<compile_context>
chip_gen: v6e
topology: v6e:2x2x1
jax: 0.10.0
libtpu: 0.0.40
codegen_flags: <defaults>
</compile_context>

<pallas_src>
import functools

import jax
import jax.numpy as jnp
from jax.experimental import pallas as pl
from jax.experimental.pallas import tpu as pltpu


_VMEM_LIMIT = 32 * 1024 * 1024  # explicit scoped-VMEM budget (safe on v5e/v6e/v7x)


def _cparams(n_par):
    return pltpu.CompilerParams(
        dimension_semantics=("parallel",) * n_par,
        vmem_limit_bytes=_VMEM_LIMIT,
    )


def _row_block(rows, max_rows=1024):
    """Pick a row-block size (multiple of 8 or the full extent).

    Prefers a divisor of `rows` so no pad/slice round trip is needed;
    returns (block_rows, padded_rows).
    """
    if rows <= max_rows:
        return rows, rows
    for cand in (1024, 512, 384, 256, 128, 64, 32, 16, 8):
        if cand <= max_rows and rows % cand == 0:
            return cand, rows
    br = max(8, (min(max_rows, 256) // 8) * 8)
    return br, pl.cdiv(rows, br) * br


# ------------------------- matmul (+bias, +GELU) kernel -----------------------

def _matmul_kernel(act, x_ref, w_ref, b_ref, o_ref):
    y = jnp.dot(x_ref[...], w_ref[...], preferred_element_type=jnp.float32)
    y = y + b_ref[...]
    if act == "gelu":
        # exact (erf) GELU -- matches torch.nn.GELU() default
        y = 0.5 * y * (1.0 + jax.lax.erf(y * 0.7071067811865476))
    o_ref[...] = y.astype(o_ref.dtype)


def matmul_bias(x, w, b, act="none"):
    """act(x @ w + b); MXU matmul, rows tiled 512-1024 with a parallel grid."""
    m, k = x.shape
    n = w.shape[1]
    bm, mp = _row_block(m)
    if mp != m:
        x = jnp.pad(x, ((0, mp - m), (0, 0)))
    out = pl.pallas_call(
        functools.partial(_matmul_kernel, act),
        out_shape=jax.ShapeDtypeStruct((mp, n), jnp.float32),
        grid=(mp // bm,),
        in_specs=[
            pl.BlockSpec((bm, k), lambda i: (i, 0)),
            pl.BlockSpec((k, n), lambda i: (0, 0)),
            pl.BlockSpec((1, n), lambda i: (0, 0)),
        ],
        out_specs=pl.BlockSpec((bm, n), lambda i: (i, 0)),
        compiler_params=_cparams(1),
    )(x, w, b.reshape(1, n))
    return out if mp == m else out[:m]


# ------------------ shifted-view window reductions (VPU) -----------------------

def _wmax_kernel(v_ref, o_ref):
    o_ref[...] = jnp.max(v_ref[...], axis=0)


def _wvar_kernel(v_ref, o_ref):
    v = v_ref[...]
    kk = v.shape[0]
    mean = jnp.mean(v, axis=0)                 # two-pass mean/deviation (f32)
    d = v - mean[None, :, :]
    o_ref[...] = jnp.sum(d * d, axis=0) * (1.0 / float(kk - 1))  # unbiased


def _window_reduce(views, kind):
    """views: (k*k, R, L) stacked shifted windows; reduce over axis 0."""
    kk, r, l = views.shape
    max_rows = min(2048, max(8, (4 * 1024 * 1024) // (kk * l * 4)))
    br, rp = _row_block(r, max_rows)
    if rp != r:
        views = jnp.pad(views, ((0, 0), (0, rp - r), (0, 0)))
    kernel = _wmax_kernel if kind == "max" else _wvar_kernel
    out = pl.pallas_call(
        kernel,
        out_shape=jax.ShapeDtypeStruct((rp, l), jnp.float32),
        grid=(rp // br,),
        in_specs=[pl.BlockSpec((kk, br, l), lambda i: (0, i, 0))],
        out_specs=pl.BlockSpec((br, l), lambda i: (i, 0)),
        compiler_params=_cparams(1),
    )(views)
    return out if rp == r else out[:r]


def _stack_shifted_views(t, k, stride):
    # t: (N, Hp, Wp, C) already padded -> (k*k, N*OH, OW*C) plus (OH, OW)
    # TODO(synk): views are staged through HBM (cheap at this downsampled
    # stage); a fully in-kernel strided-window reduction would need multi-dim
    # strided dynamic slices inside the kernel.
    n, hp, wp, c = t.shape
    oh = (hp - k) // stride + 1
    ow = (wp - k) // stride + 1
    views = []
    for dy in range(k):
        for dx in range(k):
            views.append(jax.lax.slice(
                t, (0, dy, dx, 0),
                (n, dy + stride * (oh - 1) + 1, dx + stride * (ow - 1) + 1, c),
                (1, stride, stride, 1)))
    stacked = jnp.stack(views, axis=0).reshape(k * k, n * oh, ow * c)
    return stacked, oh, ow


def maxpool2d(t, k, stride, pad):
    n, _, _, c = t.shape
    if pad > 0:  # MaxPool2d padding never wins -> -inf
        t = jnp.pad(t, ((0, 0), (pad, pad), (pad, pad), (0, 0)),
                    mode="constant", constant_values=-jnp.inf)
    views, oh, ow = _stack_shifted_views(t, k, stride)
    return _window_reduce(views, "max").reshape(n, oh, ow, c)


def local_variance(t, k, pad, stride=3):
    # get_local_weights: reflect pad, unfold(k, step=3), unbiased variance
    n, _, _, c = t.shape
    t = jnp.pad(t, ((0, 0), (pad, pad), (pad, pad), (0, 0)), mode="reflect")
    views, oh, ow = _stack_shifted_views(t, k, stride)
    return _window_reduce(views, "var").reshape(n, oh, ow, c)


# ----------------------------- conv (im2col) glue ------------------------------

def _extract_patches(t, k, stride):
    n, h, w, c = t.shape
    oh = (h - k) // stride + 1
    ow = (w - k) // stride + 1
    rows = []
    for dy in range(k):
        cols = []
        for dx in range(k):
            cols.append(t[:, dy:dy + stride * (oh - 1) + 1:stride,
                          dx:dx + stride * (ow - 1) + 1:stride, :])
        rows.append(jnp.stack(cols, axis=3))
    return jnp.stack(rows, axis=3)            # (n, oh, ow, k, k, c)


def _w_to_mat(w_pt):                          # (Cout, Cin, kh, kw) -> (kh*kw*Cin, Cout)
    cout, cin, kh, kw = w_pt.shape
    return jnp.transpose(w_pt, (2, 3, 1, 0)).reshape(kh * kw * cin, cout)


def conv2d(t, w_pt, b, stride=1, pad=0, act="none"):
    cout, cin, kh, kw = w_pt.shape
    if pad > 0:
        t = jnp.pad(t, ((0, 0), (pad, pad), (pad, pad), (0, 0)), mode="reflect")
    n = t.shape[0]
    if kh == 1 and kw == 1 and stride == 1:
        h, w = t.shape[1], t.shape[2]
        y = matmul_bias(t.reshape(n * h * w, cin), w_pt[:, :, 0, 0].T, b, act)
        return y.reshape(n, h, w, cout)
    patches = _extract_patches(t, kh, stride)
    oh, ow = patches.shape[1], patches.shape[2]
    y = matmul_bias(patches.reshape(n * oh * ow, kh * kw * cin), _w_to_mat(w_pt), b, act)
    return y.reshape(n, oh, ow, cout)


def conv2_batched(c1, ws, bs):
    """Four 3x3/stride-2/reflect convs sharing one input: one im2col, one matmul."""
    n, _, _, f = c1.shape
    t = jnp.pad(c1, ((0, 0), (1, 1), (1, 1), (0, 0)), mode="reflect")
    patches = _extract_patches(t, 3, 2)
    oh, ow = patches.shape[1], patches.shape[2]
    xmat = patches.reshape(n * oh * ow, 9 * f)
    wcat = jnp.concatenate([_w_to_mat(w) for w in ws], axis=1)   # (9f, 4f)
    bcat = jnp.concatenate(bs, axis=0)
    y = matmul_bias(xmat, wcat, bcat).reshape(n, oh, ow, 4 * f)
    return [y[..., i * f:(i + 1) * f] for i in range(4)]


# ---------------- fused bilinear upsample of the 3 branches + sum --------------

def _bilinear_matrix(out_size, in_size):
    # weights of torch F.interpolate(mode='bilinear', align_corners=False)
    scale = in_size / out_size
    dst = jnp.arange(out_size, dtype=jnp.float32)
    src = jnp.maximum((dst + 0.5) * scale - 0.5, 0.0)
    i0 = jnp.minimum(jnp.floor(src).astype(jnp.int32), in_size - 1)
    i1 = jnp.minimum(i0 + 1, in_size - 1)
    w1 = src - i0.astype(jnp.float32)
    w0 = 1.0 - w1
    a = jnp.zeros((out_size, in_size), jnp.float32)
    r = jnp.arange(out_size)
    a = a.at[r, i0].add(w0)
    a = a.at[r, i1].add(w1)
    return a


def _width_kron(aw, f):
    # K[(w,c),(ow,c')] = Aw[ow,w] * delta_{c,c'} so width-resize with channel
    # passenger becomes a single 2-D matmul keeping W*f in the lane dim.
    ow, w = aw.shape
    eye = jnp.eye(f, dtype=jnp.float32)
    return (aw.T[:, None, :, None] * eye[None, :, None, :]).reshape(w * f, ow * f)


def _upsum_kernel(v0, v1, v2, k0, k1, k2, a0, a1, a2, o_ref):
    def branch(v_ref, k_ref, a_ref):
        t1 = jnp.dot(v_ref[0], k_ref[...], preferred_element_type=jnp.float32)
        return jnp.dot(a_ref[...], t1, preferred_element_type=jnp.float32)
    s = branch(v0, k0, a0) + branch(v1, k1, a1) + branch(v2, k2, a2)
    o_ref[...] = s[None, :, :]


def _choose_rowblock(h):
    if h <= 256:
        return h
    for c in (256, 128, 64, 32, 16, 8):
        if h % c == 0:
            return c
    return h


def upsample_sum(vs, out_h, out_w):
    """sum_i bilinear_resize(vs[i] -> (out_h,out_w)): one kernel, 2 dots/branch."""
    n, _, _, f = vs[0].shape
    v_flat, kmats, amats = [], [], []
    for v in vs:
        hi, wi = v.shape[1], v.shape[2]
        v_flat.append(v.reshape(n, hi, wi * f))
        kmats.append(_width_kron(_bilinear_matrix(out_w, wi), f))
        amats.append(_bilinear_matrix(out_h, hi))
    bh = _choose_rowblock(out_h)
    in_specs = (
        [pl.BlockSpec((1,) + v.shape[1:], lambda i, r: (i, 0, 0)) for v in v_flat]
        + [pl.BlockSpec(k.shape, lambda i, r: (0, 0)) for k in kmats]
        + [pl.BlockSpec((bh, a.shape[1]), lambda i, r: (r, 0)) for a in amats]
    )
    out = pl.pallas_call(
        _upsum_kernel,
        out_shape=jax.ShapeDtypeStruct((n, out_h, out_w * f), jnp.float32),
        grid=(n, out_h // bh),
        in_specs=in_specs,
        out_specs=pl.BlockSpec((1, bh, out_w * f), lambda i, r: (i, r, 0)),
        compiler_params=_cparams(2),
    )(*v_flat, *kmats, *amats)
    return out.reshape(n, out_h, out_w, f)


# --------------------- fused conv4 + conv_f-path + sigmoid gate ----------------

def _gate_kernel(s_ref, x_ref, w4_ref, wcf_ref, b_ref, o_ref):
    x = x_ref[...]
    c4 = jnp.dot(s_ref[...], w4_ref[...], preferred_element_type=jnp.float32)
    c4 = c4 + jnp.dot(x, wcf_ref[...], preferred_element_type=jnp.float32)
    c4 = c4 + b_ref[...]
    o_ref[...] = x * jax.nn.sigmoid(c4)


def fused_gate(s, x_flat, w4, wcf, bvec):
    """x * sigmoid(s @ W4 + x @ (W1 Wf W4) + b);  cf never hits HBM."""
    m, f = s.shape
    c = x_flat.shape[1]
    bm, mp = _row_block(m)
    if mp != m:
        s = jnp.pad(s, ((0, mp - m), (0, 0)))
        x_flat = jnp.pad(x_flat, ((0, mp - m), (0, 0)))
    out = pl.pallas_call(
        _gate_kernel,
        out_shape=jax.ShapeDtypeStruct((mp, c), jnp.float32),
        grid=(mp // bm,),
        in_specs=[
            pl.BlockSpec((bm, f), lambda i: (i, 0)),
            pl.BlockSpec((bm, c), lambda i: (i, 0)),
            pl.BlockSpec((f, c), lambda i: (0, 0)),
            pl.BlockSpec((c, c), lambda i: (0, 0)),
            pl.BlockSpec((1, c), lambda i: (0, 0)),
        ],
        out_specs=pl.BlockSpec((bm, c), lambda i: (i, 0)),
        compiler_params=_cparams(1),
    )(s, x_flat, w4, wcf, bvec.reshape(1, c))
    return out if mp == m else out[:m]


# ------------------------------------ ESA --------------------------------------

def init_esa_params(key, num_feat):
    f = num_feat // 4
    shapes = {
        "conv1": (f, num_feat, 1, 1),
        "conv_f": (f, f, 1, 1),
        "conv2_0": (f, f, 3, 3), "conv2_1": (f, f, 3, 3),
        "conv2_2": (f, f, 3, 3), "conv2_3": (f, f, 3, 3),
        "conv_max_0": (f, f, 3, 3), "conv_max_1": (f, f, 3, 3), "conv_max_2": (f, f, 3, 3),
        "conv3_0": (f, f, 3, 3), "conv3_1": (f, f, 3, 3), "conv3_2": (f, f, 3, 3),
        "conv4": (num_feat, f, 1, 1),
    }
    params = {}
    for name, shp in shapes.items():
        key, kw, kb = jax.random.split(key, 3)
        params[name + "_w"] = 0.1 * jax.random.normal(kw, shp, jnp.float32)
        params[name + "_b"] = 0.05 * jax.random.normal(kb, (shp[0],), jnp.float32)
    return params


def esa_forward(x_nchw, p):
    n, c, h, w = x_nchw.shape
    f = c // 4
    x = jnp.transpose(x_nchw, (0, 2, 3, 1)).astype(jnp.float32)   # NHWC

    c1_ = conv2d(x, p["conv1_w"], p["conv1_b"])                   # 1x1 C->f

    # four stride-2 reflect-pad 3x3 convs batched into one MXU matmul
    t0, t1, t2, t3 = conv2_batched(
        c1_,
        [p["conv2_0_w"], p["conv2_1_w"], p["conv2_2_w"], p["conv2_3_w"]],
        [p["conv2_0_b"], p["conv2_1_b"], p["conv2_2_b"], p["conv2_3_b"]])

    c1_0 = maxpool2d(t0, 3, 3, 1)
    c1_1 = maxpool2d(t1, 5, 3, 0)
    c1_2 = maxpool2d(t2, 7, 3, 1)
    c1_3 = local_variance(t3, 7, 1)

    v0 = conv2d(conv2d(c1_0, p["conv_max_0_w"], p["conv_max_0_b"], act="gelu"),
                p["conv3_0_w"], p["conv3_0_b"])
    v1 = conv2d(conv2d(c1_1, p["conv_max_1_w"], p["conv_max_1_b"], act="gelu"),
                p["conv3_1_w"], p["conv3_1_b"])
    v2 = conv2d(conv2d(c1_2 + c1_3, p["conv_max_2_w"], p["conv_max_2_b"], act="gelu"),
                p["conv3_2_w"], p["conv3_2_b"])

    # fused bilinear upsample of all three branches + their sum (one kernel)
    s = upsample_sum([v0, v1, v2], h, w)                          # (n, h, w, f)

    # conv4(conv_f(conv1(x))) is a 1x1 conv of x with W1 @ Wf @ W4 (folded,
    # computed once at highest precision), so cf is never materialized.
    hi = jax.lax.Precision.HIGHEST
    w1 = p["conv1_w"][:, :, 0, 0].T        # (C, f)
    wf = p["conv_f_w"][:, :, 0, 0].T       # (f, f)
    w4 = p["conv4_w"][:, :, 0, 0].T        # (f, C)
    wcf = jnp.dot(jnp.dot(w1, wf, precision=hi), w4, precision=hi)
    bcf = jnp.dot(jnp.dot(p["conv1_b"], wf, precision=hi) + p["conv_f_b"],
                  w4, precision=hi) + p["conv4_b"]

    m = n * h * w
    out = fused_gate(s.reshape(m, f), x.reshape(m, c), w4, wcf, bcf)
    return jnp.transpose(out.reshape(n, h, w, c), (0, 3, 1, 2))   # NCHW


if __name__ == "__main__":
    key = jax.random.PRNGKey(0)
    kx, kp = jax.random.split(key)
    num_feat = 8                      # f = num_feat // 4 = 2
    N, H, W = 2, 48, 48               # 48 keeps every downsampled stage valid
    x = jax.random.normal(kx, (N, num_feat, H, W), jnp.float32)
    params = init_esa_params(kp, num_feat)

    fwd = jax.jit(esa_forward)
    out = fwd(x, params)
    jax.block_until_ready(out)
    assert out.shape == (N, num_feat, H, W) and out.dtype == jnp.float32
    assert bool(jnp.all(jnp.isfinite(out)))
    print("KERNEL_OK")
</pallas_src>

<mosaic_0001>
module attributes {stable_mosaic.version = 11 : i64} {
  func.func private @main(%arg0: i32) attributes {dimension_semantics = [#tpu.dimension_semantics<core_parallel>], iteration_bounds = array<i64: 2>, tpu.core_type = #tpu.core_type<sc_scalar_subcore>, window_params = []} {
    return
  }
}

module attributes {stable_mosaic.version = 11 : i64} {
  func.func private @main(%arg0: i32) attributes {dimension_semantics = [#tpu.dimension_semantics<core_parallel>], iteration_bounds = array<i64: 2>, tpu.core_type = #tpu.core_type<sc_scalar_subcore>, window_params = []} {
    return
  }
}

module attributes {stable_mosaic.version = 11 : i64} {
  func.func @_matmul_kernel(%arg0: i32, %arg1: memref<512x8xf32, #tpu.memory_space<vmem>>, %arg2: memref<8x2xf32, #tpu.memory_space<vmem>>, %arg3: memref<1x2xf32, #tpu.memory_space<vmem>>, %arg4: memref<512x2xf32, #tpu.memory_space<vmem>>) attributes {dimension_semantics = [#tpu.dimension_semantics<parallel>], iteration_bounds = array<i64: 9>, scalar_prefetch = 0 : i64, scratch_operands = 0 : i64, tpu.core_type = #tpu.core_type<tc>, window_params = [{transform_indices = @transform_0, window_bounds = array<i64: 512, 8>}, {pipeline_mode = #tpu.pipeline_mode<synchronous>, transform_indices = @transform_1, window_bounds = array<i64: 8, 2>}, {pipeline_mode = #tpu.pipeline_mode<synchronous>, transform_indices = @transform_2, window_bounds = array<i64: 1, 2>}, {transform_indices = @transform_3, window_bounds = array<i64: 512, 2>}]} {
    %c0 = arith.constant 0 : index
    %c0_0 = arith.constant 0 : index
    %0 = vector.load %arg1[%c0, %c0_0] : memref<512x8xf32, #tpu.memory_space<vmem>>, vector<512x8xf32>
    %c0_1 = arith.constant 0 : index
    %c0_2 = arith.constant 0 : index
    %1 = vector.load %arg2[%c0_1, %c0_2] : memref<8x2xf32, #tpu.memory_space<vmem>>, vector<8x2xf32>
    %cst = arith.constant dense<0.000000e+00> : vector<512x2xf32>
    %2 = tpu.matmul %0, %1, %cst {dimension_numbers = #tpu.dot_dimension_numbers<[1], [0], [0], [1], [0, 0, 1, 1], [], []>} : vector<512x8xf32>, vector<8x2xf32>, vector<512x2xf32> -> vector<512x2xf32>
    %c0_3 = arith.constant 0 : index
    %c0_4 = arith.constant 0 : index
    %3 = vector.load %arg3[%c0_3, %c0_4] : memref<1x2xf32, #tpu.memory_space<vmem>>, vector<1x2xf32>
    %4 = vector.broadcast %3 : vector<1x2xf32> to vector<512x2xf32>
    %5 = arith.addf %2, %4 : vector<512x2xf32>
    %c0_5 = arith.constant 0 : index
    %c0_6 = arith.constant 0 : index
    %6 = vector.load %arg4[%c0_5, %c0_6] : memref<512x2xf32, #tpu.memory_space<vmem>>, vector<512x2xf32>
    tpu.vector_store %arg4[%c0_5, %c0_6], %5 {strides = array<i32>} : memref<512x2xf32, #tpu.memory_space<vmem>>, vector<512x2xf32>,
    return
  }
  func.func @transform_0(%arg0: i32) -> (i32, i32) {
    %c0_i32 = arith.constant 0 : i32
    %c0_i32_0 = arith.constant 0 : i32
    return %arg0, %c0_i32 : i32, i32
  }
  func.func @transform_1(%arg0: i32) -> (i32, i32) {
    %c0_i32 = arith.constant 0 : i32
    %c0_i32_0 = arith.constant 0 : i32
    %c0_i32_1 = arith.constant 0 : i32
    return %c0_i32, %c0_i32_0 : i32, i32
  }
  func.func @transform_2(%arg0: i32) -> (i32, i32) {
    %c0_i32 = arith.constant 0 : i32
    %c0_i32_0 = arith.constant 0 : i32
    %c0_i32_1 = arith.constant 0 : i32
    return %c0_i32, %c0_i32_0 : i32, i32
  }
  func.func @transform_3(%arg0: i32) -> (i32, i32) {
    %c0_i32 = arith.constant 0 : i32
    %c0_i32_0 = arith.constant 0 : i32
    return %arg0, %c0_i32 : i32, i32
  }
}

module attributes {stable_mosaic.version = 11 : i64} {
  func.func @_matmul_kernel(%arg0: i32, %arg1: memref<384x18xf32, #tpu.memory_space<vmem>>, %arg2: memref<18x8xf32, #tpu.memory_space<vmem>>, %arg3: memref<1x8xf32, #tpu.memory_space<vmem>>, %arg4: memref<384x8xf32, #tpu.memory_space<vmem>>) attributes {dimension_semantics = [#tpu.dimension_semantics<parallel>], iteration_bounds = array<i64: 3>, scalar_prefetch = 0 : i64, scratch_operands = 0 : i64, tpu.core_type = #tpu.core_type<tc>, window_params = [{transform_indices = @transform_0, window_bounds = array<i64: 384, 18>}, {pipeline_mode = #tpu.pipeline_mode<synchronous>, transform_indices = @transform_1, window_bounds = array<i64: 18, 8>}, {pipeline_mode = #tpu.pipeline_mode<synchronous>, transform_indices = @transform_2, window_bounds = array<i64: 1, 8>}, {transform_indices = @transform_3, window_bounds = array<i64: 384, 8>}]} {
    %c0 = arith.constant 0 : index
    %c0_0 = arith.constant 0 : index
    %0 = vector.load %arg1[%c0, %c0_0] : memref<384x18xf32, #tpu.memory_space<vmem>>, vector<384x18xf32>
    %c0_1 = arith.constant 0 : index
    %c0_2 = arith.constant 0 : index
    %1 = vector.load %arg2[%c0_1, %c0_2] : memref<18x8xf32, #tpu.memory_space<vmem>>, vector<18x8xf32>
    %cst = arith.constant dense<0.000000e+00> : vector<384x8xf32>
    %2 = tpu.matmul %0, %1, %cst {dimension_numbers = #tpu.dot_dimension_numbers<[1], [0], [0], [1], [0, 0, 1, 1], [], []>} : vector<384x18xf32>, vector<18x8xf32>, vector<384x8xf32> -> vector<384x8xf32>
    %c0_3 = arith.constant 0 : index
    %c0_4 = arith.constant 0 : index
    %3 = vector.load %arg3[%c0_3, %c0_4] : memref<1x8xf32, #tpu.memory_space<vmem>>, vector<1x8xf32>
    %4 = vector.broadcast %3 : vector<1x8xf32> to vector<384x8xf32>
    %5 = arith.addf %2, %4 : vector<384x8xf32>
    %c0_5 = arith.constant 0 : index
    %c0_6 = arith.constant 0 : index
    %6 = vector.load %arg4[%c0_5, %c0_6] : memref<384x8xf32, #tpu.memory_space<vmem>>, vector<384x8xf32>
    tpu.vector_store %arg4[%c0_5, %c0_6], %5 {strides = array<i32>} : memref<384x8xf32, #tpu.memory_space<vmem>>, vector<384x8xf32>,
    return
  }
  func.func @transform_0(%arg0: i32) -> (i32, i32) {
    %c0_i32 = arith.constant 0 : i32
    %c0_i32_0 = arith.constant 0 : i32
    return %arg0, %c0_i32 : i32, i32
  }
  func.func @transform_1(%arg0: i32) -> (i32, i32) {
    %c0_i32 = arith.constant 0 : i32
    %c0_i32_0 = arith.constant 0 : i32
    %c0_i32_1 = arith.constant 0 : i32
    return %c0_i32, %c0_i32_0 : i32, i32
  }
  func.func @transform_2(%arg0: i32) -> (i32, i32) {
    %c0_i32 = arith.constant 0 : i32
    %c0_i32_0 = arith.constant 0 : i32
    %c0_i32_1 = arith.constant 0 : i32
    return %c0_i32, %c0_i32_0 : i32, i32
  }
  func.func @transform_3(%arg0: i32) -> (i32, i32) {
    %c0_i32 = arith.constant 0 : i32
    %c0_i32_0 = arith.constant 0 : i32
    return %arg0, %c0_i32 : i32, i32
  }
}

module attributes {stable_mosaic.version = 11 : i64} {
  func.func @_wmax_kernel(%arg0: i32, %arg1: memref<9x16x16xf32, #tpu.memory_space<vmem>>, %arg2: memref<16x16xf32, #tpu.memory_space<vmem>>) attributes {dimension_semantics = [#tpu.dimension_semantics<parallel>], iteration_bounds = array<i64: 1>, scalar_prefetch = 0 : i64, scratch_operands = 0 : i64, tpu.core_type = #tpu.core_type<tc>, window_params = [{transform_indices = @transform_0, window_bounds = array<i64: 9, 16, 16>}, {transform_indices = @transform_1, window_bounds = array<i64: 16, 16>}]} {
    %c0 = arith.constant 0 : index
    %c0_0 = arith.constant 0 : index
    %c0_1 = arith.constant 0 : index
    %0 = vector.load %arg1[%c0, %c0_0, %c0_1] : memref<9x16x16xf32, #tpu.memory_space<vmem>>, vector<9x16x16xf32>
    %cst = arith.constant dense<0xFF800000> : vector<16x16xf32>
    %1 = vector.multi_reduction <maximumf>, %0, %cst [0] : vector<9x16x16xf32> to vector<16x16xf32>
    %c0_2 = arith.constant 0 : index
    %c0_3 = arith.constant 0 : index
    %2 = vector.load %arg2[%c0_2, %c0_3] : memref<16x16xf32, #tpu.memory_space<vmem>>, vector<16x16xf32>
    tpu.vector_store %arg2[%c0_2, %c0_3], %1 {strides = array<i32>} : memref<16x16xf32, #tpu.memory_space<vmem>>, vector<16x16xf32>,
    return
  }
  func.func @transform_0(%arg0: i32) -> (i32, i32, i32) {
    %c0_i32 = arith.constant 0 : i32
    %c0_i32_0 = arith.constant 0 : i32
    %c0_i32_1 = arith.constant 0 : i32
    return %c0_i32, %arg0, %c0_i32_0 : i32, i32, i32
  }
  func.func @transform_1(%arg0: i32) -> (i32, i32) {
    %c0_i32 = arith.constant 0 : i32
    %c0_i32_0 = arith.constant 0 : i32
    return %arg0, %c0_i32 : i32, i32
  }
}

module attributes {stable_mosaic.version = 11 : i64} {
  func.func @_matmul_kernel(%arg0: i32, %arg1: memref<72x18xf32, #tpu.memory_space<vmem>>, %arg2: memref<18x2xf32, #tpu.memory_space<vmem>>, %arg3: memref<1x2xf32, #tpu.memory_space<vmem>>, %arg4: memref<72x2xf32, #tpu.memory_space<vmem>>) attributes {dimension_semantics = [#tpu.dimension_semantics<parallel>], iteration_bounds = array<i64: 1>, scalar_prefetch = 0 : i64, scratch_operands = 0 : i64, tpu.core_type = #tpu.core_type<tc>, window_params = [{transform_indices = @transform_0, window_bounds = array<i64: 72, 18>}, {pipeline_mode = #tpu.pipeline_mode<synchronous>, transform_indices = @transform_1, window_bounds = array<i64: 18, 2>}, {pipeline_mode = #tpu.pipeline_mode<synchronous>, transform_indices = @transform_2, window_bounds = array<i64: 1, 2>}, {transform_indices = @transform_3, window_bounds = array<i64: 72, 2>}]} {
    %c0 = arith.constant 0 : index
    %c0_0 = arith.constant 0 : index
    %0 = vector.load %arg1[%c0, %c0_0] : memref<72x18xf32, #tpu.memory_space<vmem>>, vector<72x18xf32>
    %c0_1 = arith.constant 0 : index
    %c0_2 = arith.constant 0 : index
    %1 = vector.load %arg2[%c0_1, %c0_2] : memref<18x2xf32, #tpu.memory_space<vmem>>, vector<18x2xf32>
    %cst = arith.constant dense<0.000000e+00> : vector<72x2xf32>
    %2 = tpu.matmul %0, %1, %cst {dimension_numbers = #tpu.dot_dimension_numbers<[1], [0], [0], [1], [0, 0, 1, 1], [], []>} : vector<72x18xf32>, vector<18x2xf32>, vector<72x2xf32> -> vector<72x2xf32>
    %c0_3 = arith.constant 0 : index
    %c0_4 = arith.constant 0 : index
    %3 = vector.load %arg3[%c0_3, %c0_4] : memref<1x2xf32, #tpu.memory_space<vmem>>, vector<1x2xf32>
    %4 = vector.broadcast %3 : vector<1x2xf32> to vector<72x2xf32>
    %5 = arith.addf %2, %4 : vector<72x2xf32>
    %cst_5 = arith.constant 5.000000e-01 : f32
    %6 = vector.broadcast %cst_5 : f32 to vector<72x2xf32>
    %7 = arith.mulf %6, %5 : vector<72x2xf32>
    %cst_6 = arith.constant 0.707106769 : f32
    %8 = vector.broadcast %cst_6 : f32 to vector<72x2xf32>
    %9 = arith.mulf %5, %8 : vector<72x2xf32>
    %10 = math.erf %9 : vector<72x2xf32>
    %cst_7 = arith.constant 1.000000e+00 : f32
    %11 = vector.broadcast %cst_7 : f32 to vector<72x2xf32>
    %12 = arith.addf %11, %10 : vector<72x2xf32>
    %13 = arith.mulf %7, %12 : vector<72x2xf32>
    %c0_8 = arith.constant 0 : index
    %c0_9 = arith.constant 0 : index
    %14 = vector.load %arg4[%c0_8, %c0_9] : memref<72x2xf32, #tpu.memory_space<vmem>>, vector<72x2xf32>
    tpu.vector_store %arg4[%c0_8, %c0_9], %13 {strides = array<i32>} : memref<72x2xf32, #tpu.memory_space<vmem>>, vector<72x2xf32>,
    return
  }
  func.func @transform_0(%arg0: i32) -> (i32, i32) {
    %c0_i32 = arith.constant 0 : i32
    %c0_i32_0 = arith.constant 0 : i32
    return %arg0, %c0_i32 : i32, i32
  }
  func.func @transform_1(%arg0: i32) -> (i32, i32) {
    %c0_i32 = arith.constant 0 : i32
    %c0_i32_0 = arith.constant 0 : i32
    %c0_i32_1 = arith.constant 0 : i32
    return %c0_i32, %c0_i32_0 : i32, i32
  }
  func.func @transform_2(%arg0: i32) -> (i32, i32) {
    %c0_i32 = arith.constant 0 : i32
    %c0_i32_0 = arith.constant 0 : i32
    %c0_i32_1 = arith.constant 0 : i32
    return %c0_i32, %c0_i32_0 : i32, i32
  }
  func.func @transform_3(%arg0: i32) -> (i32, i32) {
    %c0_i32 = arith.constant 0 : i32
    %c0_i32_0 = arith.constant 0 : i32
    return %arg0, %c0_i32 : i32, i32
  }
}

module attributes {stable_mosaic.version = 11 : i64} {
  func.func @_matmul_kernel(%arg0: i32, %arg1: memref<32x18xf32, #tpu.memory_space<vmem>>, %arg2: memref<18x2xf32, #tpu.memory_space<vmem>>, %arg3: memref<1x2xf32, #tpu.memory_space<vmem>>, %arg4: memref<32x2xf32, #tpu.memory_space<vmem>>) attributes {dimension_semantics = [#tpu.dimension_semantics<parallel>], iteration_bounds = array<i64: 1>, scalar_prefetch = 0 : i64, scratch_operands = 0 : i64, tpu.core_type = #tpu.core_type<tc>, window_params = [{transform_indices = @transform_0, window_bounds = array<i64: 32, 18>}, {pipeline_mode = #tpu.pipeline_mode<synchronous>, transform_indices = @transform_1, window_bounds = array<i64: 18, 2>}, {pipeline_mode = #tpu.pipeline_mode<synchronous>, transform_indices = @transform_2, window_bounds = array<i64: 1, 2>}, {transform_indices = @transform_3, window_bounds = array<i64: 32, 2>}]} {
    %c0 = arith.constant 0 : index
    %c0_0 = arith.constant 0 : index
    %0 = vector.load %arg1[%c0, %c0_0] : memref<32x18xf32, #tpu.memory_space<vmem>>, vector<32x18xf32>
    %c0_1 = arith.constant 0 : index
    %c0_2 = arith.constant 0 : index
    %1 = vector.load %arg2[%c0_1, %c0_2] : memref<18x2xf32, #tpu.memory_space<vmem>>, vector<18x2xf32>
    %cst = arith.constant dense<0.000000e+00> : vector<32x2xf32>
    %2 = tpu.matmul %0, %1, %cst {dimension_numbers = #tpu.dot_dimension_numbers<[1], [0], [0], [1], [0, 0, 1, 1], [], []>} : vector<32x18xf32>, vector<18x2xf32>, vector<32x2xf32> -> vector<32x2xf32>
    %c0_3 = arith.constant 0 : index
    %c0_4 = arith.constant 0 : index
    %3 = vector.load %arg3[%c0_3, %c0_4] : memref<1x2xf32, #tpu.memory_space<vmem>>, vector<1x2xf32>
    %4 = vector.broadcast %3 : vector<1x2xf32> to vector<32x2xf32>
    %5 = arith.addf %2, %4 : vector<32x2xf32>
    %c0_5 = arith.constant 0 : index
    %c0_6 = arith.constant 0 : index
    %6 = vector.load %arg4[%c0_5, %c0_6] : memref<32x2xf32, #tpu.memory_space<vmem>>, vector<32x2xf32>
    tpu.vector_store %arg4[%c0_5, %c0_6], %5 {strides = array<i32>} : memref<32x2xf32, #tpu.memory_space<vmem>>, vector<32x2xf32>,
    return
  }
  func.func @transform_0(%arg0: i32) -> (i32, i32) {
    %c0_i32 = arith.constant 0 : i32
    %c0_i32_0 = arith.constant 0 : i32
    return %arg0, %c0_i32 : i32, i32
  }
  func.func @transform_1(%arg0: i32) -> (i32, i32) {
    %c0_i32 = arith.constant 0 : i32
    %c0_i32_0 = arith.constant 0 : i32
    %c0_i32_1 = arith.constant 0 : i32
    return %c0_i32, %c0_i32_0 : i32, i32
  }
  func.func @transform_2(%arg0: i32) -> (i32, i32) {
    %c0_i32 = arith.constant 0 : i32
    %c0_i32_0 = arith.constant 0 : i32
    %c0_i32_1 = arith.constant 0 : i32
    return %c0_i32, %c0_i32_0 : i32, i32
  }
  func.func @transform_3(%arg0: i32) -> (i32, i32) {
    %c0_i32 = arith.constant 0 : i32
    %c0_i32_0 = arith.constant 0 : i32
    return %arg0, %c0_i32 : i32, i32
  }
}

module attributes {stable_mosaic.version = 11 : i64} {
  func.func @_wmax_kernel(%arg0: i32, %arg1: memref<25x14x14xf32, #tpu.memory_space<vmem>>, %arg2: memref<14x14xf32, #tpu.memory_space<vmem>>) attributes {dimension_semantics = [#tpu.dimension_semantics<parallel>], iteration_bounds = array<i64: 1>, scalar_prefetch = 0 : i64, scratch_operands = 0 : i64, tpu.core_type = #tpu.core_type<tc>, window_params = [{transform_indices = @transform_0, window_bounds = array<i64: 25, 14, 14>}, {transform_indices = @transform_1, window_bounds = array<i64: 14, 14>}]} {
    %c0 = arith.constant 0 : index
    %c0_0 = arith.constant 0 : index
    %c0_1 = arith.constant 0 : index
    %0 = vector.load %arg1[%c0, %c0_0, %c0_1] : memref<25x14x14xf32, #tpu.memory_space<vmem>>, vector<25x14x14xf32>
    %cst = arith.constant dense<0xFF800000> : vector<14x14xf32>
    %1 = vector.multi_reduction <maximumf>, %0, %cst [0] : vector<25x14x14xf32> to vector<14x14xf32>
    %c0_2 = arith.constant 0 : index
    %c0_3 = arith.constant 0 : index
    %2 = vector.load %arg2[%c0_2, %c0_3] : memref<14x14xf32, #tpu.memory_space<vmem>>, vector<14x14xf32>
    tpu.vector_store %arg2[%c0_2, %c0_3], %1 {strides = array<i32>} : memref<14x14xf32, #tpu.memory_space<vmem>>, vector<14x14xf32>,
    return
  }
  func.func @transform_0(%arg0: i32) -> (i32, i32, i32) {
    %c0_i32 = arith.constant 0 : i32
    %c0_i32_0 = arith.constant 0 : i32
    %c0_i32_1 = arith.constant 0 : i32
    return %c0_i32, %arg0, %c0_i32_0 : i32, i32, i32
  }
  func.func @transform_1(%arg0: i32) -> (i32, i32) {
    %c0_i32 = arith.constant 0 : i32
    %c0_i32_0 = arith.constant 0 : i32
    return %arg0, %c0_i32 : i32, i32
  }
}

module attributes {stable_mosaic.version = 11 : i64} {
  func.func @_matmul_kernel(%arg0: i32, %arg1: memref<50x18xf32, #tpu.memory_space<vmem>>, %arg2: memref<18x2xf32, #tpu.memory_space<vmem>>, %arg3: memref<1x2xf32, #tpu.memory_space<vmem>>, %arg4: memref<50x2xf32, #tpu.memory_space<vmem>>) attributes {dimension_semantics = [#tpu.dimension_semantics<parallel>], iteration_bounds = array<i64: 1>, scalar_prefetch = 0 : i64, scratch_operands = 0 : i64, tpu.core_type = #tpu.core_type<tc>, window_params = [{transform_indices = @transform_0, window_bounds = array<i64: 50, 18>}, {pipeline_mode = #tpu.pipeline_mode<synchronous>, transform_indices = @transform_1, window_bounds = array<i64: 18, 2>}, {pipeline_mode = #tpu.pipeline_mode<synchronous>, transform_indices = @transform_2, window_bounds = array<i64: 1, 2>}, {transform_indices = @transform_3, window_bounds = array<i64: 50, 2>}]} {
    %c0 = arith.constant 0 : index
    %c0_0 = arith.constant 0 : index
    %0 = vector.load %arg1[%c0, %c0_0] : memref<50x18xf32, #tpu.memory_space<vmem>>, vector<50x18xf32>
    %c0_1 = arith.constant 0 : index
    %c0_2 = arith.constant 0 : index
    %1 = vector.load %arg2[%c0_1, %c0_2] : memref<18x2xf32, #tpu.memory_space<vmem>>, vector<18x2xf32>
    %cst = arith.constant dense<0.000000e+00> : vector<50x2xf32>
    %2 = tpu.matmul %0, %1, %cst {dimension_numbers = #tpu.dot_dimension_numbers<[1], [0], [0], [1], [0, 0, 1, 1], [], []>} : vector<50x18xf32>, vector<18x2xf32>, vector<50x2xf32> -> vector<50x2xf32>
    %c0_3 = arith.constant 0 : index
    %c0_4 = arith.constant 0 : index
    %3 = vector.load %arg3[%c0_3, %c0_4] : memref<1x2xf32, #tpu.memory_space<vmem>>, vector<1x2xf32>
    %4 = vector.broadcast %3 : vector<1x2xf32> to vector<50x2xf32>
    %5 = arith.addf %2, %4 : vector<50x2xf32>
    %cst_5 = arith.constant 5.000000e-01 : f32
    %6 = vector.broadcast %cst_5 : f32 to vector<50x2xf32>
    %7 = arith.mulf %6, %5 : vector<50x2xf32>
    %cst_6 = arith.constant 0.707106769 : f32
    %8 = vector.broadcast %cst_6 : f32 to vector<50x2xf32>
    %9 = arith.mulf %5, %8 : vector<50x2xf32>
    %10 = math.erf %9 : vector<50x2xf32>
    %cst_7 = arith.constant 1.000000e+00 : f32
    %11 = vector.broadcast %cst_7 : f32 to vector<50x2xf32>
    %12 = arith.addf %11, %10 : vector<50x2xf32>
    %13 = arith.mulf %7, %12 : vector<50x2xf32>
    %c0_8 = arith.constant 0 : index
    %c0_9 = arith.constant 0 : index
    %14 = vector.load %arg4[%c0_8, %c0_9] : memref<50x2xf32, #tpu.memory_space<vmem>>, vector<50x2xf32>
    tpu.vector_store %arg4[%c0_8, %c0_9], %13 {strides = array<i32>} : memref<50x2xf32, #tpu.memory_space<vmem>>, vector<50x2xf32>,
    return
  }
  func.func @transform_0(%arg0: i32) -> (i32, i32) {
    %c0_i32 = arith.constant 0 : i32
    %c0_i32_0 = arith.constant 0 : i32
    return %arg0, %c0_i32 : i32, i32
  }
  func.func @transform_1(%arg0: i32) -> (i32, i32) {
    %c0_i32 = arith.constant 0 : i32
    %c0_i32_0 = arith.constant 0 : i32
    %c0_i32_1 = arith.constant 0 : i32
    return %c0_i32, %c0_i32_0 : i32, i32
  }
  func.func @transform_2(%arg0: i32) -> (i32, i32) {
    %c0_i32 = arith.constant 0 : i32
    %c0_i32_0 = arith.constant 0 : i32
    %c0_i32_1 = arith.constant 0 : i32
    return %c0_i32, %c0_i32_0 : i32, i32
  }
  func.func @transform_3(%arg0: i32) -> (i32, i32) {
    %c0_i32 = arith.constant 0 : i32
    %c0_i32_0 = arith.constant 0 : i32
    return %arg0, %c0_i32 : i32, i32
  }
}

module attributes {stable_mosaic.version = 11 : i64} {
  func.func @_matmul_kernel(%arg0: i32, %arg1: memref<18x18xf32, #tpu.memory_space<vmem>>, %arg2: memref<18x2xf32, #tpu.memory_space<vmem>>, %arg3: memref<1x2xf32, #tpu.memory_space<vmem>>, %arg4: memref<18x2xf32, #tpu.memory_space<vmem>>) attributes {dimension_semantics = [#tpu.dimension_semantics<parallel>], iteration_bounds = array<i64: 1>, scalar_prefetch = 0 : i64, scratch_operands = 0 : i64, tpu.core_type = #tpu.core_type<tc>, window_params = [{transform_indices = @transform_0, window_bounds = array<i64: 18, 18>}, {pipeline_mode = #tpu.pipeline_mode<synchronous>, transform_indices = @transform_1, window_bounds = array<i64: 18, 2>}, {pipeline_mode = #tpu.pipeline_mode<synchronous>, transform_indices = @transform_2, window_bounds = array<i64: 1, 2>}, {transform_indices = @transform_3, window_bounds = array<i64: 18, 2>}]} {
    %c0 = arith.constant 0 : index
    %c0_0 = arith.constant 0 : index
    %0 = vector.load %arg1[%c0, %c0_0] : memref<18x18xf32, #tpu.memory_space<vmem>>, vector<18x18xf32>
    %c0_1 = arith.constant 0 : index
    %c0_2 = arith.constant 0 : index
    %1 = vector.load %arg2[%c0_1, %c0_2] : memref<18x2xf32, #tpu.memory_space<vmem>>, vector<18x2xf32>
    %cst = arith.constant dense<0.000000e+00> : vector<18x2xf32>
    %2 = tpu.matmul %0, %1, %cst {dimension_numbers = #tpu.dot_dimension_numbers<[1], [0], [0], [1], [0, 0, 1, 1], [], []>} : vector<18x18xf32>, vector<18x2xf32>, vector<18x2xf32> -> vector<18x2xf32>
    %c0_3 = arith.constant 0 : index
    %c0_4 = arith.constant 0 : index
    %3 = vector.load %arg3[%c0_3, %c0_4] : memref<1x2xf32, #tpu.memory_space<vmem>>, vector<1x2xf32>
    %4 = vector.broadcast %3 : vector<1x2xf32> to vector<18x2xf32>
    %5 = arith.addf %2, %4 : vector<18x2xf32>
    %c0_5 = arith.constant 0 : index
    %c0_6 = arith.constant 0 : index
    %6 = vector.load %arg4[%c0_5, %c0_6] : memref<18x2xf32, #tpu.memory_space<vmem>>, vector<18x2xf32>
    tpu.vector_store %arg4[%c0_5, %c0_6], %5 {strides = array<i32>} : memref<18x2xf32, #tpu.memory_space<vmem>>, vector<18x2xf32>,
    return
  }
  func.func @transform_0(%arg0: i32) -> (i32, i32) {
    %c0_i32 = arith.constant 0 : i32
    %c0_i32_0 = arith.constant 0 : i32
    return %arg0, %c0_i32 : i32, i32
  }
  func.func @transform_1(%arg0: i32) -> (i32, i32) {
    %c0_i32 = arith.constant 0 : i32
    %c0_i32_0 = arith.constant 0 : i32
    %c0_i32_1 = arith.constant 0 : i32
    return %c0_i32, %c0_i32_0 : i32, i32
  }
  func.func @transform_2(%arg0: i32) -> (i32, i32) {
    %c0_i32 = arith.constant 0 : i32
    %c0_i32_0 = arith.constant 0 : i32
    %c0_i32_1 = arith.constant 0 : i32
    return %c0_i32, %c0_i32_0 : i32, i32
  }
  func.func @transform_3(%arg0: i32) -> (i32, i32) {
    %c0_i32 = arith.constant 0 : i32
    %c0_i32_0 = arith.constant 0 : i32
    return %arg0, %c0_i32 : i32, i32
  }
}

module attributes {stable_mosaic.version = 11 : i64} {
  func.func @_wmax_kernel(%arg0: i32, %arg1: memref<49x14x14xf32, #tpu.memory_space<vmem>>, %arg2: memref<14x14xf32, #tpu.memory_space<vmem>>) attributes {dimension_semantics = [#tpu.dimension_semantics<parallel>], iteration_bounds = array<i64: 1>, scalar_prefetch = 0 : i64, scratch_operands = 0 : i64, tpu.core_type = #tpu.core_type<tc>, window_params = [{transform_indices = @transform_0, window_bounds = array<i64: 49, 14, 14>}, {transform_indices = @transform_1, window_bounds = array<i64: 14, 14>}]} {
    %c0 = arith.constant 0 : index
    %c0_0 = arith.constant 0 : index
    %c0_1 = arith.constant 0 : index
    %0 = vector.load %arg1[%c0, %c0_0, %c0_1] : memref<49x14x14xf32, #tpu.memory_space<vmem>>, vector<49x14x14xf32>
    %cst = arith.constant dense<0xFF800000> : vector<14x14xf32>
    %1 = vector.multi_reduction <maximumf>, %0, %cst [0] : vector<49x14x14xf32> to vector<14x14xf32>
    %c0_2 = arith.constant 0 : index
    %c0_3 = arith.constant 0 : index
    %2 = vector.load %arg2[%c0_2, %c0_3] : memref<14x14xf32, #tpu.memory_space<vmem>>, vector<14x14xf32>
    tpu.vector_store %arg2[%c0_2, %c0_3], %1 {strides = array<i32>} : memref<14x14xf32, #tpu.memory_space<vmem>>, vector<14x14xf32>,
    return
  }
  func.func @transform_0(%arg0: i32) -> (i32, i32, i32) {
    %c0_i32 = arith.constant 0 : i32
    %c0_i32_0 = arith.constant 0 : i32
    %c0_i32_1 = arith.constant 0 : i32
    return %c0_i32, %arg0, %c0_i32_0 : i32, i32, i32
  }
  func.func @transform_1(%arg0: i32) -> (i32, i32) {
    %c0_i32 = arith.constant 0 : i32
    %c0_i32_0 = arith.constant 0 : i32
    return %arg0, %c0_i32 : i32, i32
  }
}

module attributes {stable_mosaic.version = 11 : i64} {
  func.func @_wvar_kernel(%arg0: i32, %arg1: memref<49x14x14xf32, #tpu.memory_space<vmem>>, %arg2: memref<14x14xf32, #tpu.memory_space<vmem>>) attributes {dimension_semantics = [#tpu.dimension_semantics<parallel>], iteration_bounds = array<i64: 1>, scalar_prefetch = 0 : i64, scratch_operands = 0 : i64, tpu.core_type = #tpu.core_type<tc>, window_params = [{transform_indices = @transform_0, window_bounds = array<i64: 49, 14, 14>}, {transform_indices = @transform_1, window_bounds = array<i64: 14, 14>}]} {
    %c0 = arith.constant 0 : index
    %c0_0 = arith.constant 0 : index
    %c0_1 = arith.constant 0 : index
    %0 = vector.load %arg1[%c0, %c0_0, %c0_1] : memref<49x14x14xf32, #tpu.memory_space<vmem>>, vector<49x14x14xf32>
    %cst = arith.constant dense<0.000000e+00> : vector<14x14xf32>
    %1 = vector.multi_reduction <add>, %0, %cst [0] : vector<49x14x14xf32> to vector<14x14xf32>
    %cst_2 = arith.constant 4.900000e+01 : f32
    %2 = vector.broadcast %cst_2 : f32 to vector<14x14xf32>
    %3 = arith.divf %1, %2 : vector<14x14xf32>
    %4 = vector.shape_cast %3 : vector<14x14xf32> to vector<1x14x14xf32>
    %5 = vector.broadcast %4 : vector<1x14x14xf32> to vector<49x14x14xf32>
    %6 = arith.subf %0, %5 : vector<49x14x14xf32>
    %7 = arith.mulf %6, %6 : vector<49x14x14xf32>
    %cst_3 = arith.constant dense<0.000000e+00> : vector<14x14xf32>
    %8 = vector.multi_reduction <add>, %7, %cst_3 [0] : vector<49x14x14xf32> to vector<14x14xf32>
    %cst_4 = arith.constant 0.020833334 : f32
    %9 = vector.broadcast %cst_4 : f32 to vector<14x14xf32>
    %10 = arith.mulf %8, %9 : vector<14x14xf32>
    %c0_5 = arith.constant 0 : index
    %c0_6 = arith.constant 0 : index
    %11 = vector.load %arg2[%c0_5, %c0_6] : memref<14x14xf32, #tpu.memory_space<vmem>>, vector<14x14xf32>
    tpu.vector_store %arg2[%c0_5, %c0_6], %10 {strides = array<i32>} : memref<14x14xf32, #tpu.memory_space<vmem>>, vector<14x14xf32>,
    return
  }
  func.func @transform_0(%arg0: i32) -> (i32, i32, i32) {
    %c0_i32 = arith.constant 0 : i32
    %c0_i32_0 = arith.constant 0 : i32
    %c0_i32_1 = arith.constant 0 : i32
    return %c0_i32, %arg0, %c0_i32_0 : i32, i32, i32
  }
  func.func @transform_1(%arg0: i32) -> (i32, i32) {
    %c0_i32 = arith.constant 0 : i32
    %c0_i32_0 = arith.constant 0 : i32
    return %arg0, %c0_i32 : i32, i32
  }
}

module attributes {stable_mosaic.version = 11 : i64} {
  func.func @_upsum_kernel(%arg0: i32, %arg1: i32, %arg2: memref<1x4x8xf32, #tpu.memory_space<vmem>>, %arg3: memref<1x3x6xf32, #tpu.memory_space<vmem>>, %arg4: memref<1x3x6xf32, #tpu.memory_space<vmem>>, %arg5: memref<8x96xf32, #tpu.memory_space<vmem>>, %arg6: memref<6x96xf32, #tpu.memory_space<vmem>>, %arg7: memref<6x96xf32, #tpu.memory_space<vmem>>, %arg8: memref<48x4xf32, #tpu.memory_space<vmem>>, %arg9: memref<48x3xf32, #tpu.memory_space<vmem>>, %arg10: memref<48x3xf32, #tpu.memory_space<vmem>>, %arg11: memref<1x48x96xf32, #tpu.memory_space<vmem>>) attributes {dimension_semantics = [#tpu.dimension_semantics<parallel>, #tpu.dimension_semantics<parallel>], iteration_bounds = array<i64: 2, 1>, scalar_prefetch = 0 : i64, scratch_operands = 0 : i64, tpu.core_type = #tpu.core_type<tc>, window_params = [{transform_indices = @transform_0, window_bounds = array<i64: 1, 4, 8>}, {transform_indices = @transform_1, window_bounds = array<i64: 1, 3, 6>}, {transform_indices = @transform_2, window_bounds = array<i64: 1, 3, 6>}, {pipeline_mode = #tpu.pipeline_mode<synchronous>, transform_indices = @transform_3, window_bounds = array<i64: 8, 96>}, {pipeline_mode = #tpu.pipeline_mode<synchronous>, transform_indices = @transform_4, window_bounds = array<i64: 6, 96>}, {pipeline_mode = #tpu.pipeline_mode<synchronous>, transform_indices = @transform_5, window_bounds = array<i64: 6, 96>}, {transform_indices = @transform_6, window_bounds = array<i64: 48, 4>}, {transform_indices = @transform_7, window_bounds = array<i64: 48, 3>}, {transform_indices = @transform_8, window_bounds = array<i64: 48, 3>}, {transform_indices = @transform_9, window_bounds = array<i64: 1, 48, 96>}]} {
    %c0 = arith.constant 0 : index
    %c0_0 = arith.constant 0 : index
    %c0_1 = arith.constant 0 : index
    %0 = vector.load %arg2[%c0, %c0_0, %c0_1] : memref<1x4x8xf32, #tpu.memory_space<vmem>>, vector<1x4x8xf32>
    %1 = vector.shape_cast %0 : vector<1x4x8xf32> to vector<4x8xf32>
    %c0_2 = arith.constant 0 : index
    %c0_3 = arith.constant 0 : index
    %2 = vector.load %arg5[%c0_2, %c0_3] : memref<8x96xf32, #tpu.memory_space<vmem>>, vector<8x96xf32>
    %cst = arith.constant dense<0.000000e+00> : vector<4x96xf32>
    %3 = tpu.matmul %1, %2, %cst {dimension_numbers = #tpu.dot_dimension_numbers<[1], [0], [0], [1], [0, 0, 1, 1], [], []>} : vector<4x8xf32>, vector<8x96xf32>, vector<4x96xf32> -> vector<4x96xf32>
    %c0_4 = arith.constant 0 : index
    %c0_5 = arith.constant 0 : index
    %4 = vector.load %arg8[%c0_4, %c0_5] : memref<48x4xf32, #tpu.memory_space<vmem>>, vector<48x4xf32>
    %cst_6 = arith.constant dense<0.000000e+00> : vector<48x96xf32>
    %5 = tpu.matmul %4, %3, %cst_6 {dimension_numbers = #tpu.dot_dimension_numbers<[1], [0], [0], [1], [0, 0, 1, 1], [], []>} : vector<48x4xf32>, vector<4x96xf32>, vector<48x96xf32> -> vector<48x96xf32>
    %c0_7 = arith.constant 0 : index
    %c0_8 = arith.constant 0 : index
    %c0_9 = arith.constant 0 : index
    %6 = vector.load %arg3[%c0_7, %c0_8, %c0_9] : memref<1x3x6xf32, #tpu.memory_space<vmem>>, vector<1x3x6xf32>
    %7 = vector.shape_cast %6 : vector<1x3x6xf32> to vector<3x6xf32>
    %c0_10 = arith.constant 0 : index
    %c0_11 = arith.constant 0 : index
    %8 = vector.load %arg6[%c0_10, %c0_11] : memref<6x96xf32, #tpu.memory_space<vmem>>, vector<6x96xf32>
    %cst_12 = arith.constant dense<0.000000e+00> : vector<3x96xf32>
    %9 = tpu.matmul %7, %8, %cst_12 {dimension_numbers = #tpu.dot_dimension_numbers<[1], [0], [0], [1], [0, 0, 1, 1], [], []>} : vector<3x6xf32>, vector<6x96xf32>, vector<3x96xf32> -> vector<3x96xf32>
    %c0_13 = arith.constant 0 : index
    %c0_14 = arith.constant 0 : index
    %10 = vector.load %arg9[%c0_13, %c0_14] : memref<48x3xf32, #tpu.memory_space<vmem>>, vector<48x3xf32>
    %cst_15 = arith.constant dense<0.000000e+00> : vector<48x96xf32>
    %11 = tpu.matmul %10, %9, %cst_15 {dimension_numbers = #tpu.dot_dimension_numbers<[1], [0], [0], [1], [0, 0, 1, 1], [], []>} : vector<48x3xf32>, vector<3x96xf32>, vector<48x96xf32> -> vector<48x96xf32>
    %12 = arith.addf %5, %11 : vector<48x96xf32>
    %c0_16 = arith.constant 0 : index
    %c0_17 = arith.constant 0 : index
    %c0_18 = arith.constant 0 : index
    %13 = vector.load %arg4[%c0_16, %c0_17, %c0_18] : memref<1x3x6xf32, #tpu.memory_space<vmem>>, vector<1x3x6xf32>
    %14 = vector.shape_cast %13 : vector<1x3x6xf32> to vector<3x6xf32>
    %c0_19 = arith.constant 0 : index
    %c0_20 = arith.constant 0 : index
    %15 = vector.load %arg7[%c0_19, %c0_20] : memref<6x96xf32, #tpu.memory_space<vmem>>, vector<6x96xf32>
    %cst_21 = arith.constant dense<0.000000e+00> : vector<3x96xf32>
    %16 = tpu.matmul %14, %15, %cst_21 {dimension_numbers = #tpu.dot_dimension_numbers<[1], [0], [0], [1], [0, 0, 1, 1], [], []>} : vector<3x6xf32>, vector<6x96xf32>, vector<3x96xf32> -> vector<3x96xf32>
    %c0_22 = arith.constant 0 : index
    %c0_23 = arith.constant 0 : index
    %17 = vector.load %arg10[%c0_22, %c0_23] : memref<48x3xf32, #tpu.memory_space<vmem>>, vector<48x3xf32>
    %cst_24 = arith.constant dense<0.000000e+00> : vector<48x96xf32>
    %18 = tpu.matmul %17, %16, %cst_24 {dimension_numbers = #tpu.dot_dimension_numbers<[1], [0], [0], [1], [0, 0, 1, 1], [], []>} : vector<48x3xf32>, vector<3x96xf32>, vector<48x96xf32> -> vector<48x96xf32>
    %19 = arith.addf %12, %18 : vector<48x96xf32>
    %20 = vector.shape_cast %19 : vector<48x96xf32> to vector<1x48x96xf32>
    %c0_25 = arith.constant 0 : index
    %c0_26 = arith.constant 0 : index
    %c0_27 = arith.constant 0 : index
    %21 = vector.load %arg11[%c0_25, %c0_26, %c0_27] : memref<1x48x96xf32, #tpu.memory_space<vmem>>, vector<1x48x96xf32>
    tpu.vector_store %arg11[%c0_25, %c0_26, %c0_27], %20 {strides = array<i32>} : memref<1x48x96xf32, #tpu.memory_space<vmem>>, vector<1x48x96xf32>,
    return
  }
  func.func @transform_0(%arg0: i32, %arg1: i32) -> (i32, i32, i32) {
    %c0_i32 = arith.constant 0 : i32
    %c0_i32_0 = arith.constant 0 : i32
    %c0_i32_1 = arith.constant 0 : i32
    return %arg0, %c0_i32, %c0_i32_0 : i32, i32, i32
  }
  func.func @transform_1(%arg0: i32, %arg1: i32) -> (i32, i32, i32) {
    %c0_i32 = arith.constant 0 : i32
    %c0_i32_0 = arith.constant 0 : i32
    %c0_i32_1 = arith.constant 0 : i32
    return %arg0, %c0_i32, %c0_i32_0 : i32, i32, i32
  }
  func.func @transform_2(%arg0: i32, %arg1: i32) -> (i32, i32, i32) {
    %c0_i32 = arith.constant 0 : i32
    %c0_i32_0 = arith.constant 0 : i32
    %c0_i32_1 = arith.constant 0 : i32
    return %arg0, %c0_i32, %c0_i32_0 : i32, i32, i32
  }
  func.func @transform_3(%arg0: i32, %arg1: i32) -> (i32, i32) {
    %c0_i32 = arith.constant 0 : i32
    %c0_i32_0 = arith.constant 0 : i32
    %c0_i32_1 = arith.constant 0 : i32
    return %c0_i32, %c0_i32_0 : i32, i32
  }
  func.func @transform_4(%arg0: i32, %arg1: i32) -> (i32, i32) {
    %c0_i32 = arith.constant 0 : i32
    %c0_i32_0 = arith.constant 0 : i32
    %c0_i32_1 = arith.constant 0 : i32
    return %c0_i32, %c0_i32_0 : i32, i32
  }
  func.func @transform_5(%arg0: i32, %arg1: i32) -> (i32, i32) {
    %c0_i32 = arith.constant 0 : i32
    %c0_i32_0 = arith.constant 0 : i32
    %c0_i32_1 = arith.constant 0 : i32
    return %c0_i32, %c0_i32_0 : i32, i32
  }
  func.func @transform_6(%arg0: i32, %arg1: i32) -> (i32, i32) {
    %c0_i32 = arith.constant 0 : i32
    %c0_i32_0 = arith.constant 0 : i32
    return %arg1, %c0_i32 : i32, i32
  }
  func.func @transform_7(%arg0: i32, %arg1: i32) -> (i32, i32) {
    %c0_i32 = arith.constant 0 : i32
    %c0_i32_0 = arith.constant 0 : i32
    return %arg1, %c0_i32 : i32, i32
  }
  func.func @transform_8(%arg0: i32, %arg1: i32) -> (i32, i32) {
    %c0_i32 = arith.constant 0 : i32
    %c0_i32_0 = arith.constant 0 : i32
    return %arg1, %c0_i32 : i32, i32
  }
  func.func @transform_9(%arg0: i32, %arg1: i32) -> (i32, i32, i32) {
    %c0_i32 = arith.constant 0 : i32
    %c0_i32_0 = arith.constant 0 : i32
    return %arg0, %arg1, %c0_i32 : i32, i32, i32
  }
}

module attributes {stable_mosaic.version = 11 : i64} {
  func.func @_gate_kernel(%arg0: i32, %arg1: memref<512x2xf32, #tpu.memory_space<vmem>>, %arg2: memref<512x8xf32, #tpu.memory_space<vmem>>, %arg3: memref<2x8xf32, #tpu.memory_space<vmem>>, %arg4: memref<8x8xf32, #tpu.memory_space<vmem>>, %arg5: memref<1x8xf32, #tpu.memory_space<vmem>>, %arg6: memref<512x8xf32, #tpu.memory_space<vmem>>) attributes {dimension_semantics = [#tpu.dimension_semantics<parallel>], iteration_bounds = array<i64: 9>, scalar_prefetch = 0 : i64, scratch_operands = 0 : i64, tpu.core_type = #tpu.core_type<tc>, window_params = [{transform_indices = @transform_0, window_bounds = array<i64: 512, 2>}, {transform_indices = @transform_1, window_bounds = array<i64: 512, 8>}, {pipeline_mode = #tpu.pipeline_mode<synchronous>, transform_indices = @transform_2, window_bounds = array<i64: 2, 8>}, {pipeline_mode = #tpu.pipeline_mode<synchronous>, transform_indices = @transform_3, window_bounds = array<i64: 8, 8>}, {pipeline_mode = #tpu.pipeline_mode<synchronous>, transform_indices = @transform_4, window_bounds = array<i64: 1, 8>}, {transform_indices = @transform_5, window_bounds = array<i64: 512, 8>}]} {
    %c0 = arith.constant 0 : index
    %c0_0 = arith.constant 0 : index
    %0 = vector.load %arg2[%c0, %c0_0] : memref<512x8xf32, #tpu.memory_space<vmem>>, vector<512x8xf32>
    %c0_1 = arith.constant 0 : index
    %c0_2 = arith.constant 0 : index
    %1 = vector.load %arg1[%c0_1, %c0_2] : memref<512x2xf32, #tpu.memory_space<vmem>>, vector<512x2xf32>
    %c0_3 = arith.constant 0 : index
    %c0_4 = arith.constant 0 : index
    %2 = vector.load %arg3[%c0_3, %c0_4] : memref<2x8xf32, #tpu.memory_space<vmem>>, vector<2x8xf32>
    %cst = arith.constant dense<0.000000e+00> : vector<512x8xf32>
    %3 = tpu.matmul %1, %2, %cst {dimension_numbers = #tpu.dot_dimension_numbers<[1], [0], [0], [1], [0, 0, 1, 1], [], []>} : vector<512x2xf32>, vector<2x8xf32>, vector<512x8xf32> -> vector<512x8xf32>
    %c0_5 = arith.constant 0 : index
    %c0_6 = arith.constant 0 : index
    %4 = vector.load %arg4[%c0_5, %c0_6] : memref<8x8xf32, #tpu.memory_space<vmem>>, vector<8x8xf32>
    %cst_7 = arith.constant dense<0.000000e+00> : vector<512x8xf32>
    %5 = tpu.matmul %0, %4, %cst_7 {dimension_numbers = #tpu.dot_dimension_numbers<[1], [0], [0], [1], [0, 0, 1, 1], [], []>} : vector<512x8xf32>, vector<8x8xf32>, vector<512x8xf32> -> vector<512x8xf32>
    %6 = arith.addf %3, %5 : vector<512x8xf32>
    %c0_8 = arith.constant 0 : index
    %c0_9 = arith.constant 0 : index
    %7 = vector.load %arg5[%c0_8, %c0_9] : memref<1x8xf32, #tpu.memory_space<vmem>>, vector<1x8xf32>
    %8 = vector.broadcast %7 : vector<1x8xf32> to vector<512x8xf32>
    %9 = arith.addf %6, %8 : vector<512x8xf32>
    %10 = arith.negf %9 : vector<512x8xf32>
    %11 = math.exp %10 : vector<512x8xf32>
    %cst_10 = arith.constant 1.000000e+00 : f32
    %12 = vector.broadcast %cst_10 : f32 to vector<512x8xf32>
    %13 = arith.addf %12, %11 : vector<512x8xf32>
    %14 = arith.divf %12, %13 : vector<512x8xf32>
    %15 = arith.mulf %0, %14 : vector<512x8xf32>
    %c0_11 = arith.constant 0 : index
    %c0_12 = arith.constant 0 : index
    %16 = vector.load %arg6[%c0_11, %c0_12] : memref<512x8xf32, #tpu.memory_space<vmem>>, vector<512x8xf32>
    tpu.vector_store %arg6[%c0_11, %c0_12], %15 {strides = array<i32>} : memref<512x8xf32, #tpu.memory_space<vmem>>, vector<512x8xf32>,
    return
  }
  func.func @transform_0(%arg0: i32) -> (i32, i32) {
    %c0_i32 = arith.constant 0 : i32
    %c0_i32_0 = arith.constant 0 : i32
    return %arg0, %c0_i32 : i32, i32
  }
  func.func @transform_1(%arg0: i32) -> (i32, i32) {
    %c0_i32 = arith.constant 0 : i32
    %c0_i32_0 = arith.constant 0 : i32
    return %arg0, %c0_i32 : i32, i32
  }
  func.func @transform_2(%arg0: i32) -> (i32, i32) {
    %c0_i32 = arith.constant 0 : i32
    %c0_i32_0 = arith.constant 0 : i32
    %c0_i32_1 = arith.constant 0 : i32
    return %c0_i32, %c0_i32_0 : i32, i32
  }
  func.func @transform_3(%arg0: i32) -> (i32, i32) {
    %c0_i32 = arith.constant 0 : i32
    %c0_i32_0 = arith.constant 0 : i32
    %c0_i32_1 = arith.constant 0 : i32
    return %c0_i32, %c0_i32_0 : i32, i32
  }
  func.func @transform_4(%arg0: i32) -> (i32, i32) {
    %c0_i32 = arith.constant 0 : i32
    %c0_i32_0 = arith.constant 0 : i32
    %c0_i32_1 = arith.constant 0 : i32
    return %c0_i32, %c0_i32_0 : i32, i32
  }
  func.func @transform_5(%arg0: i32) -> (i32, i32) {
    %c0_i32 = arith.constant 0 : i32
    %c0_i32_0 = arith.constant 0 : i32
    return %arg0, %c0_i32 : i32, i32
  }
}

</mosaic_0001>

<llo_original>
// kernel: esa_forward.14
$region0: #{esa_forward.14}
  #allocation0 [shape = 'u32[]', space=smem, size = 0x4, offset = 0x4, fixed_abs, tag = 'smem constant byte address 0x4 - core index']
  #allocation1 [shape = 'u32[144,128]{1,0:T(1,128)}', space=vmem, size = 0x12000, scoped, tag = 'internal scratch']
  %s0 = inlined_call_operand.vmem [shape: f32[4608,8], index: 0, kind: input, shape index: {}]
  %s1 = inlined_call_operand.vmem [shape: f32[8,2], index: 1, kind: input, shape index: {}]
  %s2 = inlined_call_operand.vmem [shape: f32[1,2], index: 2, kind: input, shape index: {}]
  %s3 = inlined_call_operand.vmem [shape: f32[4608,2], index: 3, kind: output, shape index: {}]
  %s4 = sld [smem:[#allocation0]]
  $region45: #{esa_forward.14} parent=0
    _
  %s6 = ssub.s32 1, %s4
  %s7 = scalar_select 0, %s6, %s4
  loop: start=0, step=1, limit=11
  $region2: #{esa_forward.14} parent=0 // loop_pre_header
    _
  $region3: #{esa_forward.14} parent=0 // loop_header
    %s9 = sphi 0, %s13
    %p10 = scmp.ge.s32.totalorder %s9, 11
    %s19 = sphi 0, %s21
    %s22 = sphi 0, %s19
    %s23 = sphi 0, %s22
    %s39 = sphi 0, %s23
    %s43 = sphi 0, %s43
    %s45 = sphi 0, %s43
    %s46 = sphi 0, %s45
    %s60 = sphi 0, %s46
    %s64 = sphi 0, %s64
    %s66 = sphi 0, %s64
    %s67 = sphi 0, %s66
    %s81 = sphi 0, %s67
    %s87 = sphi 0, %s89
    %s90 = sphi 0, %s87
    %s91 = sphi 0, %s90
    %s107 = sphi 0, %s91
  $region4: #{esa_forward.14} parent=0 // loop_header_branch
    %12 = sbr.rel (%p10) target = $region8
  $region5: #{esa_forward.14} parent=0 // loop_body
    %s14 = ssub.s32 %s9, 1
    %s15 = ssub.s32 %s9, 2
    %s16 = sadd.s32 %s9, 1
    %s17 = ssub.s32 %s9, %s16
    %p18 = scmp.eq.s32.totalorder %s17, 0
    %s20 = sadd.s32 %s19, 1
    %s21 = scalar_select %p18, %s19, %s20
    %p24 = pneg %p18
    %p25 = scmp.eq.s32.totalorder %s9, 8
    %p26 = por %p24, %p25
    %p27 = scmp.ne.s32.totalorder %s19, %s22
    %p28 = scmp.eq.s32.totalorder %s9, 0
    %p29 = por %p27, %p28
    %p30 = scmp.ne.s32.totalorder %s19, %s22
    %p31 = scmp.eq.s32.totalorder %s14, 8
    %p32 = por %p30, %p31
    %p33 = scmp.ne.s32.totalorder %s22, %s23
    %p34 = scmp.eq.s32.totalorder %s14, 0
    %p35 = por %p33, %p34
    %p36 = scmp.ne.s32.totalorder %s22, %s23
    %p37 = scmp.eq.s32.totalorder %s15, 8
    %p38 = por %p36, %p37
    %p40 = scmp.ne.s32.totalorder %s23, %s39
    %p41 = scmp.eq.s32.totalorder %s15, 0
    %p42 = por %p40, %p41
    %s44 = sadd.s32 %s43, 1
    %p47 = scmp.eq.s32.totalorder %s9, 8
    %p48 = scmp.ne.s32.totalorder %s43, %s45
    %p49 = scmp.eq.s32.totalorder %s9, 0
    %p50 = por %p48, %p49
    %p51 = scmp.ne.s32.totalorder %s43, %s45
    %p52 = scmp.eq.s32.totalorder %s14, 8
    %p53 = por %p51, %p52
    %p54 = scmp.ne.s32.totalorder %s45, %s46
    %p55 = scmp.eq.s32.totalorder %s14, 0
    %p56 = por %p54, %p55
    %p57 = scmp.ne.s32.totalorder %s45, %s46
    %p58 = scmp.eq.s32.totalorder %s15, 8
    %p59 = por %p57, %p58
    %p61 = scmp.ne.s32.totalorder %s46, %s60
    %p62 = scmp.eq.s32.totalorder %s15, 0
    %p63 = por %p61, %p62
    %s65 = sadd.s32 %s64, 1
    %p68 = scmp.eq.s32.totalorder %s9, 8
    %p69 = scmp.ne.s32.totalorder %s64, %s66
    %p70 = scmp.eq.s32.totalorder %s9, 0
    %p71 = por %p69, %p70
    %p72 = scmp.ne.s32.totalorder %s64, %s66
    %p73 = scmp.eq.s32.totalorder %s14, 8
    %p74 = por %p72, %p73
    %p75 = scmp.ne.s32.totalorder %s66, %s67
    %p76 = scmp.eq.s32.totalorder %s14, 0
    %p77 = por %p75, %p76
    %p78 = scmp.ne.s32.totalorder %s66, %s67
    %p79 = scmp.eq.s32.totalorder %s15, 8
    %p80 = por %p78, %p79
    %p82 = scmp.ne.s32.totalorder %s67, %s81
    %p83 = scmp.eq.s32.totalorder %s15, 0
    %p84 = por %p82, %p83
    %s85 = ssub.s32 %s9, %s16
    %p86 = scmp.eq.s32.totalorder %s85, 0
    %s88 = sadd.s32 %s87, 1
    %s89 = scalar_select %p86, %s87, %s88
    %p92 = pneg %p86
    %p93 = scmp.eq.s32.totalorder %s9, 8
    %p94 = por %p92, %p93
    %p95 = scmp.ne.s32.totalorder %s87, %s90
    %p96 = scmp.eq.s32.totalorder %s9, 0
    %p97 = por %p95, %p96
    %p98 = scmp.ne.s32.totalorder %s87, %s90
    %p99 = scmp.eq.s32.totalorder %s14, 8
    %p100 = por %p98, %p99
    %p101 = scmp.ne.s32.totalorder %s90, %s91
    %p102 = scmp.eq.s32.totalorder %s14, 0
    %p103 = por %p101, %p102
    %p104 = scmp.ne.s32.totalorder %s90, %s91
    %p105 = scmp.eq.s32.totalorder %s15, 8
    %p106 = por %p104, %p105
    %p108 = scmp.ne.s32.totalorder %s91, %s107
    %p109 = scmp.eq.s32.totalorder %s15, 0
    %p110 = por %p108, %p109
    %p111 = scmp.le.s32.totalorder 1, %s9
    %p112 = scmp.lt.s32.totalorder %s9, 10
    %p113 = pnand %p111, %p112
    %p114 = pneg %p113
    // Predicated region
    $region9: #{esa_forward.14} parent=5 // pred_check
      _
    $region10: #{esa_forward.14} parent=5 // pred_check_branch
      %116 = sbr.rel (%p113) target = $region12
    $region11: #{esa_forward.14} parent=5 // pred_region
      %s117 = ssub.s32 %s9, 1
      // Predicated region
      $region13: #{esa_forward.14} parent=11 // pred_check
        %p118 = pneg %p56
      $region14: #{esa_forward.14} parent=11 // pred_check_branch
        %120 = sbr.rel (%p118) target = $region16
      $region15: #{esa_forward.14} parent=11 // pred_region
        _
      $region16: #{esa_forward.14} parent=11 // pred_fallthru
        _
      // Predicated region
      $region17: #{esa_forward.14} parent=11 // pred_check
        %p121 = pneg %p77
      $region18: #{esa_forward.14} parent=11 // pred_check_branch
        %123 = sbr.rel (%p121) target = $region20
      $region19: #{esa_forward.14} parent=11 // pred_region
        _
      $region20: #{esa_forward.14} parent=11 // pred_fallthru
        _
    $region12: #{esa_forward.14} parent=5 // pred_fallthru
      _
    %p124 = scmp.lt.s32.totalorder %s9, 9
    // Predicated region
    $region21: #{esa_forward.14} parent=5 // pred_check
      %p125 = pneg %p124
    $region22: #{esa_forward.14} parent=5 // pred_check_branch
      %127 = sbr.rel (%p125) target = $region24
    $region23: #{esa_forward.14} parent=5 // pred_region
      // Predicated region
      $region25: #{esa_forward.14} parent=23 // pred_check
        %p128 = pneg %p29
      $region26: #{esa_forward.14} parent=23 // pred_check_branch
        %130 = sbr.rel (%p128) target = $region28
      $region27: #{esa_forward.14} parent=23 // pred_region
        %s131 = smul.u32 64, %s9
        %p132 = scmp.lt.s32.totalorder %s131, 575
        %s133 = scalar_select %p132, %s131, 575
        %s134 = smul.addr %s133, 8
        %s135 = scalar_lea.vmem %s0, %s134
        %s136 = smul.u32 64, %s9
      $region28: #{esa_forward.14} parent=23 // pred_fallthru
        _
    $region24: #{esa_forward.14} parent=5 // pred_fallthru
      _
    %p137 = scmp.le.s32.totalorder 1, %s9
    %p138 = scmp.lt.s32.totalorder %s9, 10
    %p139 = pnand %p137, %p138
    %p140 = pneg %p139
    // Predicated region
    $region29: #{esa_forward.14} parent=5 // pred_check
      _
    $region30: #{esa_forward.14} parent=5 // pred_check_branch
      %142 = sbr.rel (%p139) target = $region32
    $region31: #{esa_forward.14} parent=5 // pred_region
      %s143 = ssub.s32 %s9, 1
      %s144 = smul.u32 64, %s14
      %p145 = scmp.lt.s32.totalorder %s144, 575
      %s146 = scalar_select %p145, %s144, 575
      %s147 = smul.addr %s146, 8
      %s148 = scalar_lea.vmem %s0, %s147
      %p149 = pneg %p35
      %p150 = pneg %p32
      %p151 = pneg %p56
      %p152 = pneg %p53
      %p153 = pneg %p77
      %p154 = pneg %p74
      %p155 = pneg %p103
      %p156 = pneg %p100
      %s157 = smul.u32 64, %s14
      %p158 = scmp.lt.s32.totalorder %s157, 575
      %s159 = scalar_select %p158, %s157, 575
      %s160 = smul.addr %s159, 8
      %s161 = scalar_lea.vmem %s3, %s160
      %s162 = smul.u32 64, %s14
      %p163 = scmp.lt.s32.totalorder %s162, 575
      %s164 = scalar_select %p163, %s162, 575
      %s165 = smul.addr %s164, 8
      %s166 = scalar_lea.vmem %s0, %s165
      %s167 = smul.u32 64, %s14
      %s168 = smul.u32 64, %s14
      %p169 = scmp.lt.s32.totalorder %s168, 575
      %s170 = scalar_select %p169, %s168, 575
      %s171 = smul.addr %s170, 8
      %s172 = scalar_lea.vmem %s3, %s171
      %s173 = smul.u32 64, %s14
      %v174 = vld [vmem:[%s166] sm:$0xff]
      %v175 = vld [vmem:[%s166 + $0x8] sm:$0xff]
      %v176 = vld [vmem:[%s166 + $0x10] sm:$0xff]
      %v177 = vld [vmem:[%s166 + $0x18] sm:$0xff]
      %v178 = vld [vmem:[%s166 + $0x20] sm:$0xff]
      %v179 = vld [vmem:[%s166 + $0x28] sm:$0xff]
      %v180 = vld [vmem:[%s166 + $0x30] sm:$0xff]
      %v181 = vld [vmem:[%s166 + $0x38] sm:$0xff]
      %v182 = vld [vmem:[%s166 + $0x40] sm:$0xff]
      %v183 = vld [vmem:[%s166 + $0x48] sm:$0xff]
      %v184 = vld [vmem:[%s166 + $0x50] sm:$0xff]
      %v185 = vld [vmem:[%s166 + $0x58] sm:$0xff]
      %v186 = vld [vmem:[%s166 + $0x60] sm:$0xff]
      %v187 = vld [vmem:[%s166 + $0x68] sm:$0xff]
      %v188 = vld [vmem:[%s166 + $0x70] sm:$0xff]
      %v189 = vld [vmem:[%s166 + $0x78] sm:$0xff]
      %v190 = vld [vmem:[%s166 + $0x80] sm:$0xff]
      %v191 = vld [vmem:[%s166 + $0x88] sm:$0xff]
      %v192 = vld [vmem:[%s166 + $0x90] sm:$0xff]
      %v193 = vld [vmem:[%s166 + $0x98] sm:$0xff]
      %v194 = vld [vmem:[%s166 + $0xa0] sm:$0xff]
      %v195 = vld [vmem:[%s166 + $0xa8] sm:$0xff]
      %v196 = vld [vmem:[%s166 + $0xb0] sm:$0xff]
      %v197 = vld [vmem:[%s166 + $0xb8] sm:$0xff]
      %v198 = vld [vmem:[%s166 + $0xc0] sm:$0xff]
      %v199 = vld [vmem:[%s166 + $0xc8] sm:$0xff]
      %v200 = vld [vmem:[%s166 + $0xd0] sm:$0xff]
      %v201 = vld [vmem:[%s166 + $0xd8] sm:$0xff]
      %v202 = vld [vmem:[%s166 + $0xe0] sm:$0xff]
      %v203 = vld [vmem:[%s166 + $0xe8] sm:$0xff]
      %v204 = vld [vmem:[%s166 + $0xf0] sm:$0xff]
      %v205 = vld [vmem:[%s166 + $0xf8] sm:$0xff]
      %v206 = vld [vmem:[%s166 + $0x100] sm:$0xff]
      %v207 = vld [vmem:[%s166 + $0x108] sm:$0xff]
      %v208 = vld [vmem:[%s166 + $0x110] sm:$0xff]
      %v209 = vld [vmem:[%s166 + $0x118] sm:$0xff]
      %v210 = vld [vmem:[%s166 + $0x120] sm:$0xff]
      %v211 = vld [vmem:[%s166 + $0x128] sm:$0xff]
      %v212 = vld [vmem:[%s166 + $0x130] sm:$0xff]
      %v213 = vld [vmem:[%s166 + $0x138] sm:$0xff]
      %v214 = vld [vmem:[%s166 + $0x140] sm:$0xff]
      %v215 = vld [vmem:[%s166 + $0x148] sm:$0xff]
      %v216 = vld [vmem:[%s166 + $0x150] sm:$0xff]
      %v217 = vld [vmem:[%s166 + $0x158] sm:$0xff]
      %v218 = vld [vmem:[%s166 + $0x160] sm:$0xff]
      %v219 = vld [vmem:[%s166 + $0x168] sm:$0xff]
      %v220 = vld [vmem:[%s166 + $0x170] sm:$0xff]
      %v221 = vld [vmem:[%s166 + $0x178] sm:$0xff]
      %v222 = vld [vmem:[%s166 + $0x180] sm:$0xff]
      %v223 = vld [vmem:[%s166 + $0x188] sm:$0xff]
      %v224 = vld [vmem:[%s166 + $0x190] sm:$0xff]
      %v225 = vld [vmem:[%s166 + $0x198] sm:$0xff]
      %v226 = vld [vmem:[%s166 + $0x1a0] sm:$0xff]
      %v227 = vld [vmem:[%s166 + $0x1a8] sm:$0xff]
      %v228 = vld [vmem:[%s166 + $0x1b0] sm:$0xff]
      %v229 = vld [vmem:[%s166 + $0x1b8] sm:$0xff]
      %v230 = vld [vmem:[%s166 + $0x1c0] sm:$0xff]
      %v231 = vld [vmem:[%s166 + $0x1c8] sm:$0xff]
      %v232 = vld [vmem:[%s166 + $0x1d0] sm:$0xff]
      %v233 = vld [vmem:[%s166 + $0x1d8] sm:$0xff]
      %v234 = vld [vmem:[%s166 + $0x1e0] sm:$0xff]
      %v235 = vld [vmem:[%s166 + $0x1e8] sm:$0xff]
      %v236 = vld [vmem:[%s166 + $0x1f0] sm:$0xff]
      %v237 = vld [vmem:[%s166 + $0x1f8] sm:$0xff]
      %v238 = vld [vmem:[%s1] sm:$0xff]
      %v239 = vld [vmem:[%s2] sm:$0x1]
      %v241 = vlaneseq
      %v242 = vshrl.u32 %v241, 7
      %v243 = vsub.s32 0, %v242
      %v244 = vrot.slane %v239, %v243
      %vm246 = vcmask 64512
      %v248 = vsel %vm246, %v174, 0
      %v251 = vsel %vm246, %v175, 0
      %v254 = vsel %vm246, %v176, 0
      %v257 = vsel %vm246, %v177, 0
      %v260 = vsel %vm246, %v178, 0
      %v263 = vsel %vm246, %v179, 0
      %v266 = vsel %vm246, %v180, 0
      %v269 = vsel %vm246, %v181, 0
      %v272 = vsel %vm246, %v182, 0
      %v275 = vsel %vm246, %v183, 0
      %v278 = vsel %vm246, %v184, 0
      %v281 = vsel %vm246, %v185, 0
      %v284 = vsel %vm246, %v186, 0
      %v287 = vsel %vm246, %v187, 0
      %v290 = vsel %vm246, %v188, 0
      %v293 = vsel %vm246, %v189, 0
      %v296 = vsel %vm246, %v190, 0
      %v299 = vsel %vm246, %v191, 0
      %v302 = vsel %vm246, %v192, 0
      %v305 = vsel %vm246, %v193, 0
      %v308 = vsel %vm246, %v194, 0
      %v311 = vsel %vm246, %v195, 0
      %v314 = vsel %vm246, %v196, 0
      %v317 = vsel %vm246, %v197, 0
      %v320 = vsel %vm246, %v198, 0
      %v323 = vsel %vm246, %v199, 0
      %v326 = vsel %vm246, %v200, 0
      %v329 = vsel %vm246, %v201, 0
      %v332 = vsel %vm246, %v202, 0
      %v335 = vsel %vm246, %v203, 0
      %v338 = vsel %vm246, %v204, 0
      %v341 = vsel %vm246, %v205, 0
      %v344 = vsel %vm246, %v206, 0
      %v347 = vsel %vm246, %v207, 0
      %v350 = vsel %vm246, %v208, 0
      %v353 = vsel %vm246, %v209, 0
      %v356 = vsel %vm246, %v210, 0
      %v359 = vsel %vm246, %v211, 0
      %v362 = vsel %vm246, %v212, 0
      %v365 = vsel %vm246, %v213, 0
      %v368 = vsel %vm246, %v214, 0
      %v371 = vsel %vm246, %v215, 0
      %v374 = vsel %vm246, %v216, 0
      %v377 = vsel %vm246, %v217, 0
      %v380 = vsel %vm246, %v218, 0
      %v383 = vsel %vm246, %v219, 0
      %v386 = vsel %vm246, %v220, 0
      %v389 = vsel %vm246, %v221, 0
      %v392 = vsel %vm246, %v222, 0
      %v395 = vsel %vm246, %v223, 0
      %v398 = vsel %vm246, %v224, 0
      %v401 = vsel %vm246, %v225, 0
      %v404 = vsel %vm246, %v226, 0
      %v407 = vsel %vm246, %v227, 0
      %v410 = vsel %vm246, %v228, 0
      %v413 = vsel %vm246, %v229, 0
      %v416 = vsel %vm246, %v230, 0
      %v419 = vsel %vm246, %v231, 0
      %v422 = vsel %vm246, %v232, 0
      %v425 = vsel %vm246, %v233, 0
      %v428 = vsel %vm246, %v234, 0
      %v431 = vsel %vm246, %v235, 0
      %v434 = vsel %vm246, %v236, 0
      %v437 = vsel %vm246, %v237, 0
      %439 = vmatprep.subr.mxu0 0.0
      %440 = vmatpush1.msra.mxu0 0.0
      %441 = vmatprep.subr.mxu0 0.0
      %442 = vmatpush1.msra.mxu0 0.0
      %443 = vmatprep.subr.mxu0 0.0
      %444 = vmatpush1.msra.mxu0 0.0
      %445 = vmatprep.subr.mxu0 0.0
      %446 = vmatpush1.msra.mxu0 0.0
      %447 = vmatprep.subr.mxu0 0.0
      %448 = vmatpush1.msra.mxu0 0.0
      %449 = vmatprep.subr.mxu0 0.0
      %450 = vmatpush1.msra.mxu0 0.0
      %451 = vmatprep.subr.mxu0 0.0
      %452 = vmatpush1.msra.mxu0 0.0
      %453 = vmatprep.subr.mxu0 0.0
      %454 = vmatpush1.msra.mxu0 0.0
      %455 = vmatprep.subr.mxu0 0.0
      %456 = vmatpush1.msra.mxu0 0.0
      %457 = vmatprep.subr.mxu0 0.0
      %458 = vmatpush1.msra.mxu0 0.0
      %459 = vmatprep.subr.mxu0 0.0
      %460 = vmatpush1.msra.mxu0 0.0
      %461 = vmatprep.subr.mxu0 0.0
      %462 = vmatpush1.msra.mxu0 0.0
      %463 = vmatprep.subr.mxu0 0.0
      %464 = vmatpush1.msra.mxu0 0.0
      %465 = vmatprep.subr.mxu0 0.0
      %466 = vmatpush1.msra.mxu0 0.0
      %467 = vmatprep.subr.mxu0 0.0
      %468 = vmatpush1.msra.mxu0 0.0
      %469 = vmatprep.subr.mxu0 0.0
      %470 = vmatpush1.msra.mxu0 %v238
      %471 = vmatprep.subr.mxu0 0.0
      %472 = vmatpush2.msra.mxu0 0.0
      %473 = vmatprep.subr.mxu0 0.0
      %474 = vmatpush2.msra.mxu0 0.0
      %475 = vmatprep.subr.mxu0 0.0
      %476 = vmatpush2.msra.mxu0 0.0
      %477 = vmatprep.subr.mxu0 0.0
      %478 = vmatpush2.msra.mxu0 0.0
      %479 = vmatprep.subr.mxu0 0.0
      %480 = vmatpush2.msra.mxu0 0.0
      %481 = vmatprep.subr.mxu0 0.0
      %482 = vmatpush2.msra.mxu0 0.0
      %483 = vmatprep.subr.mxu0 0.0
      %484 = vmatpush2.msra.mxu0 0.0
      %485 = vmatprep.subr.mxu0 0.0
      %486 = vmatpush2.msra.mxu0 0.0
      %487 = vmatprep.subr.mxu0 0.0
      %488 = vmatpush2.msra.mxu0 0.0
      %489 = vmatprep.subr.mxu0 0.0
      %490 = vmatpush2.msra.mxu0 0.0
      %491 = vmatprep.subr.mxu0 0.0
      %492 = vmatpush2.msra.mxu0 0.0
      %493 = vmatprep.subr.mxu0 0.0
      %494 = vmatpush2.msra.mxu0 0.0
      %495 = vmatprep.subr.mxu0 0.0
      %496 = vmatpush2.msra.mxu0 0.0
      %497 = vmatprep.subr.mxu0 0.0
      %498 = vmatpush2.msra.mxu0 0.0
      %499 = vmatprep.subr.mxu0 0.0
      %500 = vmatpush2.msra.mxu0 0.0
      %501 = vmatprep.subr.mxu0 0.0
      %502 = vmatpush2.msra.mxu0 0.0
      %503 = vmatprep.mubr.f32.mxu0 0.0
      %504 = vmatmul.mubr.f32.gmra.mxu0 %v248
      %v505 = vpop.f32.mrf.mxu0
      %v506 = vadd.f32 %v244, %v505
      %v507 = vpop.f32.mrf.mxu0
      %508 = vmatprep.mubr.f32.mxu0 0.0
      %509 = vmatmul.mubr.f32.gmra.mxu0 %v251
      %v510 = vpop.f32.mrf.mxu0
      %v511 = vadd.f32 %v244, %v510
      %v512 = vpop.f32.mrf.mxu0
      %513 = vmatprep.mubr.f32.mxu0 0.0
      %514 = vmatmul.mubr.f32.gmra.mxu0 %v254
      %v515 = vpop.f32.mrf.mxu0
      %v516 = vadd.f32 %v244, %v515
      %v517 = vpop.f32.mrf.mxu0
      %518 = vmatprep.mubr.f32.mxu0 0.0
      %519 = vmatmul.mubr.f32.gmra.mxu0 %v257
      %v520 = vpop.f32.mrf.mxu0
      %v521 = vadd.f32 %v244, %v520
      %v522 = vpop.f32.mrf.mxu0
      %523 = vmatprep.mubr.f32.mxu0 0.0
      %524 = vmatmul.mubr.f32.gmra.mxu0 %v260
      %v525 = vpop.f32.mrf.mxu0
      %v526 = vadd.f32 %v244, %v525
      %v527 = vpop.f32.mrf.mxu0
      %528 = vmatprep.mubr.f32.mxu0 0.0
      %529 = vmatmul.mubr.f32.gmra.mxu0 %v263
      %v530 = vpop.f32.mrf.mxu0
      %v531 = vadd.f32 %v244, %v530
      %v532 = vpop.f32.mrf.mxu0
      %533 = vmatprep.mubr.f32.mxu0 0.0
      %534 = vmatmul.mubr.f32.gmra.mxu0 %v266
      %v535 = vpop.f32.mrf.mxu0
      %v536 = vadd.f32 %v244, %v535
      %v537 = vpop.f32.mrf.mxu0
      %538 = vmatprep.mubr.f32.mxu0 0.0
      %539 = vmatmul.mubr.f32.gmra.mxu0 %v269
      %v540 = vpop.f32.mrf.mxu0
      %v541 = vadd.f32 %v244, %v540
      %v542 = vpop.f32.mrf.mxu0
      %543 = vmatprep.mubr.f32.mxu0 0.0
      %544 = vmatmul.mubr.f32.gmra.mxu0 %v272
      %v545 = vpop.f32.mrf.mxu0
      %v546 = vadd.f32 %v244, %v545
      %v547 = vpop.f32.mrf.mxu0
      %548 = vmatprep.mubr.f32.mxu0 0.0
      %549 = vmatmul.mubr.f32.gmra.mxu0 %v275
      %v550 = vpop.f32.mrf.mxu0
      %v551 = vadd.f32 %v244, %v550
      %v552 = vpop.f32.mrf.mxu0
      %553 = vmatprep.mubr.f32.mxu0 0.0
      %554 = vmatmul.mubr.f32.gmra.mxu0 %v278
      %v555 = vpop.f32.mrf.mxu0
      %v556 = vadd.f32 %v244, %v555
      %v557 = vpop.f32.mrf.mxu0
      %558 = vmatprep.mubr.f32.mxu0 0.0
      %559 = vmatmul.mubr.f32.gmra.mxu0 %v281
      %v560 = vpop.f32.mrf.mxu0
      %v561 = vadd.f32 %v244, %v560
      %v562 = vpop.f32.mrf.mxu0
      %563 = vmatprep.mubr.f32.mxu0 0.0
      %564 = vmatmul.mubr.f32.gmra.mxu0 %v284
      %v565 = vpop.f32.mrf.mxu0
      %v566 = vadd.f32 %v244, %v565
      %v567 = vpop.f32.mrf.mxu0
      %568 = vmatprep.mubr.f32.mxu0 0.0
      %569 = vmatmul.mubr.f32.gmra.mxu0 %v287
      %v570 = vpop.f32.mrf.mxu0
      %v571 = vadd.f32 %v244, %v570
      %v572 = vpop.f32.mrf.mxu0
      %573 = vmatprep.mubr.f32.mxu0 0.0
      %574 = vmatmul.mubr.f32.gmra.mxu0 %v290
      %v575 = vpop.f32.mrf.mxu0
      %v576 = vadd.f32 %v244, %v575
      %v577 = vpop.f32.mrf.mxu0
      %578 = vmatprep.mubr.f32.mxu0 0.0
      %579 = vmatmul.mubr.f32.gmra.mxu0 %v293
      %v580 = vpop.f32.mrf.mxu0
      %v581 = vadd.f32 %v244, %v580
      %v582 = vpop.f32.mrf.mxu0
      %583 = vmatprep.mubr.f32.mxu0 0.0
      %584 = vmatmul.mubr.f32.gmra.mxu0 %v296
      %v585 = vpop.f32.mrf.mxu0
      %v586 = vadd.f32 %v244, %v585
      %v587 = vpop.f32.mrf.mxu0
      %588 = vmatprep.mubr.f32.mxu0 0.0
      %589 = vmatmul.mubr.f32.gmra.mxu0 %v299
      %v590 = vpop.f32.mrf.mxu0
      %v591 = vadd.f32 %v244, %v590
      %v592 = vpop.f32.mrf.mxu0
      %593 = vmatprep.mubr.f32.mxu0 0.0
      %594 = vmatmul.mubr.f32.gmra.mxu0 %v302
      %v595 = vpop.f32.mrf.mxu0
      %v596 = vadd.f32 %v244, %v595
      %v597 = vpop.f32.mrf.mxu0
      %598 = vmatprep.mubr.f32.mxu0 0.0
      %599 = vmatmul.mubr.f32.gmra.mxu0 %v305
      %v600 = vpop.f32.mrf.mxu0
      %v601 = vadd.f32 %v244, %v600
      %v602 = vpop.f32.mrf.mxu0
      %603 = vmatprep.mubr.f32.mxu0 0.0
      %604 = vmatmul.mubr.f32.gmra.mxu0 %v308
      %v605 = vpop.f32.mrf.mxu0
      %v606 = vadd.f32 %v244, %v605
      %v607 = vpop.f32.mrf.mxu0
      %608 = vmatprep.mubr.f32.mxu0 0.0
      %609 = vmatmul.mubr.f32.gmra.mxu0 %v311
      %v610 = vpop.f32.mrf.mxu0
      %v611 = vadd.f32 %v244, %v610
      %v612 = vpop.f32.mrf.mxu0
      %613 = vmatprep.mubr.f32.mxu0 0.0
      %614 = vmatmul.mubr.f32.gmra.mxu0 %v314
      %v615 = vpop.f32.mrf.mxu0
      %v616 = vadd.f32 %v244, %v615
      %v617 = vpop.f32.mrf.mxu0
      %618 = vmatprep.mubr.f32.mxu0 0.0
      %619 = vmatmul.mubr.f32.gmra.mxu0 %v317
      %v620 = vpop.f32.mrf.mxu0
      %v621 = vadd.f32 %v244, %v620
      %v622 = vpop.f32.mrf.mxu0
      %623 = vmatprep.mubr.f32.mxu0 0.0
      %624 = vmatmul.mubr.f32.gmra.mxu0 %v320
      %v625 = vpop.f32.mrf.mxu0
      %v626 = vadd.f32 %v244, %v625
      %v627 = vpop.f32.mrf.mxu0
      %628 = vmatprep.mubr.f32.mxu0 0.0
      %629 = vmatmul.mubr.f32.gmra.mxu0 %v323
      %v630 = vpop.f32.mrf.mxu0
      %v631 = vadd.f32 %v244, %v630
      %v632 = vpop.f32.mrf.mxu0
      %633 = vmatprep.mubr.f32.mxu0 0.0
      %634 = vmatmul.mubr.f32.gmra.mxu0 %v326
      %v635 = vpop.f32.mrf.mxu0
      %v636 = vadd.f32 %v244, %v635
      %v637 = vpop.f32.mrf.mxu0
      %638 = vmatprep.mubr.f32.mxu0 0.0
      %639 = vmatmul.mubr.f32.gmra.mxu0 %v329
      %v640 = vpop.f32.mrf.mxu0
      %v641 = vadd.f32 %v244, %v640
      %v642 = vpop.f32.mrf.mxu0
      %643 = vmatprep.mubr.f32.mxu0 0.0
      %644 = vmatmul.mubr.f32.gmra.mxu0 %v332
      %v645 = vpop.f32.mrf.mxu0
      %v646 = vadd.f32 %v244, %v645
      %v647 = vpop.f32.mrf.mxu0
      %648 = vmatprep.mubr.f32.mxu0 0.0
      %649 = vmatmul.mubr.f32.gmra.mxu0 %v335
      %v650 = vpop.f32.mrf.mxu0
      %v651 = vadd.f32 %v244, %v650
      %v652 = vpop.f32.mrf.mxu0
      %653 = vmatprep.mubr.f32.mxu0 0.0
      %654 = vmatmul.mubr.f32.gmra.mxu0 %v338
      %v655 = vpop.f32.mrf.mxu0
      %v656 = vadd.f32 %v244, %v655
      %v657 = vpop.f32.mrf.mxu0
      %658 = vmatprep.mubr.f32.mxu0 0.0
      %659 = vmatmul.mubr.f32.gmra.mxu0 %v341
      %v660 = vpop.f32.mrf.mxu0
      %v661 = vadd.f32 %v244, %v660
      %v662 = vpop.f32.mrf.mxu0
      %663 = vmatprep.mubr.f32.mxu0 0.0
      %664 = vmatmul.mubr.f32.gmra.mxu0 %v344
      %v665 = vpop.f32.mrf.mxu0
      %v666 = vadd.f32 %v244, %v665
      %v667 = vpop.f32.mrf.mxu0
      %668 = vmatprep.mubr.f32.mxu0 0.0
      %669 = vmatmul.mubr.f32.gmra.mxu0 %v347
      %v670 = vpop.f32.mrf.mxu0
      %v671 = vadd.f32 %v244, %v670
      %v672 = vpop.f32.mrf.mxu0
      %673 = vmatprep.mubr.f32.mxu0 0.0
      %674 = vmatmul.mubr.f32.gmra.mxu0 %v350
      %v675 = vpop.f32.mrf.mxu0
      %v676 = vadd.f32 %v244, %v675
      %v677 = vpop.f32.mrf.mxu0
      %678 = vmatprep.mubr.f32.mxu0 0.0
      %679 = vmatmul.mubr.f32.gmra.mxu0 %v353
      %v680 = vpop.f32.mrf.mxu0
      %v681 = vadd.f32 %v244, %v680
      %v682 = vpop.f32.mrf.mxu0
      %683 = vmatprep.mubr.f32.mxu0 0.0
      %684 = vmatmul.mubr.f32.gmra.mxu0 %v356
      %v685 = vpop.f32.mrf.mxu0
      %v686 = vadd.f32 %v244, %v685
      %v687 = vpop.f32.mrf.mxu0
      %688 = vmatprep.mubr.f32.mxu0 0.0
      %689 = vmatmul.mubr.f32.gmra.mxu0 %v359
      %v690 = vpop.f32.mrf.mxu0
      %v691 = vadd.f32 %v244, %v690
      %v692 = vpop.f32.mrf.mxu0
      %693 = vmatprep.mubr.f32.mxu0 0.0
      %694 = vmatmul.mubr.f32.gmra.mxu0 %v362
      %v695 = vpop.f32.mrf.mxu0
      %v696 = vadd.f32 %v244, %v695
      %v697 = vpop.f32.mrf.mxu0
      %698 = vmatprep.mubr.f32.mxu0 0.0
      %699 = vmatmul.mubr.f32.gmra.mxu0 %v365
      %v700 = vpop.f32.mrf.mxu0
      %v701 = vadd.f32 %v244, %v700
      %v702 = vpop.f32.mrf.mxu0
      %703 = vmatprep.mubr.f32.mxu0 0.0
      %704 = vmatmul.mubr.f32.gmra.mxu0 %v368
      %v705 = vpop.f32.mrf.mxu0
      %v706 = vadd.f32 %v244, %v705
      %v707 = vpop.f32.mrf.mxu0
      %708 = vmatprep.mubr.f32.mxu0 0.0
      %709 = vmatmul.mubr.f32.gmra.mxu0 %v371
      %v710 = vpop.f32.mrf.mxu0
      %v711 = vadd.f32 %v244, %v710
      %v712 = vpop.f32.mrf.mxu0
      %713 = vmatprep.mubr.f32.mxu0 0.0
      %714 = vmatmul.mubr.f32.gmra.mxu0 %v374
      %v715 = vpop.f32.mrf.mxu0
      %v716 = vadd.f32 %v244, %v715
      %v717 = vpop.f32.mrf.mxu0
      %718 = vmatprep.mubr.f32.mxu0 0.0
      %719 = vmatmul.mubr.f32.gmra.mxu0 %v377
      %v720 = vpop.f32.mrf.mxu0
      %v721 = vadd.f32 %v244, %v720
      %v722 = vpop.f32.mrf.mxu0
      %723 = vmatprep.mubr.f32.mxu0 0.0
      %724 = vmatmul.mubr.f32.gmra.mxu0 %v380
      %v725 = vpop.f32.mrf.mxu0
      %v726 = vadd.f32 %v244, %v725
      %v727 = vpop.f32.mrf.mxu0
      %728 = vmatprep.mubr.f32.mxu0 0.0
      %729 = vmatmul.mubr.f32.gmra.mxu0 %v383
      %v730 = vpop.f32.mrf.mxu0
      %v731 = vadd.f32 %v244, %v730
      %v732 = vpop.f32.mrf.mxu0
      %733 = vmatprep.mubr.f32.mxu0 0.0
      %734 = vmatmul.mubr.f32.gmra.mxu0 %v386
      %v735 = vpop.f32.mrf.mxu0
      %v736 = vadd.f32 %v244, %v735
      %v737 = vpop.f32.mrf.mxu0
      %738 = vmatprep.mubr.f32.mxu0 0.0
      %739 = vmatmul.mubr.f32.gmra.mxu0 %v389
      %v740 = vpop.f32.mrf.mxu0
      %v741 = vadd.f32 %v244, %v740
      %v742 = vpop.f32.mrf.mxu0
      %743 = vmatprep.mubr.f32.mxu0 0.0
      %744 = vmatmul.mubr.f32.gmra.mxu0 %v392
      %v745 = vpop.f32.mrf.mxu0
      %v746 = vadd.f32 %v244, %v745
      %v747 = vpop.f32.mrf.mxu0
      %748 = vmatprep.mubr.f32.mxu0 0.0
      %749 = vmatmul.mubr.f32.gmra.mxu0 %v395
      %v750 = vpop.f32.mrf.mxu0
      %v751 = vadd.f32 %v244, %v750
      %v752 = vpop.f32.mrf.mxu0
      %753 = vmatprep.mubr.f32.mxu0 0.0
      %754 = vmatmul.mubr.f32.gmra.mxu0 %v398
      %v755 = vpop.f32.mrf.mxu0
      %v756 = vadd.f32 %v244, %v755
      %v757 = vpop.f32.mrf.mxu0
      %758 = vmatprep.mubr.f32.mxu0 0.0
      %759 = vmatmul.mubr.f32.gmra.mxu0 %v401
      %v760 = vpop.f32.mrf.mxu0
      %v761 = vadd.f32 %v244, %v760
      %v762 = vpop.f32.mrf.mxu0
      %763 = vmatprep.mubr.f32.mxu0 0.0
      %764 = vmatmul.mubr.f32.gmra.mxu0 %v404
      %v765 = vpop.f32.mrf.mxu0
      %v766 = vadd.f32 %v244, %v765
      %v767 = vpop.f32.mrf.mxu0
      %768 = vmatprep.mubr.f32.mxu0 0.0
      %769 = vmatmul.mubr.f32.gmra.mxu0 %v407
      %v770 = vpop.f32.mrf.mxu0
      %v771 = vadd.f32 %v244, %v770
      %v772 = vpop.f32.mrf.mxu0
      %773 = vmatprep.mubr.f32.mxu0 0.0
      %774 = vmatmul.mubr.f32.gmra.mxu0 %v410
      %v775 = vpop.f32.mrf.mxu0
      %v776 = vadd.f32 %v244, %v775
      %v777 = vpop.f32.mrf.mxu0
      %778 = vmatprep.mubr.f32.mxu0 0.0
      %779 = vmatmul.mubr.f32.gmra.mxu0 %v413
      %v780 = vpop.f32.mrf.mxu0
      %v781 = vadd.f32 %v244, %v780
      %v782 = vpop.f32.mrf.mxu0
      %783 = vmatprep.mubr.f32.mxu0 0.0
      %784 = vmatmul.mubr.f32.gmra.mxu0 %v416
      %v785 = vpop.f32.mrf.mxu0
      %v786 = vadd.f32 %v244, %v785
      %v787 = vpop.f32.mrf.mxu0
      %788 = vmatprep.mubr.f32.mxu0 0.0
      %789 = vmatmul.mubr.f32.gmra.mxu0 %v419
      %v790 = vpop.f32.mrf.mxu0
      %v791 = vadd.f32 %v244, %v790
      %v792 = vpop.f32.mrf.mxu0
      %793 = vmatprep.mubr.f32.mxu0 0.0
      %794 = vmatmul.mubr.f32.gmra.mxu0 %v422
      %v795 = vpop.f32.mrf.mxu0
      %v796 = vadd.f32 %v244, %v795
      %v797 = vpop.f32.mrf.mxu0
      %798 = vmatprep.mubr.f32.mxu0 0.0
      %799 = vmatmul.mubr.f32.gmra.mxu0 %v425
      %v800 = vpop.f32.mrf.mxu0
      %v801 = vadd.f32 %v244, %v800
      %v802 = vpop.f32.mrf.mxu0
      %803 = vmatprep.mubr.f32.mxu0 0.0
      %804 = vmatmul.mubr.f32.gmra.mxu0 %v428
      %v805 = vpop.f32.mrf.mxu0
      %v806 = vadd.f32 %v244, %v805
      %v807 = vpop.f32.mrf.mxu0
      %808 = vmatprep.mubr.f32.mxu0 0.0
      %809 = vmatmul.mubr.f32.gmra.mxu0 %v431
      %v810 = vpop.f32.mrf.mxu0
      %v811 = vadd.f32 %v244, %v810
      %v812 = vpop.f32.mrf.mxu0
      %813 = vmatprep.mubr.f32.mxu0 0.0
      %814 = vmatmul.mubr.f32.gmra.mxu0 %v434
      %v815 = vpop.f32.mrf.mxu0
      %v816 = vadd.f32 %v244, %v815
      %v817 = vpop.f32.mrf.mxu0
      %818 = vmatprep.mubr.f32.mxu0 0.0
      %819 = vmatmul.mubr.f32.gmra.mxu0 %v437
      %v820 = vpop.f32.mrf.mxu0
      %v821 = vadd.f32 %v244, %v820
      %v822 = vpop.f32.mrf.mxu0
      %823 = vdwg.mxu0
      %vm824 = vcmask 15360
      %825 = vst.msk [vmem:[%s172] sm:$0xff] %vm824, %v506
      %826 = vst.msk [vmem:[%s172 + $0x8] sm:$0xff] %vm824, %v511
      %827 = vst.msk [vmem:[%s172 + $0x10] sm:$0xff] %vm824, %v516
      %828 = vst.msk [vmem:[%s172 + $0x18] sm:$0xff] %vm824, %v521
      %829 = vst.msk [vmem:[%s172 + $0x20] sm:$0xff] %vm824, %v526
      %830 = vst.msk [vmem:[%s172 + $0x28] sm:$0xff] %vm824, %v531
      %831 = vst.msk [vmem:[%s172 + $0x30] sm:$0xff] %vm824, %v536
      %832 = vst.msk [vmem:[%s172 + $0x38] sm:$0xff] %vm824, %v541
      %833 = vst.msk [vmem:[%s172 + $0x40] sm:$0xff] %vm824, %v546
      %834 = vst.msk [vmem:[%s172 + $0x48] sm:$0xff] %vm824, %v551
      %835 = vst.msk [vmem:[%s172 + $0x50] sm:$0xff] %vm824, %v556
      %836 = vst.msk [vmem:[%s172 + $0x58] sm:$0xff] %vm824, %v561
      %837 = vst.msk [vmem:[%s172 + $0x60] sm:$0xff] %vm824, %v566
      %838 = vst.msk [vmem:[%s172 + $0x68] sm:$0xff] %vm824, %v571
      %839 = vst.msk [vmem:[%s172 + $0x70] sm:$0xff] %vm824, %v576
      %840 = vst.msk [vmem:[%s172 + $0x78] sm:$0xff] %vm824, %v581
      %841 = vst.msk [vmem:[%s172 + $0x80] sm:$0xff] %vm824, %v586
      %842 = vst.msk [vmem:[%s172 + $0x88] sm:$0xff] %vm824, %v591
      %843 = vst.msk [vmem:[%s172 + $0x90] sm:$0xff] %vm824, %v596
      %844 = vst.msk [vmem:[%s172 + $0x98] sm:$0xff] %vm824, %v601
      %845 = vst.msk [vmem:[%s172 + $0xa0] sm:$0xff] %vm824, %v606
      %846 = vst.msk [vmem:[%s172 + $0xa8] sm:$0xff] %vm824, %v611
      %847 = vst.msk [vmem:[%s172 + $0xb0] sm:$0xff] %vm824, %v616
      %848 = vst.msk [vmem:[%s172 + $0xb8] sm:$0xff] %vm824, %v621
      %849 = vst.msk [vmem:[%s172 + $0xc0] sm:$0xff] %vm824, %v626
      %850 = vst.msk [vmem:[%s172 + $0xc8] sm:$0xff] %vm824, %v631
      %851 = vst.msk [vmem:[%s172 + $0xd0] sm:$0xff] %vm824, %v636
      %852 = vst.msk [vmem:[%s172 + $0xd8] sm:$0xff] %vm824, %v641
      %853 = vst.msk [vmem:[%s172 + $0xe0] sm:$0xff] %vm824, %v646
      %854 = vst.msk [vmem:[%s172 + $0xe8] sm:$0xff] %vm824, %v651
      %855 = vst.msk [vmem:[%s172 + $0xf0] sm:$0xff] %vm824, %v656
      %856 = vst.msk [vmem:[%s172 + $0xf8] sm:$0xff] %vm824, %v661
      %857 = vst.msk [vmem:[%s172 + $0x100] sm:$0xff] %vm824, %v666
      %858 = vst.msk [vmem:[%s172 + $0x108] sm:$0xff] %vm824, %v671
      %859 = vst.msk [vmem:[%s172 + $0x110] sm:$0xff] %vm824, %v676
      %860 = vst.msk [vmem:[%s172 + $0x118] sm:$0xff] %vm824, %v681
      %861 = vst.msk [vmem:[%s172 + $0x120] sm:$0xff] %vm824, %v686
      %862 = vst.msk [vmem:[%s172 + $0x128] sm:$0xff] %vm824, %v691
      %863 = vst.msk [vmem:[%s172 + $0x130] sm:$0xff] %vm824, %v696
      %864 = vst.msk [vmem:[%s172 + $0x138] sm:$0xff] %vm824, %v701
      %865 = vst.msk [vmem:[%s172 + $0x140] sm:$0xff] %vm824, %v706
      %866 = vst.msk [vmem:[%s172 + $0x148] sm:$0xff] %vm824, %v711
      %867 = vst.msk [vmem:[%s172 + $0x150] sm:$0xff] %vm824, %v716
      %868 = vst.msk [vmem:[%s172 + $0x158] sm:$0xff] %vm824, %v721
      %869 = vst.msk [vmem:[%s172 + $0x160] sm:$0xff] %vm824, %v726
      %870 = vst.msk [vmem:[%s172 + $0x168] sm:$0xff] %vm824, %v731
      %871 = vst.msk [vmem:[%s172 + $0x170] sm:$0xff] %vm824, %v736
      %872 = vst.msk [vmem:[%s172 + $0x178] sm:$0xff] %vm824, %v741
      %873 = vst.msk [vmem:[%s172 + $0x180] sm:$0xff] %vm824, %v746
      %874 = vst.msk [vmem:[%s172 + $0x188] sm:$0xff] %vm824, %v751
      %875 = vst.msk [vmem:[%s172 + $0x190] sm:$0xff] %vm824, %v756
      %876 = vst.msk [vmem:[%s172 + $0x198] sm:$0xff] %vm824, %v761
      %877 = vst.msk [vmem:[%s172 + $0x1a0] sm:$0xff] %vm824, %v766
      %878 = vst.msk [vmem:[%s172 + $0x1a8] sm:$0xff] %vm824, %v771
      %879 = vst.msk [vmem:[%s172 + $0x1b0] sm:$0xff] %vm824, %v776
      %880 = vst.msk [vmem:[%s172 + $0x1b8] sm:$0xff] %vm824, %v781
      %881 = vst.msk [vmem:[%s172 + $0x1c0] sm:$0xff] %vm824, %v786
      %882 = vst.msk [vmem:[%s172 + $0x1c8] sm:$0xff] %vm824, %v791
      %883 = vst.msk [vmem:[%s172 + $0x1d0] sm:$0xff] %vm824, %v796
      %884 = vst.msk [vmem:[%s172 + $0x1d8] sm:$0xff] %vm824, %v801
      %885 = vst.msk [vmem:[%s172 + $0x1e0] sm:$0xff] %vm824, %v806
      %886 = vst.msk [vmem:[%s172 + $0x1e8] sm:$0xff] %vm824, %v811
      %887 = vst.msk [vmem:[%s172 + $0x1f0] sm:$0xff] %vm824, %v816
      %888 = vst.msk [vmem:[%s172 + $0x1f8] sm:$0xff] %vm824, %v821
      %s889 = smul.u32 64, %s14
      %p890 = scmp.lt.s32.totalorder %s889, 575
      %s891 = scalar_select %p890, %s889, 575
      %s892 = smul.addr %s891, 8
      %s893 = scalar_lea.vmem %s3, %s892
      // Predicated region
      $region33: #{esa_forward.14} parent=31 // pred_check
        %p894 = pneg %p100
      $region34: #{esa_forward.14} parent=31 // pred_check_branch
        %896 = sbr.rel (%p894) target = $region36
      $region35: #{esa_forward.14} parent=31 // pred_region
        %s897 = smul.u32 64, %s14
      $region36: #{esa_forward.14} parent=31 // pred_fallthru
        _
    $region32: #{esa_forward.14} parent=5 // pred_fallthru
      _
    %p898 = scmp.le.s32.totalorder 2, %s9
    // Predicated region
    $region37: #{esa_forward.14} parent=5 // pred_check
      %p899 = pneg %p898
    $region38: #{esa_forward.14} parent=5 // pred_check_branch
      %901 = sbr.rel (%p899) target = $region40
    $region39: #{esa_forward.14} parent=5 // pred_region
      %s902 = ssub.s32 %s9, 2
      // Predicated region
      $region41: #{esa_forward.14} parent=39 // pred_check
        %p903 = pneg %p106
      $region42: #{esa_forward.14} parent=39 // pred_check_branch
        %905 = sbr.rel (%p903) target = $region44
      $region43: #{esa_forward.14} parent=39 // pred_region
        %s906 = smul.u32 64, %s15
        %p907 = scmp.lt.s32.totalorder %s906, 575
        %s908 = scalar_select %p907, %s906, 575
        %s909 = smul.addr %s908, 8
        %s910 = scalar_lea.vmem %s3, %s909
      $region44: #{esa_forward.14} parent=39 // pred_fallthru
        _
    $region40: #{esa_forward.14} parent=5 // pred_fallthru
      _
  $region6: #{esa_forward.14} parent=0 // loop_footer
    %s13 = sadd.s32 1, %s9
  $region7: #{esa_forward.14} parent=0 // loop_footer_branch
    %8 = sbr.rel target = $region3
  $region8: #{esa_forward.14} parent=0 // loop_exit
    _

// kernel: esa_forward.15
$region0: #{esa_forward.15}
  #allocation0 [shape = 'u32[]', space=smem, size = 0x4, offset = 0x4, fixed_abs, tag = 'smem constant byte address 0x4 - core index']
  #allocation1 [shape = 'u32[144,128]{1,0:T(1,128)}', space=vmem, size = 0x12000, scoped, tag = 'internal scratch']
  %s0 = inlined_call_operand.vmem [shape: f32[1152,18], index: 0, kind: input, shape index: {}]
  %s1 = inlined_call_operand.vmem [shape: f32[18,8], index: 1, kind: input, shape index: {}]
  %s2 = inlined_call_operand.vmem [shape: f32[1,8], index: 2, kind: input, shape index: {}]
  %s3 = inlined_call_operand.vmem [shape: f32[1152,8], index: 3, kind: output, shape index: {}]
  %s4 = sld [smem:[#allocation0]]
  $region45: #{esa_forward.15} parent=0
    _
  %s6 = ssub.s32 1, %s4
  %s7 = scalar_select 0, %s6, %s4
  loop: start=0, step=1, limit=5
  $region2: #{esa_forward.15} parent=0 // loop_pre_header
    _
  $region3: #{esa_forward.15} parent=0 // loop_header
    %s9 = sphi 0, %s13
    %p10 = scmp.ge.s32.totalorder %s9, 5
    %s19 = sphi 0, %s21
    %s22 = sphi 0, %s19
    %s23 = sphi 0, %s22
    %s39 = sphi 0, %s23
    %s43 = sphi 0, %s43
    %s45 = sphi 0, %s43
    %s46 = sphi 0, %s45
    %s60 = sphi 0, %s46
    %s64 = sphi 0, %s64
    %s66 = sphi 0, %s64
    %s67 = sphi 0, %s66
    %s81 = sphi 0, %s67
    %s87 = sphi 0, %s89
    %s90 = sphi 0, %s87
    %s91 = sphi 0, %s90
    %s107 = sphi 0, %s91
  $region4: #{esa_forward.15} parent=0 // loop_header_branch
    %12 = sbr.rel (%p10) target = $region8
  $region5: #{esa_forward.15} parent=0 // loop_body
    %s14 = ssub.s32 %s9, 1
    %s15 = ssub.s32 %s9, 2
    %s16 = sadd.s32 %s9, 1
    %s17 = ssub.s32 %s9, %s16
    %p18 = scmp.eq.s32.totalorder %s17, 0
    %s20 = sadd.s32 %s19, 1
    %s21 = scalar_select %p18, %s19, %s20
    %p24 = pneg %p18
    %p25 = scmp.eq.s32.totalorder %s9, 2
    %p26 = por %p24, %p25
    %p27 = scmp.ne.s32.totalorder %s19, %s22
    %p28 = scmp.eq.s32.totalorder %s9, 0
    %p29 = por %p27, %p28
    %p30 = scmp.ne.s32.totalorder %s19, %s22
    %p31 = scmp.eq.s32.totalorder %s14, 2
    %p32 = por %p30, %p31
    %p33 = scmp.ne.s32.totalorder %s22, %s23
    %p34 = scmp.eq.s32.totalorder %s14, 0
    %p35 = por %p33, %p34
    %p36 = scmp.ne.s32.totalorder %s22, %s23
    %p37 = scmp.eq.s32.totalorder %s15, 2
    %p38 = por %p36, %p37
    %p40 = scmp.ne.s32.totalorder %s23, %s39
    %p41 = scmp.eq.s32.totalorder %s15, 0
    %p42 = por %p40, %p41
    %s44 = sadd.s32 %s43, 1
    %p47 = scmp.eq.s32.totalorder %s9, 2
    %p48 = scmp.ne.s32.totalorder %s43, %s45
    %p49 = scmp.eq.s32.totalorder %s9, 0
    %p50 = por %p48, %p49
    %p51 = scmp.ne.s32.totalorder %s43, %s45
    %p52 = scmp.eq.s32.totalorder %s14, 2
    %p53 = por %p51, %p52
    %p54 = scmp.ne.s32.totalorder %s45, %s46
    %p55 = scmp.eq.s32.totalorder %s14, 0
    %p56 = por %p54, %p55
    %p57 = scmp.ne.s32.totalorder %s45, %s46
    %p58 = scmp.eq.s32.totalorder %s15, 2
    %p59 = por %p57, %p58
    %p61 = scmp.ne.s32.totalorder %s46, %s60
    %p62 = scmp.eq.s32.totalorder %s15, 0
    %p63 = por %p61, %p62
    %s65 = sadd.s32 %s64, 1
    %p68 = scmp.eq.s32.totalorder %s9, 2
    %p69 = scmp.ne.s32.totalorder %s64, %s66
    %p70 = scmp.eq.s32.totalorder %s9, 0
    %p71 = por %p69, %p70
    %p72 = scmp.ne.s32.totalorder %s64, %s66
    %p73 = scmp.eq.s32.totalorder %s14, 2
    %p74 = por %p72, %p73
    %p75 = scmp.ne.s32.totalorder %s66, %s67
    %p76 = scmp.eq.s32.totalorder %s14, 0
    %p77 = por %p75, %p76
    %p78 = scmp.ne.s32.totalorder %s66, %s67
    %p79 = scmp.eq.s32.totalorder %s15, 2
    %p80 = por %p78, %p79
    %p82 = scmp.ne.s32.totalorder %s67, %s81
    %p83 = scmp.eq.s32.totalorder %s15, 0
    %p84 = por %p82, %p83
    %s85 = ssub.s32 %s9, %s16
    %p86 = scmp.eq.s32.totalorder %s85, 0
    %s88 = sadd.s32 %s87, 1
    %s89 = scalar_select %p86, %s87, %s88
    %p92 = pneg %p86
    %p93 = scmp.eq.s32.totalorder %s9, 2
    %p94 = por %p92, %p93
    %p95 = scmp.ne.s32.totalorder %s87, %s90
    %p96 = scmp.eq.s32.totalorder %s9, 0
    %p97 = por %p95, %p96
    %p98 = scmp.ne.s32.totalorder %s87, %s90
    %p99 = scmp.eq.s32.totalorder %s14, 2
    %p100 = por %p98, %p99
    %p101 = scmp.ne.s32.totalorder %s90, %s91
    %p102 = scmp.eq.s32.totalorder %s14, 0
    %p103 = por %p101, %p102
    %p104 = scmp.ne.s32.totalorder %s90, %s91
    %p105 = scmp.eq.s32.totalorder %s15, 2
    %p106 = por %p104, %p105
    %p108 = scmp.ne.s32.totalorder %s91, %s107
    %p109 = scmp.eq.s32.totalorder %s15, 0
    %p110 = por %p108, %p109
    %p111 = scmp.le.s32.totalorder 1, %s9
    %p112 = scmp.lt.s32.totalorder %s9, 4
    %p113 = pnand %p111, %p112
    %p114 = pneg %p113
    // Predicated region
    $region9: #{esa_forward.15} parent=5 // pred_check
      _
    $region10: #{esa_forward.15} parent=5 // pred_check_branch
      %116 = sbr.rel (%p113) target = $region12
    $region11: #{esa_forward.15} parent=5 // pred_region
      %s117 = ssub.s32 %s9, 1
      // Predicated region
      $region13: #{esa_forward.15} parent=11 // pred_check
        %p118 = pneg %p56
      $region14: #{esa_forward.15} parent=11 // pred_check_branch
        %120 = sbr.rel (%p118) target = $region16
      $region15: #{esa_forward.15} parent=11 // pred_region
        _
      $region16: #{esa_forward.15} parent=11 // pred_fallthru
        _
      // Predicated region
      $region17: #{esa_forward.15} parent=11 // pred_check
        %p121 = pneg %p77
      $region18: #{esa_forward.15} parent=11 // pred_check_branch
        %123 = sbr.rel (%p121) target = $region20
      $region19: #{esa_forward.15} parent=11 // pred_region
        _
      $region20: #{esa_forward.15} parent=11 // pred_fallthru
        _
    $region12: #{esa_forward.15} parent=5 // pred_fallthru
      _
    %p124 = scmp.lt.s32.totalorder %s9, 3
    // Predicated region
    $region21: #{esa_forward.15} parent=5 // pred_check
      %p125 = pneg %p124
    $region22: #{esa_forward.15} parent=5 // pred_check_branch
      %127 = sbr.rel (%p125) target = $region24
    $region23: #{esa_forward.15} parent=5 // pred_region
      // Predicated region
      $region25: #{esa_forward.15} parent=23 // pred_check
        %p128 = pneg %p29
      $region26: #{esa_forward.15} parent=23 // pred_check_branch
        %130 = sbr.rel (%p128) target = $region28
      $region27: #{esa_forward.15} parent=23 // pred_region
        %s131 = smul.u32 48, %s9
        %p132 = scmp.lt.s32.totalorder %s131, 143
        %s133 = scalar_select %p132, %s131, 143
        %s134 = smul.addr %s133, 8
        %s135 = scalar_lea.vmem %s0, %s134
        %s136 = smul.u32 48, %s9
      $region28: #{esa_forward.15} parent=23 // pred_fallthru
        _
    $region24: #{esa_forward.15} parent=5 // pred_fallthru
      _
    %p137 = scmp.le.s32.totalorder 1, %s9
    %p138 = scmp.lt.s32.totalorder %s9, 4
    %p139 = pnand %p137, %p138
    %p140 = pneg %p139
    // Predicated region
    $region29: #{esa_forward.15} parent=5 // pred_check
      _
    $region30: #{esa_forward.15} parent=5 // pred_check_branch
      %142 = sbr.rel (%p139) target = $region32
    $region31: #{esa_forward.15} parent=5 // pred_region
      %s143 = ssub.s32 %s9, 1
      %s144 = smul.u32 48, %s14
      %p145 = scmp.lt.s32.totalorder %s144, 143
      %s146 = scalar_select %p145, %s144, 143
      %s147 = smul.addr %s146, 8
      %s148 = scalar_lea.vmem %s0, %s147
      %p149 = pneg %p35
      %p150 = pneg %p32
      %p151 = pneg %p56
      %p152 = pneg %p53
      %p153 = pneg %p77
      %p154 = pneg %p74
      %p155 = pneg %p103
      %p156 = pneg %p100
      %s157 = smul.u32 48, %s14
      %p158 = scmp.lt.s32.totalorder %s157, 143
      %s159 = scalar_select %p158, %s157, 143
      %s160 = smul.addr %s159, 8
      %s161 = scalar_lea.vmem %s3, %s160
      %s162 = smul.u32 48, %s14
      %p163 = scmp.lt.s32.totalorder %s162, 143
      %s164 = scalar_select %p163, %s162, 143
      %s165 = smul.addr %s164, 8
      %s166 = scalar_lea.vmem %s0, %s165
      %s167 = smul.u32 48, %s14
      %s168 = smul.u32 48, %s14
      %p169 = scmp.lt.s32.totalorder %s168, 143
      %s170 = scalar_select %p169, %s168, 143
      %s171 = smul.addr %s170, 8
      %s172 = scalar_lea.vmem %s3, %s171
      %s173 = smul.u32 48, %s14
      %v174 = vld [vmem:[%s166] sm:$0xff]
      %v175 = vld [vmem:[%s166 + $0x8] sm:$0xff]
      %v176 = vld [vmem:[%s166 + $0x10] sm:$0xff]
      %v177 = vld [vmem:[%s166 + $0x18] sm:$0xff]
      %v178 = vld [vmem:[%s166 + $0x20] sm:$0xff]
      %v179 = vld [vmem:[%s166 + $0x28] sm:$0xff]
      %v180 = vld [vmem:[%s166 + $0x30] sm:$0xff]
      %v181 = vld [vmem:[%s166 + $0x38] sm:$0xff]
      %v182 = vld [vmem:[%s166 + $0x40] sm:$0xff]
      %v183 = vld [vmem:[%s166 + $0x48] sm:$0xff]
      %v184 = vld [vmem:[%s166 + $0x50] sm:$0xff]
      %v185 = vld [vmem:[%s166 + $0x58] sm:$0xff]
      %v186 = vld [vmem:[%s166 + $0x60] sm:$0xff]
      %v187 = vld [vmem:[%s166 + $0x68] sm:$0xff]
      %v188 = vld [vmem:[%s166 + $0x70] sm:$0xff]
      %v189 = vld [vmem:[%s166 + $0x78] sm:$0xff]
      %v190 = vld [vmem:[%s166 + $0x80] sm:$0xff]
      %v191 = vld [vmem:[%s166 + $0x88] sm:$0xff]
      %v192 = vld [vmem:[%s166 + $0x90] sm:$0xff]
      %v193 = vld [vmem:[%s166 + $0x98] sm:$0xff]
      %v194 = vld [vmem:[%s166 + $0xa0] sm:$0xff]
      %v195 = vld [vmem:[%s166 + $0xa8] sm:$0xff]
      %v196 = vld [vmem:[%s166 + $0xb0] sm:$0xff]
      %v197 = vld [vmem:[%s166 + $0xb8] sm:$0xff]
      %v198 = vld [vmem:[%s166 + $0xc0] sm:$0xff]
      %v199 = vld [vmem:[%s166 + $0xc8] sm:$0xff]
      %v200 = vld [vmem:[%s166 + $0xd0] sm:$0xff]
      %v201 = vld [vmem:[%s166 + $0xd8] sm:$0xff]
      %v202 = vld [vmem:[%s166 + $0xe0] sm:$0xff]
      %v203 = vld [vmem:[%s166 + $0xe8] sm:$0xff]
      %v204 = vld [vmem:[%s166 + $0xf0] sm:$0xff]
      %v205 = vld [vmem:[%s166 + $0xf8] sm:$0xff]
      %v206 = vld [vmem:[%s166 + $0x100] sm:$0xff]
      %v207 = vld [vmem:[%s166 + $0x108] sm:$0xff]
      %v208 = vld [vmem:[%s166 + $0x110] sm:$0xff]
      %v209 = vld [vmem:[%s166 + $0x118] sm:$0xff]
      %v210 = vld [vmem:[%s166 + $0x120] sm:$0xff]
      %v211 = vld [vmem:[%s166 + $0x128] sm:$0xff]
      %v212 = vld [vmem:[%s166 + $0x130] sm:$0xff]
      %v213 = vld [vmem:[%s166 + $0x138] sm:$0xff]
      %v214 = vld [vmem:[%s166 + $0x140] sm:$0xff]
      %v215 = vld [vmem:[%s166 + $0x148] sm:$0xff]
      %v216 = vld [vmem:[%s166 + $0x150] sm:$0xff]
      %v217 = vld [vmem:[%s166 + $0x158] sm:$0xff]
      %v218 = vld [vmem:[%s166 + $0x160] sm:$0xff]
      %v219 = vld [vmem:[%s166 + $0x168] sm:$0xff]
      %v220 = vld [vmem:[%s166 + $0x170] sm:$0xff]
      %v221 = vld [vmem:[%s166 + $0x178] sm:$0xff]
      %v222 = vld [vmem:[%s1] sm:$0xff]
      %v223 = vld [vmem:[%s1 + $0x8] sm:$0xff]
      %v224 = vld [vmem:[%s1 + $0x10] sm:$0x3]
      %v225 = vld [vmem:[%s2] sm:$0x1]
      %v227 = vlaneseq
      %v228 = vshrl.u32 %v227, 7
      %v229 = vsub.s32 0, %v228
      %v230 = vrot.slane %v225, %v229
      %vm232 = vcmask 146432
      %v234 = vsel %vm232, %v174, 0
      %v237 = vsel %vm232, %v175, 0
      %v240 = vsel %vm232, %v176, 0
      %v243 = vsel %vm232, %v177, 0
      %v246 = vsel %vm232, %v178, 0
      %v249 = vsel %vm232, %v179, 0
      %v252 = vsel %vm232, %v180, 0
      %v255 = vsel %vm232, %v181, 0
      %v258 = vsel %vm232, %v182, 0
      %v261 = vsel %vm232, %v183, 0
      %v264 = vsel %vm232, %v184, 0
      %v267 = vsel %vm232, %v185, 0
      %v270 = vsel %vm232, %v186, 0
      %v273 = vsel %vm232, %v187, 0
      %v276 = vsel %vm232, %v188, 0
      %v279 = vsel %vm232, %v189, 0
      %v282 = vsel %vm232, %v190, 0
      %v285 = vsel %vm232, %v191, 0
      %v288 = vsel %vm232, %v192, 0
      %v291 = vsel %vm232, %v193, 0
      %v294 = vsel %vm232, %v194, 0
      %v297 = vsel %vm232, %v195, 0
      %v300 = vsel %vm232, %v196, 0
      %v303 = vsel %vm232, %v197, 0
      %v306 = vsel %vm232, %v198, 0
      %v309 = vsel %vm232, %v199, 0
      %v312 = vsel %vm232, %v200, 0
      %v315 = vsel %vm232, %v201, 0
      %v318 = vsel %vm232, %v202, 0
      %v321 = vsel %vm232, %v203, 0
      %v324 = vsel %vm232, %v204, 0
      %v327 = vsel %vm232, %v205, 0
      %v330 = vsel %vm232, %v206, 0
      %v333 = vsel %vm232, %v207, 0
      %v336 = vsel %vm232, %v208, 0
      %v339 = vsel %vm232, %v209, 0
      %v342 = vsel %vm232, %v210, 0
      %v345 = vsel %vm232, %v211, 0
      %v348 = vsel %vm232, %v212, 0
      %v351 = vsel %vm232, %v213, 0
      %v354 = vsel %vm232, %v214, 0
      %v357 = vsel %vm232, %v215, 0
      %v360 = vsel %vm232, %v216, 0
      %v363 = vsel %vm232, %v217, 0
      %v366 = vsel %vm232, %v218, 0
      %v369 = vsel %vm232, %v219, 0
      %v372 = vsel %vm232, %v220, 0
      %v375 = vsel %vm232, %v221, 0
      %vm377 = vcmask 1041408
      %v379 = vsel %vm377, %v224, 0
      %381 = vmatprep.subr.mxu0 0.0
      %382 = vmatpush1.msra.mxu0 0.0
      %383 = vmatprep.subr.mxu0 0.0
      %384 = vmatpush1.msra.mxu0 0.0
      %385 = vmatprep.subr.mxu0 0.0
      %386 = vmatpush1.msra.mxu0 0.0
      %387 = vmatprep.subr.mxu0 0.0
      %388 = vmatpush1.msra.mxu0 0.0
      %389 = vmatprep.subr.mxu0 0.0
      %390 = vmatpush1.msra.mxu0 0.0
      %391 = vmatprep.subr.mxu0 0.0
      %392 = vmatpush1.msra.mxu0 0.0
      %393 = vmatprep.subr.mxu0 0.0
      %394 = vmatpush1.msra.mxu0 0.0
      %395 = vmatprep.subr.mxu0 0.0
      %396 = vmatpush1.msra.mxu0 0.0
      %397 = vmatprep.subr.mxu0 0.0
      %398 = vmatpush1.msra.mxu0 0.0
      %399 = vmatprep.subr.mxu0 0.0
      %400 = vmatpush1.msra.mxu0 0.0
      %401 = vmatprep.subr.mxu0 0.0
      %402 = vmatpush1.msra.mxu0 0.0
      %403 = vmatprep.subr.mxu0 0.0
      %404 = vmatpush1.msra.mxu0 0.0
      %405 = vmatprep.subr.mxu0 0.0
      %406 = vmatpush1.msra.mxu0 0.0
      %407 = vmatprep.subr.mxu0 0.0
      %408 = vmatpush1.msra.mxu0 %v379
      %409 = vmatprep.subr.mxu0 0.0
      %410 = vmatpush1.msra.mxu0 %v223
      %411 = vmatprep.subr.mxu0 0.0
      %412 = vmatpush1.msra.mxu0 %v222
      %413 = vmatprep.subr.mxu0 0.0
      %414 = vmatpush2.msra.mxu0 0.0
      %415 = vmatprep.subr.mxu0 0.0
      %416 = vmatpush2.msra.mxu0 0.0
      %417 = vmatprep.subr.mxu0 0.0
      %418 = vmatpush2.msra.mxu0 0.0
      %419 = vmatprep.subr.mxu0 0.0
      %420 = vmatpush2.msra.mxu0 0.0
      %421 = vmatprep.subr.mxu0 0.0
      %422 = vmatpush2.msra.mxu0 0.0
      %423 = vmatprep.subr.mxu0 0.0
      %424 = vmatpush2.msra.mxu0 0.0
      %425 = vmatprep.subr.mxu0 0.0
      %426 = vmatpush2.msra.mxu0 0.0
      %427 = vmatprep.subr.mxu0 0.0
      %428 = vmatpush2.msra.mxu0 0.0
      %429 = vmatprep.subr.mxu0 0.0
      %430 = vmatpush2.msra.mxu0 0.0
      %431 = vmatprep.subr.mxu0 0.0
      %432 = vmatpush2.msra.mxu0 0.0
      %433 = vmatprep.subr.mxu0 0.0
      %434 = vmatpush2.msra.mxu0 0.0
      %435 = vmatprep.subr.mxu0 0.0
      %436 = vmatpush2.msra.mxu0 0.0
      %437 = vmatprep.subr.mxu0 0.0
      %438 = vmatpush2.msra.mxu0 0.0
      %439 = vmatprep.subr.mxu0 0.0
      %440 = vmatpush2.msra.mxu0 0.0
      %441 = vmatprep.subr.mxu0 0.0
      %442 = vmatpush2.msra.mxu0 0.0
      %443 = vmatprep.subr.mxu0 0.0
      %444 = vmatpush2.msra.mxu0 0.0
      %445 = vmatprep.mubr.f32.mxu0 0.0
      %446 = vmatmul.mubr.f32.gmra.mxu0 %v234
      %v447 = vpop.f32.mrf.mxu0
      %v448 = vadd.f32 %v230, %v447
      %v449 = vpop.f32.mrf.mxu0
      %450 = vmatprep.mubr.f32.mxu0 0.0
      %451 = vmatmul.mubr.f32.gmra.mxu0 %v237
      %v452 = vpop.f32.mrf.mxu0
      %v453 = vadd.f32 %v230, %v452
      %v454 = vpop.f32.mrf.mxu0
      %455 = vmatprep.mubr.f32.mxu0 0.0
      %456 = vmatmul.mubr.f32.gmra.mxu0 %v240
      %v457 = vpop.f32.mrf.mxu0
      %v458 = vadd.f32 %v230, %v457
      %v459 = vpop.f32.mrf.mxu0
      %460 = vmatprep.mubr.f32.mxu0 0.0
      %461 = vmatmul.mubr.f32.gmra.mxu0 %v243
      %v462 = vpop.f32.mrf.mxu0
      %v463 = vadd.f32 %v230, %v462
      %v464 = vpop.f32.mrf.mxu0
      %465 = vmatprep.mubr.f32.mxu0 0.0
      %466 = vmatmul.mubr.f32.gmra.mxu0 %v246
      %v467 = vpop.f32.mrf.mxu0
      %v468 = vadd.f32 %v230, %v467
      %v469 = vpop.f32.mrf.mxu0
      %470 = vmatprep.mubr.f32.mxu0 0.0
      %471 = vmatmul.mubr.f32.gmra.mxu0 %v249
      %v472 = vpop.f32.mrf.mxu0
      %v473 = vadd.f32 %v230, %v472
      %v474 = vpop.f32.mrf.mxu0
      %475 = vmatprep.mubr.f32.mxu0 0.0
      %476 = vmatmul.mubr.f32.gmra.mxu0 %v252
      %v477 = vpop.f32.mrf.mxu0
      %v478 = vadd.f32 %v230, %v477
      %v479 = vpop.f32.mrf.mxu0
      %480 = vmatprep.mubr.f32.mxu0 0.0
      %481 = vmatmul.mubr.f32.gmra.mxu0 %v255
      %v482 = vpop.f32.mrf.mxu0
      %v483 = vadd.f32 %v230, %v482
      %v484 = vpop.f32.mrf.mxu0
      %485 = vmatprep.mubr.f32.mxu0 0.0
      %486 = vmatmul.mubr.f32.gmra.mxu0 %v258
      %v487 = vpop.f32.mrf.mxu0
      %v488 = vadd.f32 %v230, %v487
      %v489 = vpop.f32.mrf.mxu0
      %490 = vmatprep.mubr.f32.mxu0 0.0
      %491 = vmatmul.mubr.f32.gmra.mxu0 %v261
      %v492 = vpop.f32.mrf.mxu0
      %v493 = vadd.f32 %v230, %v492
      %v494 = vpop.f32.mrf.mxu0
      %495 = vmatprep.mubr.f32.mxu0 0.0
      %496 = vmatmul.mubr.f32.gmra.mxu0 %v264
      %v497 = vpop.f32.mrf.mxu0
      %v498 = vadd.f32 %v230, %v497
      %v499 = vpop.f32.mrf.mxu0
      %500 = vmatprep.mubr.f32.mxu0 0.0
      %501 = vmatmul.mubr.f32.gmra.mxu0 %v267
      %v502 = vpop.f32.mrf.mxu0
      %v503 = vadd.f32 %v230, %v502
      %v504 = vpop.f32.mrf.mxu0
      %505 = vmatprep.mubr.f32.mxu0 0.0
      %506 = vmatmul.mubr.f32.gmra.mxu0 %v270
      %v507 = vpop.f32.mrf.mxu0
      %v508 = vadd.f32 %v230, %v507
      %v509 = vpop.f32.mrf.mxu0
      %510 = vmatprep.mubr.f32.mxu0 0.0
      %511 = vmatmul.mubr.f32.gmra.mxu0 %v273
      %v512 = vpop.f32.mrf.mxu0
      %v513 = vadd.f32 %v230, %v512
      %v514 = vpop.f32.mrf.mxu0
      %515 = vmatprep.mubr.f32.mxu0 0.0
      %516 = vmatmul.mubr.f32.gmra.mxu0 %v276
      %v517 = vpop.f32.mrf.mxu0
      %v518 = vadd.f32 %v230, %v517
      %v519 = vpop.f32.mrf.mxu0
      %520 = vmatprep.mubr.f32.mxu0 0.0
      %521 = vmatmul.mubr.f32.gmra.mxu0 %v279
      %v522 = vpop.f32.mrf.mxu0
      %v523 = vadd.f32 %v230, %v522
      %v524 = vpop.f32.mrf.mxu0
      %525 = vmatprep.mubr.f32.mxu0 0.0
      %526 = vmatmul.mubr.f32.gmra.mxu0 %v282
      %v527 = vpop.f32.mrf.mxu0
      %v528 = vadd.f32 %v230, %v527
      %v529 = vpop.f32.mrf.mxu0
      %530 = vmatprep.mubr.f32.mxu0 0.0
      %531 = vmatmul.mubr.f32.gmra.mxu0 %v285
      %v532 = vpop.f32.mrf.mxu0
      %v533 = vadd.f32 %v230, %v532
      %v534 = vpop.f32.mrf.mxu0
      %535 = vmatprep.mubr.f32.mxu0 0.0
      %536 = vmatmul.mubr.f32.gmra.mxu0 %v288
      %v537 = vpop.f32.mrf.mxu0
      %v538 = vadd.f32 %v230, %v537
      %v539 = vpop.f32.mrf.mxu0
      %540 = vmatprep.mubr.f32.mxu0 0.0
      %541 = vmatmul.mubr.f32.gmra.mxu0 %v291
      %v542 = vpop.f32.mrf.mxu0
      %v543 = vadd.f32 %v230, %v542
      %v544 = vpop.f32.mrf.mxu0
      %545 = vmatprep.mubr.f32.mxu0 0.0
      %546 = vmatmul.mubr.f32.gmra.mxu0 %v294
      %v547 = vpop.f32.mrf.mxu0
      %v548 = vadd.f32 %v230, %v547
      %v549 = vpop.f32.mrf.mxu0
      %550 = vmatprep.mubr.f32.mxu0 0.0
      %551 = vmatmul.mubr.f32.gmra.mxu0 %v297
      %v552 = vpop.f32.mrf.mxu0
      %v553 = vadd.f32 %v230, %v552
      %v554 = vpop.f32.mrf.mxu0
      %555 = vmatprep.mubr.f32.mxu0 0.0
      %556 = vmatmul.mubr.f32.gmra.mxu0 %v300
      %v557 = vpop.f32.mrf.mxu0
      %v558 = vadd.f32 %v230, %v557
      %v559 = vpop.f32.mrf.mxu0
      %560 = vmatprep.mubr.f32.mxu0 0.0
      %561 = vmatmul.mubr.f32.gmra.mxu0 %v303
      %v562 = vpop.f32.mrf.mxu0
      %v563 = vadd.f32 %v230, %v562
      %v564 = vpop.f32.mrf.mxu0
      %565 = vmatprep.mubr.f32.mxu0 0.0
      %566 = vmatmul.mubr.f32.gmra.mxu0 %v306
      %v567 = vpop.f32.mrf.mxu0
      %v568 = vadd.f32 %v230, %v567
      %v569 = vpop.f32.mrf.mxu0
      %570 = vmatprep.mubr.f32.mxu0 0.0
      %571 = vmatmul.mubr.f32.gmra.mxu0 %v309
      %v572 = vpop.f32.mrf.mxu0
      %v573 = vadd.f32 %v230, %v572
      %v574 = vpop.f32.mrf.mxu0
      %575 = vmatprep.mubr.f32.mxu0 0.0
      %576 = vmatmul.mubr.f32.gmra.mxu0 %v312
      %v577 = vpop.f32.mrf.mxu0
      %v578 = vadd.f32 %v230, %v577
      %v579 = vpop.f32.mrf.mxu0
      %580 = vmatprep.mubr.f32.mxu0 0.0
      %581 = vmatmul.mubr.f32.gmra.mxu0 %v315
      %v582 = vpop.f32.mrf.mxu0
      %v583 = vadd.f32 %v230, %v582
      %v584 = vpop.f32.mrf.mxu0
      %585 = vmatprep.mubr.f32.mxu0 0.0
      %586 = vmatmul.mubr.f32.gmra.mxu0 %v318
      %v587 = vpop.f32.mrf.mxu0
      %v588 = vadd.f32 %v230, %v587
      %v589 = vpop.f32.mrf.mxu0
      %590 = vmatprep.mubr.f32.mxu0 0.0
      %591 = vmatmul.mubr.f32.gmra.mxu0 %v321
      %v592 = vpop.f32.mrf.mxu0
      %v593 = vadd.f32 %v230, %v592
      %v594 = vpop.f32.mrf.mxu0
      %595 = vmatprep.mubr.f32.mxu0 0.0
      %596 = vmatmul.mubr.f32.gmra.mxu0 %v324
      %v597 = vpop.f32.mrf.mxu0
      %v598 = vadd.f32 %v230, %v597
      %v599 = vpop.f32.mrf.mxu0
      %600 = vmatprep.mubr.f32.mxu0 0.0
      %601 = vmatmul.mubr.f32.gmra.mxu0 %v327
      %v602 = vpop.f32.mrf.mxu0
      %v603 = vadd.f32 %v230, %v602
      %v604 = vpop.f32.mrf.mxu0
      %605 = vmatprep.mubr.f32.mxu0 0.0
      %606 = vmatmul.mubr.f32.gmra.mxu0 %v330
      %v607 = vpop.f32.mrf.mxu0
      %v608 = vadd.f32 %v230, %v607
      %v609 = vpop.f32.mrf.mxu0
      %610 = vmatprep.mubr.f32.mxu0 0.0
      %611 = vmatmul.mubr.f32.gmra.mxu0 %v333
      %v612 = vpop.f32.mrf.mxu0
      %v613 = vadd.f32 %v230, %v612
      %v614 = vpop.f32.mrf.mxu0
      %615 = vmatprep.mubr.f32.mxu0 0.0
      %616 = vmatmul.mubr.f32.gmra.mxu0 %v336
      %v617 = vpop.f32.mrf.mxu0
      %v618 = vadd.f32 %v230, %v617
      %v619 = vpop.f32.mrf.mxu0
      %620 = vmatprep.mubr.f32.mxu0 0.0
      %621 = vmatmul.mubr.f32.gmra.mxu0 %v339
      %v622 = vpop.f32.mrf.mxu0
      %v623 = vadd.f32 %v230, %v622
      %v624 = vpop.f32.mrf.mxu0
      %625 = vmatprep.mubr.f32.mxu0 0.0
      %626 = vmatmul.mubr.f32.gmra.mxu0 %v342
      %v627 = vpop.f32.mrf.mxu0
      %v628 = vadd.f32 %v230, %v627
      %v629 = vpop.f32.mrf.mxu0
      %630 = vmatprep.mubr.f32.mxu0 0.0
      %631 = vmatmul.mubr.f32.gmra.mxu0 %v345
      %v632 = vpop.f32.mrf.mxu0
      %v633 = vadd.f32 %v230, %v632
      %v634 = vpop.f32.mrf.mxu0
      %635 = vmatprep.mubr.f32.mxu0 0.0
      %636 = vmatmul.mubr.f32.gmra.mxu0 %v348
      %v637 = vpop.f32.mrf.mxu0
      %v638 = vadd.f32 %v230, %v637
      %v639 = vpop.f32.mrf.mxu0
      %640 = vmatprep.mubr.f32.mxu0 0.0
      %641 = vmatmul.mubr.f32.gmra.mxu0 %v351
      %v642 = vpop.f32.mrf.mxu0
      %v643 = vadd.f32 %v230, %v642
      %v644 = vpop.f32.mrf.mxu0
      %645 = vmatprep.mubr.f32.mxu0 0.0
      %646 = vmatmul.mubr.f32.gmra.mxu0 %v354
      %v647 = vpop.f32.mrf.mxu0
      %v648 = vadd.f32 %v230, %v647
      %v649 = vpop.f32.mrf.mxu0
      %650 = vmatprep.mubr.f32.mxu0 0.0
      %651 = vmatmul.mubr.f32.gmra.mxu0 %v357
      %v652 = vpop.f32.mrf.mxu0
      %v653 = vadd.f32 %v230, %v652
      %v654 = vpop.f32.mrf.mxu0
      %655 = vmatprep.mubr.f32.mxu0 0.0
      %656 = vmatmul.mubr.f32.gmra.mxu0 %v360
      %v657 = vpop.f32.mrf.mxu0
      %v658 = vadd.f32 %v230, %v657
      %v659 = vpop.f32.mrf.mxu0
      %660 = vmatprep.mubr.f32.mxu0 0.0
      %661 = vmatmul.mubr.f32.gmra.mxu0 %v363
      %v662 = vpop.f32.mrf.mxu0
      %v663 = vadd.f32 %v230, %v662
      %v664 = vpop.f32.mrf.mxu0
      %665 = vmatprep.mubr.f32.mxu0 0.0
      %666 = vmatmul.mubr.f32.gmra.mxu0 %v366
      %v667 = vpop.f32.mrf.mxu0
      %v668 = vadd.f32 %v230, %v667
      %v669 = vpop.f32.mrf.mxu0
      %670 = vmatprep.mubr.f32.mxu0 0.0
      %671 = vmatmul.mubr.f32.gmra.mxu0 %v369
      %v672 = vpop.f32.mrf.mxu0
      %v673 = vadd.f32 %v230, %v672
      %v674 = vpop.f32.mrf.mxu0
      %675 = vmatprep.mubr.f32.mxu0 0.0
      %676 = vmatmul.mubr.f32.gmra.mxu0 %v372
      %v677 = vpop.f32.mrf.mxu0
      %v678 = vadd.f32 %v230, %v677
      %v679 = vpop.f32.mrf.mxu0
      %680 = vmatprep.mubr.f32.mxu0 0.0
      %681 = vmatmul.mubr.f32.gmra.mxu0 %v375
      %v682 = vpop.f32.mrf.mxu0
      %v683 = vadd.f32 %v230, %v682
      %v684 = vpop.f32.mrf.mxu0
      %685 = vdwg.mxu0
      %vm686 = vcmask 64512
      %687 = vst.msk [vmem:[%s172] sm:$0xff] %vm686, %v448
      %688 = vst.msk [vmem:[%s172 + $0x8] sm:$0xff] %vm686, %v453
      %689 = vst.msk [vmem:[%s172 + $0x10] sm:$0xff] %vm686, %v458
      %690 = vst.msk [vmem:[%s172 + $0x18] sm:$0xff] %vm686, %v463
      %691 = vst.msk [vmem:[%s172 + $0x20] sm:$0xff] %vm686, %v468
      %692 = vst.msk [vmem:[%s172 + $0x28] sm:$0xff] %vm686, %v473
      %693 = vst.msk [vmem:[%s172 + $0x30] sm:$0xff] %vm686, %v478
      %694 = vst.msk [vmem:[%s172 + $0x38] sm:$0xff] %vm686, %v483
      %695 = vst.msk [vmem:[%s172 + $0x40] sm:$0xff] %vm686, %v488
      %696 = vst.msk [vmem:[%s172 + $0x48] sm:$0xff] %vm686, %v493
      %697 = vst.msk [vmem:[%s172 + $0x50] sm:$0xff] %vm686, %v498
      %698 = vst.msk [vmem:[%s172 + $0x58] sm:$0xff] %vm686, %v503
      %699 = vst.msk [vmem:[%s172 + $0x60] sm:$0xff] %vm686, %v508
      %700 = vst.msk [vmem:[%s172 + $0x68] sm:$0xff] %vm686, %v513
      %701 = vst.msk [vmem:[%s172 + $0x70] sm:$0xff] %vm686, %v518
      %702 = vst.msk [vmem:[%s172 + $0x78] sm:$0xff] %vm686, %v523
      %703 = vst.msk [vmem:[%s172 + $0x80] sm:$0xff] %vm686, %v528
      %704 = vst.msk [vmem:[%s172 + $0x88] sm:$0xff] %vm686, %v533
      %705 = vst.msk [vmem:[%s172 + $0x90] sm:$0xff] %vm686, %v538
      %706 = vst.msk [vmem:[%s172 + $0x98] sm:$0xff] %vm686, %v543
      %707 = vst.msk [vmem:[%s172 + $0xa0] sm:$0xff] %vm686, %v548
      %708 = vst.msk [vmem:[%s172 + $0xa8] sm:$0xff] %vm686, %v553
      %709 = vst.msk [vmem:[%s172 + $0xb0] sm:$0xff] %vm686, %v558
      %710 = vst.msk [vmem:[%s172 + $0xb8] sm:$0xff] %vm686, %v563
      %711 = vst.msk [vmem:[%s172 + $0xc0] sm:$0xff] %vm686, %v568
      %712 = vst.msk [vmem:[%s172 + $0xc8] sm:$0xff] %vm686, %v573
      %713 = vst.msk [vmem:[%s172 + $0xd0] sm:$0xff] %vm686, %v578
      %714 = vst.msk [vmem:[%s172 + $0xd8] sm:$0xff] %vm686, %v583
      %715 = vst.msk [vmem:[%s172 + $0xe0] sm:$0xff] %vm686, %v588
      %716 = vst.msk [vmem:[%s172 + $0xe8] sm:$0xff] %vm686, %v593
      %717 = vst.msk [vmem:[%s172 + $0xf0] sm:$0xff] %vm686, %v598
      %718 = vst.msk [vmem:[%s172 + $0xf8] sm:$0xff] %vm686, %v603
      %719 = vst.msk [vmem:[%s172 + $0x100] sm:$0xff] %vm686, %v608
      %720 = vst.msk [vmem:[%s172 + $0x108] sm:$0xff] %vm686, %v613
      %721 = vst.msk [vmem:[%s172 + $0x110] sm:$0xff] %vm686, %v618
      %722 = vst.msk [vmem:[%s172 + $0x118] sm:$0xff] %vm686, %v623
      %723 = vst.msk [vmem:[%s172 + $0x120] sm:$0xff] %vm686, %v628
      %724 = vst.msk [vmem:[%s172 + $0x128] sm:$0xff] %vm686, %v633
      %725 = vst.msk [vmem:[%s172 + $0x130] sm:$0xff] %vm686, %v638
      %726 = vst.msk [vmem:[%s172 + $0x138] sm:$0xff] %vm686, %v643
      %727 = vst.msk [vmem:[%s172 + $0x140] sm:$0xff] %vm686, %v648
      %728 = vst.msk [vmem:[%s172 + $0x148] sm:$0xff] %vm686, %v653
      %729 = vst.msk [vmem:[%s172 + $0x150] sm:$0xff] %vm686, %v658
      %730 = vst.msk [vmem:[%s172 + $0x158] sm:$0xff] %vm686, %v663
      %731 = vst.msk [vmem:[%s172 + $0x160] sm:$0xff] %vm686, %v668
      %732 = vst.msk [vmem:[%s172 + $0x168] sm:$0xff] %vm686, %v673
      %733 = vst.msk [vmem:[%s172 + $0x170] sm:$0xff] %vm686, %v678
      %734 = vst.msk [vmem:[%s172 + $0x178] sm:$0xff] %vm686, %v683
      %s735 = smul.u32 48, %s14
      %p736 = scmp.lt.s32.totalorder %s735, 143
      %s737 = scalar_select %p736, %s735, 143
      %s738 = smul.addr %s737, 8
      %s739 = scalar_lea.vmem %s3, %s738
      // Predicated region
      $region33: #{esa_forward.15} parent=31 // pred_check
        %p740 = pneg %p100
      $region34: #{esa_forward.15} parent=31 // pred_check_branch
        %742 = sbr.rel (%p740) target = $region36
      $region35: #{esa_forward.15} parent=31 // pred_region
        %s743 = smul.u32 48, %s14
      $region36: #{esa_forward.15} parent=31 // pred_fallthru
        _
    $region32: #{esa_forward.15} parent=5 // pred_fallthru
      _
    %p744 = scmp.le.s32.totalorder 2, %s9
    // Predicated region
    $region37: #{esa_forward.15} parent=5 // pred_check
      %p745 = pneg %p744
    $region38: #{esa_forward.15} parent=5 // pred_check_branch
      %747 = sbr.rel (%p745) target = $region40
    $region39: #{esa_forward.15} parent=5 // pred_region
      %s748 = ssub.s32 %s9, 2
      // Predicated region
      $region41: #{esa_forward.15} parent=39 // pred_check
        %p749 = pneg %p106
      $region42: #{esa_forward.15} parent=39 // pred_check_branch
        %751 = sbr.rel (%p749) target = $region44
      $region43: #{esa_forward.15} parent=39 // pred_region
        %s752 = smul.u32 48, %s15
        %p753 = scmp.lt.s32.totalorder %s752, 143
        %s754 = scalar_select %p753, %s752, 143
        %s755 = smul.addr %s754, 8
        %s756 = scalar_lea.vmem %s3, %s755
      $region44: #{esa_forward.15} parent=39 // pred_fallthru
        _
    $region40: #{esa_forward.15} parent=5 // pred_fallthru
      _
  $region6: #{esa_forward.15} parent=0 // loop_footer
    %s13 = sadd.s32 1, %s9
  $region7: #{esa_forward.15} parent=0 // loop_footer_branch
    %8 = sbr.rel target = $region3
  $region8: #{esa_forward.15} parent=0 // loop_exit
    _

// kernel: esa_forward.16
$region0: #{esa_forward.16}
  #allocation0 [shape = 'u32[]', space=smem, size = 0x4, offset = 0x4, fixed_abs, tag = 'smem constant byte address 0x4 - core index']
  #allocation1 [shape = 'u32[144,128]{1,0:T(1,128)}', space=vmem, size = 0x12000, scoped, tag = 'internal scratch']
  %s0 = inlined_call_operand.vmem [shape: f32[9,16,16], index: 0, kind: input, shape index: {}]
  %s1 = inlined_call_operand.vmem [shape: f32[16,16], index: 1, kind: output, shape index: {}]
  %s2 = sld [smem:[#allocation0]]
  $region14: #{esa_forward.16} parent=0
    _
  %s4 = ssub.s32 1, %s2
  %s5 = scalar_select 0, %s4, %s2
  // Predicated region
  $region2: #{esa_forward.16} parent=0 // pred_check
    _
  $region3: #{esa_forward.16} parent=0 // pred_check_branch
    %7 = sbr.rel (0) target = $region5
  $region4: #{esa_forward.16} parent=0 // pred_region
    _
  $region5: #{esa_forward.16} parent=0 // pred_fallthru
    _
  %v8 = vld [vmem:[%s0] sm:$0xff]
  %v9 = vld [vmem:[%s0 + $0x8] sm:$0xff]
  %v10 = vld [vmem:[%s0 + $0x10] sm:$0xff]
  %v11 = vld [vmem:[%s0 + $0x18] sm:$0xff]
  %v12 = vld [vmem:[%s0 + $0x20] sm:$0xff]
  %v13 = vld [vmem:[%s0 + $0x28] sm:$0xff]
  %v14 = vld [vmem:[%s0 + $0x30] sm:$0xff]
  %v15 = vld [vmem:[%s0 + $0x38] sm:$0xff]
  %v16 = vld [vmem:[%s0 + $0x40] sm:$0xff]
  %v17 = vld [vmem:[%s0 + $0x48] sm:$0xff]
  %v18 = vld [vmem:[%s0 + $0x50] sm:$0xff]
  %v19 = vld [vmem:[%s0 + $0x58] sm:$0xff]
  %v20 = vld [vmem:[%s0 + $0x60] sm:$0xff]
  %v21 = vld [vmem:[%s0 + $0x68] sm:$0xff]
  %v22 = vld [vmem:[%s0 + $0x70] sm:$0xff]
  %v23 = vld [vmem:[%s0 + $0x78] sm:$0xff]
  %v24 = vld [vmem:[%s0 + $0x80] sm:$0xff]
  %v25 = vld [vmem:[%s0 + $0x88] sm:$0xff]
  %vm26 = vcmask 130048
  %v27 = vsel %vm26, %v8, -inf
  %v28 = vsel %vm26, %v10, -inf
  %v29 = vsel %vm26, %v12, -inf
  %v30 = vmax.f32 %v27, %v29
  %v31 = vsel %vm26, %v14, -inf
  %v32 = vmax.f32 %v28, %v31
  %v33 = vsel %vm26, %v16, -inf
  %v34 = vmax.f32 %v30, %v33
  %v35 = vsel %vm26, %v18, -inf
  %v36 = vmax.f32 %v32, %v35
  %v37 = vsel %vm26, %v20, -inf
  %v38 = vmax.f32 %v34, %v37
  %v39 = vsel %vm26, %v22, -inf
  %v40 = vmax.f32 %v36, %v39
  %v41 = vsel %vm26, %v24, -inf
  %v42 = vmax.f32 %v38, %v41
  %v43 = vmax.f32 %v42, %v40
  %v44 = vsel %vm26, %v9, -inf
  %v45 = vsel %vm26, %v11, -inf
  %v46 = vsel %vm26, %v13, -inf
  %v47 = vmax.f32 %v44, %v46
  %v48 = vsel %vm26, %v15, -inf
  %v49 = vmax.f32 %v45, %v48
  %v50 = vsel %vm26, %v17, -inf
  %v51 = vmax.f32 %v47, %v50
  %v52 = vsel %vm26, %v19, -inf
  %v53 = vmax.f32 %v49, %v52
  %v54 = vsel %vm26, %v21, -inf
  %v55 = vmax.f32 %v51, %v54
  %v56 = vsel %vm26, %v23, -inf
  %v57 = vmax.f32 %v53, %v56
  %v58 = vsel %vm26, %v25, -inf
  %v59 = vmax.f32 %v55, %v58
  %v60 = vmax.f32 %v59, %v57
  %61 = vst.msk [vmem:[%s1] sm:$0xff] %vm26, %v43
  %62 = vst.msk [vmem:[%s1 + $0x8] sm:$0xff] %vm26, %v60
  // Predicated region
  $region6: #{esa_forward.16} parent=0 // pred_check
    _
  $region7: #{esa_forward.16} parent=0 // pred_check_branch
    %64 = sbr.rel (0) target = $region9
  $region8: #{esa_forward.16} parent=0 // pred_region
    _
  $region9: #{esa_forward.16} parent=0 // pred_fallthru
    _
  // Predicated region
  $region10: #{esa_forward.16} parent=0 // pred_check
    _
  $region11: #{esa_forward.16} parent=0 // pred_check_branch
    %66 = sbr.rel (0) target = $region13
  $region12: #{esa_forward.16} parent=0 // pred_region
    _
  $region13: #{esa_forward.16} parent=0 // pred_fallthru
    _

// kernel: esa_forward.20
$region0: #{esa_forward.20}
  #allocation0 [shape = 'u32[]', space=smem, size = 0x4, offset = 0x4, fixed_abs, tag = 'smem constant byte address 0x4 - core index']
  #allocation1 [shape = 'u32[144,128]{1,0:T(1,128)}', space=vmem, size = 0x12000, scoped, tag = 'internal scratch']
  %s0 = inlined_call_operand.vmem [shape: f32[72,18], index: 0, kind: input, shape index: {}]
  %s1 = inlined_call_operand.vmem [shape: f32[18,2], index: 1, kind: input, shape index: {}]
  %s2 = inlined_call_operand.vmem [shape: f32[1,2], index: 2, kind: input, shape index: {}]
  %s3 = inlined_call_operand.vmem [shape: f32[72,2], index: 3, kind: output, shape index: {}]
  %s4 = sld [smem:[#allocation0]]
  $region22: #{esa_forward.20} parent=0
    _
  %s6 = ssub.s32 1, %s4
  %s7 = scalar_select 0, %s6, %s4
  // Predicated region
  $region2: #{esa_forward.20} parent=0 // pred_check
    _
  $region3: #{esa_forward.20} parent=0 // pred_check_branch
    %9 = sbr.rel (0) target = $region5
  $region4: #{esa_forward.20} parent=0 // pred_region
    _
  $region5: #{esa_forward.20} parent=0 // pred_fallthru
    _
  // Predicated region
  $region6: #{esa_forward.20} parent=0 // pred_check
    _
  $region7: #{esa_forward.20} parent=0 // pred_check_branch
    %11 = sbr.rel (0) target = $region9
  $region8: #{esa_forward.20} parent=0 // pred_region
    _
  $region9: #{esa_forward.20} parent=0 // pred_fallthru
    _
  // Predicated region
  $region10: #{esa_forward.20} parent=0 // pred_check
    _
  $region11: #{esa_forward.20} parent=0 // pred_check_branch
    %13 = sbr.rel (0) target = $region13
  $region12: #{esa_forward.20} parent=0 // pred_region
    _
  $region13: #{esa_forward.20} parent=0 // pred_fallthru
    _
  %v14 = vld [vmem:[%s0] sm:$0xff]
  %v15 = vld [vmem:[%s0 + $0x8] sm:$0xff]
  %v16 = vld [vmem:[%s0 + $0x10] sm:$0xff]
  %v17 = vld [vmem:[%s0 + $0x18] sm:$0xff]
  %v18 = vld [vmem:[%s0 + $0x20] sm:$0xff]
  %v19 = vld [vmem:[%s0 + $0x28] sm:$0xff]
  %v20 = vld [vmem:[%s0 + $0x30] sm:$0xff]
  %v21 = vld [vmem:[%s0 + $0x38] sm:$0xff]
  %v22 = vld [vmem:[%s0 + $0x40] sm:$0xff]
  %v23 = vld [vmem:[%s1] sm:$0xff]
  %v24 = vld [vmem:[%s1 + $0x8] sm:$0xff]
  %v25 = vld [vmem:[%s1 + $0x10] sm:$0x3]
  %v26 = vld [vmem:[%s2] sm:$0x1]
  %v28 = vlaneseq
  %v29 = vshrl.u32 %v28, 7
  %v30 = vsub.s32 0, %v29
  %v31 = vrot.slane %v26, %v30
  %vm33 = vcmask 146432
  %v35 = vsel %vm33, %v14, 0
  %v38 = vsel %vm33, %v15, 0
  %v41 = vsel %vm33, %v16, 0
  %v44 = vsel %vm33, %v17, 0
  %v47 = vsel %vm33, %v18, 0
  %v50 = vsel %vm33, %v19, 0
  %v53 = vsel %vm33, %v20, 0
  %v56 = vsel %vm33, %v21, 0
  %v59 = vsel %vm33, %v22, 0
  %vm61 = vcmask 1041408
  %v63 = vsel %vm61, %v25, 0
  %65 = vmatprep.subr.mxu0 0.0
  %66 = vmatpush1.msra.mxu0 0.0
  %67 = vmatprep.subr.mxu0 0.0
  %68 = vmatpush1.msra.mxu0 0.0
  %69 = vmatprep.subr.mxu0 0.0
  %70 = vmatpush1.msra.mxu0 0.0
  %71 = vmatprep.subr.mxu0 0.0
  %72 = vmatpush1.msra.mxu0 0.0
  %73 = vmatprep.subr.mxu0 0.0
  %74 = vmatpush1.msra.mxu0 0.0
  %75 = vmatprep.subr.mxu0 0.0
  %76 = vmatpush1.msra.mxu0 0.0
  %77 = vmatprep.subr.mxu0 0.0
  %78 = vmatpush1.msra.mxu0 0.0
  %79 = vmatprep.subr.mxu0 0.0
  %80 = vmatpush1.msra.mxu0 0.0
  %81 = vmatprep.subr.mxu0 0.0
  %82 = vmatpush1.msra.mxu0 0.0
  %83 = vmatprep.subr.mxu0 0.0
  %84 = vmatpush1.msra.mxu0 0.0
  %85 = vmatprep.subr.mxu0 0.0
  %86 = vmatpush1.msra.mxu0 0.0
  %87 = vmatprep.subr.mxu0 0.0
  %88 = vmatpush1.msra.mxu0 0.0
  %89 = vmatprep.subr.mxu0 0.0
  %90 = vmatpush1.msra.mxu0 0.0
  %91 = vmatprep.subr.mxu0 0.0
  %92 = vmatpush1.msra.mxu0 %v63
  %93 = vmatprep.subr.mxu0 0.0
  %94 = vmatpush1.msra.mxu0 %v24
  %95 = vmatprep.subr.mxu0 0.0
  %96 = vmatpush1.msra.mxu0 %v23
  %97 = vmatprep.subr.mxu0 0.0
  %98 = vmatpush2.msra.mxu0 0.0
  %99 = vmatprep.subr.mxu0 0.0
  %100 = vmatpush2.msra.mxu0 0.0
  %101 = vmatprep.subr.mxu0 0.0
  %102 = vmatpush2.msra.mxu0 0.0
  %103 = vmatprep.subr.mxu0 0.0
  %104 = vmatpush2.msra.mxu0 0.0
  %105 = vmatprep.subr.mxu0 0.0
  %106 = vmatpush2.msra.mxu0 0.0
  %107 = vmatprep.subr.mxu0 0.0
  %108 = vmatpush2.msra.mxu0 0.0
  %109 = vmatprep.subr.mxu0 0.0
  %110 = vmatpush2.msra.mxu0 0.0
  %111 = vmatprep.subr.mxu0 0.0
  %112 = vmatpush2.msra.mxu0 0.0
  %113 = vmatprep.subr.mxu0 0.0
  %114 = vmatpush2.msra.mxu0 0.0
  %115 = vmatprep.subr.mxu0 0.0
  %116 = vmatpush2.msra.mxu0 0.0
  %117 = vmatprep.subr.mxu0 0.0
  %118 = vmatpush2.msra.mxu0 0.0
  %119 = vmatprep.subr.mxu0 0.0
  %120 = vmatpush2.msra.mxu0 0.0
  %121 = vmatprep.subr.mxu0 0.0
  %122 = vmatpush2.msra.mxu0 0.0
  %123 = vmatprep.subr.mxu0 0.0
  %124 = vmatpush2.msra.mxu0 0.0
  %125 = vmatprep.subr.mxu0 0.0
  %126 = vmatpush2.msra.mxu0 0.0
  %127 = vmatprep.subr.mxu0 0.0
  %128 = vmatpush2.msra.mxu0 0.0
  %129 = vmatprep.mubr.f32.mxu0 0.0
  %130 = vmatmul.mubr.f32.gmra.mxu0 %v35
  %v131 = vpop.f32.mrf.mxu0
  %v132 = vadd.f32 %v31, %v131
  %v133 = vpop.f32.mrf.mxu0
  %134 = vmatprep.mubr.f32.mxu0 0.0
  %135 = vmatmul.mubr.f32.gmra.mxu0 %v38
  %v136 = vpop.f32.mrf.mxu0
  %v137 = vadd.f32 %v31, %v136
  %v138 = vpop.f32.mrf.mxu0
  %139 = vmatprep.mubr.f32.mxu0 0.0
  %140 = vmatmul.mubr.f32.gmra.mxu0 %v41
  %v141 = vpop.f32.mrf.mxu0
  %v142 = vadd.f32 %v31, %v141
  %v143 = vpop.f32.mrf.mxu0
  %144 = vmatprep.mubr.f32.mxu0 0.0
  %145 = vmatmul.mubr.f32.gmra.mxu0 %v44
  %v146 = vpop.f32.mrf.mxu0
  %v147 = vadd.f32 %v31, %v146
  %v148 = vpop.f32.mrf.mxu0
  %149 = vmatprep.mubr.f32.mxu0 0.0
  %150 = vmatmul.mubr.f32.gmra.mxu0 %v47
  %v151 = vpop.f32.mrf.mxu0
  %v152 = vadd.f32 %v31, %v151
  %v153 = vpop.f32.mrf.mxu0
  %154 = vmatprep.mubr.f32.mxu0 0.0
  %155 = vmatmul.mubr.f32.gmra.mxu0 %v50
  %v156 = vpop.f32.mrf.mxu0
  %v157 = vadd.f32 %v31, %v156
  %v158 = vpop.f32.mrf.mxu0
  %159 = vmatprep.mubr.f32.mxu0 0.0
  %160 = vmatmul.mubr.f32.gmra.mxu0 %v53
  %v161 = vpop.f32.mrf.mxu0
  %v162 = vadd.f32 %v31, %v161
  %v163 = vpop.f32.mrf.mxu0
  %164 = vmatprep.mubr.f32.mxu0 0.0
  %165 = vmatmul.mubr.f32.gmra.mxu0 %v56
  %v166 = vpop.f32.mrf.mxu0
  %v167 = vadd.f32 %v31, %v166
  %v168 = vpop.f32.mrf.mxu0
  %169 = vmatprep.mubr.f32.mxu0 0.0
  %170 = vmatmul.mubr.f32.gmra.mxu0 %v59
  %v171 = vpop.f32.mrf.mxu0
  %v172 = vadd.f32 %v31, %v171
  %v173 = vpop.f32.mrf.mxu0
  %174 = vdwg.mxu0
  %v175 = vmul.f32 %v132, 0.5
  %v176 = vmul.f32 %v137, 0.5
  %v177 = vmul.f32 %v142, 0.5
  %v178 = vmul.f32 %v147, 0.5
  %v179 = vmul.f32 %v152, 0.5
  %v180 = vmul.f32 %v157, 0.5
  %v181 = vmul.f32 %v162, 0.5
  %v182 = vmul.f32 %v167, 0.5
  %v183 = vmul.f32 %v172, 0.5
  %v184 = vmul.f32 %v132, 0.70710677
  %v185 = vmul.f32 %v137, 0.70710677
  %v186 = vmul.f32 %v142, 0.70710677
  %v187 = vmul.f32 %v147, 0.70710677
  %v188 = vmul.f32 %v152, 0.70710677
  %v189 = vmul.f32 %v157, 0.70710677
  %v190 = vmul.f32 %v162, 0.70710677
  %v191 = vmul.f32 %v167, 0.70710677
  %v192 = vmul.f32 %v172, 0.70710677
  %v193 = verf.f32.pop %v184
  %v194 = verf.f32.pop %v185
  %v195 = verf.f32.pop %v186
  %v196 = verf.f32.pop %v187
  %v197 = verf.f32.pop %v188
  %v198 = verf.f32.pop %v189
  %v199 = verf.f32.pop %v190
  %v200 = verf.f32.pop %v191
  %v201 = verf.f32.pop %v192
  %v202 = vadd.f32 %v193, 1.0
  %v203 = vadd.f32 %v194, 1.0
  %v204 = vadd.f32 %v195, 1.0
  %v205 = vadd.f32 %v196, 1.0
  %v206 = vadd.f32 %v197, 1.0
  %v207 = vadd.f32 %v198, 1.0
  %v208 = vadd.f32 %v199, 1.0
  %v209 = vadd.f32 %v200, 1.0
  %v210 = vadd.f32 %v201, 1.0
  %v211 = vmul.f32 %v175, %v202
  %v212 = vmul.f32 %v176, %v203
  %v213 = vmul.f32 %v177, %v204
  %v214 = vmul.f32 %v178, %v205
  %v215 = vmul.f32 %v179, %v206
  %v216 = vmul.f32 %v180, %v207
  %v217 = vmul.f32 %v181, %v208
  %v218 = vmul.f32 %v182, %v209
  %v219 = vmul.f32 %v183, %v210
  %vm220 = vcmask 15360
  %221 = vst.msk [vmem:[%s3] sm:$0xff] %vm220, %v211
  %222 = vst.msk [vmem:[%s3 + $0x8] sm:$0xff] %vm220, %v212
  %223 = vst.msk [vmem:[%s3 + $0x10] sm:$0xff] %vm220, %v213
  %224 = vst.msk [vmem:[%s3 + $0x18] sm:$0xff] %vm220, %v214
  %225 = vst.msk [vmem:[%s3 + $0x20] sm:$0xff] %vm220, %v215
  %226 = vst.msk [vmem:[%s3 + $0x28] sm:$0xff] %vm220, %v216
  %227 = vst.msk [vmem:[%s3 + $0x30] sm:$0xff] %vm220, %v217
  %228 = vst.msk [vmem:[%s3 + $0x38] sm:$0xff] %vm220, %v218
  %229 = vst.msk [vmem:[%s3 + $0x40] sm:$0xff] %vm220, %v219
  // Predicated region
  $region14: #{esa_forward.20} parent=0 // pred_check
    _
  $region15: #{esa_forward.20} parent=0 // pred_check_branch
    %231 = sbr.rel (0) target = $region17
  $region16: #{esa_forward.20} parent=0 // pred_region
    _
  $region17: #{esa_forward.20} parent=0 // pred_fallthru
    _
  // Predicated region
  $region18: #{esa_forward.20} parent=0 // pred_check
    _
  $region19: #{esa_forward.20} parent=0 // pred_check_branch
    %233 = sbr.rel (0) target = $region21
  $region20: #{esa_forward.20} parent=0 // pred_region
    _
  $region21: #{esa_forward.20} parent=0 // pred_fallthru
    _

// kernel: esa_forward.21
$region0: #{esa_forward.21}
  #allocation0 [shape = 'u32[]', space=smem, size = 0x4, offset = 0x4, fixed_abs, tag = 'smem constant byte address 0x4 - core index']
  #allocation1 [shape = 'u32[144,128]{1,0:T(1,128)}', space=vmem, size = 0x12000, scoped, tag = 'internal scratch']
  %s0 = inlined_call_operand.vmem [shape: f32[32,18], index: 0, kind: input, shape index: {}]
  %s1 = inlined_call_operand.vmem [shape: f32[18,2], index: 1, kind: input, shape index: {}]
  %s2 = inlined_call_operand.vmem [shape: f32[1,2], index: 2, kind: input, shape index: {}]
  %s3 = inlined_call_operand.vmem [shape: f32[32,2], index: 3, kind: output, shape index: {}]
  %s4 = sld [smem:[#allocation0]]
  $region22: #{esa_forward.21} parent=0
    _
  %s6 = ssub.s32 1, %s4
  %s7 = scalar_select 0, %s6, %s4
  // Predicated region
  $region2: #{esa_forward.21} parent=0 // pred_check
    _
  $region3: #{esa_forward.21} parent=0 // pred_check_branch
    %9 = sbr.rel (0) target = $region5
  $region4: #{esa_forward.21} parent=0 // pred_region
    _
  $region5: #{esa_forward.21} parent=0 // pred_fallthru
    _
  // Predicated region
  $region6: #{esa_forward.21} parent=0 // pred_check
    _
  $region7: #{esa_forward.21} parent=0 // pred_check_branch
    %11 = sbr.rel (0) target = $region9
  $region8: #{esa_forward.21} parent=0 // pred_region
    _
  $region9: #{esa_forward.21} parent=0 // pred_fallthru
    _
  // Predicated region
  $region10: #{esa_forward.21} parent=0 // pred_check
    _
  $region11: #{esa_forward.21} parent=0 // pred_check_branch
    %13 = sbr.rel (0) target = $region13
  $region12: #{esa_forward.21} parent=0 // pred_region
    _
  $region13: #{esa_forward.21} parent=0 // pred_fallthru
    _
  %v14 = vld [vmem:[%s0] sm:$0xff]
  %v15 = vld [vmem:[%s0 + $0x8] sm:$0xff]
  %v16 = vld [vmem:[%s0 + $0x10] sm:$0xff]
  %v17 = vld [vmem:[%s0 + $0x18] sm:$0xff]
  %v18 = vld [vmem:[%s1] sm:$0xff]
  %v19 = vld [vmem:[%s1 + $0x8] sm:$0xff]
  %v20 = vld [vmem:[%s1 + $0x10] sm:$0x3]
  %v21 = vld [vmem:[%s2] sm:$0x1]
  %v23 = vlaneseq
  %v24 = vshrl.u32 %v23, 7
  %v25 = vsub.s32 0, %v24
  %v26 = vrot.slane %v21, %v25
  %vm28 = vcmask 146432
  %v30 = vsel %vm28, %v14, 0
  %v33 = vsel %vm28, %v15, 0
  %v36 = vsel %vm28, %v16, 0
  %v39 = vsel %vm28, %v17, 0
  %vm41 = vcmask 1041408
  %v43 = vsel %vm41, %v20, 0
  %45 = vmatprep.subr.mxu0 0.0
  %46 = vmatpush1.msra.mxu0 0.0
  %47 = vmatprep.subr.mxu0 0.0
  %48 = vmatpush1.msra.mxu0 0.0
  %49 = vmatprep.subr.mxu0 0.0
  %50 = vmatpush1.msra.mxu0 0.0
  %51 = vmatprep.subr.mxu0 0.0
  %52 = vmatpush1.msra.mxu0 0.0
  %53 = vmatprep.subr.mxu0 0.0
  %54 = vmatpush1.msra.mxu0 0.0
  %55 = vmatprep.subr.mxu0 0.0
  %56 = vmatpush1.msra.mxu0 0.0
  %57 = vmatprep.subr.mxu0 0.0
  %58 = vmatpush1.msra.mxu0 0.0
  %59 = vmatprep.subr.mxu0 0.0
  %60 = vmatpush1.msra.mxu0 0.0
  %61 = vmatprep.subr.mxu0 0.0
  %62 = vmatpush1.msra.mxu0 0.0
  %63 = vmatprep.subr.mxu0 0.0
  %64 = vmatpush1.msra.mxu0 0.0
  %65 = vmatprep.subr.mxu0 0.0
  %66 = vmatpush1.msra.mxu0 0.0
  %67 = vmatprep.subr.mxu0 0.0
  %68 = vmatpush1.msra.mxu0 0.0
  %69 = vmatprep.subr.mxu0 0.0
  %70 = vmatpush1.msra.mxu0 0.0
  %71 = vmatprep.subr.mxu0 0.0
  %72 = vmatpush1.msra.mxu0 %v43
  %73 = vmatprep.subr.mxu0 0.0
  %74 = vmatpush1.msra.mxu0 %v19
  %75 = vmatprep.subr.mxu0 0.0
  %76 = vmatpush1.msra.mxu0 %v18
  %77 = vmatprep.subr.mxu0 0.0
  %78 = vmatpush2.msra.mxu0 0.0
  %79 = vmatprep.subr.mxu0 0.0
  %80 = vmatpush2.msra.mxu0 0.0
  %81 = vmatprep.subr.mxu0 0.0
  %82 = vmatpush2.msra.mxu0 0.0
  %83 = vmatprep.subr.mxu0 0.0
  %84 = vmatpush2.msra.mxu0 0.0
  %85 = vmatprep.subr.mxu0 0.0
  %86 = vmatpush2.msra.mxu0 0.0
  %87 = vmatprep.subr.mxu0 0.0
  %88 = vmatpush2.msra.mxu0 0.0
  %89 = vmatprep.subr.mxu0 0.0
  %90 = vmatpush2.msra.mxu0 0.0
  %91 = vmatprep.subr.mxu0 0.0
  %92 = vmatpush2.msra.mxu0 0.0
  %93 = vmatprep.subr.mxu0 0.0
  %94 = vmatpush2.msra.mxu0 0.0
  %95 = vmatprep.subr.mxu0 0.0
  %96 = vmatpush2.msra.mxu0 0.0
  %97 = vmatprep.subr.mxu0 0.0
  %98 = vmatpush2.msra.mxu0 0.0
  %99 = vmatprep.subr.mxu0 0.0
  %100 = vmatpush2.msra.mxu0 0.0
  %101 = vmatprep.subr.mxu0 0.0
  %102 = vmatpush2.msra.mxu0 0.0
  %103 = vmatprep.subr.mxu0 0.0
  %104 = vmatpush2.msra.mxu0 0.0
  %105 = vmatprep.subr.mxu0 0.0
  %106 = vmatpush2.msra.mxu0 0.0
  %107 = vmatprep.subr.mxu0 0.0
  %108 = vmatpush2.msra.mxu0 0.0
  %109 = vmatprep.mubr.f32.mxu0 0.0
  %110 = vmatmul.mubr.f32.gmra.mxu0 %v30
  %v111 = vpop.f32.mrf.mxu0
  %v112 = vadd.f32 %v26, %v111
  %v113 = vpop.f32.mrf.mxu0
  %114 = vmatprep.mubr.f32.mxu0 0.0
  %115 = vmatmul.mubr.f32.gmra.mxu0 %v33
  %v116 = vpop.f32.mrf.mxu0
  %v117 = vadd.f32 %v26, %v116
  %v118 = vpop.f32.mrf.mxu0
  %119 = vmatprep.mubr.f32.mxu0 0.0
  %120 = vmatmul.mubr.f32.gmra.mxu0 %v36
  %v121 = vpop.f32.mrf.mxu0
  %v122 = vadd.f32 %v26, %v121
  %v123 = vpop.f32.mrf.mxu0
  %124 = vmatprep.mubr.f32.mxu0 0.0
  %125 = vmatmul.mubr.f32.gmra.mxu0 %v39
  %v126 = vpop.f32.mrf.mxu0
  %v127 = vadd.f32 %v26, %v126
  %v128 = vpop.f32.mrf.mxu0
  %129 = vdwg.mxu0
  %vm130 = vcmask 15360
  %131 = vst.msk [vmem:[%s3] sm:$0xff] %vm130, %v112
  %132 = vst.msk [vmem:[%s3 + $0x8] sm:$0xff] %vm130, %v117
  %133 = vst.msk [vmem:[%s3 + $0x10] sm:$0xff] %vm130, %v122
  %134 = vst.msk [vmem:[%s3 + $0x18] sm:$0xff] %vm130, %v127
  // Predicated region
  $region14: #{esa_forward.21} parent=0 // pred_check
    _
  $region15: #{esa_forward.21} parent=0 // pred_check_branch
    %136 = sbr.rel (0) target = $region17
  $region16: #{esa_forward.21} parent=0 // pred_region
    _
  $region17: #{esa_forward.21} parent=0 // pred_fallthru
    _
  // Predicated region
  $region18: #{esa_forward.21} parent=0 // pred_check
    _
  $region19: #{esa_forward.21} parent=0 // pred_check_branch
    %138 = sbr.rel (0) target = $region21
  $region20: #{esa_forward.21} parent=0 // pred_region
    _
  $region21: #{esa_forward.21} parent=0 // pred_fallthru
    _

// kernel: esa_forward.17
$region0: #{esa_forward.17}
  #allocation0 [shape = 'u32[]', space=smem, size = 0x4, offset = 0x4, fixed_abs, tag = 'smem constant byte address 0x4 - core index']
  #allocation1 [shape = 'u32[144,128]{1,0:T(1,128)}', space=vmem, size = 0x12000, scoped, tag = 'internal scratch']
  %s0 = inlined_call_operand.vmem [shape: f32[25,14,14], index: 0, kind: input, shape index: {}]
  %s1 = inlined_call_operand.vmem [shape: f32[14,14], index: 1, kind: output, shape index: {}]
  %s2 = sld [smem:[#allocation0]]
  $region14: #{esa_forward.17} parent=0
    _
  %s4 = ssub.s32 1, %s2
  %s5 = scalar_select 0, %s4, %s2
  // Predicated region
  $region2: #{esa_forward.17} parent=0 // pred_check
    _
  $region3: #{esa_forward.17} parent=0 // pred_check_branch
    %7 = sbr.rel (0) target = $region5
  $region4: #{esa_forward.17} parent=0 // pred_region
    _
  $region5: #{esa_forward.17} parent=0 // pred_fallthru
    _
  %v8 = vld [vmem:[%s0] sm:$0xff]
  %v9 = vld [vmem:[%s0 + $0x8] sm:$0x3f]
  %v10 = vld [vmem:[%s0 + $0x10] sm:$0xff]
  %v11 = vld [vmem:[%s0 + $0x18] sm:$0x3f]
  %v12 = vld [vmem:[%s0 + $0x20] sm:$0xff]
  %v13 = vld [vmem:[%s0 + $0x28] sm:$0x3f]
  %v14 = vld [vmem:[%s0 + $0x30] sm:$0xff]
  %v15 = vld [vmem:[%s0 + $0x38] sm:$0x3f]
  %v16 = vld [vmem:[%s0 + $0x40] sm:$0xff]
  %v17 = vld [vmem:[%s0 + $0x48] sm:$0x3f]
  %v18 = vld [vmem:[%s0 + $0x50] sm:$0xff]
  %v19 = vld [vmem:[%s0 + $0x58] sm:$0x3f]
  %v20 = vld [vmem:[%s0 + $0x60] sm:$0xff]
  %v21 = vld [vmem:[%s0 + $0x68] sm:$0x3f]
  %v22 = vld [vmem:[%s0 + $0x70] sm:$0xff]
  %v23 = vld [vmem:[%s0 + $0x78] sm:$0x3f]
  %v24 = vld [vmem:[%s0 + $0x80] sm:$0xff]
  %v25 = vld [vmem:[%s0 + $0x88] sm:$0x3f]
  %v26 = vld [vmem:[%s0 + $0x90] sm:$0xff]
  %v27 = vld [vmem:[%s0 + $0x98] sm:$0x3f]
  %v28 = vld [vmem:[%s0 + $0xa0] sm:$0xff]
  %v29 = vld [vmem:[%s0 + $0xa8] sm:$0x3f]
  %v30 = vld [vmem:[%s0 + $0xb0] sm:$0xff]
  %v31 = vld [vmem:[%s0 + $0xb8] sm:$0x3f]
  %v32 = vld [vmem:[%s0 + $0xc0] sm:$0xff]
  %v33 = vld [vmem:[%s0 + $0xc8] sm:$0x3f]
  %v34 = vld [vmem:[%s0 + $0xd0] sm:$0xff]
  %v35 = vld [vmem:[%s0 + $0xd8] sm:$0x3f]
  %v36 = vld [vmem:[%s0 + $0xe0] sm:$0xff]
  %v37 = vld [vmem:[%s0 + $0xe8] sm:$0x3f]
  %v38 = vld [vmem:[%s0 + $0xf0] sm:$0xff]
  %v39 = vld [vmem:[%s0 + $0xf8] sm:$0x3f]
  %v40 = vld [vmem:[%s0 + $0x100] sm:$0xff]
  %v41 = vld [vmem:[%s0 + $0x108] sm:$0x3f]
  %v42 = vld [vmem:[%s0 + $0x110] sm:$0xff]
  %v43 = vld [vmem:[%s0 + $0x118] sm:$0x3f]
  %v44 = vld [vmem:[%s0 + $0x120] sm:$0xff]
  %v45 = vld [vmem:[%s0 + $0x128] sm:$0x3f]
  %v46 = vld [vmem:[%s0 + $0x130] sm:$0xff]
  %v47 = vld [vmem:[%s0 + $0x138] sm:$0x3f]
  %v48 = vld [vmem:[%s0 + $0x140] sm:$0xff]
  %v49 = vld [vmem:[%s0 + $0x148] sm:$0x3f]
  %v50 = vld [vmem:[%s0 + $0x150] sm:$0xff]
  %v51 = vld [vmem:[%s0 + $0x158] sm:$0x3f]
  %v52 = vld [vmem:[%s0 + $0x160] sm:$0xff]
  %v53 = vld [vmem:[%s0 + $0x168] sm:$0x3f]
  %v54 = vld [vmem:[%s0 + $0x170] sm:$0xff]
  %v55 = vld [vmem:[%s0 + $0x178] sm:$0x3f]
  %v56 = vld [vmem:[%s0 + $0x180] sm:$0xff]
  %v57 = vld [vmem:[%s0 + $0x188] sm:$0x3f]
  %vm58 = vcmask 113664
  %v59 = vsel %vm58, %v8, -inf
  %v60 = vsel %vm58, %v10, -inf
  %v61 = vsel %vm58, %v12, -inf
  %v62 = vmax.f32 %v59, %v61
  %v63 = vsel %vm58, %v14, -inf
  %v64 = vmax.f32 %v60, %v63
  %v65 = vsel %vm58, %v16, -inf
  %v66 = vmax.f32 %v62, %v65
  %v67 = vsel %vm58, %v18, -inf
  %v68 = vmax.f32 %v64, %v67
  %v69 = vsel %vm58, %v20, -inf
  %v70 = vmax.f32 %v66, %v69
  %v71 = vsel %vm58, %v22, -inf
  %v72 = vmax.f32 %v68, %v71
  %v73 = vsel %vm58, %v24, -inf
  %v74 = vmax.f32 %v70, %v73
  %v75 = vsel %vm58, %v26, -inf
  %v76 = vmax.f32 %v72, %v75
  %v77 = vsel %vm58, %v28, -inf
  %v78 = vmax.f32 %v74, %v77
  %v79 = vsel %vm58, %v30, -inf
  %v80 = vmax.f32 %v76, %v79
  %v81 = vsel %vm58, %v32, -inf
  %v82 = vmax.f32 %v78, %v81
  %v83 = vsel %vm58, %v34, -inf
  %v84 = vmax.f32 %v80, %v83
  %v85 = vsel %vm58, %v36, -inf
  %v86 = vmax.f32 %v82, %v85
  %v87 = vsel %vm58, %v38, -inf
  %v88 = vmax.f32 %v84, %v87
  %v89 = vsel %vm58, %v40, -inf
  %v90 = vmax.f32 %v86, %v89
  %v91 = vsel %vm58, %v42, -inf
  %v92 = vmax.f32 %v88, %v91
  %v93 = vsel %vm58, %v44, -inf
  %v94 = vmax.f32 %v90, %v93
  %v95 = vsel %vm58, %v46, -inf
  %v96 = vmax.f32 %v92, %v95
  %v97 = vsel %vm58, %v48, -inf
  %v98 = vmax.f32 %v94, %v97
  %v99 = vsel %vm58, %v50, -inf
  %v100 = vmax.f32 %v96, %v99
  %v101 = vsel %vm58, %v52, -inf
  %v102 = vmax.f32 %v98, %v101
  %v103 = vsel %vm58, %v54, -inf
  %v104 = vmax.f32 %v100, %v103
  %v105 = vsel %vm58, %v56, -inf
  %v106 = vmax.f32 %v102, %v105
  %v107 = vmax.f32 %v106, %v104
  %vm108 = vcmask 111616
  %v109 = vsel %vm108, %v9, -inf
  %v110 = vsel %vm108, %v11, -inf
  %v111 = vsel %vm108, %v13, -inf
  %v112 = vmax.f32 %v109, %v111
  %v113 = vsel %vm108, %v15, -inf
  %v114 = vmax.f32 %v110, %v113
  %v115 = vsel %vm108, %v17, -inf
  %v116 = vmax.f32 %v112, %v115
  %v117 = vsel %vm108, %v19, -inf
  %v118 = vmax.f32 %v114, %v117
  %v119 = vsel %vm108, %v21, -inf
  %v120 = vmax.f32 %v116, %v119
  %v121 = vsel %vm108, %v23, -inf
  %v122 = vmax.f32 %v118, %v121
  %v123 = vsel %vm108, %v25, -inf
  %v124 = vmax.f32 %v120, %v123
  %v125 = vsel %vm108, %v27, -inf
  %v126 = vmax.f32 %v122, %v125
  %v127 = vsel %vm108, %v29, -inf
  %v128 = vmax.f32 %v124, %v127
  %v129 = vsel %vm108, %v31, -inf
  %v130 = vmax.f32 %v126, %v129
  %v131 = vsel %vm108, %v33, -inf
  %v132 = vmax.f32 %v128, %v131
  %v133 = vsel %vm108, %v35, -inf
  %v134 = vmax.f32 %v130, %v133
  %v135 = vsel %vm108, %v37, -inf
  %v136 = vmax.f32 %v132, %v135
  %v137 = vsel %vm108, %v39, -inf
  %v138 = vmax.f32 %v134, %v137
  %v139 = vsel %vm108, %v41, -inf
  %v140 = vmax.f32 %v136, %v139
  %v141 = vsel %vm108, %v43, -inf
  %v142 = vmax.f32 %v138, %v141
  %v143 = vsel %vm108, %v45, -inf
  %v144 = vmax.f32 %v140, %v143
  %v145 = vsel %vm108, %v47, -inf
  %v146 = vmax.f32 %v142, %v145
  %v147 = vsel %vm108, %v49, -inf
  %v148 = vmax.f32 %v144, %v147
  %v149 = vsel %vm108, %v51, -inf
  %v150 = vmax.f32 %v146, %v149
  %v151 = vsel %vm108, %v53, -inf
  %v152 = vmax.f32 %v148, %v151
  %v153 = vsel %vm108, %v55, -inf
  %v154 = vmax.f32 %v150, %v153
  %v155 = vsel %vm108, %v57, -inf
  %v156 = vmax.f32 %v152, %v155
  %v157 = vmax.f32 %v156, %v154
  %158 = vst.msk [vmem:[%s1] sm:$0xff] %vm58, %v107
  %159 = vst.msk [vmem:[%s1 + $0x8] sm:$0x3f] %vm108, %v157
  // Predicated region
  $region6: #{esa_forward.17} parent=0 // pred_check
    _
  $region7: #{esa_forward.17} parent=0 // pred_check_branch
    %161 = sbr.rel (0) target = $region9
  $region8: #{esa_forward.17} parent=0 // pred_region
    _
  $region9: #{esa_forward.17} parent=0 // pred_fallthru
    _
  // Predicated region
  $region10: #{esa_forward.17} parent=0 // pred_check
    _
  $region11: #{esa_forward.17} parent=0 // pred_check_branch
    %163 = sbr.rel (0) target = $region13
  $region12: #{esa_forward.17} parent=0 // pred_region
    _
  $region13: #{esa_forward.17} parent=0 // pred_fallthru
    _

// kernel: esa_forward.22
$region0: #{esa_forward.22}
  #allocation0 [shape = 'u32[]', space=smem, size = 0x4, offset = 0x4, fixed_abs, tag = 'smem constant byte address 0x4 - core index']
  #allocation1 [shape = 'u32[144,128]{1,0:T(1,128)}', space=vmem, size = 0x12000, scoped, tag = 'internal scratch']
  %s0 = inlined_call_operand.vmem [shape: f32[50,18], index: 0, kind: input, shape index: {}]
  %s1 = inlined_call_operand.vmem [shape: f32[18,2], index: 1, kind: input, shape index: {}]
  %s2 = inlined_call_operand.vmem [shape: f32[1,2], index: 2, kind: input, shape index: {}]
  %s3 = inlined_call_operand.vmem [shape: f32[50,2], index: 3, kind: output, shape index: {}]
  %s4 = sld [smem:[#allocation0]]
  $region22: #{esa_forward.22} parent=0
    _
  %s6 = ssub.s32 1, %s4
  %s7 = scalar_select 0, %s6, %s4
  // Predicated region
  $region2: #{esa_forward.22} parent=0 // pred_check
    _
  $region3: #{esa_forward.22} parent=0 // pred_check_branch
    %9 = sbr.rel (0) target = $region5
  $region4: #{esa_forward.22} parent=0 // pred_region
    _
  $region5: #{esa_forward.22} parent=0 // pred_fallthru
    _
  // Predicated region
  $region6: #{esa_forward.22} parent=0 // pred_check
    _
  $region7: #{esa_forward.22} parent=0 // pred_check_branch
    %11 = sbr.rel (0) target = $region9
  $region8: #{esa_forward.22} parent=0 // pred_region
    _
  $region9: #{esa_forward.22} parent=0 // pred_fallthru
    _
  // Predicated region
  $region10: #{esa_forward.22} parent=0 // pred_check
    _
  $region11: #{esa_forward.22} parent=0 // pred_check_branch
    %13 = sbr.rel (0) target = $region13
  $region12: #{esa_forward.22} parent=0 // pred_region
    _
  $region13: #{esa_forward.22} parent=0 // pred_fallthru
    _
  %v14 = vld [vmem:[%s0] sm:$0xff]
  %v15 = vld [vmem:[%s0 + $0x8] sm:$0xff]
  %v16 = vld [vmem:[%s0 + $0x10] sm:$0xff]
  %v17 = vld [vmem:[%s0 + $0x18] sm:$0xff]
  %v18 = vld [vmem:[%s0 + $0x20] sm:$0xff]
  %v19 = vld [vmem:[%s0 + $0x28] sm:$0xff]
  %v20 = vld [vmem:[%s0 + $0x30] sm:$0x3]
  %v21 = vld [vmem:[%s1] sm:$0xff]
  %v22 = vld [vmem:[%s1 + $0x8] sm:$0xff]
  %v23 = vld [vmem:[%s1 + $0x10] sm:$0x3]
  %v24 = vld [vmem:[%s2] sm:$0x1]
  %v26 = vlaneseq
  %v27 = vshrl.u32 %v26, 7
  %v28 = vsub.s32 0, %v27
  %v29 = vrot.slane %v24, %v28
  %vm31 = vcmask 146432
  %v33 = vsel %vm31, %v14, 0
  %v36 = vsel %vm31, %v15, 0
  %v39 = vsel %vm31, %v16, 0
  %v42 = vsel %vm31, %v17, 0
  %v45 = vsel %vm31, %v18, 0
  %v48 = vsel %vm31, %v19, 0
  %v51 = vsel %vm31, %v20, 0
  %vm53 = vcmask 1041408
  %v55 = vsel %vm53, %v23, 0
  %57 = vmatprep.subr.mxu0 0.0
  %58 = vmatpush1.msra.mxu0 0.0
  %59 = vmatprep.subr.mxu0 0.0
  %60 = vmatpush1.msra.mxu0 0.0
  %61 = vmatprep.subr.mxu0 0.0
  %62 = vmatpush1.msra.mxu0 0.0
  %63 = vmatprep.subr.mxu0 0.0
  %64 = vmatpush1.msra.mxu0 0.0
  %65 = vmatprep.subr.mxu0 0.0
  %66 = vmatpush1.msra.mxu0 0.0
  %67 = vmatprep.subr.mxu0 0.0
  %68 = vmatpush1.msra.mxu0 0.0
  %69 = vmatprep.subr.mxu0 0.0
  %70 = vmatpush1.msra.mxu0 0.0
  %71 = vmatprep.subr.mxu0 0.0
  %72 = vmatpush1.msra.mxu0 0.0
  %73 = vmatprep.subr.mxu0 0.0
  %74 = vmatpush1.msra.mxu0 0.0
  %75 = vmatprep.subr.mxu0 0.0
  %76 = vmatpush1.msra.mxu0 0.0
  %77 = vmatprep.subr.mxu0 0.0
  %78 = vmatpush1.msra.mxu0 0.0
  %79 = vmatprep.subr.mxu0 0.0
  %80 = vmatpush1.msra.mxu0 0.0
  %81 = vmatprep.subr.mxu0 0.0
  %82 = vmatpush1.msra.mxu0 0.0
  %83 = vmatprep.subr.mxu0 0.0
  %84 = vmatpush1.msra.mxu0 %v55
  %85 = vmatprep.subr.mxu0 0.0
  %86 = vmatpush1.msra.mxu0 %v22
  %87 = vmatprep.subr.mxu0 0.0
  %88 = vmatpush1.msra.mxu0 %v21
  %89 = vmatprep.subr.mxu0 0.0
  %90 = vmatpush2.msra.mxu0 0.0
  %91 = vmatprep.subr.mxu0 0.0
  %92 = vmatpush2.msra.mxu0 0.0
  %93 = vmatprep.subr.mxu0 0.0
  %94 = vmatpush2.msra.mxu0 0.0
  %95 = vmatprep.subr.mxu0 0.0
  %96 = vmatpush2.msra.mxu0 0.0
  %97 = vmatprep.subr.mxu0 0.0
  %98 = vmatpush2.msra.mxu0 0.0
  %99 = vmatprep.subr.mxu0 0.0
  %100 = vmatpush2.msra.mxu0 0.0
  %101 = vmatprep.subr.mxu0 0.0
  %102 = vmatpush2.msra.mxu0 0.0
  %103 = vmatprep.subr.mxu0 0.0
  %104 = vmatpush2.msra.mxu0 0.0
  %105 = vmatprep.subr.mxu0 0.0
  %106 = vmatpush2.msra.mxu0 0.0
  %107 = vmatprep.subr.mxu0 0.0
  %108 = vmatpush2.msra.mxu0 0.0
  %109 = vmatprep.subr.mxu0 0.0
  %110 = vmatpush2.msra.mxu0 0.0
  %111 = vmatprep.subr.mxu0 0.0
  %112 = vmatpush2.msra.mxu0 0.0
  %113 = vmatprep.subr.mxu0 0.0
  %114 = vmatpush2.msra.mxu0 0.0
  %115 = vmatprep.subr.mxu0 0.0
  %116 = vmatpush2.msra.mxu0 0.0
  %117 = vmatprep.subr.mxu0 0.0
  %118 = vmatpush2.msra.mxu0 0.0
  %119 = vmatprep.subr.mxu0 0.0
  %120 = vmatpush2.msra.mxu0 0.0
  %121 = vmatprep.mubr.f32.mxu0 0.0
  %122 = vmatmul.mubr.f32.gmra.mxu0 %v33
  %v123 = vpop.f32.mrf.mxu0
  %v124 = vadd.f32 %v29, %v123
  %v125 = vpop.f32.mrf.mxu0
  %126 = vmatprep.mubr.f32.mxu0 0.0
  %127 = vmatmul.mubr.f32.gmra.mxu0 %v36
  %v128 = vpop.f32.mrf.mxu0
  %v129 = vadd.f32 %v29, %v128
  %v130 = vpop.f32.mrf.mxu0
  %131 = vmatprep.mubr.f32.mxu0 0.0
  %132 = vmatmul.mubr.f32.gmra.mxu0 %v39
  %v133 = vpop.f32.mrf.mxu0
  %v134 = vadd.f32 %v29, %v133
  %v135 = vpop.f32.mrf.mxu0
  %136 = vmatprep.mubr.f32.mxu0 0.0
  %137 = vmatmul.mubr.f32.gmra.mxu0 %v42
  %v138 = vpop.f32.mrf.mxu0
  %v139 = vadd.f32 %v29, %v138
  %v140 = vpop.f32.mrf.mxu0
  %141 = vmatprep.mubr.f32.mxu0 0.0
  %142 = vmatmul.mubr.f32.gmra.mxu0 %v45
  %v143 = vpop.f32.mrf.mxu0
  %v144 = vadd.f32 %v29, %v143
  %v145 = vpop.f32.mrf.mxu0
  %146 = vmatprep.mubr.f32.mxu0 0.0
  %147 = vmatmul.mubr.f32.gmra.mxu0 %v48
  %v148 = vpop.f32.mrf.mxu0
  %v149 = vadd.f32 %v29, %v148
  %v150 = vpop.f32.mrf.mxu0
  %151 = vmatprep.mubr.f32.mxu0 0.0
  %152 = vmatmul.mubr.f32.gmra.mxu0 %v51
  %v153 = vpop.f32.mrf.mxu0
  %v154 = vadd.f32 %v29, %v153
  %v155 = vpop.f32.mrf.mxu0
  %156 = vdwg.mxu0
  %v157 = vmul.f32 %v124, 0.5
  %v158 = vmul.f32 %v129, 0.5
  %v159 = vmul.f32 %v134, 0.5
  %v160 = vmul.f32 %v139, 0.5
  %v161 = vmul.f32 %v144, 0.5
  %v162 = vmul.f32 %v149, 0.5
  %v163 = vmul.f32 %v154, 0.5
  %v164 = vmul.f32 %v124, 0.70710677
  %v165 = vmul.f32 %v129, 0.70710677
  %v166 = vmul.f32 %v134, 0.70710677
  %v167 = vmul.f32 %v139, 0.70710677
  %v168 = vmul.f32 %v144, 0.70710677
  %v169 = vmul.f32 %v149, 0.70710677
  %v170 = vmul.f32 %v154, 0.70710677
  %v171 = verf.f32.pop %v164
  %v172 = verf.f32.pop %v165
  %v173 = verf.f32.pop %v166
  %v174 = verf.f32.pop %v167
  %v175 = verf.f32.pop %v168
  %v176 = verf.f32.pop %v169
  %v177 = verf.f32.pop %v170
  %v178 = vadd.f32 %v171, 1.0
  %v179 = vadd.f32 %v172, 1.0
  %v180 = vadd.f32 %v173, 1.0
  %v181 = vadd.f32 %v174, 1.0
  %v182 = vadd.f32 %v175, 1.0
  %v183 = vadd.f32 %v176, 1.0
  %v184 = vadd.f32 %v177, 1.0
  %v185 = vmul.f32 %v157, %v178
  %v186 = vmul.f32 %v158, %v179
  %v187 = vmul.f32 %v159, %v180
  %v188 = vmul.f32 %v160, %v181
  %v189 = vmul.f32 %v161, %v182
  %v190 = vmul.f32 %v162, %v183
  %v191 = vmul.f32 %v163, %v184
  %vm192 = vcmask 15360
  %193 = vst.msk [vmem:[%s3] sm:$0xff] %vm192, %v185
  %194 = vst.msk [vmem:[%s3 + $0x8] sm:$0xff] %vm192, %v186
  %195 = vst.msk [vmem:[%s3 + $0x10] sm:$0xff] %vm192, %v187
  %196 = vst.msk [vmem:[%s3 + $0x18] sm:$0xff] %vm192, %v188
  %197 = vst.msk [vmem:[%s3 + $0x20] sm:$0xff] %vm192, %v189
  %198 = vst.msk [vmem:[%s3 + $0x28] sm:$0xff] %vm192, %v190
  %vm199 = vcmask 9216
  %200 = vst.msk [vmem:[%s3 + $0x30] sm:$0x3] %vm199, %v191
  // Predicated region
  $region14: #{esa_forward.22} parent=0 // pred_check
    _
  $region15: #{esa_forward.22} parent=0 // pred_check_branch
    %202 = sbr.rel (0) target = $region17
  $region16: #{esa_forward.22} parent=0 // pred_region
    _
  $region17: #{esa_forward.22} parent=0 // pred_fallthru
    _
  // Predicated region
  $region18: #{esa_forward.22} parent=0 // pred_check
    _
  $region19: #{esa_forward.22} parent=0 // pred_check_branch
    %204 = sbr.rel (0) target = $region21
  $region20: #{esa_forward.22} parent=0 // pred_region
    _
  $region21: #{esa_forward.22} parent=0 // pred_fallthru
    _

// kernel: esa_forward.23
$region0: #{esa_forward.23}
  #allocation0 [shape = 'u32[]', space=smem, size = 0x4, offset = 0x4, fixed_abs, tag = 'smem constant byte address 0x4 - core index']
  #allocation1 [shape = 'u32[144,128]{1,0:T(1,128)}', space=vmem, size = 0x12000, scoped, tag = 'internal scratch']
  %s0 = inlined_call_operand.vmem [shape: f32[18,18], index: 0, kind: input, shape index: {}]
  %s1 = inlined_call_operand.vmem [shape: f32[18,2], index: 1, kind: input, shape index: {}]
  %s2 = inlined_call_operand.vmem [shape: f32[1,2], index: 2, kind: input, shape index: {}]
  %s3 = inlined_call_operand.vmem [shape: f32[18,2], index: 3, kind: output, shape index: {}]
  %s4 = sld [smem:[#allocation0]]
  $region22: #{esa_forward.23} parent=0
    _
  %s6 = ssub.s32 1, %s4
  %s7 = scalar_select 0, %s6, %s4
  // Predicated region
  $region2: #{esa_forward.23} parent=0 // pred_check
    _
  $region3: #{esa_forward.23} parent=0 // pred_check_branch
    %9 = sbr.rel (0) target = $region5
  $region4: #{esa_forward.23} parent=0 // pred_region
    _
  $region5: #{esa_forward.23} parent=0 // pred_fallthru
    _
  // Predicated region
  $region6: #{esa_forward.23} parent=0 // pred_check
    _
  $region7: #{esa_forward.23} parent=0 // pred_check_branch
    %11 = sbr.rel (0) target = $region9
  $region8: #{esa_forward.23} parent=0 // pred_region
    _
  $region9: #{esa_forward.23} parent=0 // pred_fallthru
    _
  // Predicated region
  $region10: #{esa_forward.23} parent=0 // pred_check
    _
  $region11: #{esa_forward.23} parent=0 // pred_check_branch
    %13 = sbr.rel (0) target = $region13
  $region12: #{esa_forward.23} parent=0 // pred_region
    _
  $region13: #{esa_forward.23} parent=0 // pred_fallthru
    _
  %v14 = vld [vmem:[%s0] sm:$0xff]
  %v15 = vld [vmem:[%s0 + $0x8] sm:$0xff]
  %v16 = vld [vmem:[%s0 + $0x10] sm:$0x3]
  %v17 = vld [vmem:[%s1] sm:$0xff]
  %v18 = vld [vmem:[%s1 + $0x8] sm:$0xff]
  %v19 = vld [vmem:[%s1 + $0x10] sm:$0x3]
  %v20 = vld [vmem:[%s2] sm:$0x1]
  %v22 = vlaneseq
  %v23 = vshrl.u32 %v22, 7
  %v24 = vsub.s32 0, %v23
  %v25 = vrot.slane %v20, %v24
  %vm27 = vcmask 146432
  %v29 = vsel %vm27, %v14, 0
  %v32 = vsel %vm27, %v15, 0
  %v35 = vsel %vm27, %v16, 0
  %vm37 = vcmask 1041408
  %v39 = vsel %vm37, %v19, 0
  %41 = vmatprep.subr.mxu0 0.0
  %42 = vmatpush1.msra.mxu0 0.0
  %43 = vmatprep.subr.mxu0 0.0
  %44 = vmatpush1.msra.mxu0 0.0
  %45 = vmatprep.subr.mxu0 0.0
  %46 = vmatpush1.msra.mxu0 0.0
  %47 = vmatprep.subr.mxu0 0.0
  %48 = vmatpush1.msra.mxu0 0.0
  %49 = vmatprep.subr.mxu0 0.0
  %50 = vmatpush1.msra.mxu0 0.0
  %51 = vmatprep.subr.mxu0 0.0
  %52 = vmatpush1.msra.mxu0 0.0
  %53 = vmatprep.subr.mxu0 0.0
  %54 = vmatpush1.msra.mxu0 0.0
  %55 = vmatprep.subr.mxu0 0.0
  %56 = vmatpush1.msra.mxu0 0.0
  %57 = vmatprep.subr.mxu0 0.0
  %58 = vmatpush1.msra.mxu0 0.0
  %59 = vmatprep.subr.mxu0 0.0
  %60 = vmatpush1.msra.mxu0 0.0
  %61 = vmatprep.subr.mxu0 0.0
  %62 = vmatpush1.msra.mxu0 0.0
  %63 = vmatprep.subr.mxu0 0.0
  %64 = vmatpush1.msra.mxu0 0.0
  %65 = vmatprep.subr.mxu0 0.0
  %66 = vmatpush1.msra.mxu0 0.0
  %67 = vmatprep.subr.mxu0 0.0
  %68 = vmatpush1.msra.mxu0 %v39
  %69 = vmatprep.subr.mxu0 0.0
  %70 = vmatpush1.msra.mxu0 %v18
  %71 = vmatprep.subr.mxu0 0.0
  %72 = vmatpush1.msra.mxu0 %v17
  %73 = vmatprep.subr.mxu0 0.0
  %74 = vmatpush2.msra.mxu0 0.0
  %75 = vmatprep.subr.mxu0 0.0
  %76 = vmatpush2.msra.mxu0 0.0
  %77 = vmatprep.subr.mxu0 0.0
  %78 = vmatpush2.msra.mxu0 0.0
  %79 = vmatprep.subr.mxu0 0.0
  %80 = vmatpush2.msra.mxu0 0.0
  %81 = vmatprep.subr.mxu0 0.0
  %82 = vmatpush2.msra.mxu0 0.0
  %83 = vmatprep.subr.mxu0 0.0
  %84 = vmatpush2.msra.mxu0 0.0
  %85 = vmatprep.subr.mxu0 0.0
  %86 = vmatpush2.msra.mxu0 0.0
  %87 = vmatprep.subr.mxu0 0.0
  %88 = vmatpush2.msra.mxu0 0.0
  %89 = vmatprep.subr.mxu0 0.0
  %90 = vmatpush2.msra.mxu0 0.0
  %91 = vmatprep.subr.mxu0 0.0
  %92 = vmatpush2.msra.mxu0 0.0
  %93 = vmatprep.subr.mxu0 0.0
  %94 = vmatpush2.msra.mxu0 0.0
  %95 = vmatprep.subr.mxu0 0.0
  %96 = vmatpush2.msra.mxu0 0.0
  %97 = vmatprep.subr.mxu0 0.0
  %98 = vmatpush2.msra.mxu0 0.0
  %99 = vmatprep.subr.mxu0 0.0
  %100 = vmatpush2.msra.mxu0 0.0
  %101 = vmatprep.subr.mxu0 0.0
  %102 = vmatpush2.msra.mxu0 0.0
  %103 = vmatprep.subr.mxu0 0.0
  %104 = vmatpush2.msra.mxu0 0.0
  %105 = vmatprep.mubr.f32.mxu0 0.0
  %106 = vmatmul.mubr.f32.gmra.mxu0 %v29
  %v107 = vpop.f32.mrf.mxu0
  %v108 = vadd.f32 %v25, %v107
  %v109 = vpop.f32.mrf.mxu0
  %110 = vmatprep.mubr.f32.mxu0 0.0
  %111 = vmatmul.mubr.f32.gmra.mxu0 %v32
  %v112 = vpop.f32.mrf.mxu0
  %v113 = vadd.f32 %v25, %v112
  %v114 = vpop.f32.mrf.mxu0
  %115 = vmatprep.mubr.f32.mxu0 0.0
  %116 = vmatmul.mubr.f32.gmra.mxu0 %v35
  %v117 = vpop.f32.mrf.mxu0
  %v118 = vadd.f32 %v25, %v117
  %v119 = vpop.f32.mrf.mxu0
  %120 = vdwg.mxu0
  %vm121 = vcmask 15360
  %122 = vst.msk [vmem:[%s3] sm:$0xff] %vm121, %v108
  %123 = vst.msk [vmem:[%s3 + $0x8] sm:$0xff] %vm121, %v113
  %vm124 = vcmask 9216
  %125 = vst.msk [vmem:[%s3 + $0x10] sm:$0x3] %vm124, %v118
  // Predicated region
  $region14: #{esa_forward.23} parent=0 // pred_check
    _
  $region15: #{esa_forward.23} parent=0 // pred_check_branch
    %127 = sbr.rel (0) target = $region17
  $region16: #{esa_forward.23} parent=0 // pred_region
    _
  $region17: #{esa_forward.23} parent=0 // pred_fallthru
    _
  // Predicated region
  $region18: #{esa_forward.23} parent=0 // pred_check
    _
  $region19: #{esa_forward.23} parent=0 // pred_check_branch
    %129 = sbr.rel (0) target = $region21
  $region20: #{esa_forward.23} parent=0 // pred_region
    _
  $region21: #{esa_forward.23} parent=0 // pred_fallthru
    _

// kernel: esa_forward.18
$region0: #{esa_forward.18}
  #allocation0 [shape = 'u32[]', space=smem, size = 0x4, offset = 0x4, fixed_abs, tag = 'smem constant byte address 0x4 - core index']
  #allocation1 [shape = 'u32[144,128]{1,0:T(1,128)}', space=vmem, size = 0x12000, scoped, tag = 'internal scratch']
  %s0 = inlined_call_operand.vmem [shape: f32[49,14,14], index: 0, kind: input, shape index: {}]
  %s1 = inlined_call_operand.vmem [shape: f32[14,14], index: 1, kind: output, shape index: {}]
  %s2 = sld [smem:[#allocation0]]
  $region14: #{esa_forward.18} parent=0
    _
  %s4 = ssub.s32 1, %s2
  %s5 = scalar_select 0, %s4, %s2
  // Predicated region
  $region2: #{esa_forward.18} parent=0 // pred_check
    _
  $region3: #{esa_forward.18} parent=0 // pred_check_branch
    %7 = sbr.rel (0) target = $region5
  $region4: #{esa_forward.18} parent=0 // pred_region
    _
  $region5: #{esa_forward.18} parent=0 // pred_fallthru
    _
  %v8 = vld [vmem:[%s0] sm:$0xff]
  %v9 = vld [vmem:[%s0 + $0x8] sm:$0x3f]
  %v10 = vld [vmem:[%s0 + $0x10] sm:$0xff]
  %v11 = vld [vmem:[%s0 + $0x18] sm:$0x3f]
  %v12 = vld [vmem:[%s0 + $0x20] sm:$0xff]
  %v13 = vld [vmem:[%s0 + $0x28] sm:$0x3f]
  %v14 = vld [vmem:[%s0 + $0x30] sm:$0xff]
  %v15 = vld [vmem:[%s0 + $0x38] sm:$0x3f]
  %v16 = vld [vmem:[%s0 + $0x40] sm:$0xff]
  %v17 = vld [vmem:[%s0 + $0x48] sm:$0x3f]
  %v18 = vld [vmem:[%s0 + $0x50] sm:$0xff]
  %v19 = vld [vmem:[%s0 + $0x58] sm:$0x3f]
  %v20 = vld [vmem:[%s0 + $0x60] sm:$0xff]
  %v21 = vld [vmem:[%s0 + $0x68] sm:$0x3f]
  %v22 = vld [vmem:[%s0 + $0x70] sm:$0xff]
  %v23 = vld [vmem:[%s0 + $0x78] sm:$0x3f]
  %v24 = vld [vmem:[%s0 + $0x80] sm:$0xff]
  %v25 = vld [vmem:[%s0 + $0x88] sm:$0x3f]
  %v26 = vld [vmem:[%s0 + $0x90] sm:$0xff]
  %v27 = vld [vmem:[%s0 + $0x98] sm:$0x3f]
  %v28 = vld [vmem:[%s0 + $0xa0] sm:$0xff]
  %v29 = vld [vmem:[%s0 + $0xa8] sm:$0x3f]
  %v30 = vld [vmem:[%s0 + $0xb0] sm:$0xff]
  %v31 = vld [vmem:[%s0 + $0xb8] sm:$0x3f]
  %v32 = vld [vmem:[%s0 + $0xc0] sm:$0xff]
  %v33 = vld [vmem:[%s0 + $0xc8] sm:$0x3f]
  %v34 = vld [vmem:[%s0 + $0xd0] sm:$0xff]
  %v35 = vld [vmem:[%s0 + $0xd8] sm:$0x3f]
  %v36 = vld [vmem:[%s0 + $0xe0] sm:$0xff]
  %v37 = vld [vmem:[%s0 + $0xe8] sm:$0x3f]
  %v38 = vld [vmem:[%s0 + $0xf0] sm:$0xff]
  %v39 = vld [vmem:[%s0 + $0xf8] sm:$0x3f]
  %v40 = vld [vmem:[%s0 + $0x100] sm:$0xff]
  %v41 = vld [vmem:[%s0 + $0x108] sm:$0x3f]
  %v42 = vld [vmem:[%s0 + $0x110] sm:$0xff]
  %v43 = vld [vmem:[%s0 + $0x118] sm:$0x3f]
  %v44 = vld [vmem:[%s0 + $0x120] sm:$0xff]
  %v45 = vld [vmem:[%s0 + $0x128] sm:$0x3f]
  %v46 = vld [vmem:[%s0 + $0x130] sm:$0xff]
  %v47 = vld [vmem:[%s0 + $0x138] sm:$0x3f]
  %v48 = vld [vmem:[%s0 + $0x140] sm:$0xff]
  %v49 = vld [vmem:[%s0 + $0x148] sm:$0x3f]
  %v50 = vld [vmem:[%s0 + $0x150] sm:$0xff]
  %v51 = vld [vmem:[%s0 + $0x158] sm:$0x3f]
  %v52 = vld [vmem:[%s0 + $0x160] sm:$0xff]
  %v53 = vld [vmem:[%s0 + $0x168] sm:$0x3f]
  %v54 = vld [vmem:[%s0 + $0x170] sm:$0xff]
  %v55 = vld [vmem:[%s0 + $0x178] sm:$0x3f]
  %v56 = vld [vmem:[%s0 + $0x180] sm:$0xff]
  %v57 = vld [vmem:[%s0 + $0x188] sm:$0x3f]
  %v58 = vld [vmem:[%s0 + $0x190] sm:$0xff]
  %v59 = vld [vmem:[%s0 + $0x198] sm:$0x3f]
  %v60 = vld [vmem:[%s0 + $0x1a0] sm:$0xff]
  %v61 = vld [vmem:[%s0 + $0x1a8] sm:$0x3f]
  %v62 = vld [vmem:[%s0 + $0x1b0] sm:$0xff]
  %v63 = vld [vmem:[%s0 + $0x1b8] sm:$0x3f]
  %v64 = vld [vmem:[%s0 + $0x1c0] sm:$0xff]
  %v65 = vld [vmem:[%s0 + $0x1c8] sm:$0x3f]
  %v66 = vld [vmem:[%s0 + $0x1d0] sm:$0xff]
  %v67 = vld [vmem:[%s0 + $0x1d8] sm:$0x3f]
  %v68 = vld [vmem:[%s0 + $0x1e0] sm:$0xff]
  %v69 = vld [vmem:[%s0 + $0x1e8] sm:$0x3f]
  %v70 = vld [vmem:[%s0 + $0x1f0] sm:$0xff]
  %v71 = vld [vmem:[%s0 + $0x1f8] sm:$0x3f]
  %v72 = vld [vmem:[%s0 + $0x200] sm:$0xff]
  %v73 = vld [vmem:[%s0 + $0x208] sm:$0x3f]
  %v74 = vld [vmem:[%s0 + $0x210] sm:$0xff]
  %v75 = vld [vmem:[%s0 + $0x218] sm:$0x3f]
  %v76 = vld [vmem:[%s0 + $0x220] sm:$0xff]
  %v77 = vld [vmem:[%s0 + $0x228] sm:$0x3f]
  %v78 = vld [vmem:[%s0 + $0x230] sm:$0xff]
  %v79 = vld [vmem:[%s0 + $0x238] sm:$0x3f]
  %v80 = vld [vmem:[%s0 + $0x240] sm:$0xff]
  %v81 = vld [vmem:[%s0 + $0x248] sm:$0x3f]
  %v82 = vld [vmem:[%s0 + $0x250] sm:$0xff]
  %v83 = vld [vmem:[%s0 + $0x258] sm:$0x3f]
  %v84 = vld [vmem:[%s0 + $0x260] sm:$0xff]
  %v85 = vld [vmem:[%s0 + $0x268] sm:$0x3f]
  %v86 = vld [vmem:[%s0 + $0x270] sm:$0xff]
  %v87 = vld [vmem:[%s0 + $0x278] sm:$0x3f]
  %v88 = vld [vmem:[%s0 + $0x280] sm:$0xff]
  %v89 = vld [vmem:[%s0 + $0x288] sm:$0x3f]
  %v90 = vld [vmem:[%s0 + $0x290] sm:$0xff]
  %v91 = vld [vmem:[%s0 + $0x298] sm:$0x3f]
  %v92 = vld [vmem:[%s0 + $0x2a0] sm:$0xff]
  %v93 = vld [vmem:[%s0 + $0x2a8] sm:$0x3f]
  %v94 = vld [vmem:[%s0 + $0x2b0] sm:$0xff]
  %v95 = vld [vmem:[%s0 + $0x2b8] sm:$0x3f]
  %v96 = vld [vmem:[%s0 + $0x2c0] sm:$0xff]
  %v97 = vld [vmem:[%s0 + $0x2c8] sm:$0x3f]
  %v98 = vld [vmem:[%s0 + $0x2d0] sm:$0xff]
  %v99 = vld [vmem:[%s0 + $0x2d8] sm:$0x3f]
  %v100 = vld [vmem:[%s0 + $0x2e0] sm:$0xff]
  %v101 = vld [vmem:[%s0 + $0x2e8] sm:$0x3f]
  %v102 = vld [vmem:[%s0 + $0x2f0] sm:$0xff]
  %v103 = vld [vmem:[%s0 + $0x2f8] sm:$0x3f]
  %v104 = vld [vmem:[%s0 + $0x300] sm:$0xff]
  %v105 = vld [vmem:[%s0 + $0x308] sm:$0x3f]
  %vm106 = vcmask 113664
  %v107 = vsel %vm106, %v8, -inf
  %v108 = vsel %vm106, %v10, -inf
  %v109 = vsel %vm106, %v12, -inf
  %v110 = vmax.f32 %v107, %v109
  %v111 = vsel %vm106, %v14, -inf
  %v112 = vmax.f32 %v108, %v111
  %v113 = vsel %vm106, %v16, -inf
  %v114 = vmax.f32 %v110, %v113
  %v115 = vsel %vm106, %v18, -inf
  %v116 = vmax.f32 %v112, %v115
  %v117 = vsel %vm106, %v20, -inf
  %v118 = vmax.f32 %v114, %v117
  %v119 = vsel %vm106, %v22, -inf
  %v120 = vmax.f32 %v116, %v119
  %v121 = vsel %vm106, %v24, -inf
  %v122 = vmax.f32 %v118, %v121
  %v123 = vsel %vm106, %v26, -inf
  %v124 = vmax.f32 %v120, %v123
  %v125 = vsel %vm106, %v28, -inf
  %v126 = vmax.f32 %v122, %v125
  %v127 = vsel %vm106, %v30, -inf
  %v128 = vmax.f32 %v124, %v127
  %v129 = vsel %vm106, %v32, -inf
  %v130 = vmax.f32 %v126, %v129
  %v131 = vsel %vm106, %v34, -inf
  %v132 = vmax.f32 %v128, %v131
  %v133 = vsel %vm106, %v36, -inf
  %v134 = vmax.f32 %v130, %v133
  %v135 = vsel %vm106, %v38, -inf
  %v136 = vmax.f32 %v132, %v135
  %v137 = vsel %vm106, %v40, -inf
  %v138 = vmax.f32 %v134, %v137
  %v139 = vsel %vm106, %v42, -inf
  %v140 = vmax.f32 %v136, %v139
  %v141 = vsel %vm106, %v44, -inf
  %v142 = vmax.f32 %v138, %v141
  %v143 = vsel %vm106, %v46, -inf
  %v144 = vmax.f32 %v140, %v143
  %v145 = vsel %vm106, %v48, -inf
  %v146 = vmax.f32 %v142, %v145
  %v147 = vsel %vm106, %v50, -inf
  %v148 = vmax.f32 %v144, %v147
  %v149 = vsel %vm106, %v52, -inf
  %v150 = vmax.f32 %v146, %v149
  %v151 = vsel %vm106, %v54, -inf
  %v152 = vmax.f32 %v148, %v151
  %v153 = vsel %vm106, %v56, -inf
  %v154 = vmax.f32 %v150, %v153
  %v155 = vsel %vm106, %v58, -inf
  %v156 = vmax.f32 %v152, %v155
  %v157 = vsel %vm106, %v60, -inf
  %v158 = vmax.f32 %v154, %v157
  %v159 = vsel %vm106, %v62, -inf
  %v160 = vmax.f32 %v156, %v159
  %v161 = vsel %vm106, %v64, -inf
  %v162 = vmax.f32 %v158, %v161
  %v163 = vsel %vm106, %v66, -inf
  %v164 = vmax.f32 %v160, %v163
  %v165 = vsel %vm106, %v68, -inf
  %v166 = vmax.f32 %v162, %v165
  %v167 = vsel %vm106, %v70, -inf
  %v168 = vmax.f32 %v164, %v167
  %v169 = vsel %vm106, %v72, -inf
  %v170 = vmax.f32 %v166, %v169
  %v171 = vsel %vm106, %v74, -inf
  %v172 = vmax.f32 %v168, %v171
  %v173 = vsel %vm106, %v76, -inf
  %v174 = vmax.f32 %v170, %v173
  %v175 = vsel %vm106, %v78, -inf
  %v176 = vmax.f32 %v172, %v175
  %v177 = vsel %vm106, %v80, -inf
  %v178 = vmax.f32 %v174, %v177
  %v179 = vsel %vm106, %v82, -inf
  %v180 = vmax.f32 %v176, %v179
  %v181 = vsel %vm106, %v84, -inf
  %v182 = vmax.f32 %v178, %v181
  %v183 = vsel %vm106, %v86, -inf
  %v184 = vmax.f32 %v180, %v183
  %v185 = vsel %vm106, %v88, -inf
  %v186 = vmax.f32 %v182, %v185
  %v187 = vsel %vm106, %v90, -inf
  %v188 = vmax.f32 %v184, %v187
  %v189 = vsel %vm106, %v92, -inf
  %v190 = vmax.f32 %v186, %v189
  %v191 = vsel %vm106, %v94, -inf
  %v192 = vmax.f32 %v188, %v191
  %v193 = vsel %vm106, %v96, -inf
  %v194 = vmax.f32 %v190, %v193
  %v195 = vsel %vm106, %v98, -inf
  %v196 = vmax.f32 %v192, %v195
  %v197 = vsel %vm106, %v100, -inf
  %v198 = vmax.f32 %v194, %v197
  %v199 = vsel %vm106, %v102, -inf
  %v200 = vmax.f32 %v196, %v199
  %v201 = vsel %vm106, %v104, -inf
  %v202 = vmax.f32 %v198, %v201
  %v203 = vmax.f32 %v202, %v200
  %vm204 = vcmask 111616
  %v205 = vsel %vm204, %v9, -inf
  %v206 = vsel %vm204, %v11, -inf
  %v207 = vsel %vm204, %v13, -inf
  %v208 = vmax.f32 %v205, %v207
  %v209 = vsel %vm204, %v15, -inf
  %v210 = vmax.f32 %v206, %v209
  %v211 = vsel %vm204, %v17, -inf
  %v212 = vmax.f32 %v208, %v211
  %v213 = vsel %vm204, %v19, -inf
  %v214 = vmax.f32 %v210, %v213
  %v215 = vsel %vm204, %v21, -inf
  %v216 = vmax.f32 %v212, %v215
  %v217 = vsel %vm204, %v23, -inf
  %v218 = vmax.f32 %v214, %v217
  %v219 = vsel %vm204, %v25, -inf
  %v220 = vmax.f32 %v216, %v219
  %v221 = vsel %vm204, %v27, -inf
  %v222 = vmax.f32 %v218, %v221
  %v223 = vsel %vm204, %v29, -inf
  %v224 = vmax.f32 %v220, %v223
  %v225 = vsel %vm204, %v31, -inf
  %v226 = vmax.f32 %v222, %v225
  %v227 = vsel %vm204, %v33, -inf
  %v228 = vmax.f32 %v224, %v227
  %v229 = vsel %vm204, %v35, -inf
  %v230 = vmax.f32 %v226, %v229
  %v231 = vsel %vm204, %v37, -inf
  %v232 = vmax.f32 %v228, %v231
  %v233 = vsel %vm204, %v39, -inf
  %v234 = vmax.f32 %v230, %v233
  %v235 = vsel %vm204, %v41, -inf
  %v236 = vmax.f32 %v232, %v235
  %v237 = vsel %vm204, %v43, -inf
  %v238 = vmax.f32 %v234, %v237
  %v239 = vsel %vm204, %v45, -inf
  %v240 = vmax.f32 %v236, %v239
  %v241 = vsel %vm204, %v47, -inf
  %v242 = vmax.f32 %v238, %v241
  %v243 = vsel %vm204, %v49, -inf
  %v244 = vmax.f32 %v240, %v243
  %v245 = vsel %vm204, %v51, -inf
  %v246 = vmax.f32 %v242, %v245
  %v247 = vsel %vm204, %v53, -inf
  %v248 = vmax.f32 %v244, %v247
  %v249 = vsel %vm204, %v55, -inf
  %v250 = vmax.f32 %v246, %v249
  %v251 = vsel %vm204, %v57, -inf
  %v252 = vmax.f32 %v248, %v251
  %v253 = vsel %vm204, %v59, -inf
  %v254 = vmax.f32 %v250, %v253
  %v255 = vsel %vm204, %v61, -inf
  %v256 = vmax.f32 %v252, %v255
  %v257 = vsel %vm204, %v63, -inf
  %v258 = vmax.f32 %v254, %v257
  %v259 = vsel %vm204, %v65, -inf
  %v260 = vmax.f32 %v256, %v259
  %v261 = vsel %vm204, %v67, -inf
  %v262 = vmax.f32 %v258, %v261
  %v263 = vsel %vm204, %v69, -inf
  %v264 = vmax.f32 %v260, %v263
  %v265 = vsel %vm204, %v71, -inf
  %v266 = vmax.f32 %v262, %v265
  %v267 = vsel %vm204, %v73, -inf
  %v268 = vmax.f32 %v264, %v267
  %v269 = vsel %vm204, %v75, -inf
  %v270 = vmax.f32 %v266, %v269
  %v271 = vsel %vm204, %v77, -inf
  %v272 = vmax.f32 %v268, %v271
  %v273 = vsel %vm204, %v79, -inf
  %v274 = vmax.f32 %v270, %v273
  %v275 = vsel %vm204, %v81, -inf
  %v276 = vmax.f32 %v272, %v275
  %v277 = vsel %vm204, %v83, -inf
  %v278 = vmax.f32 %v274, %v277
  %v279 = vsel %vm204, %v85, -inf
  %v280 = vmax.f32 %v276, %v279
  %v281 = vsel %vm204, %v87, -inf
  %v282 = vmax.f32 %v278, %v281
  %v283 = vsel %vm204, %v89, -inf
  %v284 = vmax.f32 %v280, %v283
  %v285 = vsel %vm204, %v91, -inf
  %v286 = vmax.f32 %v282, %v285
  %v287 = vsel %vm204, %v93, -inf
  %v288 = vmax.f32 %v284, %v287
  %v289 = vsel %vm204, %v95, -inf
  %v290 = vmax.f32 %v286, %v289
  %v291 = vsel %vm204, %v97, -inf
  %v292 = vmax.f32 %v288, %v291
  %v293 = vsel %vm204, %v99, -inf
  %v294 = vmax.f32 %v290, %v293
  %v295 = vsel %vm204, %v101, -inf
  %v296 = vmax.f32 %v292, %v295
  %v297 = vsel %vm204, %v103, -inf
  %v298 = vmax.f32 %v294, %v297
  %v299 = vsel %vm204, %v105, -inf
  %v300 = vmax.f32 %v296, %v299
  %v301 = vmax.f32 %v300, %v298
  %302 = vst.msk [vmem:[%s1] sm:$0xff] %vm106, %v203
  %303 = vst.msk [vmem:[%s1 + $0x8] sm:$0x3f] %vm204, %v301
  // Predicated region
  $region6: #{esa_forward.18} parent=0 // pred_check
    _
  $region7: #{esa_forward.18} parent=0 // pred_check_branch
    %305 = sbr.rel (0) target = $region9
  $region8: #{esa_forward.18} parent=0 // pred_region
    _
  $region9: #{esa_forward.18} parent=0 // pred_fallthru
    _
  // Predicated region
  $region10: #{esa_forward.18} parent=0 // pred_check
    _
  $region11: #{esa_forward.18} parent=0 // pred_check_branch
    %307 = sbr.rel (0) target = $region13
  $region12: #{esa_forward.18} parent=0 // pred_region
    _
  $region13: #{esa_forward.18} parent=0 // pred_fallthru
    _

// kernel: esa_forward.19
$region0: #{esa_forward.19}
  #allocation0 [shape = 'u32[]', space=smem, size = 0x4, offset = 0x4, fixed_abs, tag = 'smem constant byte address 0x4 - core index']
  #allocation1 [shape = 'u32[144,128]{1,0:T(1,128)}', space=vmem, size = 0x12000, scoped, tag = 'internal scratch']
  %s0 = inlined_call_operand.vmem [shape: f32[49,14,14], index: 0, kind: input, shape index: {}]
  %s1 = inlined_call_operand.vmem [shape: f32[14,14], index: 1, kind: output, shape index: {}]
  %s2 = sld [smem:[#allocation0]]
  $region14: #{esa_forward.19} parent=0
    _
  %s4 = ssub.s32 1, %s2
  %s5 = scalar_select 0, %s4, %s2
  // Predicated region
  $region2: #{esa_forward.19} parent=0 // pred_check
    _
  $region3: #{esa_forward.19} parent=0 // pred_check_branch
    %7 = sbr.rel (0) target = $region5
  $region4: #{esa_forward.19} parent=0 // pred_region
    _
  $region5: #{esa_forward.19} parent=0 // pred_fallthru
    _
  %v8 = vld [vmem:[%s0] sm:$0xff]
  %v9 = vld [vmem:[%s0 + $0x8] sm:$0x3f]
  %v10 = vld [vmem:[%s0 + $0x10] sm:$0xff]
  %v11 = vld [vmem:[%s0 + $0x18] sm:$0x3f]
  %v12 = vld [vmem:[%s0 + $0x20] sm:$0xff]
  %v13 = vld [vmem:[%s0 + $0x28] sm:$0x3f]
  %v14 = vld [vmem:[%s0 + $0x30] sm:$0xff]
  %v15 = vld [vmem:[%s0 + $0x38] sm:$0x3f]
  %v16 = vld [vmem:[%s0 + $0x40] sm:$0xff]
  %v17 = vld [vmem:[%s0 + $0x48] sm:$0x3f]
  %v18 = vld [vmem:[%s0 + $0x50] sm:$0xff]
  %v19 = vld [vmem:[%s0 + $0x58] sm:$0x3f]
  %v20 = vld [vmem:[%s0 + $0x60] sm:$0xff]
  %v21 = vld [vmem:[%s0 + $0x68] sm:$0x3f]
  %v22 = vld [vmem:[%s0 + $0x70] sm:$0xff]
  %v23 = vld [vmem:[%s0 + $0x78] sm:$0x3f]
  %v24 = vld [vmem:[%s0 + $0x80] sm:$0xff]
  %v25 = vld [vmem:[%s0 + $0x88] sm:$0x3f]
  %v26 = vld [vmem:[%s0 + $0x90] sm:$0xff]
  %v27 = vld [vmem:[%s0 + $0x98] sm:$0x3f]
  %v28 = vld [vmem:[%s0 + $0xa0] sm:$0xff]
  %v29 = vld [vmem:[%s0 + $0xa8] sm:$0x3f]
  %v30 = vld [vmem:[%s0 + $0xb0] sm:$0xff]
  %v31 = vld [vmem:[%s0 + $0xb8] sm:$0x3f]
  %v32 = vld [vmem:[%s0 + $0xc0] sm:$0xff]
  %v33 = vld [vmem:[%s0 + $0xc8] sm:$0x3f]
  %v34 = vld [vmem:[%s0 + $0xd0] sm:$0xff]
  %v35 = vld [vmem:[%s0 + $0xd8] sm:$0x3f]
  %v36 = vld [vmem:[%s0 + $0xe0] sm:$0xff]
  %v37 = vld [vmem:[%s0 + $0xe8] sm:$0x3f]
  %v38 = vld [vmem:[%s0 + $0xf0] sm:$0xff]
  %v39 = vld [vmem:[%s0 + $0xf8] sm:$0x3f]
  %v40 = vld [vmem:[%s0 + $0x100] sm:$0xff]
  %v41 = vld [vmem:[%s0 + $0x108] sm:$0x3f]
  %v42 = vld [vmem:[%s0 + $0x110] sm:$0xff]
  %v43 = vld [vmem:[%s0 + $0x118] sm:$0x3f]
  %v44 = vld [vmem:[%s0 + $0x120] sm:$0xff]
  %v45 = vld [vmem:[%s0 + $0x128] sm:$0x3f]
  %v46 = vld [vmem:[%s0 + $0x130] sm:$0xff]
  %v47 = vld [vmem:[%s0 + $0x138] sm:$0x3f]
  %v48 = vld [vmem:[%s0 + $0x140] sm:$0xff]
  %v49 = vld [vmem:[%s0 + $0x148] sm:$0x3f]
  %v50 = vld [vmem:[%s0 + $0x150] sm:$0xff]
  %v51 = vld [vmem:[%s0 + $0x158] sm:$0x3f]
  %v52 = vld [vmem:[%s0 + $0x160] sm:$0xff]
  %v53 = vld [vmem:[%s0 + $0x168] sm:$0x3f]
  %v54 = vld [vmem:[%s0 + $0x170] sm:$0xff]
  %v55 = vld [vmem:[%s0 + $0x178] sm:$0x3f]
  %v56 = vld [vmem:[%s0 + $0x180] sm:$0xff]
  %v57 = vld [vmem:[%s0 + $0x188] sm:$0x3f]
  %v58 = vld [vmem:[%s0 + $0x190] sm:$0xff]
  %v59 = vld [vmem:[%s0 + $0x198] sm:$0x3f]
  %v60 = vld [vmem:[%s0 + $0x1a0] sm:$0xff]
  %v61 = vld [vmem:[%s0 + $0x1a8] sm:$0x3f]
  %v62 = vld [vmem:[%s0 + $0x1b0] sm:$0xff]
  %v63 = vld [vmem:[%s0 + $0x1b8] sm:$0x3f]
  %v64 = vld [vmem:[%s0 + $0x1c0] sm:$0xff]
  %v65 = vld [vmem:[%s0 + $0x1c8] sm:$0x3f]
  %v66 = vld [vmem:[%s0 + $0x1d0] sm:$0xff]
  %v67 = vld [vmem:[%s0 + $0x1d8] sm:$0x3f]
  %v68 = vld [vmem:[%s0 + $0x1e0] sm:$0xff]
  %v69 = vld [vmem:[%s0 + $0x1e8] sm:$0x3f]
  %v70 = vld [vmem:[%s0 + $0x1f0] sm:$0xff]
  %v71 = vld [vmem:[%s0 + $0x1f8] sm:$0x3f]
  %v72 = vld [vmem:[%s0 + $0x200] sm:$0xff]
  %v73 = vld [vmem:[%s0 + $0x208] sm:$0x3f]
  %v74 = vld [vmem:[%s0 + $0x210] sm:$0xff]
  %v75 = vld [vmem:[%s0 + $0x218] sm:$0x3f]
  %v76 = vld [vmem:[%s0 + $0x220] sm:$0xff]
  %v77 = vld [vmem:[%s0 + $0x228] sm:$0x3f]
  %v78 = vld [vmem:[%s0 + $0x230] sm:$0xff]
  %v79 = vld [vmem:[%s0 + $0x238] sm:$0x3f]
  %v80 = vld [vmem:[%s0 + $0x240] sm:$0xff]
  %v81 = vld [vmem:[%s0 + $0x248] sm:$0x3f]
  %v82 = vld [vmem:[%s0 + $0x250] sm:$0xff]
  %v83 = vld [vmem:[%s0 + $0x258] sm:$0x3f]
  %v84 = vld [vmem:[%s0 + $0x260] sm:$0xff]
  %v85 = vld [vmem:[%s0 + $0x268] sm:$0x3f]
  %v86 = vld [vmem:[%s0 + $0x270] sm:$0xff]
  %v87 = vld [vmem:[%s0 + $0x278] sm:$0x3f]
  %v88 = vld [vmem:[%s0 + $0x280] sm:$0xff]
  %v89 = vld [vmem:[%s0 + $0x288] sm:$0x3f]
  %v90 = vld [vmem:[%s0 + $0x290] sm:$0xff]
  %v91 = vld [vmem:[%s0 + $0x298] sm:$0x3f]
  %v92 = vld [vmem:[%s0 + $0x2a0] sm:$0xff]
  %v93 = vld [vmem:[%s0 + $0x2a8] sm:$0x3f]
  %v94 = vld [vmem:[%s0 + $0x2b0] sm:$0xff]
  %v95 = vld [vmem:[%s0 + $0x2b8] sm:$0x3f]
  %v96 = vld [vmem:[%s0 + $0x2c0] sm:$0xff]
  %v97 = vld [vmem:[%s0 + $0x2c8] sm:$0x3f]
  %v98 = vld [vmem:[%s0 + $0x2d0] sm:$0xff]
  %v99 = vld [vmem:[%s0 + $0x2d8] sm:$0x3f]
  %v100 = vld [vmem:[%s0 + $0x2e0] sm:$0xff]
  %v101 = vld [vmem:[%s0 + $0x2e8] sm:$0x3f]
  %v102 = vld [vmem:[%s0 + $0x2f0] sm:$0xff]
  %v103 = vld [vmem:[%s0 + $0x2f8] sm:$0x3f]
  %v104 = vld [vmem:[%s0 + $0x300] sm:$0xff]
  %v105 = vld [vmem:[%s0 + $0x308] sm:$0x3f]
  %vm106 = vcmask 113664
  %v107 = vsel %vm106, %v8, 0.0
  %v108 = vsel %vm106, %v10, 0.0
  %v109 = vadd.f32 %v107, %v108
  %v110 = vsel %vm106, %v12, 0.0
  %v111 = vadd.f32 %v109, %v110
  %v112 = vsel %vm106, %v14, 0.0
  %v113 = vadd.f32 %v111, %v112
  %v114 = vsel %vm106, %v16, 0.0
  %v115 = vadd.f32 %v113, %v114
  %v116 = vsel %vm106, %v18, 0.0
  %v117 = vadd.f32 %v115, %v116
  %v118 = vsel %vm106, %v20, 0.0
  %v119 = vadd.f32 %v117, %v118
  %v120 = vsel %vm106, %v22, 0.0
  %v121 = vadd.f32 %v119, %v120
  %v122 = vsel %vm106, %v24, 0.0
  %v123 = vadd.f32 %v121, %v122
  %v124 = vsel %vm106, %v26, 0.0
  %v125 = vadd.f32 %v123, %v124
  %v126 = vsel %vm106, %v28, 0.0
  %v127 = vadd.f32 %v125, %v126
  %v128 = vsel %vm106, %v30, 0.0
  %v129 = vadd.f32 %v127, %v128
  %v130 = vsel %vm106, %v32, 0.0
  %v131 = vadd.f32 %v129, %v130
  %v132 = vsel %vm106, %v34, 0.0
  %v133 = vadd.f32 %v131, %v132
  %v134 = vsel %vm106, %v36, 0.0
  %v135 = vadd.f32 %v133, %v134
  %v136 = vsel %vm106, %v38, 0.0
  %v137 = vadd.f32 %v135, %v136
  %v138 = vsel %vm106, %v40, 0.0
  %v139 = vadd.f32 %v137, %v138
  %v140 = vsel %vm106, %v42, 0.0
  %v141 = vadd.f32 %v139, %v140
  %v142 = vsel %vm106, %v44, 0.0
  %v143 = vadd.f32 %v141, %v142
  %v144 = vsel %vm106, %v46, 0.0
  %v145 = vadd.f32 %v143, %v144
  %v146 = vsel %vm106, %v48, 0.0
  %v147 = vadd.f32 %v145, %v146
  %v148 = vsel %vm106, %v50, 0.0
  %v149 = vadd.f32 %v147, %v148
  %v150 = vsel %vm106, %v52, 0.0
  %v151 = vadd.f32 %v149, %v150
  %v152 = vsel %vm106, %v54, 0.0
  %v153 = vadd.f32 %v151, %v152
  %v154 = vsel %vm106, %v56, 0.0
  %v155 = vadd.f32 %v153, %v154
  %v156 = vsel %vm106, %v58, 0.0
  %v157 = vadd.f32 %v155, %v156
  %v158 = vsel %vm106, %v60, 0.0
  %v159 = vadd.f32 %v157, %v158
  %v160 = vsel %vm106, %v62, 0.0
  %v161 = vadd.f32 %v159, %v160
  %v162 = vsel %vm106, %v64, 0.0
  %v163 = vadd.f32 %v161, %v162
  %v164 = vsel %vm106, %v66, 0.0
  %v165 = vadd.f32 %v163, %v164
  %v166 = vsel %vm106, %v68, 0.0
  %v167 = vadd.f32 %v165, %v166
  %v168 = vsel %vm106, %v70, 0.0
  %v169 = vadd.f32 %v167, %v168
  %v170 = vsel %vm106, %v72, 0.0
  %v171 = vadd.f32 %v169, %v170
  %v172 = vsel %vm106, %v74, 0.0
  %v173 = vadd.f32 %v171, %v172
  %v174 = vsel %vm106, %v76, 0.0
  %v175 = vadd.f32 %v173, %v174
  %v176 = vsel %vm106, %v78, 0.0
  %v177 = vadd.f32 %v175, %v176
  %v178 = vsel %vm106, %v80, 0.0
  %v179 = vadd.f32 %v177, %v178
  %v180 = vsel %vm106, %v82, 0.0
  %v181 = vadd.f32 %v179, %v180
  %v182 = vsel %vm106, %v84, 0.0
  %v183 = vadd.f32 %v181, %v182
  %v184 = vsel %vm106, %v86, 0.0
  %v185 = vadd.f32 %v183, %v184
  %v186 = vsel %vm106, %v88, 0.0
  %v187 = vadd.f32 %v185, %v186
  %v188 = vsel %vm106, %v90, 0.0
  %v189 = vadd.f32 %v187, %v188
  %v190 = vsel %vm106, %v92, 0.0
  %v191 = vadd.f32 %v189, %v190
  %v192 = vsel %vm106, %v94, 0.0
  %v193 = vadd.f32 %v191, %v192
  %v194 = vsel %vm106, %v96, 0.0
  %v195 = vadd.f32 %v193, %v194
  %v196 = vsel %vm106, %v98, 0.0
  %v197 = vadd.f32 %v195, %v196
  %v198 = vsel %vm106, %v100, 0.0
  %v199 = vadd.f32 %v197, %v198
  %v200 = vsel %vm106, %v102, 0.0
  %v201 = vadd.f32 %v199, %v200
  %v202 = vsel %vm106, %v104, 0.0
  %v203 = vadd.f32 %v201, %v202
  %vm204 = vcmask 111616
  %v205 = vsel %vm204, %v9, 0.0
  %v206 = vsel %vm204, %v11, 0.0
  %v207 = vadd.f32 %v205, %v206
  %v208 = vsel %vm204, %v13, 0.0
  %v209 = vadd.f32 %v207, %v208
  %v210 = vsel %vm204, %v15, 0.0
  %v211 = vadd.f32 %v209, %v210
  %v212 = vsel %vm204, %v17, 0.0
  %v213 = vadd.f32 %v211, %v212
  %v214 = vsel %vm204, %v19, 0.0
  %v215 = vadd.f32 %v213, %v214
  %v216 = vsel %vm204, %v21, 0.0
  %v217 = vadd.f32 %v215, %v216
  %v218 = vsel %vm204, %v23, 0.0
  %v219 = vadd.f32 %v217, %v218
  %v220 = vsel %vm204, %v25, 0.0
  %v221 = vadd.f32 %v219, %v220
  %v222 = vsel %vm204, %v27, 0.0
  %v223 = vadd.f32 %v221, %v222
  %v224 = vsel %vm204, %v29, 0.0
  %v225 = vadd.f32 %v223, %v224
  %v226 = vsel %vm204, %v31, 0.0
  %v227 = vadd.f32 %v225, %v226
  %v228 = vsel %vm204, %v33, 0.0
  %v229 = vadd.f32 %v227, %v228
  %v230 = vsel %vm204, %v35, 0.0
  %v231 = vadd.f32 %v229, %v230
  %v232 = vsel %vm204, %v37, 0.0
  %v233 = vadd.f32 %v231, %v232
  %v234 = vsel %vm204, %v39, 0.0
  %v235 = vadd.f32 %v233, %v234
  %v236 = vsel %vm204, %v41, 0.0
  %v237 = vadd.f32 %v235, %v236
  %v238 = vsel %vm204, %v43, 0.0
  %v239 = vadd.f32 %v237, %v238
  %v240 = vsel %vm204, %v45, 0.0
  %v241 = vadd.f32 %v239, %v240
  %v242 = vsel %vm204, %v47, 0.0
  %v243 = vadd.f32 %v241, %v242
  %v244 = vsel %vm204, %v49, 0.0
  %v245 = vadd.f32 %v243, %v244
  %v246 = vsel %vm204, %v51, 0.0
  %v247 = vadd.f32 %v245, %v246
  %v248 = vsel %vm204, %v53, 0.0
  %v249 = vadd.f32 %v247, %v248
  %v250 = vsel %vm204, %v55, 0.0
  %v251 = vadd.f32 %v249, %v250
  %v252 = vsel %vm204, %v57, 0.0
  %v253 = vadd.f32 %v251, %v252
  %v254 = vsel %vm204, %v59, 0.0
  %v255 = vadd.f32 %v253, %v254
  %v256 = vsel %vm204, %v61, 0.0
  %v257 = vadd.f32 %v255, %v256
  %v258 = vsel %vm204, %v63, 0.0
  %v259 = vadd.f32 %v257, %v258
  %v260 = vsel %vm204, %v65, 0.0
  %v261 = vadd.f32 %v259, %v260
  %v262 = vsel %vm204, %v67, 0.0
  %v263 = vadd.f32 %v261, %v262
  %v264 = vsel %vm204, %v69, 0.0
  %v265 = vadd.f32 %v263, %v264
  %v266 = vsel %vm204, %v71, 0.0
  %v267 = vadd.f32 %v265, %v266
  %v268 = vsel %vm204, %v73, 0.0
  %v269 = vadd.f32 %v267, %v268
  %v270 = vsel %vm204, %v75, 0.0
  %v271 = vadd.f32 %v269, %v270
  %v272 = vsel %vm204, %v77, 0.0
  %v273 = vadd.f32 %v271, %v272
  %v274 = vsel %vm204, %v79, 0.0
  %v275 = vadd.f32 %v273, %v274
  %v276 = vsel %vm204, %v81, 0.0
  %v277 = vadd.f32 %v275, %v276
  %v278 = vsel %vm204, %v83, 0.0
  %v279 = vadd.f32 %v277, %v278
  %v280 = vsel %vm204, %v85, 0.0
  %v281 = vadd.f32 %v279, %v280
  %v282 = vsel %vm204, %v87, 0.0
  %v283 = vadd.f32 %v281, %v282
  %v284 = vsel %vm204, %v89, 0.0
  %v285 = vadd.f32 %v283, %v284
  %v286 = vsel %vm204, %v91, 0.0
  %v287 = vadd.f32 %v285, %v286
  %v288 = vsel %vm204, %v93, 0.0
  %v289 = vadd.f32 %v287, %v288
  %v290 = vsel %vm204, %v95, 0.0
  %v291 = vadd.f32 %v289, %v290
  %v292 = vsel %vm204, %v97, 0.0
  %v293 = vadd.f32 %v291, %v292
  %v294 = vsel %vm204, %v99, 0.0
  %v295 = vadd.f32 %v293, %v294
  %v296 = vsel %vm204, %v101, 0.0
  %v297 = vadd.f32 %v295, %v296
  %v298 = vsel %vm204, %v103, 0.0
  %v299 = vadd.f32 %v297, %v298
  %v300 = vsel %vm204, %v105, 0.0
  %v301 = vadd.f32 %v299, %v300
  %v302 = vrcp.pop 49.0
  %v303 = vmul.f32 %v203, %v302
  %v304 = vmul.f32 %v301, %v302
  %v305 = vsub.f32 %v8, %v303
  %v306 = vsub.f32 %v9, %v304
  %v307 = vsub.f32 %v10, %v303
  %v308 = vsub.f32 %v11, %v304
  %v309 = vsub.f32 %v12, %v303
  %v310 = vsub.f32 %v13, %v304
  %v311 = vsub.f32 %v14, %v303
  %v312 = vsub.f32 %v15, %v304
  %v313 = vsub.f32 %v16, %v303
  %v314 = vsub.f32 %v17, %v304
  %v315 = vsub.f32 %v18, %v303
  %v316 = vsub.f32 %v19, %v304
  %v317 = vsub.f32 %v20, %v303
  %v318 = vsub.f32 %v21, %v304
  %v319 = vsub.f32 %v22, %v303
  %v320 = vsub.f32 %v23, %v304
  %v321 = vsub.f32 %v24, %v303
  %v322 = vsub.f32 %v25, %v304
  %v323 = vsub.f32 %v26, %v303
  %v324 = vsub.f32 %v27, %v304
  %v325 = vsub.f32 %v28, %v303
  %v326 = vsub.f32 %v29, %v304
  %v327 = vsub.f32 %v30, %v303
  %v328 = vsub.f32 %v31, %v304
  %v329 = vsub.f32 %v32, %v303
  %v330 = vsub.f32 %v33, %v304
  %v331 = vsub.f32 %v34, %v303
  %v332 = vsub.f32 %v35, %v304
  %v333 = vsub.f32 %v36, %v303
  %v334 = vsub.f32 %v37, %v304
  %v335 = vsub.f32 %v38, %v303
  %v336 = vsub.f32 %v39, %v304
  %v337 = vsub.f32 %v40, %v303
  %v338 = vsub.f32 %v41, %v304
  %v339 = vsub.f32 %v42, %v303
  %v340 = vsub.f32 %v43, %v304
  %v341 = vsub.f32 %v44, %v303
  %v342 = vsub.f32 %v45, %v304
  %v343 = vsub.f32 %v46, %v303
  %v344 = vsub.f32 %v47, %v304
  %v345 = vsub.f32 %v48, %v303
  %v346 = vsub.f32 %v49, %v304
  %v347 = vsub.f32 %v50, %v303
  %v348 = vsub.f32 %v51, %v304
  %v349 = vsub.f32 %v52, %v303
  %v350 = vsub.f32 %v53, %v304
  %v351 = vsub.f32 %v54, %v303
  %v352 = vsub.f32 %v55, %v304
  %v353 = vsub.f32 %v56, %v303
  %v354 = vsub.f32 %v57, %v304
  %v355 = vsub.f32 %v58, %v303
  %v356 = vsub.f32 %v59, %v304
  %v357 = vsub.f32 %v60, %v303
  %v358 = vsub.f32 %v61, %v304
  %v359 = vsub.f32 %v62, %v303
  %v360 = vsub.f32 %v63, %v304
  %v361 = vsub.f32 %v64, %v303
  %v362 = vsub.f32 %v65, %v304
  %v363 = vsub.f32 %v66, %v303
  %v364 = vsub.f32 %v67, %v304
  %v365 = vsub.f32 %v68, %v303
  %v366 = vsub.f32 %v69, %v304
  %v367 = vsub.f32 %v70, %v303
  %v368 = vsub.f32 %v71, %v304
  %v369 = vsub.f32 %v72, %v303
  %v370 = vsub.f32 %v73, %v304
  %v371 = vsub.f32 %v74, %v303
  %v372 = vsub.f32 %v75, %v304
  %v373 = vsub.f32 %v76, %v303
  %v374 = vsub.f32 %v77, %v304
  %v375 = vsub.f32 %v78, %v303
  %v376 = vsub.f32 %v79, %v304
  %v377 = vsub.f32 %v80, %v303
  %v378 = vsub.f32 %v81, %v304
  %v379 = vsub.f32 %v82, %v303
  %v380 = vsub.f32 %v83, %v304
  %v381 = vsub.f32 %v84, %v303
  %v382 = vsub.f32 %v85, %v304
  %v383 = vsub.f32 %v86, %v303
  %v384 = vsub.f32 %v87, %v304
  %v385 = vsub.f32 %v88, %v303
  %v386 = vsub.f32 %v89, %v304
  %v387 = vsub.f32 %v90, %v303
  %v388 = vsub.f32 %v91, %v304
  %v389 = vsub.f32 %v92, %v303
  %v390 = vsub.f32 %v93, %v304
  %v391 = vsub.f32 %v94, %v303
  %v392 = vsub.f32 %v95, %v304
  %v393 = vsub.f32 %v96, %v303
  %v394 = vsub.f32 %v97, %v304
  %v395 = vsub.f32 %v98, %v303
  %v396 = vsub.f32 %v99, %v304
  %v397 = vsub.f32 %v100, %v303
  %v398 = vsub.f32 %v101, %v304
  %v399 = vsub.f32 %v102, %v303
  %v400 = vsub.f32 %v103, %v304
  %v401 = vsub.f32 %v104, %v303
  %v402 = vsub.f32 %v105, %v304
  %v403 = vmul.f32 %v305, %v305
  %v404 = vmul.f32 %v306, %v306
  %v405 = vmul.f32 %v307, %v307
  %v406 = vmul.f32 %v308, %v308
  %v407 = vmul.f32 %v309, %v309
  %v408 = vmul.f32 %v310, %v310
  %v409 = vmul.f32 %v311, %v311
  %v410 = vmul.f32 %v312, %v312
  %v411 = vmul.f32 %v313, %v313
  %v412 = vmul.f32 %v314, %v314
  %v413 = vmul.f32 %v315, %v315
  %v414 = vmul.f32 %v316, %v316
  %v415 = vmul.f32 %v317, %v317
  %v416 = vmul.f32 %v318, %v318
  %v417 = vmul.f32 %v319, %v319
  %v418 = vmul.f32 %v320, %v320
  %v419 = vmul.f32 %v321, %v321
  %v420 = vmul.f32 %v322, %v322
  %v421 = vmul.f32 %v323, %v323
  %v422 = vmul.f32 %v324, %v324
  %v423 = vmul.f32 %v325, %v325
  %v424 = vmul.f32 %v326, %v326
  %v425 = vmul.f32 %v327, %v327
  %v426 = vmul.f32 %v328, %v328
  %v427 = vmul.f32 %v329, %v329
  %v428 = vmul.f32 %v330, %v330
  %v429 = vmul.f32 %v331, %v331
  %v430 = vmul.f32 %v332, %v332
  %v431 = vmul.f32 %v333, %v333
  %v432 = vmul.f32 %v334, %v334
  %v433 = vmul.f32 %v335, %v335
  %v434 = vmul.f32 %v336, %v336
  %v435 = vmul.f32 %v337, %v337
  %v436 = vmul.f32 %v338, %v338
  %v437 = vmul.f32 %v339, %v339
  %v438 = vmul.f32 %v340, %v340
  %v439 = vmul.f32 %v341, %v341
  %v440 = vmul.f32 %v342, %v342
  %v441 = vmul.f32 %v343, %v343
  %v442 = vmul.f32 %v344, %v344
  %v443 = vmul.f32 %v345, %v345
  %v444 = vmul.f32 %v346, %v346
  %v445 = vmul.f32 %v347, %v347
  %v446 = vmul.f32 %v348, %v348
  %v447 = vmul.f32 %v349, %v349
  %v448 = vmul.f32 %v350, %v350
  %v449 = vmul.f32 %v351, %v351
  %v450 = vmul.f32 %v352, %v352
  %v451 = vmul.f32 %v353, %v353
  %v452 = vmul.f32 %v354, %v354
  %v453 = vmul.f32 %v355, %v355
  %v454 = vmul.f32 %v356, %v356
  %v455 = vmul.f32 %v357, %v357
  %v456 = vmul.f32 %v358, %v358
  %v457 = vmul.f32 %v359, %v359
  %v458 = vmul.f32 %v360, %v360
  %v459 = vmul.f32 %v361, %v361
  %v460 = vmul.f32 %v362, %v362
  %v461 = vmul.f32 %v363, %v363
  %v462 = vmul.f32 %v364, %v364
  %v463 = vmul.f32 %v365, %v365
  %v464 = vmul.f32 %v366, %v366
  %v465 = vmul.f32 %v367, %v367
  %v466 = vmul.f32 %v368, %v368
  %v467 = vmul.f32 %v369, %v369
  %v468 = vmul.f32 %v370, %v370
  %v469 = vmul.f32 %v371, %v371
  %v470 = vmul.f32 %v372, %v372
  %v471 = vmul.f32 %v373, %v373
  %v472 = vmul.f32 %v374, %v374
  %v473 = vmul.f32 %v375, %v375
  %v474 = vmul.f32 %v376, %v376
  %v475 = vmul.f32 %v377, %v377
  %v476 = vmul.f32 %v378, %v378
  %v477 = vmul.f32 %v379, %v379
  %v478 = vmul.f32 %v380, %v380
  %v479 = vmul.f32 %v381, %v381
  %v480 = vmul.f32 %v382, %v382
  %v481 = vmul.f32 %v383, %v383
  %v482 = vmul.f32 %v384, %v384
  %v483 = vmul.f32 %v385, %v385
  %v484 = vmul.f32 %v386, %v386
  %v485 = vmul.f32 %v387, %v387
  %v486 = vmul.f32 %v388, %v388
  %v487 = vmul.f32 %v389, %v389
  %v488 = vmul.f32 %v390, %v390
  %v489 = vmul.f32 %v391, %v391
  %v490 = vmul.f32 %v392, %v392
  %v491 = vmul.f32 %v393, %v393
  %v492 = vmul.f32 %v394, %v394
  %v493 = vmul.f32 %v395, %v395
  %v494 = vmul.f32 %v396, %v396
  %v495 = vmul.f32 %v397, %v397
  %v496 = vmul.f32 %v398, %v398
  %v497 = vmul.f32 %v399, %v399
  %v498 = vmul.f32 %v400, %v400
  %v499 = vmul.f32 %v401, %v401
  %v500 = vmul.f32 %v402, %v402
  %v501 = vsel %vm106, %v403, 0.0
  %v502 = vsel %vm106, %v405, 0.0
  %v503 = vadd.f32 %v501, %v502
  %v504 = vsel %vm106, %v407, 0.0
  %v505 = vadd.f32 %v503, %v504
  %v506 = vsel %vm106, %v409, 0.0
  %v507 = vadd.f32 %v505, %v506
  %v508 = vsel %vm106, %v411, 0.0
  %v509 = vadd.f32 %v507, %v508
  %v510 = vsel %vm106, %v413, 0.0
  %v511 = vadd.f32 %v509, %v510
  %v512 = vsel %vm106, %v415, 0.0
  %v513 = vadd.f32 %v511, %v512
  %v514 = vsel %vm106, %v417, 0.0
  %v515 = vadd.f32 %v513, %v514
  %v516 = vsel %vm106, %v419, 0.0
  %v517 = vadd.f32 %v515, %v516
  %v518 = vsel %vm106, %v421, 0.0
  %v519 = vadd.f32 %v517, %v518
  %v520 = vsel %vm106, %v423, 0.0
  %v521 = vadd.f32 %v519, %v520
  %v522 = vsel %vm106, %v425, 0.0
  %v523 = vadd.f32 %v521, %v522
  %v524 = vsel %vm106, %v427, 0.0
  %v525 = vadd.f32 %v523, %v524
  %v526 = vsel %vm106, %v429, 0.0
  %v527 = vadd.f32 %v525, %v526
  %v528 = vsel %vm106, %v431, 0.0
  %v529 = vadd.f32 %v527, %v528
  %v530 = vsel %vm106, %v433, 0.0
  %v531 = vadd.f32 %v529, %v530
  %v532 = vsel %vm106, %v435, 0.0
  %v533 = vadd.f32 %v531, %v532
  %v534 = vsel %vm106, %v437, 0.0
  %v535 = vadd.f32 %v533, %v534
  %v536 = vsel %vm106, %v439, 0.0
  %v537 = vadd.f32 %v535, %v536
  %v538 = vsel %vm106, %v441, 0.0
  %v539 = vadd.f32 %v537, %v538
  %v540 = vsel %vm106, %v443, 0.0
  %v541 = vadd.f32 %v539, %v540
  %v542 = vsel %vm106, %v445, 0.0
  %v543 = vadd.f32 %v541, %v542
  %v544 = vsel %vm106, %v447, 0.0
  %v545 = vadd.f32 %v543, %v544
  %v546 = vsel %vm106, %v449, 0.0
  %v547 = vadd.f32 %v545, %v546
  %v548 = vsel %vm106, %v451, 0.0
  %v549 = vadd.f32 %v547, %v548
  %v550 = vsel %vm106, %v453, 0.0
  %v551 = vadd.f32 %v549, %v550
  %v552 = vsel %vm106, %v455, 0.0
  %v553 = vadd.f32 %v551, %v552
  %v554 = vsel %vm106, %v457, 0.0
  %v555 = vadd.f32 %v553, %v554
  %v556 = vsel %vm106, %v459, 0.0
  %v557 = vadd.f32 %v555, %v556
  %v558 = vsel %vm106, %v461, 0.0
  %v559 = vadd.f32 %v557, %v558
  %v560 = vsel %vm106, %v463, 0.0
  %v561 = vadd.f32 %v559, %v560
  %v562 = vsel %vm106, %v465, 0.0
  %v563 = vadd.f32 %v561, %v562
  %v564 = vsel %vm106, %v467, 0.0
  %v565 = vadd.f32 %v563, %v564
  %v566 = vsel %vm106, %v469, 0.0
  %v567 = vadd.f32 %v565, %v566
  %v568 = vsel %vm106, %v471, 0.0
  %v569 = vadd.f32 %v567, %v568
  %v570 = vsel %vm106, %v473, 0.0
  %v571 = vadd.f32 %v569, %v570
  %v572 = vsel %vm106, %v475, 0.0
  %v573 = vadd.f32 %v571, %v572
  %v574 = vsel %vm106, %v477, 0.0
  %v575 = vadd.f32 %v573, %v574
  %v576 = vsel %vm106, %v479, 0.0
  %v577 = vadd.f32 %v575, %v576
  %v578 = vsel %vm106, %v481, 0.0
  %v579 = vadd.f32 %v577, %v578
  %v580 = vsel %vm106, %v483, 0.0
  %v581 = vadd.f32 %v579, %v580
  %v582 = vsel %vm106, %v485, 0.0
  %v583 = vadd.f32 %v581, %v582
  %v584 = vsel %vm106, %v487, 0.0
  %v585 = vadd.f32 %v583, %v584
  %v586 = vsel %vm106, %v489, 0.0
  %v587 = vadd.f32 %v585, %v586
  %v588 = vsel %vm106, %v491, 0.0
  %v589 = vadd.f32 %v587, %v588
  %v590 = vsel %vm106, %v493, 0.0
  %v591 = vadd.f32 %v589, %v590
  %v592 = vsel %vm106, %v495, 0.0
  %v593 = vadd.f32 %v591, %v592
  %v594 = vsel %vm106, %v497, 0.0
  %v595 = vadd.f32 %v593, %v594
  %v596 = vsel %vm106, %v499, 0.0
  %v597 = vadd.f32 %v595, %v596
  %v598 = vsel %vm204, %v404, 0.0
  %v599 = vsel %vm204, %v406, 0.0
  %v600 = vadd.f32 %v598, %v599
  %v601 = vsel %vm204, %v408, 0.0
  %v602 = vadd.f32 %v600, %v601
  %v603 = vsel %vm204, %v410, 0.0
  %v604 = vadd.f32 %v602, %v603
  %v605 = vsel %vm204, %v412, 0.0
  %v606 = vadd.f32 %v604, %v605
  %v607 = vsel %vm204, %v414, 0.0
  %v608 = vadd.f32 %v606, %v607
  %v609 = vsel %vm204, %v416, 0.0
  %v610 = vadd.f32 %v608, %v609
  %v611 = vsel %vm204, %v418, 0.0
  %v612 = vadd.f32 %v610, %v611
  %v613 = vsel %vm204, %v420, 0.0
  %v614 = vadd.f32 %v612, %v613
  %v615 = vsel %vm204, %v422, 0.0
  %v616 = vadd.f32 %v614, %v615
  %v617 = vsel %vm204, %v424, 0.0
  %v618 = vadd.f32 %v616, %v617
  %v619 = vsel %vm204, %v426, 0.0
  %v620 = vadd.f32 %v618, %v619
  %v621 = vsel %vm204, %v428, 0.0
  %v622 = vadd.f32 %v620, %v621
  %v623 = vsel %vm204, %v430, 0.0
  %v624 = vadd.f32 %v622, %v623
  %v625 = vsel %vm204, %v432, 0.0
  %v626 = vadd.f32 %v624, %v625
  %v627 = vsel %vm204, %v434, 0.0
  %v628 = vadd.f32 %v626, %v627
  %v629 = vsel %vm204, %v436, 0.0
  %v630 = vadd.f32 %v628, %v629
  %v631 = vsel %vm204, %v438, 0.0
  %v632 = vadd.f32 %v630, %v631
  %v633 = vsel %vm204, %v440, 0.0
  %v634 = vadd.f32 %v632, %v633
  %v635 = vsel %vm204, %v442, 0.0
  %v636 = vadd.f32 %v634, %v635
  %v637 = vsel %vm204, %v444, 0.0
  %v638 = vadd.f32 %v636, %v637
  %v639 = vsel %vm204, %v446, 0.0
  %v640 = vadd.f32 %v638, %v639
  %v641 = vsel %vm204, %v448, 0.0
  %v642 = vadd.f32 %v640, %v641
  %v643 = vsel %vm204, %v450, 0.0
  %v644 = vadd.f32 %v642, %v643
  %v645 = vsel %vm204, %v452, 0.0
  %v646 = vadd.f32 %v644, %v645
  %v647 = vsel %vm204, %v454, 0.0
  %v648 = vadd.f32 %v646, %v647
  %v649 = vsel %vm204, %v456, 0.0
  %v650 = vadd.f32 %v648, %v649
  %v651 = vsel %vm204, %v458, 0.0
  %v652 = vadd.f32 %v650, %v651
  %v653 = vsel %vm204, %v460, 0.0
  %v654 = vadd.f32 %v652, %v653
  %v655 = vsel %vm204, %v462, 0.0
  %v656 = vadd.f32 %v654, %v655
  %v657 = vsel %vm204, %v464, 0.0
  %v658 = vadd.f32 %v656, %v657
  %v659 = vsel %vm204, %v466, 0.0
  %v660 = vadd.f32 %v658, %v659
  %v661 = vsel %vm204, %v468, 0.0
  %v662 = vadd.f32 %v660, %v661
  %v663 = vsel %vm204, %v470, 0.0
  %v664 = vadd.f32 %v662, %v663
  %v665 = vsel %vm204, %v472, 0.0
  %v666 = vadd.f32 %v664, %v665
  %v667 = vsel %vm204, %v474, 0.0
  %v668 = vadd.f32 %v666, %v667
  %v669 = vsel %vm204, %v476, 0.0
  %v670 = vadd.f32 %v668, %v669
  %v671 = vsel %vm204, %v478, 0.0
  %v672 = vadd.f32 %v670, %v671
  %v673 = vsel %vm204, %v480, 0.0
  %v674 = vadd.f32 %v672, %v673
  %v675 = vsel %vm204, %v482, 0.0
  %v676 = vadd.f32 %v674, %v675
  %v677 = vsel %vm204, %v484, 0.0
  %v678 = vadd.f32 %v676, %v677
  %v679 = vsel %vm204, %v486, 0.0
  %v680 = vadd.f32 %v678, %v679
  %v681 = vsel %vm204, %v488, 0.0
  %v682 = vadd.f32 %v680, %v681
  %v683 = vsel %vm204, %v490, 0.0
  %v684 = vadd.f32 %v682, %v683
  %v685 = vsel %vm204, %v492, 0.0
  %v686 = vadd.f32 %v684, %v685
  %v687 = vsel %vm204, %v494, 0.0
  %v688 = vadd.f32 %v686, %v687
  %v689 = vsel %vm204, %v496, 0.0
  %v690 = vadd.f32 %v688, %v689
  %v691 = vsel %vm204, %v498, 0.0
  %v692 = vadd.f32 %v690, %v691
  %v693 = vsel %vm204, %v500, 0.0
  %v694 = vadd.f32 %v692, %v693
  %v695 = vmul.f32 %v597, 0.020833334
  %v696 = vmul.f32 %v694, 0.020833334
  %697 = vst.msk [vmem:[%s1] sm:$0xff] %vm106, %v695
  %698 = vst.msk [vmem:[%s1 + $0x8] sm:$0x3f] %vm204, %v696
  // Predicated region
  $region6: #{esa_forward.19} parent=0 // pred_check
    _
  $region7: #{esa_forward.19} parent=0 // pred_check_branch
    %700 = sbr.rel (0) target = $region9
  $region8: #{esa_forward.19} parent=0 // pred_region
    _
  $region9: #{esa_forward.19} parent=0 // pred_fallthru
    _
  // Predicated region
  $region10: #{esa_forward.19} parent=0 // pred_check
    _
  $region11: #{esa_forward.19} parent=0 // pred_check_branch
    %702 = sbr.rel (0) target = $region13
  $region12: #{esa_forward.19} parent=0 // pred_region
    _
  $region13: #{esa_forward.19} parent=0 // pred_fallthru
    _

// kernel: esa_forward.26
$region0: #{esa_forward.26}
  #allocation0 [shape = 'u32[]', space=smem, size = 0x4, offset = 0x4, fixed_abs, tag = 'smem constant byte address 0x4 - core index']
  #allocation1 [shape = 'u32[144,128]{1,0:T(1,128)}', space=vmem, size = 0x12000, scoped, tag = 'internal scratch']
  %s0 = inlined_call_operand.vmem [shape: f32[2,4,8], index: 0, kind: input, shape index: {}]
  %s1 = inlined_call_operand.vmem [shape: f32[2,3,6], index: 1, kind: input, shape index: {}]
  %s2 = inlined_call_operand.vmem [shape: f32[2,3,6], index: 2, kind: input, shape index: {}]
  %s3 = inlined_call_operand.vmem [shape: f32[8,96], index: 3, kind: input, shape index: {}]
  %s4 = inlined_call_operand.vmem [shape: f32[6,96], index: 4, kind: input, shape index: {}, may-alias: {4,5}]
  %s5 = inlined_call_operand.vmem [shape: f32[6,96], index: 5, kind: input, shape index: {}, may-alias: {4,5}]
  %s6 = inlined_call_operand.vmem [shape: f32[48,4], index: 6, kind: input, shape index: {}]
  %s7 = inlined_call_operand.vmem [shape: f32[48,3], index: 7, kind: input, shape index: {}, may-alias: {7,8}]
  %s8 = inlined_call_operand.vmem [shape: f32[48,3], index: 8, kind: input, shape index: {}, may-alias: {7,8}]
  %s9 = inlined_call_operand.vmem [shape: f32[2,48,96], index: 9, kind: output, shape index: {}]
  %s10 = sld [smem:[#allocation0]]
  $region69: #{esa_forward.26} parent=0
    _
  %s12 = ssub.s32 1, %s10
  %s13 = scalar_select 0, %s12, %s10
  loop: start=0, step=1, limit=4
  $region2: #{esa_forward.26} parent=0 // loop_pre_header
    _
  $region3: #{esa_forward.26} parent=0 // loop_header
    %s15 = sphi 0, %s19
    %p16 = scmp.ge.s32.totalorder %s15, 4
    %s22 = sphi 0, %s34
    %s23 = sphi 0, %s30
    %s24 = sphi 0, %s22
    %s25 = sphi 0, %s23
    %s26 = sphi 0, %s24
    %s27 = sphi 0, %s25
    %s37 = sphi 0, %s39
    %s40 = sphi 0, %s37
    %s41 = sphi 0, %s40
    %s57 = sphi 0, %s41
    %s63 = sphi 0, %s65
    %s66 = sphi 0, %s63
    %s67 = sphi 0, %s66
    %s83 = sphi 0, %s67
    %s89 = sphi 0, %s91
    %s92 = sphi 0, %s89
    %s93 = sphi 0, %s92
    %s109 = sphi 0, %s93
    %s113 = sphi 0, %s113
    %s115 = sphi 0, %s113
    %s116 = sphi 0, %s115
    %s130 = sphi 0, %s116
    %s134 = sphi 0, %s134
    %s136 = sphi 0, %s134
    %s137 = sphi 0, %s136
    %s151 = sphi 0, %s137
    %s155 = sphi 0, %s155
    %s157 = sphi 0, %s155
    %s158 = sphi 0, %s157
    %s172 = sphi 0, %s158
    %s178 = sphi 0, %s180
    %s181 = sphi 0, %s178
    %s182 = sphi 0, %s181
    %s198 = sphi 0, %s182
    %s204 = sphi 0, %s206
    %s207 = sphi 0, %s204
    %s208 = sphi 0, %s207
    %s224 = sphi 0, %s208
    %s230 = sphi 0, %s232
    %s233 = sphi 0, %s230
    %s234 = sphi 0, %s233
    %s250 = sphi 0, %s234
    %s258 = sphi 0, %s260
    %s261 = sphi 0, %s258
    %s262 = sphi 0, %s261
    %s278 = sphi 0, %s262
  $region4: #{esa_forward.26} parent=0 // loop_header_branch
    %18 = sbr.rel (%p16) target = $region8
  $region5: #{esa_forward.26} parent=0 // loop_body
    %s20 = ssub.s32 %s15, 1
    %s21 = ssub.s32 %s15, 2
    %s28 = sadd.s32 1, %s23
    %p29 = scmp.ge.s32.totalorder %s28, 1
    %s30 = scalar_select %p29, 0, %s28
    %s31 = sadd.s32 1, %s22
    %s32 = scalar_select %p29, %s31, %s22
    %p33 = scmp.ge.s32.totalorder %s32, 2
    %s34 = scalar_select %p33, 0, %s32
    %s35 = ssub.s32 %s22, %s34
    %p36 = scmp.eq.s32.totalorder %s35, 0
    %s38 = sadd.s32 %s37, 1
    %s39 = scalar_select %p36, %s37, %s38
    %p42 = pneg %p36
    %p43 = scmp.eq.s32.totalorder %s15, 1
    %p44 = por %p42, %p43
    %p45 = scmp.ne.s32.totalorder %s37, %s40
    %p46 = scmp.eq.s32.totalorder %s15, 0
    %p47 = por %p45, %p46
    %p48 = scmp.ne.s32.totalorder %s37, %s40
    %p49 = scmp.eq.s32.totalorder %s20, 1
    %p50 = por %p48, %p49
    %p51 = scmp.ne.s32.totalorder %s40, %s41
    %p52 = scmp.eq.s32.totalorder %s20, 0
    %p53 = por %p51, %p52
    %p54 = scmp.ne.s32.totalorder %s40, %s41
    %p55 = scmp.eq.s32.totalorder %s21, 1
    %p56 = por %p54, %p55
    %p58 = scmp.ne.s32.totalorder %s41, %s57
    %p59 = scmp.eq.s32.totalorder %s21, 0
    %p60 = por %p58, %p59
    %s61 = ssub.s32 %s22, %s34
    %p62 = scmp.eq.s32.totalorder %s61, 0
    %s64 = sadd.s32 %s63, 1
    %s65 = scalar_select %p62, %s63, %s64
    %p68 = pneg %p62
    %p69 = scmp.eq.s32.totalorder %s15, 1
    %p70 = por %p68, %p69
    %p71 = scmp.ne.s32.totalorder %s63, %s66
    %p72 = scmp.eq.s32.totalorder %s15, 0
    %p73 = por %p71, %p72
    %p74 = scmp.ne.s32.totalorder %s63, %s66
    %p75 = scmp.eq.s32.totalorder %s20, 1
    %p76 = por %p74, %p75
    %p77 = scmp.ne.s32.totalorder %s66, %s67
    %p78 = scmp.eq.s32.totalorder %s20, 0
    %p79 = por %p77, %p78
    %p80 = scmp.ne.s32.totalorder %s66, %s67
    %p81 = scmp.eq.s32.totalorder %s21, 1
    %p82 = por %p80, %p81
    %p84 = scmp.ne.s32.totalorder %s67, %s83
    %p85 = scmp.eq.s32.totalorder %s21, 0
    %p86 = por %p84, %p85
    %s87 = ssub.s32 %s22, %s34
    %p88 = scmp.eq.s32.totalorder %s87, 0
    %s90 = sadd.s32 %s89, 1
    %s91 = scalar_select %p88, %s89, %s90
    %p94 = pneg %p88
    %p95 = scmp.eq.s32.totalorder %s15, 1
    %p96 = por %p94, %p95
    %p97 = scmp.ne.s32.totalorder %s89, %s92
    %p98 = scmp.eq.s32.totalorder %s15, 0
    %p99 = por %p97, %p98
    %p100 = scmp.ne.s32.totalorder %s89, %s92
    %p101 = scmp.eq.s32.totalorder %s20, 1
    %p102 = por %p100, %p101
    %p103 = scmp.ne.s32.totalorder %s92, %s93
    %p104 = scmp.eq.s32.totalorder %s20, 0
    %p105 = por %p103, %p104
    %p106 = scmp.ne.s32.totalorder %s92, %s93
    %p107 = scmp.eq.s32.totalorder %s21, 1
    %p108 = por %p106, %p107
    %p110 = scmp.ne.s32.totalorder %s93, %s109
    %p111 = scmp.eq.s32.totalorder %s21, 0
    %p112 = por %p110, %p111
    %s114 = sadd.s32 %s113, 1
    %p117 = scmp.eq.s32.totalorder %s15, 1
    %p118 = scmp.ne.s32.totalorder %s113, %s115
    %p119 = scmp.eq.s32.totalorder %s15, 0
    %p120 = por %p118, %p119
    %p121 = scmp.ne.s32.totalorder %s113, %s115
    %p122 = scmp.eq.s32.totalorder %s20, 1
    %p123 = por %p121, %p122
    %p124 = scmp.ne.s32.totalorder %s115, %s116
    %p125 = scmp.eq.s32.totalorder %s20, 0
    %p126 = por %p124, %p125
    %p127 = scmp.ne.s32.totalorder %s115, %s116
    %p128 = scmp.eq.s32.totalorder %s21, 1
    %p129 = por %p127, %p128
    %p131 = scmp.ne.s32.totalorder %s116, %s130
    %p132 = scmp.eq.s32.totalorder %s21, 0
    %p133 = por %p131, %p132
    %s135 = sadd.s32 %s134, 1
    %p138 = scmp.eq.s32.totalorder %s15, 1
    %p139 = scmp.ne.s32.totalorder %s134, %s136
    %p140 = scmp.eq.s32.totalorder %s15, 0
    %p141 = por %p139, %p140
    %p142 = scmp.ne.s32.totalorder %s134, %s136
    %p143 = scmp.eq.s32.totalorder %s20, 1
    %p144 = por %p142, %p143
    %p145 = scmp.ne.s32.totalorder %s136, %s137
    %p146 = scmp.eq.s32.totalorder %s20, 0
    %p147 = por %p145, %p146
    %p148 = scmp.ne.s32.totalorder %s136, %s137
    %p149 = scmp.eq.s32.totalorder %s21, 1
    %p150 = por %p148, %p149
    %p152 = scmp.ne.s32.totalorder %s137, %s151
    %p153 = scmp.eq.s32.totalorder %s21, 0
    %p154 = por %p152, %p153
    %s156 = sadd.s32 %s155, 1
    %p159 = scmp.eq.s32.totalorder %s15, 1
    %p160 = scmp.ne.s32.totalorder %s155, %s157
    %p161 = scmp.eq.s32.totalorder %s15, 0
    %p162 = por %p160, %p161
    %p163 = scmp.ne.s32.totalorder %s155, %s157
    %p164 = scmp.eq.s32.totalorder %s20, 1
    %p165 = por %p163, %p164
    %p166 = scmp.ne.s32.totalorder %s157, %s158
    %p167 = scmp.eq.s32.totalorder %s20, 0
    %p168 = por %p166, %p167
    %p169 = scmp.ne.s32.totalorder %s157, %s158
    %p170 = scmp.eq.s32.totalorder %s21, 1
    %p171 = por %p169, %p170
    %p173 = scmp.ne.s32.totalorder %s158, %s172
    %p174 = scmp.eq.s32.totalorder %s21, 0
    %p175 = por %p173, %p174
    %s176 = ssub.s32 %s23, %s30
    %p177 = scmp.eq.s32.totalorder %s176, 0
    %s179 = sadd.s32 %s178, 1
    %s180 = scalar_select %p177, %s178, %s179
    %p183 = pneg %p177
    %p184 = scmp.eq.s32.totalorder %s15, 1
    %p185 = por %p183, %p184
    %p186 = scmp.ne.s32.totalorder %s178, %s181
    %p187 = scmp.eq.s32.totalorder %s15, 0
    %p188 = por %p186, %p187
    %p189 = scmp.ne.s32.totalorder %s178, %s181
    %p190 = scmp.eq.s32.totalorder %s20, 1
    %p191 = por %p189, %p190
    %p192 = scmp.ne.s32.totalorder %s181, %s182
    %p193 = scmp.eq.s32.totalorder %s20, 0
    %p194 = por %p192, %p193
    %p195 = scmp.ne.s32.totalorder %s181, %s182
    %p196 = scmp.eq.s32.totalorder %s21, 1
    %p197 = por %p195, %p196
    %p199 = scmp.ne.s32.totalorder %s182, %s198
    %p200 = scmp.eq.s32.totalorder %s21, 0
    %p201 = por %p199, %p200
    %s202 = ssub.s32 %s23, %s30
    %p203 = scmp.eq.s32.totalorder %s202, 0
    %s205 = sadd.s32 %s204, 1
    %s206 = scalar_select %p203, %s204, %s205
    %p209 = pneg %p203
    %p210 = scmp.eq.s32.totalorder %s15, 1
    %p211 = por %p209, %p210
    %p212 = scmp.ne.s32.totalorder %s204, %s207
    %p213 = scmp.eq.s32.totalorder %s15, 0
    %p214 = por %p212, %p213
    %p215 = scmp.ne.s32.totalorder %s204, %s207
    %p216 = scmp.eq.s32.totalorder %s20, 1
    %p217 = por %p215, %p216
    %p218 = scmp.ne.s32.totalorder %s207, %s208
    %p219 = scmp.eq.s32.totalorder %s20, 0
    %p220 = por %p218, %p219
    %p221 = scmp.ne.s32.totalorder %s207, %s208
    %p222 = scmp.eq.s32.totalorder %s21, 1
    %p223 = por %p221, %p222
    %p225 = scmp.ne.s32.totalorder %s208, %s224
    %p226 = scmp.eq.s32.totalorder %s21, 0
    %p227 = por %p225, %p226
    %s228 = ssub.s32 %s23, %s30
    %p229 = scmp.eq.s32.totalorder %s228, 0
    %s231 = sadd.s32 %s230, 1
    %s232 = scalar_select %p229, %s230, %s231
    %p235 = pneg %p229
    %p236 = scmp.eq.s32.totalorder %s15, 1
    %p237 = por %p235, %p236
    %p238 = scmp.ne.s32.totalorder %s230, %s233
    %p239 = scmp.eq.s32.totalorder %s15, 0
    %p240 = por %p238, %p239
    %p241 = scmp.ne.s32.totalorder %s230, %s233
    %p242 = scmp.eq.s32.totalorder %s20, 1
    %p243 = por %p241, %p242
    %p244 = scmp.ne.s32.totalorder %s233, %s234
    %p245 = scmp.eq.s32.totalorder %s20, 0
    %p246 = por %p244, %p245
    %p247 = scmp.ne.s32.totalorder %s233, %s234
    %p248 = scmp.eq.s32.totalorder %s21, 1
    %p249 = por %p247, %p248
    %p251 = scmp.ne.s32.totalorder %s234, %s250
    %p252 = scmp.eq.s32.totalorder %s21, 0
    %p253 = por %p251, %p252
    %s254 = ssub.s32 %s22, %s34
    %s255 = ssub.s32 %s23, %s30
    %s256 = sor.u32 %s254, %s255
    %p257 = scmp.eq.s32.totalorder %s256, 0
    %s259 = sadd.s32 %s258, 1
    %s260 = scalar_select %p257, %s258, %s259
    %p263 = pneg %p257
    %p264 = scmp.eq.s32.totalorder %s15, 1
    %p265 = por %p263, %p264
    %p266 = scmp.ne.s32.totalorder %s258, %s261
    %p267 = scmp.eq.s32.totalorder %s15, 0
    %p268 = por %p266, %p267
    %p269 = scmp.ne.s32.totalorder %s258, %s261
    %p270 = scmp.eq.s32.totalorder %s20, 1
    %p271 = por %p269, %p270
    %p272 = scmp.ne.s32.totalorder %s261, %s262
    %p273 = scmp.eq.s32.totalorder %s20, 0
    %p274 = por %p272, %p273
    %p275 = scmp.ne.s32.totalorder %s261, %s262
    %p276 = scmp.eq.s32.totalorder %s21, 1
    %p277 = por %p275, %p276
    %p279 = scmp.ne.s32.totalorder %s262, %s278
    %p280 = scmp.eq.s32.totalorder %s21, 0
    %p281 = por %p279, %p280
    %p282 = scmp.le.s32.totalorder 1, %s15
    %p283 = scmp.lt.s32.totalorder %s15, 3
    %p284 = pnand %p282, %p283
    %p285 = pneg %p284
    // Predicated region
    $region9: #{esa_forward.26} parent=5 // pred_check
      _
    $region10: #{esa_forward.26} parent=5 // pred_check_branch
      %287 = sbr.rel (%p284) target = $region12
    $region11: #{esa_forward.26} parent=5 // pred_region
      %s288 = ssub.s32 %s15, 1
      // Predicated region
      $region13: #{esa_forward.26} parent=11 // pred_check
        %p289 = pneg %p126
      $region14: #{esa_forward.26} parent=11 // pred_check_branch
        %291 = sbr.rel (%p289) target = $region16
      $region15: #{esa_forward.26} parent=11 // pred_region
        _
      $region16: #{esa_forward.26} parent=11 // pred_fallthru
        _
      // Predicated region
      $region17: #{esa_forward.26} parent=11 // pred_check
        %p292 = pneg %p147
      $region18: #{esa_forward.26} parent=11 // pred_check_branch
        %294 = sbr.rel (%p292) target = $region20
      $region19: #{esa_forward.26} parent=11 // pred_region
        _
      $region20: #{esa_forward.26} parent=11 // pred_fallthru
        _
      // Predicated region
      $region21: #{esa_forward.26} parent=11 // pred_check
        %p295 = pneg %p168
      $region22: #{esa_forward.26} parent=11 // pred_check_branch
        %297 = sbr.rel (%p295) target = $region24
      $region23: #{esa_forward.26} parent=11 // pred_region
        _
      $region24: #{esa_forward.26} parent=11 // pred_fallthru
        _
      // Predicated region
      $region25: #{esa_forward.26} parent=11 // pred_check
        %p298 = pneg %p194
      $region26: #{esa_forward.26} parent=11 // pred_check_branch
        %300 = sbr.rel (%p298) target = $region28
      $region27: #{esa_forward.26} parent=11 // pred_region
        %s301 = smul.u32 6, %s25
        %p302 = scmp.lt.s32.totalorder %s301, 5
        %s303 = scalar_select %p302, %s301, 5
        %s304 = smul.addr %s303, 8
        %s305 = scalar_lea.vmem %s6, %s304
        %s306 = smul.u32 6, %s25
      $region28: #{esa_forward.26} parent=11 // pred_fallthru
        _
      // Predicated region
      $region29: #{esa_forward.26} parent=11 // pred_check
        %p307 = pneg %p220
      $region30: #{esa_forward.26} parent=11 // pred_check_branch
        %309 = sbr.rel (%p307) target = $region32
      $region31: #{esa_forward.26} parent=11 // pred_region
        %s310 = smul.u32 6, %s25
        %p311 = scmp.lt.s32.totalorder %s310, 5
        %s312 = scalar_select %p311, %s310, 5
        %s313 = smul.addr %s312, 8
        %s314 = scalar_lea.vmem %s7, %s313
        %s315 = smul.u32 6, %s25
      $region32: #{esa_forward.26} parent=11 // pred_fallthru
        _
      // Predicated region
      $region33: #{esa_forward.26} parent=11 // pred_check
        %p316 = pneg %p246
      $region34: #{esa_forward.26} parent=11 // pred_check_branch
        %318 = sbr.rel (%p316) target = $region36
      $region35: #{esa_forward.26} parent=11 // pred_region
        %s319 = smul.u32 6, %s25
        %p320 = scmp.lt.s32.totalorder %s319, 5
        %s321 = scalar_select %p320, %s319, 5
        %s322 = smul.addr %s321, 8
        %s323 = scalar_lea.vmem %s8, %s322
        %s324 = smul.u32 6, %s25
      $region36: #{esa_forward.26} parent=11 // pred_fallthru
        _
    $region12: #{esa_forward.26} parent=5 // pred_fallthru
      _
    %p325 = scmp.lt.s32.totalorder %s15, 2
    // Predicated region
    $region37: #{esa_forward.26} parent=5 // pred_check
      %p326 = pneg %p325
    $region38: #{esa_forward.26} parent=5 // pred_check_branch
      %328 = sbr.rel (%p326) target = $region40
    $region39: #{esa_forward.26} parent=5 // pred_region
      // Predicated region
      $region41: #{esa_forward.26} parent=39 // pred_check
        %p329 = pneg %p47
      $region42: #{esa_forward.26} parent=39 // pred_check_branch
        %331 = sbr.rel (%p329) target = $region44
      $region43: #{esa_forward.26} parent=39 // pred_region
        %p332 = scmp.lt.s32.totalorder %s22, 1
        %s333 = scalar_select %p332, %s22, 1
        %s334 = smul.addr %s333, 4
        %s335 = scalar_lea.vmem %s0, %s334
      $region44: #{esa_forward.26} parent=39 // pred_fallthru
        _
      // Predicated region
      $region45: #{esa_forward.26} parent=39 // pred_check
        %p336 = pneg %p73
      $region46: #{esa_forward.26} parent=39 // pred_check_branch
        %338 = sbr.rel (%p336) target = $region48
      $region47: #{esa_forward.26} parent=39 // pred_region
        %p339 = scmp.lt.s32.totalorder %s22, 1
        %s340 = scalar_select %p339, %s22, 1
        %s341 = smul.addr %s340, 4
        %s342 = scalar_lea.vmem %s1, %s341
      $region48: #{esa_forward.26} parent=39 // pred_fallthru
        _
      // Predicated region
      $region49: #{esa_forward.26} parent=39 // pred_check
        %p343 = pneg %p99
      $region50: #{esa_forward.26} parent=39 // pred_check_branch
        %345 = sbr.rel (%p343) target = $region52
      $region51: #{esa_forward.26} parent=39 // pred_region
        %p346 = scmp.lt.s32.totalorder %s22, 1
        %s347 = scalar_select %p346, %s22, 1
        %s348 = smul.addr %s347, 4
        %s349 = scalar_lea.vmem %s2, %s348
      $region52: #{esa_forward.26} parent=39 // pred_fallthru
        _
    $region40: #{esa_forward.26} parent=5 // pred_fallthru
      _
    %p350 = scmp.le.s32.totalorder 1, %s15
    %p351 = scmp.lt.s32.totalorder %s15, 3
    %p352 = pnand %p350, %p351
    %p353 = pneg %p352
    // Predicated region
    $region53: #{esa_forward.26} parent=5 // pred_check
      _
    $region54: #{esa_forward.26} parent=5 // pred_check_branch
      %355 = sbr.rel (%p352) target = $region56
    $region55: #{esa_forward.26} parent=5 // pred_region
      %s356 = ssub.s32 %s15, 1
      %p357 = scmp.lt.s32.totalorder %s24, 1
      %s358 = scalar_select %p357, %s24, 1
      %s359 = smul.addr %s358, 4
      %s360 = scalar_lea.vmem %s0, %s359
      %p361 = pneg %p53
      %p362 = pneg %p50
      %p363 = scmp.lt.s32.totalorder %s24, 1
      %s364 = scalar_select %p363, %s24, 1
      %s365 = smul.addr %s364, 4
      %s366 = scalar_lea.vmem %s1, %s365
      %p367 = pneg %p79
      %p368 = pneg %p76
      %p369 = scmp.lt.s32.totalorder %s24, 1
      %s370 = scalar_select %p369, %s24, 1
      %s371 = smul.addr %s370, 4
      %s372 = scalar_lea.vmem %s2, %s371
      %p373 = pneg %p105
      %p374 = pneg %p102
      %p375 = pneg %p126
      %p376 = pneg %p123
      %p377 = pneg %p147
      %p378 = pneg %p144
      %p379 = pneg %p168
      %p380 = pneg %p165
      %s381 = smul.u32 6, %s25
      %p382 = scmp.lt.s32.totalorder %s381, 5
      %s383 = scalar_select %p382, %s381, 5
      %s384 = smul.addr %s383, 8
      %s385 = scalar_lea.vmem %s6, %s384
      %p386 = pneg %p194
      %p387 = pneg %p191
      %s388 = smul.u32 6, %s25
      %p389 = scmp.lt.s32.totalorder %s388, 5
      %s390 = scalar_select %p389, %s388, 5
      %s391 = smul.addr %s390, 8
      %s392 = scalar_lea.vmem %s7, %s391
      %p393 = pneg %p220
      %p394 = pneg %p217
      %s395 = smul.u32 6, %s25
      %p396 = scmp.lt.s32.totalorder %s395, 5
      %s397 = scalar_select %p396, %s395, 5
      %s398 = smul.addr %s397, 8
      %s399 = scalar_lea.vmem %s8, %s398
      %p400 = pneg %p246
      %p401 = pneg %p243
      %p402 = pneg %p274
      %p403 = pneg %p271
      %s404 = smul.u32 6, %s25
      %p405 = scmp.lt.s32.totalorder %s24, 1
      %s406 = scalar_select %p405, %s24, 1
      %p407 = scmp.lt.s32.totalorder %s404, 5
      %s408 = scalar_select %p407, %s404, 5
      %s409 = smul.addr %s406, 6
      %s410 = sadd.s32 %s408, %s409
      %s411 = smul.addr %s410, 8
      %s412 = scalar_lea.vmem %s9, %s411
      %p413 = scmp.lt.s32.totalorder %s24, 1
      %s414 = scalar_select %p413, %s24, 1
      %s415 = smul.addr %s414, 4
      %s416 = scalar_lea.vmem %s0, %s415
      %p417 = scmp.lt.s32.totalorder %s24, 1
      %s418 = scalar_select %p417, %s24, 1
      %s419 = smul.addr %s418, 4
      %s420 = scalar_lea.vmem %s1, %s419
      %p421 = scmp.lt.s32.totalorder %s24, 1
      %s422 = scalar_select %p421, %s24, 1
      %s423 = smul.addr %s422, 4
      %s424 = scalar_lea.vmem %s2, %s423
      %s425 = smul.u32 6, %s25
      %p426 = scmp.lt.s32.totalorder %s425, 5
      %s427 = scalar_select %p426, %s425, 5
      %s428 = smul.addr %s427, 8
      %s429 = scalar_lea.vmem %s6, %s428
      %s430 = smul.u32 6, %s25
      %s431 = smul.u32 6, %s25
      %p432 = scmp.lt.s32.totalorder %s431, 5
      %s433 = scalar_select %p432, %s431, 5
      %s434 = smul.addr %s433, 8
      %s435 = scalar_lea.vmem %s7, %s434
      %s436 = smul.u32 6, %s25
      %s437 = smul.u32 6, %s25
      %p438 = scmp.lt.s32.totalorder %s437, 5
      %s439 = scalar_select %p438, %s437, 5
      %s440 = smul.addr %s439, 8
      %s441 = scalar_lea.vmem %s8, %s440
      %s442 = smul.u32 6, %s25
      %s443 = smul.u32 6, %s25
      %p444 = scmp.lt.s32.totalorder %s24, 1
      %s445 = scalar_select %p444, %s24, 1
      %p446 = scmp.lt.s32.totalorder %s443, 5
      %s447 = scalar_select %p446, %s443, 5
      %s448 = smul.addr %s445, 6
      %s449 = sadd.s32 %s447, %s448
      %s450 = smul.addr %s449, 8
      %s451 = scalar_lea.vmem %s9, %s450
      %s452 = smul.u32 6, %s25
      %v453 = vld [vmem:[%s416] sm:$0xf]
      %v454 = vld [vmem:[%s3] sm:$0xff]
      %vm455 = vcmask 64512
      %v457 = vsel %vm455, %v453, 0
      %459 = vmatprep.subr.mxu0 0.0
      %460 = vmatpush1.msra.mxu0 0.0
      %461 = vmatprep.subr.mxu0 0.0
      %462 = vmatpush1.msra.mxu0 0.0
      %463 = vmatprep.subr.mxu0 0.0
      %464 = vmatpush1.msra.mxu0 0.0
      %465 = vmatprep.subr.mxu0 0.0
      %466 = vmatpush1.msra.mxu0 0.0
      %467 = vmatprep.subr.mxu0 0.0
      %468 = vmatpush1.msra.mxu0 0.0
      %469 = vmatprep.subr.mxu0 0.0
      %470 = vmatpush1.msra.mxu0 0.0
      %471 = vmatprep.subr.mxu0 0.0
      %472 = vmatpush1.msra.mxu0 0.0
      %473 = vmatprep.subr.mxu0 0.0
      %474 = vmatpush1.msra.mxu0 0.0
      %475 = vmatprep.subr.mxu0 0.0
      %476 = vmatpush1.msra.mxu0 0.0
      %477 = vmatprep.subr.mxu0 0.0
      %478 = vmatpush1.msra.mxu0 0.0
      %479 = vmatprep.subr.mxu0 0.0
      %480 = vmatpush1.msra.mxu0 0.0
      %481 = vmatprep.subr.mxu0 0.0
      %482 = vmatpush1.msra.mxu0 0.0
      %483 = vmatprep.subr.mxu0 0.0
      %484 = vmatpush1.msra.mxu0 0.0
      %485 = vmatprep.subr.mxu0 0.0
      %486 = vmatpush1.msra.mxu0 0.0
      %487 = vmatprep.subr.mxu0 0.0
      %488 = vmatpush1.msra.mxu0 0.0
      %489 = vmatprep.subr.mxu0 0.0
      %490 = vmatpush1.msra.mxu0 %v454
      %491 = vmatprep.subr.mxu0 0.0
      %492 = vmatpush2.msra.mxu0 0.0
      %493 = vmatprep.subr.mxu0 0.0
      %494 = vmatpush2.msra.mxu0 0.0
      %495 = vmatprep.subr.mxu0 0.0
      %496 = vmatpush2.msra.mxu0 0.0
      %497 = vmatprep.subr.mxu0 0.0
      %498 = vmatpush2.msra.mxu0 0.0
      %499 = vmatprep.subr.mxu0 0.0
      %500 = vmatpush2.msra.mxu0 0.0
      %501 = vmatprep.subr.mxu0 0.0
      %502 = vmatpush2.msra.mxu0 0.0
      %503 = vmatprep.subr.mxu0 0.0
      %504 = vmatpush2.msra.mxu0 0.0
      %505 = vmatprep.subr.mxu0 0.0
      %506 = vmatpush2.msra.mxu0 0.0
      %507 = vmatprep.subr.mxu0 0.0
      %508 = vmatpush2.msra.mxu0 0.0
      %509 = vmatprep.subr.mxu0 0.0
      %510 = vmatpush2.msra.mxu0 0.0
      %511 = vmatprep.subr.mxu0 0.0
      %512 = vmatpush2.msra.mxu0 0.0
      %513 = vmatprep.subr.mxu0 0.0
      %514 = vmatpush2.msra.mxu0 0.0
      %515 = vmatprep.subr.mxu0 0.0
      %516 = vmatpush2.msra.mxu0 0.0
      %517 = vmatprep.subr.mxu0 0.0
      %518 = vmatpush2.msra.mxu0 0.0
      %519 = vmatprep.subr.mxu0 0.0
      %520 = vmatpush2.msra.mxu0 0.0
      %521 = vmatprep.subr.mxu0 0.0
      %522 = vmatpush2.msra.mxu0 0.0
      %523 = vmatprep.mubr.f32.mxu0 0.0
      %524 = vmatmul.mubr.f32.gmra.mxu0 %v457
      %v525 = vpop.f32.mrf.mxu0
      %v526 = vadd.f32 0.0, %v525
      %v527 = vpop.f32.mrf.mxu0
      %528 = vdwg.mxu0
      %v529 = vld [vmem:[%s429] sm:$0xff]
      %v530 = vld [vmem:[%s429 + $0x8] sm:$0xff]
      %v531 = vld [vmem:[%s429 + $0x10] sm:$0xff]
      %v532 = vld [vmem:[%s429 + $0x18] sm:$0xff]
      %v533 = vld [vmem:[%s429 + $0x20] sm:$0xff]
      %v534 = vld [vmem:[%s429 + $0x28] sm:$0xff]
      %v535 = vld [vmem:[%s420] sm:$0x7]
      %v536 = vld [vmem:[%s4] sm:$0x3f]
      %vm537 = vcmask 48128
      %v539 = vsel %vm537, %v535, 0
      %vm541 = vcmask 1045504
      %v543 = vsel %vm541, %v536, 0
      %545 = vmatprep.subr.mxu0 0.0
      %546 = vmatpush1.msra.mxu0 0.0
      %547 = vmatprep.subr.mxu0 0.0
      %548 = vmatpush1.msra.mxu0 0.0
      %549 = vmatprep.subr.mxu0 0.0
      %550 = vmatpush1.msra.mxu0 0.0
      %551 = vmatprep.subr.mxu0 0.0
      %552 = vmatpush1.msra.mxu0 0.0
      %553 = vmatprep.subr.mxu0 0.0
      %554 = vmatpush1.msra.mxu0 0.0
      %555 = vmatprep.subr.mxu0 0.0
      %556 = vmatpush1.msra.mxu0 0.0
      %557 = vmatprep.subr.mxu0 0.0
      %558 = vmatpush1.msra.mxu0 0.0
      %559 = vmatprep.subr.mxu0 0.0
      %560 = vmatpush1.msra.mxu0 0.0
      %561 = vmatprep.subr.mxu0 0.0
      %562 = vmatpush1.msra.mxu0 0.0
      %563 = vmatprep.subr.mxu0 0.0
      %564 = vmatpush1.msra.mxu0 0.0
      %565 = vmatprep.subr.mxu0 0.0
      %566 = vmatpush1.msra.mxu0 0.0
      %567 = vmatprep.subr.mxu0 0.0
      %568 = vmatpush1.msra.mxu0 0.0
      %569 = vmatprep.subr.mxu0 0.0
      %570 = vmatpush1.msra.mxu0 0.0
      %571 = vmatprep.subr.mxu0 0.0
      %572 = vmatpush1.msra.mxu0 0.0
      %573 = vmatprep.subr.mxu0 0.0
      %574 = vmatpush1.msra.mxu0 0.0
      %575 = vmatprep.subr.mxu0 0.0
      %576 = vmatpush1.msra.mxu0 %v543
      %577 = vmatprep.subr.mxu0 0.0
      %578 = vmatpush2.msra.mxu0 0.0
      %579 = vmatprep.subr.mxu0 0.0
      %580 = vmatpush2.msra.mxu0 0.0
      %581 = vmatprep.subr.mxu0 0.0
      %582 = vmatpush2.msra.mxu0 0.0
      %583 = vmatprep.subr.mxu0 0.0
      %584 = vmatpush2.msra.mxu0 0.0
      %585 = vmatprep.subr.mxu0 0.0
      %586 = vmatpush2.msra.mxu0 0.0
      %587 = vmatprep.subr.mxu0 0.0
      %588 = vmatpush2.msra.mxu0 0.0
      %589 = vmatprep.subr.mxu0 0.0
      %590 = vmatpush2.msra.mxu0 0.0
      %591 = vmatprep.subr.mxu0 0.0
      %592 = vmatpush2.msra.mxu0 0.0
      %593 = vmatprep.subr.mxu0 0.0
      %594 = vmatpush2.msra.mxu0 0.0
      %595 = vmatprep.subr.mxu0 0.0
      %596 = vmatpush2.msra.mxu0 0.0
      %597 = vmatprep.subr.mxu0 0.0
      %598 = vmatpush2.msra.mxu0 0.0
      %599 = vmatprep.subr.mxu0 0.0
      %600 = vmatpush2.msra.mxu0 0.0
      %601 = vmatprep.subr.mxu0 0.0
      %602 = vmatpush2.msra.mxu0 0.0
      %603 = vmatprep.subr.mxu0 0.0
      %604 = vmatpush2.msra.mxu0 0.0
      %605 = vmatprep.subr.mxu0 0.0
      %606 = vmatpush2.msra.mxu0 0.0
      %607 = vmatprep.subr.mxu0 0.0
      %608 = vmatpush2.msra.mxu0 0.0
      %609 = vmatprep.mubr.f32.mxu0 0.0
      %610 = vmatmul.mubr.f32.gmra.mxu0 %v539
      %v611 = vpop.f32.mrf.mxu0
      %v612 = vadd.f32 0.0, %v611
      %v613 = vpop.f32.mrf.mxu0
      %614 = vdwg.mxu0
      %v615 = vld [vmem:[%s435] sm:$0xff]
      %v616 = vld [vmem:[%s435 + $0x8] sm:$0xff]
      %v617 = vld [vmem:[%s435 + $0x10] sm:$0xff]
      %v618 = vld [vmem:[%s435 + $0x18] sm:$0xff]
      %v619 = vld [vmem:[%s435 + $0x20] sm:$0xff]
      %v620 = vld [vmem:[%s435 + $0x28] sm:$0xff]
      %vm621 = vcmask 23552
      %v623 = vsel %vm621, %v615, 0
      %v626 = vsel %vm621, %v616, 0
      %v629 = vsel %vm621, %v617, 0
      %v632 = vsel %vm621, %v618, 0
      %v635 = vsel %vm621, %v619, 0
      %v638 = vsel %vm621, %v620, 0
      %vm640 = vcmask 1042432
      %v642 = vsel %vm640, %v612, 0
      %644 = vmatprep.subr.mxu0 0.0
      %645 = vmatpush1.msra.mxu0 0.0
      %646 = vmatprep.subr.mxu0 0.0
      %647 = vmatpush1.msra.mxu0 0.0
      %648 = vmatprep.subr.mxu0 0.0
      %649 = vmatpush1.msra.mxu0 0.0
      %650 = vmatprep.subr.mxu0 0.0
      %651 = vmatpush1.msra.mxu0 0.0
      %652 = vmatprep.subr.mxu0 0.0
      %653 = vmatpush1.msra.mxu0 0.0
      %654 = vmatprep.subr.mxu0 0.0
      %655 = vmatpush1.msra.mxu0 0.0
      %656 = vmatprep.subr.mxu0 0.0
      %657 = vmatpush1.msra.mxu0 0.0
      %658 = vmatprep.subr.mxu0 0.0
      %659 = vmatpush1.msra.mxu0 0.0
      %660 = vmatprep.subr.mxu0 0.0
      %661 = vmatpush1.msra.mxu0 0.0
      %662 = vmatprep.subr.mxu0 0.0
      %663 = vmatpush1.msra.mxu0 0.0
      %664 = vmatprep.subr.mxu0 0.0
      %665 = vmatpush1.msra.mxu0 0.0
      %666 = vmatprep.subr.mxu0 0.0
      %667 = vmatpush1.msra.mxu0 0.0
      %668 = vmatprep.subr.mxu0 0.0
      %669 = vmatpush1.msra.mxu0 0.0
      %670 = vmatprep.subr.mxu0 0.0
      %671 = vmatpush1.msra.mxu0 0.0
      %672 = vmatprep.subr.mxu0 0.0
      %673 = vmatpush1.msra.mxu0 0.0
      %674 = vmatprep.subr.mxu0 0.0
      %675 = vmatpush1.msra.mxu0 %v642
      %676 = vmatprep.subr.mxu0 0.0
      %677 = vmatpush2.msra.mxu0 0.0
      %678 = vmatprep.subr.mxu0 0.0
      %679 = vmatpush2.msra.mxu0 0.0
      %680 = vmatprep.subr.mxu0 0.0
      %681 = vmatpush2.msra.mxu0 0.0
      %682 = vmatprep.subr.mxu0 0.0
      %683 = vmatpush2.msra.mxu0 0.0
      %684 = vmatprep.subr.mxu0 0.0
      %685 = vmatpush2.msra.mxu0 0.0
      %686 = vmatprep.subr.mxu0 0.0
      %687 = vmatpush2.msra.mxu0 0.0
      %688 = vmatprep.subr.mxu0 0.0
      %689 = vmatpush2.msra.mxu0 0.0
      %690 = vmatprep.subr.mxu0 0.0
      %691 = vmatpush2.msra.mxu0 0.0
      %692 = vmatprep.subr.mxu0 0.0
      %693 = vmatpush2.msra.mxu0 0.0
      %694 = vmatprep.subr.mxu0 0.0
      %695 = vmatpush2.msra.mxu0 0.0
      %696 = vmatprep.subr.mxu0 0.0
      %697 = vmatpush2.msra.mxu0 0.0
      %698 = vmatprep.subr.mxu0 0.0
      %699 = vmatpush2.msra.mxu0 0.0
      %700 = vmatprep.subr.mxu0 0.0
      %701 = vmatpush2.msra.mxu0 0.0
      %702 = vmatprep.subr.mxu0 0.0
      %703 = vmatpush2.msra.mxu0 0.0
      %704 = vmatprep.subr.mxu0 0.0
      %705 = vmatpush2.msra.mxu0 0.0
      %706 = vmatprep.subr.mxu0 0.0
      %707 = vmatpush2.msra.mxu0 0.0
      %708 = vmatprep.mubr.f32.mxu0 0.0
      %709 = vmatmul.mubr.f32.gmra.mxu0 %v623
      %v710 = vpop.f32.mrf.mxu0
      %v711 = vadd.f32 0.0, %v710
      %v712 = vpop.f32.mrf.mxu0
      %713 = vmatprep.mubr.f32.mxu0 0.0
      %714 = vmatmul.mubr.f32.gmra.mxu0 %v626
      %v715 = vpop.f32.mrf.mxu0
      %v716 = vadd.f32 0.0, %v715
      %v717 = vpop.f32.mrf.mxu0
      %718 = vmatprep.mubr.f32.mxu0 0.0
      %719 = vmatmul.mubr.f32.gmra.mxu0 %v629
      %v720 = vpop.f32.mrf.mxu0
      %v721 = vadd.f32 0.0, %v720
      %v722 = vpop.f32.mrf.mxu0
      %723 = vmatprep.mubr.f32.mxu0 0.0
      %724 = vmatmul.mubr.f32.gmra.mxu0 %v632
      %v725 = vpop.f32.mrf.mxu0
      %v726 = vadd.f32 0.0, %v725
      %v727 = vpop.f32.mrf.mxu0
      %728 = vmatprep.mubr.f32.mxu0 0.0
      %729 = vmatmul.mubr.f32.gmra.mxu0 %v635
      %v730 = vpop.f32.mrf.mxu0
      %v731 = vadd.f32 0.0, %v730
      %v732 = vpop.f32.mrf.mxu0
      %733 = vmatprep.mubr.f32.mxu0 0.0
      %734 = vmatmul.mubr.f32.gmra.mxu0 %v638
      %v735 = vpop.f32.mrf.mxu0
      %v736 = vadd.f32 0.0, %v735
      %v737 = vpop.f32.mrf.mxu0
      %738 = vdwg.mxu0
      %vm739 = vcmask 31744
      %v741 = vsel %vm739, %v529, 0
      %v744 = vsel %vm739, %v530, 0
      %v747 = vsel %vm739, %v531, 0
      %v750 = vsel %vm739, %v532, 0
      %v753 = vsel %vm739, %v533, 0
      %v756 = vsel %vm739, %v534, 0
      %vm758 = vcmask 1043456
      %v760 = vsel %vm758, %v526, 0
      %762 = vmatprep.subr.mxu0 0.0
      %763 = vmatpush1.msra.mxu0 0.0
      %764 = vmatprep.subr.mxu0 0.0
      %765 = vmatpush1.msra.mxu0 0.0
      %766 = vmatprep.subr.mxu0 0.0
      %767 = vmatpush1.msra.mxu0 0.0
      %768 = vmatprep.subr.mxu0 0.0
      %769 = vmatpush1.msra.mxu0 0.0
      %770 = vmatprep.subr.mxu0 0.0
      %771 = vmatpush1.msra.mxu0 0.0
      %772 = vmatprep.subr.mxu0 0.0
      %773 = vmatpush1.msra.mxu0 0.0
      %774 = vmatprep.subr.mxu0 0.0
      %775 = vmatpush1.msra.mxu0 0.0
      %776 = vmatprep.subr.mxu0 0.0
      %777 = vmatpush1.msra.mxu0 0.0
      %778 = vmatprep.subr.mxu0 0.0
      %779 = vmatpush1.msra.mxu0 0.0
      %780 = vmatprep.subr.mxu0 0.0
      %781 = vmatpush1.msra.mxu0 0.0
      %782 = vmatprep.subr.mxu0 0.0
      %783 = vmatpush1.msra.mxu0 0.0
      %784 = vmatprep.subr.mxu0 0.0
      %785 = vmatpush1.msra.mxu0 0.0
      %786 = vmatprep.subr.mxu0 0.0
      %787 = vmatpush1.msra.mxu0 0.0
      %788 = vmatprep.subr.mxu0 0.0
      %789 = vmatpush1.msra.mxu0 0.0
      %790 = vmatprep.subr.mxu0 0.0
      %791 = vmatpush1.msra.mxu0 0.0
      %792 = vmatprep.subr.mxu0 0.0
      %793 = vmatpush1.msra.mxu0 %v760
      %794 = vmatprep.subr.mxu0 0.0
      %795 = vmatpush2.msra.mxu0 0.0
      %796 = vmatprep.subr.mxu0 0.0
      %797 = vmatpush2.msra.mxu0 0.0
      %798 = vmatprep.subr.mxu0 0.0
      %799 = vmatpush2.msra.mxu0 0.0
      %800 = vmatprep.subr.mxu0 0.0
      %801 = vmatpush2.msra.mxu0 0.0
      %802 = vmatprep.subr.mxu0 0.0
      %803 = vmatpush2.msra.mxu0 0.0
      %804 = vmatprep.subr.mxu0 0.0
      %805 = vmatpush2.msra.mxu0 0.0
      %806 = vmatprep.subr.mxu0 0.0
      %807 = vmatpush2.msra.mxu0 0.0
      %808 = vmatprep.subr.mxu0 0.0
      %809 = vmatpush2.msra.mxu0 0.0
      %810 = vmatprep.subr.mxu0 0.0
      %811 = vmatpush2.msra.mxu0 0.0
      %812 = vmatprep.subr.mxu0 0.0
      %813 = vmatpush2.msra.mxu0 0.0
      %814 = vmatprep.subr.mxu0 0.0
      %815 = vmatpush2.msra.mxu0 0.0
      %816 = vmatprep.subr.mxu0 0.0
      %817 = vmatpush2.msra.mxu0 0.0
      %818 = vmatprep.subr.mxu0 0.0
      %819 = vmatpush2.msra.mxu0 0.0
      %820 = vmatprep.subr.mxu0 0.0
      %821 = vmatpush2.msra.mxu0 0.0
      %822 = vmatprep.subr.mxu0 0.0
      %823 = vmatpush2.msra.mxu0 0.0
      %824 = vmatprep.subr.mxu0 0.0
      %825 = vmatpush2.msra.mxu0 0.0
      %826 = vmatprep.mubr.f32.mxu0 0.0
      %827 = vmatmul.mubr.f32.gmra.mxu0 %v741
      %v828 = vpop.f32.mrf.mxu0
      %v829 = vadd.f32 %v711, %v828
      %v830 = vpop.f32.mrf.mxu0
      %831 = vmatprep.mubr.f32.mxu0 0.0
      %832 = vmatmul.mubr.f32.gmra.mxu0 %v744
      %v833 = vpop.f32.mrf.mxu0
      %v834 = vadd.f32 %v716, %v833
      %v835 = vpop.f32.mrf.mxu0
      %836 = vmatprep.mubr.f32.mxu0 0.0
      %837 = vmatmul.mubr.f32.gmra.mxu0 %v747
      %v838 = vpop.f32.mrf.mxu0
      %v839 = vadd.f32 %v721, %v838
      %v840 = vpop.f32.mrf.mxu0
      %841 = vmatprep.mubr.f32.mxu0 0.0
      %842 = vmatmul.mubr.f32.gmra.mxu0 %v750
      %v843 = vpop.f32.mrf.mxu0
      %v844 = vadd.f32 %v726, %v843
      %v845 = vpop.f32.mrf.mxu0
      %846 = vmatprep.mubr.f32.mxu0 0.0
      %847 = vmatmul.mubr.f32.gmra.mxu0 %v753
      %v848 = vpop.f32.mrf.mxu0
      %v849 = vadd.f32 %v731, %v848
      %v850 = vpop.f32.mrf.mxu0
      %851 = vmatprep.mubr.f32.mxu0 0.0
      %852 = vmatmul.mubr.f32.gmra.mxu0 %v756
      %v853 = vpop.f32.mrf.mxu0
      %v854 = vadd.f32 %v736, %v853
      %v855 = vpop.f32.mrf.mxu0
      %856 = vdwg.mxu0
      %v857 = vld [vmem:[%s424] sm:$0x7]
      %v858 = vld [vmem:[%s5] sm:$0x3f]
      %v860 = vsel %vm537, %v857, 0
      %v863 = vsel %vm541, %v858, 0
      %865 = vmatprep.subr.mxu0 0.0
      %866 = vmatpush1.msra.mxu0 0.0
      %867 = vmatprep.subr.mxu0 0.0
      %868 = vmatpush1.msra.mxu0 0.0
      %869 = vmatprep.subr.mxu0 0.0
      %870 = vmatpush1.msra.mxu0 0.0
      %871 = vmatprep.subr.mxu0 0.0
      %872 = vmatpush1.msra.mxu0 0.0
      %873 = vmatprep.subr.mxu0 0.0
      %874 = vmatpush1.msra.mxu0 0.0
      %875 = vmatprep.subr.mxu0 0.0
      %876 = vmatpush1.msra.mxu0 0.0
      %877 = vmatprep.subr.mxu0 0.0
      %878 = vmatpush1.msra.mxu0 0.0
      %879 = vmatprep.subr.mxu0 0.0
      %880 = vmatpush1.msra.mxu0 0.0
      %881 = vmatprep.subr.mxu0 0.0
      %882 = vmatpush1.msra.mxu0 0.0
      %883 = vmatprep.subr.mxu0 0.0
      %884 = vmatpush1.msra.mxu0 0.0
      %885 = vmatprep.subr.mxu0 0.0
      %886 = vmatpush1.msra.mxu0 0.0
      %887 = vmatprep.subr.mxu0 0.0
      %888 = vmatpush1.msra.mxu0 0.0
      %889 = vmatprep.subr.mxu0 0.0
      %890 = vmatpush1.msra.mxu0 0.0
      %891 = vmatprep.subr.mxu0 0.0
      %892 = vmatpush1.msra.mxu0 0.0
      %893 = vmatprep.subr.mxu0 0.0
      %894 = vmatpush1.msra.mxu0 0.0
      %895 = vmatprep.subr.mxu0 0.0
      %896 = vmatpush1.msra.mxu0 %v863
      %897 = vmatprep.subr.mxu0 0.0
      %898 = vmatpush2.msra.mxu0 0.0
      %899 = vmatprep.subr.mxu0 0.0
      %900 = vmatpush2.msra.mxu0 0.0
      %901 = vmatprep.subr.mxu0 0.0
      %902 = vmatpush2.msra.mxu0 0.0
      %903 = vmatprep.subr.mxu0 0.0
      %904 = vmatpush2.msra.mxu0 0.0
      %905 = vmatprep.subr.mxu0 0.0
      %906 = vmatpush2.msra.mxu0 0.0
      %907 = vmatprep.subr.mxu0 0.0
      %908 = vmatpush2.msra.mxu0 0.0
      %909 = vmatprep.subr.mxu0 0.0
      %910 = vmatpush2.msra.mxu0 0.0
      %911 = vmatprep.subr.mxu0 0.0
      %912 = vmatpush2.msra.mxu0 0.0
      %913 = vmatprep.subr.mxu0 0.0
      %914 = vmatpush2.msra.mxu0 0.0
      %915 = vmatprep.subr.mxu0 0.0
      %916 = vmatpush2.msra.mxu0 0.0
      %917 = vmatprep.subr.mxu0 0.0
      %918 = vmatpush2.msra.mxu0 0.0
      %919 = vmatprep.subr.mxu0 0.0
      %920 = vmatpush2.msra.mxu0 0.0
      %921 = vmatprep.subr.mxu0 0.0
      %922 = vmatpush2.msra.mxu0 0.0
      %923 = vmatprep.subr.mxu0 0.0
      %924 = vmatpush2.msra.mxu0 0.0
      %925 = vmatprep.subr.mxu0 0.0
      %926 = vmatpush2.msra.mxu0 0.0
      %927 = vmatprep.subr.mxu0 0.0
      %928 = vmatpush2.msra.mxu0 0.0
      %929 = vmatprep.mubr.f32.mxu0 0.0
      %930 = vmatmul.mubr.f32.gmra.mxu0 %v860
      %v931 = vpop.f32.mrf.mxu0
      %v932 = vadd.f32 0.0, %v931
      %v933 = vpop.f32.mrf.mxu0
      %934 = vdwg.mxu0
      %v935 = vld [vmem:[%s441] sm:$0xff]
      %v936 = vld [vmem:[%s441 + $0x8] sm:$0xff]
      %v937 = vld [vmem:[%s441 + $0x10] sm:$0xff]
      %v938 = vld [vmem:[%s441 + $0x18] sm:$0xff]
      %v939 = vld [vmem:[%s441 + $0x20] sm:$0xff]
      %v940 = vld [vmem:[%s441 + $0x28] sm:$0xff]
      %v942 = vsel %vm621, %v935, 0
      %v945 = vsel %vm621, %v936, 0
      %v948 = vsel %vm621, %v937, 0
      %v951 = vsel %vm621, %v938, 0
      %v954 = vsel %vm621, %v939, 0
      %v957 = vsel %vm621, %v940, 0
      %v960 = vsel %vm640, %v932, 0
      %962 = vmatprep.subr.mxu0 0.0
      %963 = vmatpush1.msra.mxu0 0.0
      %964 = vmatprep.subr.mxu0 0.0
      %965 = vmatpush1.msra.mxu0 0.0
      %966 = vmatprep.subr.mxu0 0.0
      %967 = vmatpush1.msra.mxu0 0.0
      %968 = vmatprep.subr.mxu0 0.0
      %969 = vmatpush1.msra.mxu0 0.0
      %970 = vmatprep.subr.mxu0 0.0
      %971 = vmatpush1.msra.mxu0 0.0
      %972 = vmatprep.subr.mxu0 0.0
      %973 = vmatpush1.msra.mxu0 0.0
      %974 = vmatprep.subr.mxu0 0.0
      %975 = vmatpush1.msra.mxu0 0.0
      %976 = vmatprep.subr.mxu0 0.0
      %977 = vmatpush1.msra.mxu0 0.0
      %978 = vmatprep.subr.mxu0 0.0
      %979 = vmatpush1.msra.mxu0 0.0
      %980 = vmatprep.subr.mxu0 0.0
      %981 = vmatpush1.msra.mxu0 0.0
      %982 = vmatprep.subr.mxu0 0.0
      %983 = vmatpush1.msra.mxu0 0.0
      %984 = vmatprep.subr.mxu0 0.0
      %985 = vmatpush1.msra.mxu0 0.0
      %986 = vmatprep.subr.mxu0 0.0
      %987 = vmatpush1.msra.mxu0 0.0
      %988 = vmatprep.subr.mxu0 0.0
      %989 = vmatpush1.msra.mxu0 0.0
      %990 = vmatprep.subr.mxu0 0.0
      %991 = vmatpush1.msra.mxu0 0.0
      %992 = vmatprep.subr.mxu0 0.0
      %993 = vmatpush1.msra.mxu0 %v960
      %994 = vmatprep.subr.mxu0 0.0
      %995 = vmatpush2.msra.mxu0 0.0
      %996 = vmatprep.subr.mxu0 0.0
      %997 = vmatpush2.msra.mxu0 0.0
      %998 = vmatprep.subr.mxu0 0.0
      %999 = vmatpush2.msra.mxu0 0.0
      %1000 = vmatprep.subr.mxu0 0.0
      %1001 = vmatpush2.msra.mxu0 0.0
      %1002 = vmatprep.subr.mxu0 0.0
      %1003 = vmatpush2.msra.mxu0 0.0
      %1004 = vmatprep.subr.mxu0 0.0
      %1005 = vmatpush2.msra.mxu0 0.0
      %1006 = vmatprep.subr.mxu0 0.0
      %1007 = vmatpush2.msra.mxu0 0.0
      %1008 = vmatprep.subr.mxu0 0.0
      %1009 = vmatpush2.msra.mxu0 0.0
      %1010 = vmatprep.subr.mxu0 0.0
      %1011 = vmatpush2.msra.mxu0 0.0
      %1012 = vmatprep.subr.mxu0 0.0
      %1013 = vmatpush2.msra.mxu0 0.0
      %1014 = vmatprep.subr.mxu0 0.0
      %1015 = vmatpush2.msra.mxu0 0.0
      %1016 = vmatprep.subr.mxu0 0.0
      %1017 = vmatpush2.msra.mxu0 0.0
      %1018 = vmatprep.subr.mxu0 0.0
      %1019 = vmatpush2.msra.mxu0 0.0
      %1020 = vmatprep.subr.mxu0 0.0
      %1021 = vmatpush2.msra.mxu0 0.0
      %1022 = vmatprep.subr.mxu0 0.0
      %1023 = vmatpush2.msra.mxu0 0.0
      %1024 = vmatprep.subr.mxu0 0.0
      %1025 = vmatpush2.msra.mxu0 0.0
      %1026 = vmatprep.mubr.f32.mxu0 0.0
      %1027 = vmatmul.mubr.f32.gmra.mxu0 %v942
      %v1028 = vpop.f32.mrf.mxu0
      %v1029 = vadd.f32 0.0, %v1028
      %v1030 = vpop.f32.mrf.mxu0
      %1031 = vmatprep.mubr.f32.mxu0 0.0
      %1032 = vmatmul.mubr.f32.gmra.mxu0 %v945
      %v1033 = vpop.f32.mrf.mxu0
      %v1034 = vadd.f32 0.0, %v1033
      %v1035 = vpop.f32.mrf.mxu0
      %1036 = vmatprep.mubr.f32.mxu0 0.0
      %1037 = vmatmul.mubr.f32.gmra.mxu0 %v948
      %v1038 = vpop.f32.mrf.mxu0
      %v1039 = vadd.f32 0.0, %v1038
      %v1040 = vpop.f32.mrf.mxu0
      %1041 = vmatprep.mubr.f32.mxu0 0.0
      %1042 = vmatmul.mubr.f32.gmra.mxu0 %v951
      %v1043 = vpop.f32.mrf.mxu0
      %v1044 = vadd.f32 0.0, %v1043
      %v1045 = vpop.f32.mrf.mxu0
      %1046 = vmatprep.mubr.f32.mxu0 0.0
      %1047 = vmatmul.mubr.f32.gmra.mxu0 %v954
      %v1048 = vpop.f32.mrf.mxu0
      %v1049 = vadd.f32 0.0, %v1048
      %v1050 = vpop.f32.mrf.mxu0
      %1051 = vmatprep.mubr.f32.mxu0 0.0
      %1052 = vmatmul.mubr.f32.gmra.mxu0 %v957
      %v1053 = vpop.f32.mrf.mxu0
      %v1054 = vadd.f32 0.0, %v1053
      %v1055 = vpop.f32.mrf.mxu0
      %1056 = vdwg.mxu0
      %v1057 = vadd.f32 %v829, %v1029
      %v1058 = vadd.f32 %v834, %v1034
      %v1059 = vadd.f32 %v839, %v1039
      %v1060 = vadd.f32 %v844, %v1044
      %v1061 = vadd.f32 %v849, %v1049
      %v1062 = vadd.f32 %v854, %v1054
      %vm1063 = vcmask 785408
      %1064 = vst.msk [vmem:[%s451] sm:$0xff] %vm1063, %v1057
      %1065 = vst.msk [vmem:[%s451 + $0x8] sm:$0xff] %vm1063, %v1058
      %1066 = vst.msk [vmem:[%s451 + $0x10] sm:$0xff] %vm1063, %v1059
      %1067 = vst.msk [vmem:[%s451 + $0x18] sm:$0xff] %vm1063, %v1060
      %1068 = vst.msk [vmem:[%s451 + $0x20] sm:$0xff] %vm1063, %v1061
      %1069 = vst.msk [vmem:[%s451 + $0x28] sm:$0xff] %vm1063, %v1062
      %s1070 = smul.u32 6, %s25
      %p1071 = scmp.lt.s32.totalorder %s24, 1
      %s1072 = scalar_select %p1071, %s24, 1
      %p1073 = scmp.lt.s32.totalorder %s1070, 5
      %s1074 = scalar_select %p1073, %s1070, 5
      %s1075 = smul.addr %s1072, 6
      %s1076 = sadd.s32 %s1074, %s1075
      %s1077 = smul.addr %s1076, 8
      %s1078 = scalar_lea.vmem %s9, %s1077
      // Predicated region
      $region57: #{esa_forward.26} parent=55 // pred_check
        %p1079 = pneg %p271
      $region58: #{esa_forward.26} parent=55 // pred_check_branch
        %1081 = sbr.rel (%p1079) target = $region60
      $region59: #{esa_forward.26} parent=55 // pred_region
        %s1082 = smul.u32 6, %s25
      $region60: #{esa_forward.26} parent=55 // pred_fallthru
        _
    $region56: #{esa_forward.26} parent=5 // pred_fallthru
      _
    %p1083 = scmp.le.s32.totalorder 2, %s15
    // Predicated region
    $region61: #{esa_forward.26} parent=5 // pred_check
      %p1084 = pneg %p1083
    $region62: #{esa_forward.26} parent=5 // pred_check_branch
      %1086 = sbr.rel (%p1084) target = $region64
    $region63: #{esa_forward.26} parent=5 // pred_region
      %s1087 = ssub.s32 %s15, 2
      // Predicated region
      $region65: #{esa_forward.26} parent=63 // pred_check
        %p1088 = pneg %p277
      $region66: #{esa_forward.26} parent=63 // pred_check_branch
        %1090 = sbr.rel (%p1088) target = $region68
      $region67: #{esa_forward.26} parent=63 // pred_region
        %s1091 = smul.u32 6, %s27
        %p1092 = scmp.lt.s32.totalorder %s26, 1
        %s1093 = scalar_select %p1092, %s26, 1
        %p1094 = scmp.lt.s32.totalorder %s1091, 5
        %s1095 = scalar_select %p1094, %s1091, 5
        %s1096 = smul.addr %s1093, 6
        %s1097 = sadd.s32 %s1095, %s1096
        %s1098 = smul.addr %s1097, 8
        %s1099 = scalar_lea.vmem %s9, %s1098
      $region68: #{esa_forward.26} parent=63 // pred_fallthru
        _
    $region64: #{esa_forward.26} parent=5 // pred_fallthru
      _
  $region6: #{esa_forward.26} parent=0 // loop_footer
    %s19 = sadd.s32 1, %s15
  $region7: #{esa_forward.26} parent=0 // loop_footer_branch
    %14 = sbr.rel target = $region3
  $region8: #{esa_forward.26} parent=0 // loop_exit
    _

// kernel: esa_forward.27
$region0: #{esa_forward.27}
  #allocation0 [shape = 'u32[]', space=smem, size = 0x4, offset = 0x4, fixed_abs, tag = 'smem constant byte address 0x4 - core index']
  #allocation1 [shape = 'u32[144,128]{1,0:T(1,128)}', space=vmem, size = 0x12000, scoped, tag = 'internal scratch']
  %s0 = inlined_call_operand.vmem [shape: f32[4608,2], index: 0, kind: input, shape index: {}]
  %s1 = inlined_call_operand.vmem [shape: f32[4608,8], index: 1, kind: input, shape index: {}]
  %s2 = inlined_call_operand.vmem [shape: f32[2,8], index: 2, kind: input, shape index: {}]
  %s3 = inlined_call_operand.vmem [shape: f32[8,8], index: 3, kind: input, shape index: {}]
  %s4 = inlined_call_operand.vmem [shape: f32[1,8], index: 4, kind: input, shape index: {}]
  %s5 = inlined_call_operand.vmem [shape: f32[4608,8], index: 5, kind: output, shape index: {}]
  %s6 = sld [smem:[#allocation0]]
  $region53: #{esa_forward.27} parent=0
    _
  %s8 = ssub.s32 1, %s6
  %s9 = scalar_select 0, %s8, %s6
  loop: start=0, step=1, limit=11
  $region2: #{esa_forward.27} parent=0 // loop_pre_header
    _
  $region3: #{esa_forward.27} parent=0 // loop_header
    %s11 = sphi 0, %s15
    %p12 = scmp.ge.s32.totalorder %s11, 11
    %s21 = sphi 0, %s23
    %s24 = sphi 0, %s21
    %s25 = sphi 0, %s24
    %s41 = sphi 0, %s25
    %s47 = sphi 0, %s49
    %s50 = sphi 0, %s47
    %s51 = sphi 0, %s50
    %s67 = sphi 0, %s51
    %s71 = sphi 0, %s71
    %s73 = sphi 0, %s71
    %s74 = sphi 0, %s73
    %s88 = sphi 0, %s74
    %s92 = sphi 0, %s92
    %s94 = sphi 0, %s92
    %s95 = sphi 0, %s94
    %s109 = sphi 0, %s95
    %s113 = sphi 0, %s113
    %s115 = sphi 0, %s113
    %s116 = sphi 0, %s115
    %s130 = sphi 0, %s116
    %s136 = sphi 0, %s138
    %s139 = sphi 0, %s136
    %s140 = sphi 0, %s139
    %s156 = sphi 0, %s140
  $region4: #{esa_forward.27} parent=0 // loop_header_branch
    %14 = sbr.rel (%p12) target = $region8
  $region5: #{esa_forward.27} parent=0 // loop_body
    %s16 = ssub.s32 %s11, 1
    %s17 = ssub.s32 %s11, 2
    %s18 = sadd.s32 %s11, 1
    %s19 = ssub.s32 %s11, %s18
    %p20 = scmp.eq.s32.totalorder %s19, 0
    %s22 = sadd.s32 %s21, 1
    %s23 = scalar_select %p20, %s21, %s22
    %p26 = pneg %p20
    %p27 = scmp.eq.s32.totalorder %s11, 8
    %p28 = por %p26, %p27
    %p29 = scmp.ne.s32.totalorder %s21, %s24
    %p30 = scmp.eq.s32.totalorder %s11, 0
    %p31 = por %p29, %p30
    %p32 = scmp.ne.s32.totalorder %s21, %s24
    %p33 = scmp.eq.s32.totalorder %s16, 8
    %p34 = por %p32, %p33
    %p35 = scmp.ne.s32.totalorder %s24, %s25
    %p36 = scmp.eq.s32.totalorder %s16, 0
    %p37 = por %p35, %p36
    %p38 = scmp.ne.s32.totalorder %s24, %s25
    %p39 = scmp.eq.s32.totalorder %s17, 8
    %p40 = por %p38, %p39
    %p42 = scmp.ne.s32.totalorder %s25, %s41
    %p43 = scmp.eq.s32.totalorder %s17, 0
    %p44 = por %p42, %p43
    %s45 = ssub.s32 %s11, %s18
    %p46 = scmp.eq.s32.totalorder %s45, 0
    %s48 = sadd.s32 %s47, 1
    %s49 = scalar_select %p46, %s47, %s48
    %p52 = pneg %p46
    %p53 = scmp.eq.s32.totalorder %s11, 8
    %p54 = por %p52, %p53
    %p55 = scmp.ne.s32.totalorder %s47, %s50
    %p56 = scmp.eq.s32.totalorder %s11, 0
    %p57 = por %p55, %p56
    %p58 = scmp.ne.s32.totalorder %s47, %s50
    %p59 = scmp.eq.s32.totalorder %s16, 8
    %p60 = por %p58, %p59
    %p61 = scmp.ne.s32.totalorder %s50, %s51
    %p62 = scmp.eq.s32.totalorder %s16, 0
    %p63 = por %p61, %p62
    %p64 = scmp.ne.s32.totalorder %s50, %s51
    %p65 = scmp.eq.s32.totalorder %s17, 8
    %p66 = por %p64, %p65
    %p68 = scmp.ne.s32.totalorder %s51, %s67
    %p69 = scmp.eq.s32.totalorder %s17, 0
    %p70 = por %p68, %p69
    %s72 = sadd.s32 %s71, 1
    %p75 = scmp.eq.s32.totalorder %s11, 8
    %p76 = scmp.ne.s32.totalorder %s71, %s73
    %p77 = scmp.eq.s32.totalorder %s11, 0
    %p78 = por %p76, %p77
    %p79 = scmp.ne.s32.totalorder %s71, %s73
    %p80 = scmp.eq.s32.totalorder %s16, 8
    %p81 = por %p79, %p80
    %p82 = scmp.ne.s32.totalorder %s73, %s74
    %p83 = scmp.eq.s32.totalorder %s16, 0
    %p84 = por %p82, %p83
    %p85 = scmp.ne.s32.totalorder %s73, %s74
    %p86 = scmp.eq.s32.totalorder %s17, 8
    %p87 = por %p85, %p86
    %p89 = scmp.ne.s32.totalorder %s74, %s88
    %p90 = scmp.eq.s32.totalorder %s17, 0
    %p91 = por %p89, %p90
    %s93 = sadd.s32 %s92, 1
    %p96 = scmp.eq.s32.totalorder %s11, 8
    %p97 = scmp.ne.s32.totalorder %s92, %s94
    %p98 = scmp.eq.s32.totalorder %s11, 0
    %p99 = por %p97, %p98
    %p100 = scmp.ne.s32.totalorder %s92, %s94
    %p101 = scmp.eq.s32.totalorder %s16, 8
    %p102 = por %p100, %p101
    %p103 = scmp.ne.s32.totalorder %s94, %s95
    %p104 = scmp.eq.s32.totalorder %s16, 0
    %p105 = por %p103, %p104
    %p106 = scmp.ne.s32.totalorder %s94, %s95
    %p107 = scmp.eq.s32.totalorder %s17, 8
    %p108 = por %p106, %p107
    %p110 = scmp.ne.s32.totalorder %s95, %s109
    %p111 = scmp.eq.s32.totalorder %s17, 0
    %p112 = por %p110, %p111
    %s114 = sadd.s32 %s113, 1
    %p117 = scmp.eq.s32.totalorder %s11, 8
    %p118 = scmp.ne.s32.totalorder %s113, %s115
    %p119 = scmp.eq.s32.totalorder %s11, 0
    %p120 = por %p118, %p119
    %p121 = scmp.ne.s32.totalorder %s113, %s115
    %p122 = scmp.eq.s32.totalorder %s16, 8
    %p123 = por %p121, %p122
    %p124 = scmp.ne.s32.totalorder %s115, %s116
    %p125 = scmp.eq.s32.totalorder %s16, 0
    %p126 = por %p124, %p125
    %p127 = scmp.ne.s32.totalorder %s115, %s116
    %p128 = scmp.eq.s32.totalorder %s17, 8
    %p129 = por %p127, %p128
    %p131 = scmp.ne.s32.totalorder %s116, %s130
    %p132 = scmp.eq.s32.totalorder %s17, 0
    %p133 = por %p131, %p132
    %s134 = ssub.s32 %s11, %s18
    %p135 = scmp.eq.s32.totalorder %s134, 0
    %s137 = sadd.s32 %s136, 1
    %s138 = scalar_select %p135, %s136, %s137
    %p141 = pneg %p135
    %p142 = scmp.eq.s32.totalorder %s11, 8
    %p143 = por %p141, %p142
    %p144 = scmp.ne.s32.totalorder %s136, %s139
    %p145 = scmp.eq.s32.totalorder %s11, 0
    %p146 = por %p144, %p145
    %p147 = scmp.ne.s32.totalorder %s136, %s139
    %p148 = scmp.eq.s32.totalorder %s16, 8
    %p149 = por %p147, %p148
    %p150 = scmp.ne.s32.totalorder %s139, %s140
    %p151 = scmp.eq.s32.totalorder %s16, 0
    %p152 = por %p150, %p151
    %p153 = scmp.ne.s32.totalorder %s139, %s140
    %p154 = scmp.eq.s32.totalorder %s17, 8
    %p155 = por %p153, %p154
    %p157 = scmp.ne.s32.totalorder %s140, %s156
    %p158 = scmp.eq.s32.totalorder %s17, 0
    %p159 = por %p157, %p158
    %p160 = scmp.le.s32.totalorder 1, %s11
    %p161 = scmp.lt.s32.totalorder %s11, 10
    %p162 = pnand %p160, %p161
    %p163 = pneg %p162
    // Predicated region
    $region9: #{esa_forward.27} parent=5 // pred_check
      _
    $region10: #{esa_forward.27} parent=5 // pred_check_branch
      %165 = sbr.rel (%p162) target = $region12
    $region11: #{esa_forward.27} parent=5 // pred_region
      %s166 = ssub.s32 %s11, 1
      // Predicated region
      $region13: #{esa_forward.27} parent=11 // pred_check
        %p167 = pneg %p84
      $region14: #{esa_forward.27} parent=11 // pred_check_branch
        %169 = sbr.rel (%p167) target = $region16
      $region15: #{esa_forward.27} parent=11 // pred_region
        _
      $region16: #{esa_forward.27} parent=11 // pred_fallthru
        _
      // Predicated region
      $region17: #{esa_forward.27} parent=11 // pred_check
        %p170 = pneg %p105
      $region18: #{esa_forward.27} parent=11 // pred_check_branch
        %172 = sbr.rel (%p170) target = $region20
      $region19: #{esa_forward.27} parent=11 // pred_region
        _
      $region20: #{esa_forward.27} parent=11 // pred_fallthru
        _
      // Predicated region
      $region21: #{esa_forward.27} parent=11 // pred_check
        %p173 = pneg %p126
      $region22: #{esa_forward.27} parent=11 // pred_check_branch
        %175 = sbr.rel (%p173) target = $region24
      $region23: #{esa_forward.27} parent=11 // pred_region
        _
      $region24: #{esa_forward.27} parent=11 // pred_fallthru
        _
    $region12: #{esa_forward.27} parent=5 // pred_fallthru
      _
    %p176 = scmp.lt.s32.totalorder %s11, 9
    // Predicated region
    $region25: #{esa_forward.27} parent=5 // pred_check
      %p177 = pneg %p176
    $region26: #{esa_forward.27} parent=5 // pred_check_branch
      %179 = sbr.rel (%p177) target = $region28
    $region27: #{esa_forward.27} parent=5 // pred_region
      // Predicated region
      $region29: #{esa_forward.27} parent=27 // pred_check
        %p180 = pneg %p31
      $region30: #{esa_forward.27} parent=27 // pred_check_branch
        %182 = sbr.rel (%p180) target = $region32
      $region31: #{esa_forward.27} parent=27 // pred_region
        %s183 = smul.u32 64, %s11
        %p184 = scmp.lt.s32.totalorder %s183, 575
        %s185 = scalar_select %p184, %s183, 575
        %s186 = smul.addr %s185, 8
        %s187 = scalar_lea.vmem %s0, %s186
        %s188 = smul.u32 64, %s11
      $region32: #{esa_forward.27} parent=27 // pred_fallthru
        _
      // Predicated region
      $region33: #{esa_forward.27} parent=27 // pred_check
        %p189 = pneg %p57
      $region34: #{esa_forward.27} parent=27 // pred_check_branch
        %191 = sbr.rel (%p189) target = $region36
      $region35: #{esa_forward.27} parent=27 // pred_region
        %s192 = smul.u32 64, %s11
        %p193 = scmp.lt.s32.totalorder %s192, 575
        %s194 = scalar_select %p193, %s192, 575
        %s195 = smul.addr %s194, 8
        %s196 = scalar_lea.vmem %s1, %s195
        %s197 = smul.u32 64, %s11
      $region36: #{esa_forward.27} parent=27 // pred_fallthru
        _
    $region28: #{esa_forward.27} parent=5 // pred_fallthru
      _
    %p198 = scmp.le.s32.totalorder 1, %s11
    %p199 = scmp.lt.s32.totalorder %s11, 10
    %p200 = pnand %p198, %p199
    %p201 = pneg %p200
    // Predicated region
    $region37: #{esa_forward.27} parent=5 // pred_check
      _
    $region38: #{esa_forward.27} parent=5 // pred_check_branch
      %203 = sbr.rel (%p200) target = $region40
    $region39: #{esa_forward.27} parent=5 // pred_region
      %s204 = ssub.s32 %s11, 1
      %s205 = smul.u32 64, %s16
      %p206 = scmp.lt.s32.totalorder %s205, 575
      %s207 = scalar_select %p206, %s205, 575
      %s208 = smul.addr %s207, 8
      %s209 = scalar_lea.vmem %s0, %s208
      %p210 = pneg %p37
      %p211 = pneg %p34
      %s212 = smul.u32 64, %s16
      %p213 = scmp.lt.s32.totalorder %s212, 575
      %s214 = scalar_select %p213, %s212, 575
      %s215 = smul.addr %s214, 8
      %s216 = scalar_lea.vmem %s1, %s215
      %p217 = pneg %p63
      %p218 = pneg %p60
      %p219 = pneg %p84
      %p220 = pneg %p81
      %p221 = pneg %p105
      %p222 = pneg %p102
      %p223 = pneg %p126
      %p224 = pneg %p123
      %p225 = pneg %p152
      %p226 = pneg %p149
      %s227 = smul.u32 64, %s16
      %p228 = scmp.lt.s32.totalorder %s227, 575
      %s229 = scalar_select %p228, %s227, 575
      %s230 = smul.addr %s229, 8
      %s231 = scalar_lea.vmem %s5, %s230
      %s232 = smul.u32 64, %s16
      %p233 = scmp.lt.s32.totalorder %s232, 575
      %s234 = scalar_select %p233, %s232, 575
      %s235 = smul.addr %s234, 8
      %s236 = scalar_lea.vmem %s0, %s235
      %s237 = smul.u32 64, %s16
      %s238 = smul.u32 64, %s16
      %p239 = scmp.lt.s32.totalorder %s238, 575
      %s240 = scalar_select %p239, %s238, 575
      %s241 = smul.addr %s240, 8
      %s242 = scalar_lea.vmem %s1, %s241
      %s243 = smul.u32 64, %s16
      %s244 = smul.u32 64, %s16
      %p245 = scmp.lt.s32.totalorder %s244, 575
      %s246 = scalar_select %p245, %s244, 575
      %s247 = smul.addr %s246, 8
      %s248 = scalar_lea.vmem %s5, %s247
      %s249 = smul.u32 64, %s16
      %v250 = vld [vmem:[%s242] sm:$0xff]
      %v251 = vld [vmem:[%s242 + $0x8] sm:$0xff]
      %v252 = vld [vmem:[%s242 + $0x10] sm:$0xff]
      %v253 = vld [vmem:[%s242 + $0x18] sm:$0xff]
      %v254 = vld [vmem:[%s242 + $0x20] sm:$0xff]
      %v255 = vld [vmem:[%s242 + $0x28] sm:$0xff]
      %v256 = vld [vmem:[%s242 + $0x30] sm:$0xff]
      %v257 = vld [vmem:[%s242 + $0x38] sm:$0xff]
      %v258 = vld [vmem:[%s242 + $0x40] sm:$0xff]
      %v259 = vld [vmem:[%s242 + $0x48] sm:$0xff]
      %v260 = vld [vmem:[%s242 + $0x50] sm:$0xff]
      %v261 = vld [vmem:[%s242 + $0x58] sm:$0xff]
      %v262 = vld [vmem:[%s242 + $0x60] sm:$0xff]
      %v263 = vld [vmem:[%s242 + $0x68] sm:$0xff]
      %v264 = vld [vmem:[%s242 + $0x70] sm:$0xff]
      %v265 = vld [vmem:[%s242 + $0x78] sm:$0xff]
      %v266 = vld [vmem:[%s242 + $0x80] sm:$0xff]
      %v267 = vld [vmem:[%s242 + $0x88] sm:$0xff]
      %v268 = vld [vmem:[%s242 + $0x90] sm:$0xff]
      %v269 = vld [vmem:[%s242 + $0x98] sm:$0xff]
      %v270 = vld [vmem:[%s242 + $0xa0] sm:$0xff]
      %v271 = vld [vmem:[%s242 + $0xa8] sm:$0xff]
      %v272 = vld [vmem:[%s242 + $0xb0] sm:$0xff]
      %v273 = vld [vmem:[%s242 + $0xb8] sm:$0xff]
      %v274 = vld [vmem:[%s242 + $0xc0] sm:$0xff]
      %v275 = vld [vmem:[%s242 + $0xc8] sm:$0xff]
      %v276 = vld [vmem:[%s242 + $0xd0] sm:$0xff]
      %v277 = vld [vmem:[%s242 + $0xd8] sm:$0xff]
      %v278 = vld [vmem:[%s242 + $0xe0] sm:$0xff]
      %v279 = vld [vmem:[%s242 + $0xe8] sm:$0xff]
      %v280 = vld [vmem:[%s242 + $0xf0] sm:$0xff]
      %v281 = vld [vmem:[%s242 + $0xf8] sm:$0xff]
      %v282 = vld [vmem:[%s242 + $0x100] sm:$0xff]
      %v283 = vld [vmem:[%s242 + $0x108] sm:$0xff]
      %v284 = vld [vmem:[%s242 + $0x110] sm:$0xff]
      %v285 = vld [vmem:[%s242 + $0x118] sm:$0xff]
      %v286 = vld [vmem:[%s242 + $0x120] sm:$0xff]
      %v287 = vld [vmem:[%s242 + $0x128] sm:$0xff]
      %v288 = vld [vmem:[%s242 + $0x130] sm:$0xff]
      %v289 = vld [vmem:[%s242 + $0x138] sm:$0xff]
      %v290 = vld [vmem:[%s242 + $0x140] sm:$0xff]
      %v291 = vld [vmem:[%s242 + $0x148] sm:$0xff]
      %v292 = vld [vmem:[%s242 + $0x150] sm:$0xff]
      %v293 = vld [vmem:[%s242 + $0x158] sm:$0xff]
      %v294 = vld [vmem:[%s242 + $0x160] sm:$0xff]
      %v295 = vld [vmem:[%s242 + $0x168] sm:$0xff]
      %v296 = vld [vmem:[%s242 + $0x170] sm:$0xff]
      %v297 = vld [vmem:[%s242 + $0x178] sm:$0xff]
      %v298 = vld [vmem:[%s242 + $0x180] sm:$0xff]
      %v299 = vld [vmem:[%s242 + $0x188] sm:$0xff]
      %v300 = vld [vmem:[%s242 + $0x190] sm:$0xff]
      %v301 = vld [vmem:[%s242 + $0x198] sm:$0xff]
      %v302 = vld [vmem:[%s242 + $0x1a0] sm:$0xff]
      %v303 = vld [vmem:[%s242 + $0x1a8] sm:$0xff]
      %v304 = vld [vmem:[%s242 + $0x1b0] sm:$0xff]
      %v305 = vld [vmem:[%s242 + $0x1b8] sm:$0xff]
      %v306 = vld [vmem:[%s242 + $0x1c0] sm:$0xff]
      %v307 = vld [vmem:[%s242 + $0x1c8] sm:$0xff]
      %v308 = vld [vmem:[%s242 + $0x1d0] sm:$0xff]
      %v309 = vld [vmem:[%s242 + $0x1d8] sm:$0xff]
      %v310 = vld [vmem:[%s242 + $0x1e0] sm:$0xff]
      %v311 = vld [vmem:[%s242 + $0x1e8] sm:$0xff]
      %v312 = vld [vmem:[%s242 + $0x1f0] sm:$0xff]
      %v313 = vld [vmem:[%s242 + $0x1f8] sm:$0xff]
      %v314 = vld [vmem:[%s236] sm:$0xff]
      %v315 = vld [vmem:[%s236 + $0x8] sm:$0xff]
      %v316 = vld [vmem:[%s236 + $0x10] sm:$0xff]
      %v317 = vld [vmem:[%s236 + $0x18] sm:$0xff]
      %v318 = vld [vmem:[%s236 + $0x20] sm:$0xff]
      %v319 = vld [vmem:[%s236 + $0x28] sm:$0xff]
      %v320 = vld [vmem:[%s236 + $0x30] sm:$0xff]
      %v321 = vld [vmem:[%s236 + $0x38] sm:$0xff]
      %v322 = vld [vmem:[%s236 + $0x40] sm:$0xff]
      %v323 = vld [vmem:[%s236 + $0x48] sm:$0xff]
      %v324 = vld [vmem:[%s236 + $0x50] sm:$0xff]
      %v325 = vld [vmem:[%s236 + $0x58] sm:$0xff]
      %v326 = vld [vmem:[%s236 + $0x60] sm:$0xff]
      %v327 = vld [vmem:[%s236 + $0x68] sm:$0xff]
      %v328 = vld [vmem:[%s236 + $0x70] sm:$0xff]
      %v329 = vld [vmem:[%s236 + $0x78] sm:$0xff]
      %v330 = vld [vmem:[%s236 + $0x80] sm:$0xff]
      %v331 = vld [vmem:[%s236 + $0x88] sm:$0xff]
      %v332 = vld [vmem:[%s236 + $0x90] sm:$0xff]
      %v333 = vld [vmem:[%s236 + $0x98] sm:$0xff]
      %v334 = vld [vmem:[%s236 + $0xa0] sm:$0xff]
      %v335 = vld [vmem:[%s236 + $0xa8] sm:$0xff]
      %v336 = vld [vmem:[%s236 + $0xb0] sm:$0xff]
      %v337 = vld [vmem:[%s236 + $0xb8] sm:$0xff]
      %v338 = vld [vmem:[%s236 + $0xc0] sm:$0xff]
      %v339 = vld [vmem:[%s236 + $0xc8] sm:$0xff]
      %v340 = vld [vmem:[%s236 + $0xd0] sm:$0xff]
      %v341 = vld [vmem:[%s236 + $0xd8] sm:$0xff]
      %v342 = vld [vmem:[%s236 + $0xe0] sm:$0xff]
      %v343 = vld [vmem:[%s236 + $0xe8] sm:$0xff]
      %v344 = vld [vmem:[%s236 + $0xf0] sm:$0xff]
      %v345 = vld [vmem:[%s236 + $0xf8] sm:$0xff]
      %v346 = vld [vmem:[%s236 + $0x100] sm:$0xff]
      %v347 = vld [vmem:[%s236 + $0x108] sm:$0xff]
      %v348 = vld [vmem:[%s236 + $0x110] sm:$0xff]
      %v349 = vld [vmem:[%s236 + $0x118] sm:$0xff]
      %v350 = vld [vmem:[%s236 + $0x120] sm:$0xff]
      %v351 = vld [vmem:[%s236 + $0x128] sm:$0xff]
      %v352 = vld [vmem:[%s236 + $0x130] sm:$0xff]
      %v353 = vld [vmem:[%s236 + $0x138] sm:$0xff]
      %v354 = vld [vmem:[%s236 + $0x140] sm:$0xff]
      %v355 = vld [vmem:[%s236 + $0x148] sm:$0xff]
      %v356 = vld [vmem:[%s236 + $0x150] sm:$0xff]
      %v357 = vld [vmem:[%s236 + $0x158] sm:$0xff]
      %v358 = vld [vmem:[%s236 + $0x160] sm:$0xff]
      %v359 = vld [vmem:[%s236 + $0x168] sm:$0xff]
      %v360 = vld [vmem:[%s236 + $0x170] sm:$0xff]
      %v361 = vld [vmem:[%s236 + $0x178] sm:$0xff]
      %v362 = vld [vmem:[%s236 + $0x180] sm:$0xff]
      %v363 = vld [vmem:[%s236 + $0x188] sm:$0xff]
      %v364 = vld [vmem:[%s236 + $0x190] sm:$0xff]
      %v365 = vld [vmem:[%s236 + $0x198] sm:$0xff]
      %v366 = vld [vmem:[%s236 + $0x1a0] sm:$0xff]
      %v367 = vld [vmem:[%s236 + $0x1a8] sm:$0xff]
      %v368 = vld [vmem:[%s236 + $0x1b0] sm:$0xff]
      %v369 = vld [vmem:[%s236 + $0x1b8] sm:$0xff]
      %v370 = vld [vmem:[%s236 + $0x1c0] sm:$0xff]
      %v371 = vld [vmem:[%s236 + $0x1c8] sm:$0xff]
      %v372 = vld [vmem:[%s236 + $0x1d0] sm:$0xff]
      %v373 = vld [vmem:[%s236 + $0x1d8] sm:$0xff]
      %v374 = vld [vmem:[%s236 + $0x1e0] sm:$0xff]
      %v375 = vld [vmem:[%s236 + $0x1e8] sm:$0xff]
      %v376 = vld [vmem:[%s236 + $0x1f0] sm:$0xff]
      %v377 = vld [vmem:[%s236 + $0x1f8] sm:$0xff]
      %v378 = vld [vmem:[%s2] sm:$0x3]
      %v379 = vld [vmem:[%s3] sm:$0xff]
      %vm380 = vcmask 64512
      %v382 = vsel %vm380, %v250, 0
      %v385 = vsel %vm380, %v251, 0
      %v388 = vsel %vm380, %v252, 0
      %v391 = vsel %vm380, %v253, 0
      %v394 = vsel %vm380, %v254, 0
      %v397 = vsel %vm380, %v255, 0
      %v400 = vsel %vm380, %v256, 0
      %v403 = vsel %vm380, %v257, 0
      %v406 = vsel %vm380, %v258, 0
      %v409 = vsel %vm380, %v259, 0
      %v412 = vsel %vm380, %v260, 0
      %v415 = vsel %vm380, %v261, 0
      %v418 = vsel %vm380, %v262, 0
      %v421 = vsel %vm380, %v263, 0
      %v424 = vsel %vm380, %v264, 0
      %v427 = vsel %vm380, %v265, 0
      %v430 = vsel %vm380, %v266, 0
      %v433 = vsel %vm380, %v267, 0
      %v436 = vsel %vm380, %v268, 0
      %v439 = vsel %vm380, %v269, 0
      %v442 = vsel %vm380, %v270, 0
      %v445 = vsel %vm380, %v271, 0
      %v448 = vsel %vm380, %v272, 0
      %v451 = vsel %vm380, %v273, 0
      %v454 = vsel %vm380, %v274, 0
      %v457 = vsel %vm380, %v275, 0
      %v460 = vsel %vm380, %v276, 0
      %v463 = vsel %vm380, %v277, 0
      %v466 = vsel %vm380, %v278, 0
      %v469 = vsel %vm380, %v279, 0
      %v472 = vsel %vm380, %v280, 0
      %v475 = vsel %vm380, %v281, 0
      %v478 = vsel %vm380, %v282, 0
      %v481 = vsel %vm380, %v283, 0
      %v484 = vsel %vm380, %v284, 0
      %v487 = vsel %vm380, %v285, 0
      %v490 = vsel %vm380, %v286, 0
      %v493 = vsel %vm380, %v287, 0
      %v496 = vsel %vm380, %v288, 0
      %v499 = vsel %vm380, %v289, 0
      %v502 = vsel %vm380, %v290, 0
      %v505 = vsel %vm380, %v291, 0
      %v508 = vsel %vm380, %v292, 0
      %v511 = vsel %vm380, %v293, 0
      %v514 = vsel %vm380, %v294, 0
      %v517 = vsel %vm380, %v295, 0
      %v520 = vsel %vm380, %v296, 0
      %v523 = vsel %vm380, %v297, 0
      %v526 = vsel %vm380, %v298, 0
      %v529 = vsel %vm380, %v299, 0
      %v532 = vsel %vm380, %v300, 0
      %v535 = vsel %vm380, %v301, 0
      %v538 = vsel %vm380, %v302, 0
      %v541 = vsel %vm380, %v303, 0
      %v544 = vsel %vm380, %v304, 0
      %v547 = vsel %vm380, %v305, 0
      %v550 = vsel %vm380, %v306, 0
      %v553 = vsel %vm380, %v307, 0
      %v556 = vsel %vm380, %v308, 0
      %v559 = vsel %vm380, %v309, 0
      %v562 = vsel %vm380, %v310, 0
      %v565 = vsel %vm380, %v311, 0
      %v568 = vsel %vm380, %v312, 0
      %v571 = vsel %vm380, %v313, 0
      %573 = vmatprep.subr.mxu0 0.0
      %574 = vmatpush1.msra.mxu0 0.0
      %575 = vmatprep.subr.mxu0 0.0
      %576 = vmatpush1.msra.mxu0 0.0
      %577 = vmatprep.subr.mxu0 0.0
      %578 = vmatpush1.msra.mxu0 0.0
      %579 = vmatprep.subr.mxu0 0.0
      %580 = vmatpush1.msra.mxu0 0.0
      %581 = vmatprep.subr.mxu0 0.0
      %582 = vmatpush1.msra.mxu0 0.0
      %583 = vmatprep.subr.mxu0 0.0
      %584 = vmatpush1.msra.mxu0 0.0
      %585 = vmatprep.subr.mxu0 0.0
      %586 = vmatpush1.msra.mxu0 0.0
      %587 = vmatprep.subr.mxu0 0.0
      %588 = vmatpush1.msra.mxu0 0.0
      %589 = vmatprep.subr.mxu0 0.0
      %590 = vmatpush1.msra.mxu0 0.0
      %591 = vmatprep.subr.mxu0 0.0
      %592 = vmatpush1.msra.mxu0 0.0
      %593 = vmatprep.subr.mxu0 0.0
      %594 = vmatpush1.msra.mxu0 0.0
      %595 = vmatprep.subr.mxu0 0.0
      %596 = vmatpush1.msra.mxu0 0.0
      %597 = vmatprep.subr.mxu0 0.0
      %598 = vmatpush1.msra.mxu0 0.0
      %599 = vmatprep.subr.mxu0 0.0
      %600 = vmatpush1.msra.mxu0 0.0
      %601 = vmatprep.subr.mxu0 0.0
      %602 = vmatpush1.msra.mxu0 0.0
      %603 = vmatprep.subr.mxu0 0.0
      %604 = vmatpush1.msra.mxu0 %v379
      %605 = vmatprep.subr.mxu0 0.0
      %606 = vmatpush2.msra.mxu0 0.0
      %607 = vmatprep.subr.mxu0 0.0
      %608 = vmatpush2.msra.mxu0 0.0
      %609 = vmatprep.subr.mxu0 0.0
      %610 = vmatpush2.msra.mxu0 0.0
      %611 = vmatprep.subr.mxu0 0.0
      %612 = vmatpush2.msra.mxu0 0.0
      %613 = vmatprep.subr.mxu0 0.0
      %614 = vmatpush2.msra.mxu0 0.0
      %615 = vmatprep.subr.mxu0 0.0
      %616 = vmatpush2.msra.mxu0 0.0
      %617 = vmatprep.subr.mxu0 0.0
      %618 = vmatpush2.msra.mxu0 0.0
      %619 = vmatprep.subr.mxu0 0.0
      %620 = vmatpush2.msra.mxu0 0.0
      %621 = vmatprep.subr.mxu0 0.0
      %622 = vmatpush2.msra.mxu0 0.0
      %623 = vmatprep.subr.mxu0 0.0
      %624 = vmatpush2.msra.mxu0 0.0
      %625 = vmatprep.subr.mxu0 0.0
      %626 = vmatpush2.msra.mxu0 0.0
      %627 = vmatprep.subr.mxu0 0.0
      %628 = vmatpush2.msra.mxu0 0.0
      %629 = vmatprep.subr.mxu0 0.0
      %630 = vmatpush2.msra.mxu0 0.0
      %631 = vmatprep.subr.mxu0 0.0
      %632 = vmatpush2.msra.mxu0 0.0
      %633 = vmatprep.subr.mxu0 0.0
      %634 = vmatpush2.msra.mxu0 0.0
      %635 = vmatprep.subr.mxu0 0.0
      %636 = vmatpush2.msra.mxu0 0.0
      %637 = vmatprep.mubr.f32.mxu0 0.0
      %638 = vmatmul.mubr.f32.gmra.mxu0 %v382
      %v639 = vpop.f32.mrf.mxu0
      %v640 = vadd.f32 0.0, %v639
      %v641 = vpop.f32.mrf.mxu0
      %642 = vmatprep.mubr.f32.mxu0 0.0
      %643 = vmatmul.mubr.f32.gmra.mxu0 %v385
      %v644 = vpop.f32.mrf.mxu0
      %v645 = vadd.f32 0.0, %v644
      %v646 = vpop.f32.mrf.mxu0
      %647 = vmatprep.mubr.f32.mxu0 0.0
      %648 = vmatmul.mubr.f32.gmra.mxu0 %v388
      %v649 = vpop.f32.mrf.mxu0
      %v650 = vadd.f32 0.0, %v649
      %v651 = vpop.f32.mrf.mxu0
      %652 = vmatprep.mubr.f32.mxu0 0.0
      %653 = vmatmul.mubr.f32.gmra.mxu0 %v391
      %v654 = vpop.f32.mrf.mxu0
      %v655 = vadd.f32 0.0, %v654
      %v656 = vpop.f32.mrf.mxu0
      %657 = vmatprep.mubr.f32.mxu0 0.0
      %658 = vmatmul.mubr.f32.gmra.mxu0 %v394
      %v659 = vpop.f32.mrf.mxu0
      %v660 = vadd.f32 0.0, %v659
      %v661 = vpop.f32.mrf.mxu0
      %662 = vmatprep.mubr.f32.mxu0 0.0
      %663 = vmatmul.mubr.f32.gmra.mxu0 %v397
      %v664 = vpop.f32.mrf.mxu0
      %v665 = vadd.f32 0.0, %v664
      %v666 = vpop.f32.mrf.mxu0
      %667 = vmatprep.mubr.f32.mxu0 0.0
      %668 = vmatmul.mubr.f32.gmra.mxu0 %v400
      %v669 = vpop.f32.mrf.mxu0
      %v670 = vadd.f32 0.0, %v669
      %v671 = vpop.f32.mrf.mxu0
      %672 = vmatprep.mubr.f32.mxu0 0.0
      %673 = vmatmul.mubr.f32.gmra.mxu0 %v403
      %v674 = vpop.f32.mrf.mxu0
      %v675 = vadd.f32 0.0, %v674
      %v676 = vpop.f32.mrf.mxu0
      %677 = vmatprep.mubr.f32.mxu0 0.0
      %678 = vmatmul.mubr.f32.gmra.mxu0 %v406
      %v679 = vpop.f32.mrf.mxu0
      %v680 = vadd.f32 0.0, %v679
      %v681 = vpop.f32.mrf.mxu0
      %682 = vmatprep.mubr.f32.mxu0 0.0
      %683 = vmatmul.mubr.f32.gmra.mxu0 %v409
      %v684 = vpop.f32.mrf.mxu0
      %v685 = vadd.f32 0.0, %v684
      %v686 = vpop.f32.mrf.mxu0
      %687 = vmatprep.mubr.f32.mxu0 0.0
      %688 = vmatmul.mubr.f32.gmra.mxu0 %v412
      %v689 = vpop.f32.mrf.mxu0
      %v690 = vadd.f32 0.0, %v689
      %v691 = vpop.f32.mrf.mxu0
      %692 = vmatprep.mubr.f32.mxu0 0.0
      %693 = vmatmul.mubr.f32.gmra.mxu0 %v415
      %v694 = vpop.f32.mrf.mxu0
      %v695 = vadd.f32 0.0, %v694
      %v696 = vpop.f32.mrf.mxu0
      %697 = vmatprep.mubr.f32.mxu0 0.0
      %698 = vmatmul.mubr.f32.gmra.mxu0 %v418
      %v699 = vpop.f32.mrf.mxu0
      %v700 = vadd.f32 0.0, %v699
      %v701 = vpop.f32.mrf.mxu0
      %702 = vmatprep.mubr.f32.mxu0 0.0
      %703 = vmatmul.mubr.f32.gmra.mxu0 %v421
      %v704 = vpop.f32.mrf.mxu0
      %v705 = vadd.f32 0.0, %v704
      %v706 = vpop.f32.mrf.mxu0
      %707 = vmatprep.mubr.f32.mxu0 0.0
      %708 = vmatmul.mubr.f32.gmra.mxu0 %v424
      %v709 = vpop.f32.mrf.mxu0
      %v710 = vadd.f32 0.0, %v709
      %v711 = vpop.f32.mrf.mxu0
      %712 = vmatprep.mubr.f32.mxu0 0.0
      %713 = vmatmul.mubr.f32.gmra.mxu0 %v427
      %v714 = vpop.f32.mrf.mxu0
      %v715 = vadd.f32 0.0, %v714
      %v716 = vpop.f32.mrf.mxu0
      %717 = vmatprep.mubr.f32.mxu0 0.0
      %718 = vmatmul.mubr.f32.gmra.mxu0 %v430
      %v719 = vpop.f32.mrf.mxu0
      %v720 = vadd.f32 0.0, %v719
      %v721 = vpop.f32.mrf.mxu0
      %722 = vmatprep.mubr.f32.mxu0 0.0
      %723 = vmatmul.mubr.f32.gmra.mxu0 %v433
      %v724 = vpop.f32.mrf.mxu0
      %v725 = vadd.f32 0.0, %v724
      %v726 = vpop.f32.mrf.mxu0
      %727 = vmatprep.mubr.f32.mxu0 0.0
      %728 = vmatmul.mubr.f32.gmra.mxu0 %v436
      %v729 = vpop.f32.mrf.mxu0
      %v730 = vadd.f32 0.0, %v729
      %v731 = vpop.f32.mrf.mxu0
      %732 = vmatprep.mubr.f32.mxu0 0.0
      %733 = vmatmul.mubr.f32.gmra.mxu0 %v439
      %v734 = vpop.f32.mrf.mxu0
      %v735 = vadd.f32 0.0, %v734
      %v736 = vpop.f32.mrf.mxu0
      %737 = vmatprep.mubr.f32.mxu0 0.0
      %738 = vmatmul.mubr.f32.gmra.mxu0 %v442
      %v739 = vpop.f32.mrf.mxu0
      %v740 = vadd.f32 0.0, %v739
      %v741 = vpop.f32.mrf.mxu0
      %742 = vmatprep.mubr.f32.mxu0 0.0
      %743 = vmatmul.mubr.f32.gmra.mxu0 %v445
      %v744 = vpop.f32.mrf.mxu0
      %v745 = vadd.f32 0.0, %v744
      %v746 = vpop.f32.mrf.mxu0
      %747 = vmatprep.mubr.f32.mxu0 0.0
      %748 = vmatmul.mubr.f32.gmra.mxu0 %v448
      %v749 = vpop.f32.mrf.mxu0
      %v750 = vadd.f32 0.0, %v749
      %v751 = vpop.f32.mrf.mxu0
      %752 = vmatprep.mubr.f32.mxu0 0.0
      %753 = vmatmul.mubr.f32.gmra.mxu0 %v451
      %v754 = vpop.f32.mrf.mxu0
      %v755 = vadd.f32 0.0, %v754
      %v756 = vpop.f32.mrf.mxu0
      %757 = vmatprep.mubr.f32.mxu0 0.0
      %758 = vmatmul.mubr.f32.gmra.mxu0 %v454
      %v759 = vpop.f32.mrf.mxu0
      %v760 = vadd.f32 0.0, %v759
      %v761 = vpop.f32.mrf.mxu0
      %762 = vmatprep.mubr.f32.mxu0 0.0
      %763 = vmatmul.mubr.f32.gmra.mxu0 %v457
      %v764 = vpop.f32.mrf.mxu0
      %v765 = vadd.f32 0.0, %v764
      %v766 = vpop.f32.mrf.mxu0
      %767 = vmatprep.mubr.f32.mxu0 0.0
      %768 = vmatmul.mubr.f32.gmra.mxu0 %v460
      %v769 = vpop.f32.mrf.mxu0
      %v770 = vadd.f32 0.0, %v769
      %v771 = vpop.f32.mrf.mxu0
      %772 = vmatprep.mubr.f32.mxu0 0.0
      %773 = vmatmul.mubr.f32.gmra.mxu0 %v463
      %v774 = vpop.f32.mrf.mxu0
      %v775 = vadd.f32 0.0, %v774
      %v776 = vpop.f32.mrf.mxu0
      %777 = vmatprep.mubr.f32.mxu0 0.0
      %778 = vmatmul.mubr.f32.gmra.mxu0 %v466
      %v779 = vpop.f32.mrf.mxu0
      %v780 = vadd.f32 0.0, %v779
      %v781 = vpop.f32.mrf.mxu0
      %782 = vmatprep.mubr.f32.mxu0 0.0
      %783 = vmatmul.mubr.f32.gmra.mxu0 %v469
      %v784 = vpop.f32.mrf.mxu0
      %v785 = vadd.f32 0.0, %v784
      %v786 = vpop.f32.mrf.mxu0
      %787 = vmatprep.mubr.f32.mxu0 0.0
      %788 = vmatmul.mubr.f32.gmra.mxu0 %v472
      %v789 = vpop.f32.mrf.mxu0
      %v790 = vadd.f32 0.0, %v789
      %v791 = vpop.f32.mrf.mxu0
      %792 = vmatprep.mubr.f32.mxu0 0.0
      %793 = vmatmul.mubr.f32.gmra.mxu0 %v475
      %v794 = vpop.f32.mrf.mxu0
      %v795 = vadd.f32 0.0, %v794
      %v796 = vpop.f32.mrf.mxu0
      %797 = vmatprep.mubr.f32.mxu0 0.0
      %798 = vmatmul.mubr.f32.gmra.mxu0 %v478
      %v799 = vpop.f32.mrf.mxu0
      %v800 = vadd.f32 0.0, %v799
      %v801 = vpop.f32.mrf.mxu0
      %802 = vmatprep.mubr.f32.mxu0 0.0
      %803 = vmatmul.mubr.f32.gmra.mxu0 %v481
      %v804 = vpop.f32.mrf.mxu0
      %v805 = vadd.f32 0.0, %v804
      %v806 = vpop.f32.mrf.mxu0
      %807 = vmatprep.mubr.f32.mxu0 0.0
      %808 = vmatmul.mubr.f32.gmra.mxu0 %v484
      %v809 = vpop.f32.mrf.mxu0
      %v810 = vadd.f32 0.0, %v809
      %v811 = vpop.f32.mrf.mxu0
      %812 = vmatprep.mubr.f32.mxu0 0.0
      %813 = vmatmul.mubr.f32.gmra.mxu0 %v487
      %v814 = vpop.f32.mrf.mxu0
      %v815 = vadd.f32 0.0, %v814
      %v816 = vpop.f32.mrf.mxu0
      %817 = vmatprep.mubr.f32.mxu0 0.0
      %818 = vmatmul.mubr.f32.gmra.mxu0 %v490
      %v819 = vpop.f32.mrf.mxu0
      %v820 = vadd.f32 0.0, %v819
      %v821 = vpop.f32.mrf.mxu0
      %822 = vmatprep.mubr.f32.mxu0 0.0
      %823 = vmatmul.mubr.f32.gmra.mxu0 %v493
      %v824 = vpop.f32.mrf.mxu0
      %v825 = vadd.f32 0.0, %v824
      %v826 = vpop.f32.mrf.mxu0
      %827 = vmatprep.mubr.f32.mxu0 0.0
      %828 = vmatmul.mubr.f32.gmra.mxu0 %v496
      %v829 = vpop.f32.mrf.mxu0
      %v830 = vadd.f32 0.0, %v829
      %v831 = vpop.f32.mrf.mxu0
      %832 = vmatprep.mubr.f32.mxu0 0.0
      %833 = vmatmul.mubr.f32.gmra.mxu0 %v499
      %v834 = vpop.f32.mrf.mxu0
      %v835 = vadd.f32 0.0, %v834
      %v836 = vpop.f32.mrf.mxu0
      %837 = vmatprep.mubr.f32.mxu0 0.0
      %838 = vmatmul.mubr.f32.gmra.mxu0 %v502
      %v839 = vpop.f32.mrf.mxu0
      %v840 = vadd.f32 0.0, %v839
      %v841 = vpop.f32.mrf.mxu0
      %842 = vmatprep.mubr.f32.mxu0 0.0
      %843 = vmatmul.mubr.f32.gmra.mxu0 %v505
      %v844 = vpop.f32.mrf.mxu0
      %v845 = vadd.f32 0.0, %v844
      %v846 = vpop.f32.mrf.mxu0
      %847 = vmatprep.mubr.f32.mxu0 0.0
      %848 = vmatmul.mubr.f32.gmra.mxu0 %v508
      %v849 = vpop.f32.mrf.mxu0
      %v850 = vadd.f32 0.0, %v849
      %v851 = vpop.f32.mrf.mxu0
      %852 = vmatprep.mubr.f32.mxu0 0.0
      %853 = vmatmul.mubr.f32.gmra.mxu0 %v511
      %v854 = vpop.f32.mrf.mxu0
      %v855 = vadd.f32 0.0, %v854
      %v856 = vpop.f32.mrf.mxu0
      %857 = vmatprep.mubr.f32.mxu0 0.0
      %858 = vmatmul.mubr.f32.gmra.mxu0 %v514
      %v859 = vpop.f32.mrf.mxu0
      %v860 = vadd.f32 0.0, %v859
      %v861 = vpop.f32.mrf.mxu0
      %862 = vmatprep.mubr.f32.mxu0 0.0
      %863 = vmatmul.mubr.f32.gmra.mxu0 %v517
      %v864 = vpop.f32.mrf.mxu0
      %v865 = vadd.f32 0.0, %v864
      %v866 = vpop.f32.mrf.mxu0
      %867 = vmatprep.mubr.f32.mxu0 0.0
      %868 = vmatmul.mubr.f32.gmra.mxu0 %v520
      %v869 = vpop.f32.mrf.mxu0
      %v870 = vadd.f32 0.0, %v869
      %v871 = vpop.f32.mrf.mxu0
      %872 = vmatprep.mubr.f32.mxu0 0.0
      %873 = vmatmul.mubr.f32.gmra.mxu0 %v523
      %v874 = vpop.f32.mrf.mxu0
      %v875 = vadd.f32 0.0, %v874
      %v876 = vpop.f32.mrf.mxu0
      %877 = vmatprep.mubr.f32.mxu0 0.0
      %878 = vmatmul.mubr.f32.gmra.mxu0 %v526
      %v879 = vpop.f32.mrf.mxu0
      %v880 = vadd.f32 0.0, %v879
      %v881 = vpop.f32.mrf.mxu0
      %882 = vmatprep.mubr.f32.mxu0 0.0
      %883 = vmatmul.mubr.f32.gmra.mxu0 %v529
      %v884 = vpop.f32.mrf.mxu0
      %v885 = vadd.f32 0.0, %v884
      %v886 = vpop.f32.mrf.mxu0
      %887 = vmatprep.mubr.f32.mxu0 0.0
      %888 = vmatmul.mubr.f32.gmra.mxu0 %v532
      %v889 = vpop.f32.mrf.mxu0
      %v890 = vadd.f32 0.0, %v889
      %v891 = vpop.f32.mrf.mxu0
      %892 = vmatprep.mubr.f32.mxu0 0.0
      %893 = vmatmul.mubr.f32.gmra.mxu0 %v535
      %v894 = vpop.f32.mrf.mxu0
      %v895 = vadd.f32 0.0, %v894
      %v896 = vpop.f32.mrf.mxu0
      %897 = vmatprep.mubr.f32.mxu0 0.0
      %898 = vmatmul.mubr.f32.gmra.mxu0 %v538
      %v899 = vpop.f32.mrf.mxu0
      %v900 = vadd.f32 0.0, %v899
      %v901 = vpop.f32.mrf.mxu0
      %902 = vmatprep.mubr.f32.mxu0 0.0
      %903 = vmatmul.mubr.f32.gmra.mxu0 %v541
      %v904 = vpop.f32.mrf.mxu0
      %v905 = vadd.f32 0.0, %v904
      %v906 = vpop.f32.mrf.mxu0
      %907 = vmatprep.mubr.f32.mxu0 0.0
      %908 = vmatmul.mubr.f32.gmra.mxu0 %v544
      %v909 = vpop.f32.mrf.mxu0
      %v910 = vadd.f32 0.0, %v909
      %v911 = vpop.f32.mrf.mxu0
      %912 = vmatprep.mubr.f32.mxu0 0.0
      %913 = vmatmul.mubr.f32.gmra.mxu0 %v547
      %v914 = vpop.f32.mrf.mxu0
      %v915 = vadd.f32 0.0, %v914
      %v916 = vpop.f32.mrf.mxu0
      %917 = vmatprep.mubr.f32.mxu0 0.0
      %918 = vmatmul.mubr.f32.gmra.mxu0 %v550
      %v919 = vpop.f32.mrf.mxu0
      %v920 = vadd.f32 0.0, %v919
      %v921 = vpop.f32.mrf.mxu0
      %922 = vmatprep.mubr.f32.mxu0 0.0
      %923 = vmatmul.mubr.f32.gmra.mxu0 %v553
      %v924 = vpop.f32.mrf.mxu0
      %v925 = vadd.f32 0.0, %v924
      %v926 = vpop.f32.mrf.mxu0
      %927 = vmatprep.mubr.f32.mxu0 0.0
      %928 = vmatmul.mubr.f32.gmra.mxu0 %v556
      %v929 = vpop.f32.mrf.mxu0
      %v930 = vadd.f32 0.0, %v929
      %v931 = vpop.f32.mrf.mxu0
      %932 = vmatprep.mubr.f32.mxu0 0.0
      %933 = vmatmul.mubr.f32.gmra.mxu0 %v559
      %v934 = vpop.f32.mrf.mxu0
      %v935 = vadd.f32 0.0, %v934
      %v936 = vpop.f32.mrf.mxu0
      %937 = vmatprep.mubr.f32.mxu0 0.0
      %938 = vmatmul.mubr.f32.gmra.mxu0 %v562
      %v939 = vpop.f32.mrf.mxu0
      %v940 = vadd.f32 0.0, %v939
      %v941 = vpop.f32.mrf.mxu0
      %942 = vmatprep.mubr.f32.mxu0 0.0
      %943 = vmatmul.mubr.f32.gmra.mxu0 %v565
      %v944 = vpop.f32.mrf.mxu0
      %v945 = vadd.f32 0.0, %v944
      %v946 = vpop.f32.mrf.mxu0
      %947 = vmatprep.mubr.f32.mxu0 0.0
      %948 = vmatmul.mubr.f32.gmra.mxu0 %v568
      %v949 = vpop.f32.mrf.mxu0
      %v950 = vadd.f32 0.0, %v949
      %v951 = vpop.f32.mrf.mxu0
      %952 = vmatprep.mubr.f32.mxu0 0.0
      %953 = vmatmul.mubr.f32.gmra.mxu0 %v571
      %v954 = vpop.f32.mrf.mxu0
      %v955 = vadd.f32 0.0, %v954
      %v956 = vpop.f32.mrf.mxu0
      %957 = vdwg.mxu0
      %vm958 = vcmask 15360
      %v960 = vsel %vm958, %v314, 0
      %v963 = vsel %vm958, %v315, 0
      %v966 = vsel %vm958, %v316, 0
      %v969 = vsel %vm958, %v317, 0
      %v972 = vsel %vm958, %v318, 0
      %v975 = vsel %vm958, %v319, 0
      %v978 = vsel %vm958, %v320, 0
      %v981 = vsel %vm958, %v321, 0
      %v984 = vsel %vm958, %v322, 0
      %v987 = vsel %vm958, %v323, 0
      %v990 = vsel %vm958, %v324, 0
      %v993 = vsel %vm958, %v325, 0
      %v996 = vsel %vm958, %v326, 0
      %v999 = vsel %vm958, %v327, 0
      %v1002 = vsel %vm958, %v328, 0
      %v1005 = vsel %vm958, %v329, 0
      %v1008 = vsel %vm958, %v330, 0
      %v1011 = vsel %vm958, %v331, 0
      %v1014 = vsel %vm958, %v332, 0
      %v1017 = vsel %vm958, %v333, 0
      %v1020 = vsel %vm958, %v334, 0
      %v1023 = vsel %vm958, %v335, 0
      %v1026 = vsel %vm958, %v336, 0
      %v1029 = vsel %vm958, %v337, 0
      %v1032 = vsel %vm958, %v338, 0
      %v1035 = vsel %vm958, %v339, 0
      %v1038 = vsel %vm958, %v340, 0
      %v1041 = vsel %vm958, %v341, 0
      %v1044 = vsel %vm958, %v342, 0
      %v1047 = vsel %vm958, %v343, 0
      %v1050 = vsel %vm958, %v344, 0
      %v1053 = vsel %vm958, %v345, 0
      %v1056 = vsel %vm958, %v346, 0
      %v1059 = vsel %vm958, %v347, 0
      %v1062 = vsel %vm958, %v348, 0
      %v1065 = vsel %vm958, %v349, 0
      %v1068 = vsel %vm958, %v350, 0
      %v1071 = vsel %vm958, %v351, 0
      %v1074 = vsel %vm958, %v352, 0
      %v1077 = vsel %vm958, %v353, 0
      %v1080 = vsel %vm958, %v354, 0
      %v1083 = vsel %vm958, %v355, 0
      %v1086 = vsel %vm958, %v356, 0
      %v1089 = vsel %vm958, %v357, 0
      %v1092 = vsel %vm958, %v358, 0
      %v1095 = vsel %vm958, %v359, 0
      %v1098 = vsel %vm958, %v360, 0
      %v1101 = vsel %vm958, %v361, 0
      %v1104 = vsel %vm958, %v362, 0
      %v1107 = vsel %vm958, %v363, 0
      %v1110 = vsel %vm958, %v364, 0
      %v1113 = vsel %vm958, %v365, 0
      %v1116 = vsel %vm958, %v366, 0
      %v1119 = vsel %vm958, %v367, 0
      %v1122 = vsel %vm958, %v368, 0
      %v1125 = vsel %vm958, %v369, 0
      %v1128 = vsel %vm958, %v370, 0
      %v1131 = vsel %vm958, %v371, 0
      %v1134 = vsel %vm958, %v372, 0
      %v1137 = vsel %vm958, %v373, 0
      %v1140 = vsel %vm958, %v374, 0
      %v1143 = vsel %vm958, %v375, 0
      %v1146 = vsel %vm958, %v376, 0
      %v1149 = vsel %vm958, %v377, 0
      %vm1151 = vcmask 1041408
      %v1153 = vsel %vm1151, %v378, 0
      %1155 = vmatprep.subr.mxu0 0.0
      %1156 = vmatpush1.msra.mxu0 0.0
      %1157 = vmatprep.subr.mxu0 0.0
      %1158 = vmatpush1.msra.mxu0 0.0
      %1159 = vmatprep.subr.mxu0 0.0
      %1160 = vmatpush1.msra.mxu0 0.0
      %1161 = vmatprep.subr.mxu0 0.0
      %1162 = vmatpush1.msra.mxu0 0.0
      %1163 = vmatprep.subr.mxu0 0.0
      %1164 = vmatpush1.msra.mxu0 0.0
      %1165 = vmatprep.subr.mxu0 0.0
      %1166 = vmatpush1.msra.mxu0 0.0
      %1167 = vmatprep.subr.mxu0 0.0
      %1168 = vmatpush1.msra.mxu0 0.0
      %1169 = vmatprep.subr.mxu0 0.0
      %1170 = vmatpush1.msra.mxu0 0.0
      %1171 = vmatprep.subr.mxu0 0.0
      %1172 = vmatpush1.msra.mxu0 0.0
      %1173 = vmatprep.subr.mxu0 0.0
      %1174 = vmatpush1.msra.mxu0 0.0
      %1175 = vmatprep.subr.mxu0 0.0
      %1176 = vmatpush1.msra.mxu0 0.0
      %1177 = vmatprep.subr.mxu0 0.0
      %1178 = vmatpush1.msra.mxu0 0.0
      %1179 = vmatprep.subr.mxu0 0.0
      %1180 = vmatpush1.msra.mxu0 0.0
      %1181 = vmatprep.subr.mxu0 0.0
      %1182 = vmatpush1.msra.mxu0 0.0
      %1183 = vmatprep.subr.mxu0 0.0
      %1184 = vmatpush1.msra.mxu0 0.0
      %1185 = vmatprep.subr.mxu0 0.0
      %1186 = vmatpush1.msra.mxu0 %v1153
      %1187 = vmatprep.subr.mxu0 0.0
      %1188 = vmatpush2.msra.mxu0 0.0
      %1189 = vmatprep.subr.mxu0 0.0
      %1190 = vmatpush2.msra.mxu0 0.0
      %1191 = vmatprep.subr.mxu0 0.0
      %1192 = vmatpush2.msra.mxu0 0.0
      %1193 = vmatprep.subr.mxu0 0.0
      %1194 = vmatpush2.msra.mxu0 0.0
      %1195 = vmatprep.subr.mxu0 0.0
      %1196 = vmatpush2.msra.mxu0 0.0
      %1197 = vmatprep.subr.mxu0 0.0
      %1198 = vmatpush2.msra.mxu0 0.0
      %1199 = vmatprep.subr.mxu0 0.0
      %1200 = vmatpush2.msra.mxu0 0.0
      %1201 = vmatprep.subr.mxu0 0.0
      %1202 = vmatpush2.msra.mxu0 0.0
      %1203 = vmatprep.subr.mxu0 0.0
      %1204 = vmatpush2.msra.mxu0 0.0
      %1205 = vmatprep.subr.mxu0 0.0
      %1206 = vmatpush2.msra.mxu0 0.0
      %1207 = vmatprep.subr.mxu0 0.0
      %1208 = vmatpush2.msra.mxu0 0.0
      %1209 = vmatprep.subr.mxu0 0.0
      %1210 = vmatpush2.msra.mxu0 0.0
      %1211 = vmatprep.subr.mxu0 0.0
      %1212 = vmatpush2.msra.mxu0 0.0
      %1213 = vmatprep.subr.mxu0 0.0
      %1214 = vmatpush2.msra.mxu0 0.0
      %1215 = vmatprep.subr.mxu0 0.0
      %1216 = vmatpush2.msra.mxu0 0.0
      %1217 = vmatprep.subr.mxu0 0.0
      %1218 = vmatpush2.msra.mxu0 0.0
      %1219 = vmatprep.mubr.f32.mxu0 0.0
      %1220 = vmatmul.mubr.f32.gmra.mxu0 %v960
      %v1221 = vpop.f32.mrf.mxu0
      %v1222 = vadd.f32 %v640, %v1221
      %v1223 = vpop.f32.mrf.mxu0
      %1224 = vmatprep.mubr.f32.mxu0 0.0
      %1225 = vmatmul.mubr.f32.gmra.mxu0 %v963
      %v1226 = vpop.f32.mrf.mxu0
      %v1227 = vadd.f32 %v645, %v1226
      %v1228 = vpop.f32.mrf.mxu0
      %1229 = vmatprep.mubr.f32.mxu0 0.0
      %1230 = vmatmul.mubr.f32.gmra.mxu0 %v966
      %v1231 = vpop.f32.mrf.mxu0
      %v1232 = vadd.f32 %v650, %v1231
      %v1233 = vpop.f32.mrf.mxu0
      %1234 = vmatprep.mubr.f32.mxu0 0.0
      %1235 = vmatmul.mubr.f32.gmra.mxu0 %v969
      %v1236 = vpop.f32.mrf.mxu0
      %v1237 = vadd.f32 %v655, %v1236
      %v1238 = vpop.f32.mrf.mxu0
      %1239 = vmatprep.mubr.f32.mxu0 0.0
      %1240 = vmatmul.mubr.f32.gmra.mxu0 %v972
      %v1241 = vpop.f32.mrf.mxu0
      %v1242 = vadd.f32 %v660, %v1241
      %v1243 = vpop.f32.mrf.mxu0
      %1244 = vmatprep.mubr.f32.mxu0 0.0
      %1245 = vmatmul.mubr.f32.gmra.mxu0 %v975
      %v1246 = vpop.f32.mrf.mxu0
      %v1247 = vadd.f32 %v665, %v1246
      %v1248 = vpop.f32.mrf.mxu0
      %1249 = vmatprep.mubr.f32.mxu0 0.0
      %1250 = vmatmul.mubr.f32.gmra.mxu0 %v978
      %v1251 = vpop.f32.mrf.mxu0
      %v1252 = vadd.f32 %v670, %v1251
      %v1253 = vpop.f32.mrf.mxu0
      %1254 = vmatprep.mubr.f32.mxu0 0.0
      %1255 = vmatmul.mubr.f32.gmra.mxu0 %v981
      %v1256 = vpop.f32.mrf.mxu0
      %v1257 = vadd.f32 %v675, %v1256
      %v1258 = vpop.f32.mrf.mxu0
      %1259 = vmatprep.mubr.f32.mxu0 0.0
      %1260 = vmatmul.mubr.f32.gmra.mxu0 %v984
      %v1261 = vpop.f32.mrf.mxu0
      %v1262 = vadd.f32 %v680, %v1261
      %v1263 = vpop.f32.mrf.mxu0
      %1264 = vmatprep.mubr.f32.mxu0 0.0
      %1265 = vmatmul.mubr.f32.gmra.mxu0 %v987
      %v1266 = vpop.f32.mrf.mxu0
      %v1267 = vadd.f32 %v685, %v1266
      %v1268 = vpop.f32.mrf.mxu0
      %1269 = vmatprep.mubr.f32.mxu0 0.0
      %1270 = vmatmul.mubr.f32.gmra.mxu0 %v990
      %v1271 = vpop.f32.mrf.mxu0
      %v1272 = vadd.f32 %v690, %v1271
      %v1273 = vpop.f32.mrf.mxu0
      %1274 = vmatprep.mubr.f32.mxu0 0.0
      %1275 = vmatmul.mubr.f32.gmra.mxu0 %v993
      %v1276 = vpop.f32.mrf.mxu0
      %v1277 = vadd.f32 %v695, %v1276
      %v1278 = vpop.f32.mrf.mxu0
      %1279 = vmatprep.mubr.f32.mxu0 0.0
      %1280 = vmatmul.mubr.f32.gmra.mxu0 %v996
      %v1281 = vpop.f32.mrf.mxu0
      %v1282 = vadd.f32 %v700, %v1281
      %v1283 = vpop.f32.mrf.mxu0
      %1284 = vmatprep.mubr.f32.mxu0 0.0
      %1285 = vmatmul.mubr.f32.gmra.mxu0 %v999
      %v1286 = vpop.f32.mrf.mxu0
      %v1287 = vadd.f32 %v705, %v1286
      %v1288 = vpop.f32.mrf.mxu0
      %1289 = vmatprep.mubr.f32.mxu0 0.0
      %1290 = vmatmul.mubr.f32.gmra.mxu0 %v1002
      %v1291 = vpop.f32.mrf.mxu0
      %v1292 = vadd.f32 %v710, %v1291
      %v1293 = vpop.f32.mrf.mxu0
      %1294 = vmatprep.mubr.f32.mxu0 0.0
      %1295 = vmatmul.mubr.f32.gmra.mxu0 %v1005
      %v1296 = vpop.f32.mrf.mxu0
      %v1297 = vadd.f32 %v715, %v1296
      %v1298 = vpop.f32.mrf.mxu0
      %1299 = vmatprep.mubr.f32.mxu0 0.0
      %1300 = vmatmul.mubr.f32.gmra.mxu0 %v1008
      %v1301 = vpop.f32.mrf.mxu0
      %v1302 = vadd.f32 %v720, %v1301
      %v1303 = vpop.f32.mrf.mxu0
      %1304 = vmatprep.mubr.f32.mxu0 0.0
      %1305 = vmatmul.mubr.f32.gmra.mxu0 %v1011
      %v1306 = vpop.f32.mrf.mxu0
      %v1307 = vadd.f32 %v725, %v1306
      %v1308 = vpop.f32.mrf.mxu0
      %1309 = vmatprep.mubr.f32.mxu0 0.0
      %1310 = vmatmul.mubr.f32.gmra.mxu0 %v1014
      %v1311 = vpop.f32.mrf.mxu0
      %v1312 = vadd.f32 %v730, %v1311
      %v1313 = vpop.f32.mrf.mxu0
      %1314 = vmatprep.mubr.f32.mxu0 0.0
      %1315 = vmatmul.mubr.f32.gmra.mxu0 %v1017
      %v1316 = vpop.f32.mrf.mxu0
      %v1317 = vadd.f32 %v735, %v1316
      %v1318 = vpop.f32.mrf.mxu0
      %1319 = vmatprep.mubr.f32.mxu0 0.0
      %1320 = vmatmul.mubr.f32.gmra.mxu0 %v1020
      %v1321 = vpop.f32.mrf.mxu0
      %v1322 = vadd.f32 %v740, %v1321
      %v1323 = vpop.f32.mrf.mxu0
      %1324 = vmatprep.mubr.f32.mxu0 0.0
      %1325 = vmatmul.mubr.f32.gmra.mxu0 %v1023
      %v1326 = vpop.f32.mrf.mxu0
      %v1327 = vadd.f32 %v745, %v1326
      %v1328 = vpop.f32.mrf.mxu0
      %1329 = vmatprep.mubr.f32.mxu0 0.0
      %1330 = vmatmul.mubr.f32.gmra.mxu0 %v1026
      %v1331 = vpop.f32.mrf.mxu0
      %v1332 = vadd.f32 %v750, %v1331
      %v1333 = vpop.f32.mrf.mxu0
      %1334 = vmatprep.mubr.f32.mxu0 0.0
      %1335 = vmatmul.mubr.f32.gmra.mxu0 %v1029
      %v1336 = vpop.f32.mrf.mxu0
      %v1337 = vadd.f32 %v755, %v1336
      %v1338 = vpop.f32.mrf.mxu0
      %1339 = vmatprep.mubr.f32.mxu0 0.0
      %1340 = vmatmul.mubr.f32.gmra.mxu0 %v1032
      %v1341 = vpop.f32.mrf.mxu0
      %v1342 = vadd.f32 %v760, %v1341
      %v1343 = vpop.f32.mrf.mxu0
      %1344 = vmatprep.mubr.f32.mxu0 0.0
      %1345 = vmatmul.mubr.f32.gmra.mxu0 %v1035
      %v1346 = vpop.f32.mrf.mxu0
      %v1347 = vadd.f32 %v765, %v1346
      %v1348 = vpop.f32.mrf.mxu0
      %1349 = vmatprep.mubr.f32.mxu0 0.0
      %1350 = vmatmul.mubr.f32.gmra.mxu0 %v1038
      %v1351 = vpop.f32.mrf.mxu0
      %v1352 = vadd.f32 %v770, %v1351
      %v1353 = vpop.f32.mrf.mxu0
      %1354 = vmatprep.mubr.f32.mxu0 0.0
      %1355 = vmatmul.mubr.f32.gmra.mxu0 %v1041
      %v1356 = vpop.f32.mrf.mxu0
      %v1357 = vadd.f32 %v775, %v1356
      %v1358 = vpop.f32.mrf.mxu0
      %1359 = vmatprep.mubr.f32.mxu0 0.0
      %1360 = vmatmul.mubr.f32.gmra.mxu0 %v1044
      %v1361 = vpop.f32.mrf.mxu0
      %v1362 = vadd.f32 %v780, %v1361
      %v1363 = vpop.f32.mrf.mxu0
      %1364 = vmatprep.mubr.f32.mxu0 0.0
      %1365 = vmatmul.mubr.f32.gmra.mxu0 %v1047
      %v1366 = vpop.f32.mrf.mxu0
      %v1367 = vadd.f32 %v785, %v1366
      %v1368 = vpop.f32.mrf.mxu0
      %1369 = vmatprep.mubr.f32.mxu0 0.0
      %1370 = vmatmul.mubr.f32.gmra.mxu0 %v1050
      %v1371 = vpop.f32.mrf.mxu0
      %v1372 = vadd.f32 %v790, %v1371
      %v1373 = vpop.f32.mrf.mxu0
      %1374 = vmatprep.mubr.f32.mxu0 0.0
      %1375 = vmatmul.mubr.f32.gmra.mxu0 %v1053
      %v1376 = vpop.f32.mrf.mxu0
      %v1377 = vadd.f32 %v795, %v1376
      %v1378 = vpop.f32.mrf.mxu0
      %1379 = vmatprep.mubr.f32.mxu0 0.0
      %1380 = vmatmul.mubr.f32.gmra.mxu0 %v1056
      %v1381 = vpop.f32.mrf.mxu0
      %v1382 = vadd.f32 %v800, %v1381
      %v1383 = vpop.f32.mrf.mxu0
      %1384 = vmatprep.mubr.f32.mxu0 0.0
      %1385 = vmatmul.mubr.f32.gmra.mxu0 %v1059
      %v1386 = vpop.f32.mrf.mxu0
      %v1387 = vadd.f32 %v805, %v1386
      %v1388 = vpop.f32.mrf.mxu0
      %1389 = vmatprep.mubr.f32.mxu0 0.0
      %1390 = vmatmul.mubr.f32.gmra.mxu0 %v1062
      %v1391 = vpop.f32.mrf.mxu0
      %v1392 = vadd.f32 %v810, %v1391
      %v1393 = vpop.f32.mrf.mxu0
      %1394 = vmatprep.mubr.f32.mxu0 0.0
      %1395 = vmatmul.mubr.f32.gmra.mxu0 %v1065
      %v1396 = vpop.f32.mrf.mxu0
      %v1397 = vadd.f32 %v815, %v1396
      %v1398 = vpop.f32.mrf.mxu0
      %1399 = vmatprep.mubr.f32.mxu0 0.0
      %1400 = vmatmul.mubr.f32.gmra.mxu0 %v1068
      %v1401 = vpop.f32.mrf.mxu0
      %v1402 = vadd.f32 %v820, %v1401
      %v1403 = vpop.f32.mrf.mxu0
      %1404 = vmatprep.mubr.f32.mxu0 0.0
      %1405 = vmatmul.mubr.f32.gmra.mxu0 %v1071
      %v1406 = vpop.f32.mrf.mxu0
      %v1407 = vadd.f32 %v825, %v1406
      %v1408 = vpop.f32.mrf.mxu0
      %1409 = vmatprep.mubr.f32.mxu0 0.0
      %1410 = vmatmul.mubr.f32.gmra.mxu0 %v1074
      %v1411 = vpop.f32.mrf.mxu0
      %v1412 = vadd.f32 %v830, %v1411
      %v1413 = vpop.f32.mrf.mxu0
      %1414 = vmatprep.mubr.f32.mxu0 0.0
      %1415 = vmatmul.mubr.f32.gmra.mxu0 %v1077
      %v1416 = vpop.f32.mrf.mxu0
      %v1417 = vadd.f32 %v835, %v1416
      %v1418 = vpop.f32.mrf.mxu0
      %1419 = vmatprep.mubr.f32.mxu0 0.0
      %1420 = vmatmul.mubr.f32.gmra.mxu0 %v1080
      %v1421 = vpop.f32.mrf.mxu0
      %v1422 = vadd.f32 %v840, %v1421
      %v1423 = vpop.f32.mrf.mxu0
      %1424 = vmatprep.mubr.f32.mxu0 0.0
      %1425 = vmatmul.mubr.f32.gmra.mxu0 %v1083
      %v1426 = vpop.f32.mrf.mxu0
      %v1427 = vadd.f32 %v845, %v1426
      %v1428 = vpop.f32.mrf.mxu0
      %1429 = vmatprep.mubr.f32.mxu0 0.0
      %1430 = vmatmul.mubr.f32.gmra.mxu0 %v1086
      %v1431 = vpop.f32.mrf.mxu0
      %v1432 = vadd.f32 %v850, %v1431
      %v1433 = vpop.f32.mrf.mxu0
      %1434 = vmatprep.mubr.f32.mxu0 0.0
      %1435 = vmatmul.mubr.f32.gmra.mxu0 %v1089
      %v1436 = vpop.f32.mrf.mxu0
      %v1437 = vadd.f32 %v855, %v1436
      %v1438 = vpop.f32.mrf.mxu0
      %1439 = vmatprep.mubr.f32.mxu0 0.0
      %1440 = vmatmul.mubr.f32.gmra.mxu0 %v1092
      %v1441 = vpop.f32.mrf.mxu0
      %v1442 = vadd.f32 %v860, %v1441
      %v1443 = vpop.f32.mrf.mxu0
      %1444 = vmatprep.mubr.f32.mxu0 0.0
      %1445 = vmatmul.mubr.f32.gmra.mxu0 %v1095
      %v1446 = vpop.f32.mrf.mxu0
      %v1447 = vadd.f32 %v865, %v1446
      %v1448 = vpop.f32.mrf.mxu0
      %1449 = vmatprep.mubr.f32.mxu0 0.0
      %1450 = vmatmul.mubr.f32.gmra.mxu0 %v1098
      %v1451 = vpop.f32.mrf.mxu0
      %v1452 = vadd.f32 %v870, %v1451
      %v1453 = vpop.f32.mrf.mxu0
      %1454 = vmatprep.mubr.f32.mxu0 0.0
      %1455 = vmatmul.mubr.f32.gmra.mxu0 %v1101
      %v1456 = vpop.f32.mrf.mxu0
      %v1457 = vadd.f32 %v875, %v1456
      %v1458 = vpop.f32.mrf.mxu0
      %1459 = vmatprep.mubr.f32.mxu0 0.0
      %1460 = vmatmul.mubr.f32.gmra.mxu0 %v1104
      %v1461 = vpop.f32.mrf.mxu0
      %v1462 = vadd.f32 %v880, %v1461
      %v1463 = vpop.f32.mrf.mxu0
      %1464 = vmatprep.mubr.f32.mxu0 0.0
      %1465 = vmatmul.mubr.f32.gmra.mxu0 %v1107
      %v1466 = vpop.f32.mrf.mxu0
      %v1467 = vadd.f32 %v885, %v1466
      %v1468 = vpop.f32.mrf.mxu0
      %1469 = vmatprep.mubr.f32.mxu0 0.0
      %1470 = vmatmul.mubr.f32.gmra.mxu0 %v1110
      %v1471 = vpop.f32.mrf.mxu0
      %v1472 = vadd.f32 %v890, %v1471
      %v1473 = vpop.f32.mrf.mxu0
      %1474 = vmatprep.mubr.f32.mxu0 0.0
      %1475 = vmatmul.mubr.f32.gmra.mxu0 %v1113
      %v1476 = vpop.f32.mrf.mxu0
      %v1477 = vadd.f32 %v895, %v1476
      %v1478 = vpop.f32.mrf.mxu0
      %1479 = vmatprep.mubr.f32.mxu0 0.0
      %1480 = vmatmul.mubr.f32.gmra.mxu0 %v1116
      %v1481 = vpop.f32.mrf.mxu0
      %v1482 = vadd.f32 %v900, %v1481
      %v1483 = vpop.f32.mrf.mxu0
      %1484 = vmatprep.mubr.f32.mxu0 0.0
      %1485 = vmatmul.mubr.f32.gmra.mxu0 %v1119
      %v1486 = vpop.f32.mrf.mxu0
      %v1487 = vadd.f32 %v905, %v1486
      %v1488 = vpop.f32.mrf.mxu0
      %1489 = vmatprep.mubr.f32.mxu0 0.0
      %1490 = vmatmul.mubr.f32.gmra.mxu0 %v1122
      %v1491 = vpop.f32.mrf.mxu0
      %v1492 = vadd.f32 %v910, %v1491
      %v1493 = vpop.f32.mrf.mxu0
      %1494 = vmatprep.mubr.f32.mxu0 0.0
      %1495 = vmatmul.mubr.f32.gmra.mxu0 %v1125
      %v1496 = vpop.f32.mrf.mxu0
      %v1497 = vadd.f32 %v915, %v1496
      %v1498 = vpop.f32.mrf.mxu0
      %1499 = vmatprep.mubr.f32.mxu0 0.0
      %1500 = vmatmul.mubr.f32.gmra.mxu0 %v1128
      %v1501 = vpop.f32.mrf.mxu0
      %v1502 = vadd.f32 %v920, %v1501
      %v1503 = vpop.f32.mrf.mxu0
      %1504 = vmatprep.mubr.f32.mxu0 0.0
      %1505 = vmatmul.mubr.f32.gmra.mxu0 %v1131
      %v1506 = vpop.f32.mrf.mxu0
      %v1507 = vadd.f32 %v925, %v1506
      %v1508 = vpop.f32.mrf.mxu0
      %1509 = vmatprep.mubr.f32.mxu0 0.0
      %1510 = vmatmul.mubr.f32.gmra.mxu0 %v1134
      %v1511 = vpop.f32.mrf.mxu0
      %v1512 = vadd.f32 %v930, %v1511
      %v1513 = vpop.f32.mrf.mxu0
      %1514 = vmatprep.mubr.f32.mxu0 0.0
      %1515 = vmatmul.mubr.f32.gmra.mxu0 %v1137
      %v1516 = vpop.f32.mrf.mxu0
      %v1517 = vadd.f32 %v935, %v1516
      %v1518 = vpop.f32.mrf.mxu0
      %1519 = vmatprep.mubr.f32.mxu0 0.0
      %1520 = vmatmul.mubr.f32.gmra.mxu0 %v1140
      %v1521 = vpop.f32.mrf.mxu0
      %v1522 = vadd.f32 %v940, %v1521
      %v1523 = vpop.f32.mrf.mxu0
      %1524 = vmatprep.mubr.f32.mxu0 0.0
      %1525 = vmatmul.mubr.f32.gmra.mxu0 %v1143
      %v1526 = vpop.f32.mrf.mxu0
      %v1527 = vadd.f32 %v945, %v1526
      %v1528 = vpop.f32.mrf.mxu0
      %1529 = vmatprep.mubr.f32.mxu0 0.0
      %1530 = vmatmul.mubr.f32.gmra.mxu0 %v1146
      %v1531 = vpop.f32.mrf.mxu0
      %v1532 = vadd.f32 %v950, %v1531
      %v1533 = vpop.f32.mrf.mxu0
      %1534 = vmatprep.mubr.f32.mxu0 0.0
      %1535 = vmatmul.mubr.f32.gmra.mxu0 %v1149
      %v1536 = vpop.f32.mrf.mxu0
      %v1537 = vadd.f32 %v955, %v1536
      %v1538 = vpop.f32.mrf.mxu0
      %1539 = vdwg.mxu0
      %v1540 = vld [vmem:[%s4] sm:$0x1]
      %v1542 = vlaneseq
      %v1543 = vshrl.u32 %v1542, 7
      %v1544 = vsub.s32 0, %v1543
      %v1545 = vrot.slane %v1540, %v1544
      %v1547 = vadd.f32 %v1222, %v1545
      %v1548 = vadd.f32 %v1227, %v1545
      %v1549 = vadd.f32 %v1232, %v1545
      %v1550 = vadd.f32 %v1237, %v1545
      %v1551 = vadd.f32 %v1242, %v1545
      %v1552 = vadd.f32 %v1247, %v1545
      %v1553 = vadd.f32 %v1252, %v1545
      %v1554 = vadd.f32 %v1257, %v1545
      %v1555 = vadd.f32 %v1262, %v1545
      %v1556 = vadd.f32 %v1267, %v1545
      %v1557 = vadd.f32 %v1272, %v1545
      %v1558 = vadd.f32 %v1277, %v1545
      %v1559 = vadd.f32 %v1282, %v1545
      %v1560 = vadd.f32 %v1287, %v1545
      %v1561 = vadd.f32 %v1292, %v1545
      %v1562 = vadd.f32 %v1297, %v1545
      %v1563 = vadd.f32 %v1302, %v1545
      %v1564 = vadd.f32 %v1307, %v1545
      %v1565 = vadd.f32 %v1312, %v1545
      %v1566 = vadd.f32 %v1317, %v1545
      %v1567 = vadd.f32 %v1322, %v1545
      %v1568 = vadd.f32 %v1327, %v1545
      %v1569 = vadd.f32 %v1332, %v1545
      %v1570 = vadd.f32 %v1337, %v1545
      %v1571 = vadd.f32 %v1342, %v1545
      %v1572 = vadd.f32 %v1347, %v1545
      %v1573 = vadd.f32 %v1352, %v1545
      %v1574 = vadd.f32 %v1357, %v1545
      %v1575 = vadd.f32 %v1362, %v1545
      %v1576 = vadd.f32 %v1367, %v1545
      %v1577 = vadd.f32 %v1372, %v1545
      %v1578 = vadd.f32 %v1377, %v1545
      %v1579 = vadd.f32 %v1382, %v1545
      %v1580 = vadd.f32 %v1387, %v1545
      %v1581 = vadd.f32 %v1392, %v1545
      %v1582 = vadd.f32 %v1397, %v1545
      %v1583 = vadd.f32 %v1402, %v1545
      %v1584 = vadd.f32 %v1407, %v1545
      %v1585 = vadd.f32 %v1412, %v1545
      %v1586 = vadd.f32 %v1417, %v1545
      %v1587 = vadd.f32 %v1422, %v1545
      %v1588 = vadd.f32 %v1427, %v1545
      %v1589 = vadd.f32 %v1432, %v1545
      %v1590 = vadd.f32 %v1437, %v1545
      %v1591 = vadd.f32 %v1442, %v1545
      %v1592 = vadd.f32 %v1447, %v1545
      %v1593 = vadd.f32 %v1452, %v1545
      %v1594 = vadd.f32 %v1457, %v1545
      %v1595 = vadd.f32 %v1462, %v1545
      %v1596 = vadd.f32 %v1467, %v1545
      %v1597 = vadd.f32 %v1472, %v1545
      %v1598 = vadd.f32 %v1477, %v1545
      %v1599 = vadd.f32 %v1482, %v1545
      %v1600 = vadd.f32 %v1487, %v1545
      %v1601 = vadd.f32 %v1492, %v1545
      %v1602 = vadd.f32 %v1497, %v1545
      %v1603 = vadd.f32 %v1502, %v1545
      %v1604 = vadd.f32 %v1507, %v1545
      %v1605 = vadd.f32 %v1512, %v1545
      %v1606 = vadd.f32 %v1517, %v1545
      %v1607 = vadd.f32 %v1522, %v1545
      %v1608 = vadd.f32 %v1527, %v1545
      %v1609 = vadd.f32 %v1532, %v1545
      %v1610 = vadd.f32 %v1537, %v1545
      %v1611 = vxor.u32 %v1547, 2147483648
      %v1612 = vxor.u32 %v1548, 2147483648
      %v1613 = vxor.u32 %v1549, 2147483648
      %v1614 = vxor.u32 %v1550, 2147483648
      %v1615 = vxor.u32 %v1551, 2147483648
      %v1616 = vxor.u32 %v1552, 2147483648
      %v1617 = vxor.u32 %v1553, 2147483648
      %v1618 = vxor.u32 %v1554, 2147483648
      %v1619 = vxor.u32 %v1555, 2147483648
      %v1620 = vxor.u32 %v1556, 2147483648
      %v1621 = vxor.u32 %v1557, 2147483648
      %v1622 = vxor.u32 %v1558, 2147483648
      %v1623 = vxor.u32 %v1559, 2147483648
      %v1624 = vxor.u32 %v1560, 2147483648
      %v1625 = vxor.u32 %v1561, 2147483648
      %v1626 = vxor.u32 %v1562, 2147483648
      %v1627 = vxor.u32 %v1563, 2147483648
      %v1628 = vxor.u32 %v1564, 2147483648
      %v1629 = vxor.u32 %v1565, 2147483648
      %v1630 = vxor.u32 %v1566, 2147483648
      %v1631 = vxor.u32 %v1567, 2147483648
      %v1632 = vxor.u32 %v1568, 2147483648
      %v1633 = vxor.u32 %v1569, 2147483648
      %v1634 = vxor.u32 %v1570, 2147483648
      %v1635 = vxor.u32 %v1571, 2147483648
      %v1636 = vxor.u32 %v1572, 2147483648
      %v1637 = vxor.u32 %v1573, 2147483648
      %v1638 = vxor.u32 %v1574, 2147483648
      %v1639 = vxor.u32 %v1575, 2147483648
      %v1640 = vxor.u32 %v1576, 2147483648
      %v1641 = vxor.u32 %v1577, 2147483648
      %v1642 = vxor.u32 %v1578, 2147483648
      %v1643 = vxor.u32 %v1579, 2147483648
      %v1644 = vxor.u32 %v1580, 2147483648
      %v1645 = vxor.u32 %v1581, 2147483648
      %v1646 = vxor.u32 %v1582, 2147483648
      %v1647 = vxor.u32 %v1583, 2147483648
      %v1648 = vxor.u32 %v1584, 2147483648
      %v1649 = vxor.u32 %v1585, 2147483648
      %v1650 = vxor.u32 %v1586, 2147483648
      %v1651 = vxor.u32 %v1587, 2147483648
      %v1652 = vxor.u32 %v1588, 2147483648
      %v1653 = vxor.u32 %v1589, 2147483648
      %v1654 = vxor.u32 %v1590, 2147483648
      %v1655 = vxor.u32 %v1591, 2147483648
      %v1656 = vxor.u32 %v1592, 2147483648
      %v1657 = vxor.u32 %v1593, 2147483648
      %v1658 = vxor.u32 %v1594, 2147483648
      %v1659 = vxor.u32 %v1595, 2147483648
      %v1660 = vxor.u32 %v1596, 2147483648
      %v1661 = vxor.u32 %v1597, 2147483648
      %v1662 = vxor.u32 %v1598, 2147483648
      %v1663 = vxor.u32 %v1599, 2147483648
      %v1664 = vxor.u32 %v1600, 2147483648
      %v1665 = vxor.u32 %v1601, 2147483648
      %v1666 = vxor.u32 %v1602, 2147483648
      %v1667 = vxor.u32 %v1603, 2147483648
      %v1668 = vxor.u32 %v1604, 2147483648
      %v1669 = vxor.u32 %v1605, 2147483648
      %v1670 = vxor.u32 %v1606, 2147483648
      %v1671 = vxor.u32 %v1607, 2147483648
      %v1672 = vxor.u32 %v1608, 2147483648
      %v1673 = vxor.u32 %v1609, 2147483648
      %v1674 = vxor.u32 %v1610, 2147483648
      %v1675 = vmul.f32 %v1611, 1.442695
      %v1676 = vpow.pop %v1675
      %v1677 = vmul.f32 %v1612, 1.442695
      %v1678 = vpow.pop %v1677
      %v1679 = vmul.f32 %v1613, 1.442695
      %v1680 = vpow.pop %v1679
      %v1681 = vmul.f32 %v1614, 1.442695
      %v1682 = vpow.pop %v1681
      %v1683 = vmul.f32 %v1615, 1.442695
      %v1684 = vpow.pop %v1683
      %v1685 = vmul.f32 %v1616, 1.442695
      %v1686 = vpow.pop %v1685
      %v1687 = vmul.f32 %v1617, 1.442695
      %v1688 = vpow.pop %v1687
      %v1689 = vmul.f32 %v1618, 1.442695
      %v1690 = vpow.pop %v1689
      %v1691 = vmul.f32 %v1619, 1.442695
      %v1692 = vpow.pop %v1691
      %v1693 = vmul.f32 %v1620, 1.442695
      %v1694 = vpow.pop %v1693
      %v1695 = vmul.f32 %v1621, 1.442695
      %v1696 = vpow.pop %v1695
      %v1697 = vmul.f32 %v1622, 1.442695
      %v1698 = vpow.pop %v1697
      %v1699 = vmul.f32 %v1623, 1.442695
      %v1700 = vpow.pop %v1699
      %v1701 = vmul.f32 %v1624, 1.442695
      %v1702 = vpow.pop %v1701
      %v1703 = vmul.f32 %v1625, 1.442695
      %v1704 = vpow.pop %v1703
      %v1705 = vmul.f32 %v1626, 1.442695
      %v1706 = vpow.pop %v1705
      %v1707 = vmul.f32 %v1627, 1.442695
      %v1708 = vpow.pop %v1707
      %v1709 = vmul.f32 %v1628, 1.442695
      %v1710 = vpow.pop %v1709
      %v1711 = vmul.f32 %v1629, 1.442695
      %v1712 = vpow.pop %v1711
      %v1713 = vmul.f32 %v1630, 1.442695
      %v1714 = vpow.pop %v1713
      %v1715 = vmul.f32 %v1631, 1.442695
      %v1716 = vpow.pop %v1715
      %v1717 = vmul.f32 %v1632, 1.442695
      %v1718 = vpow.pop %v1717
      %v1719 = vmul.f32 %v1633, 1.442695
      %v1720 = vpow.pop %v1719
      %v1721 = vmul.f32 %v1634, 1.442695
      %v1722 = vpow.pop %v1721
      %v1723 = vmul.f32 %v1635, 1.442695
      %v1724 = vpow.pop %v1723
      %v1725 = vmul.f32 %v1636, 1.442695
      %v1726 = vpow.pop %v1725
      %v1727 = vmul.f32 %v1637, 1.442695
      %v1728 = vpow.pop %v1727
      %v1729 = vmul.f32 %v1638, 1.442695
      %v1730 = vpow.pop %v1729
      %v1731 = vmul.f32 %v1639, 1.442695
      %v1732 = vpow.pop %v1731
      %v1733 = vmul.f32 %v1640, 1.442695
      %v1734 = vpow.pop %v1733
      %v1735 = vmul.f32 %v1641, 1.442695
      %v1736 = vpow.pop %v1735
      %v1737 = vmul.f32 %v1642, 1.442695
      %v1738 = vpow.pop %v1737
      %v1739 = vmul.f32 %v1643, 1.442695
      %v1740 = vpow.pop %v1739
      %v1741 = vmul.f32 %v1644, 1.442695
      %v1742 = vpow.pop %v1741
      %v1743 = vmul.f32 %v1645, 1.442695
      %v1744 = vpow.pop %v1743
      %v1745 = vmul.f32 %v1646, 1.442695
      %v1746 = vpow.pop %v1745
      %v1747 = vmul.f32 %v1647, 1.442695
      %v1748 = vpow.pop %v1747
      %v1749 = vmul.f32 %v1648, 1.442695
      %v1750 = vpow.pop %v1749
      %v1751 = vmul.f32 %v1649, 1.442695
      %v1752 = vpow.pop %v1751
      %v1753 = vmul.f32 %v1650, 1.442695
      %v1754 = vpow.pop %v1753
      %v1755 = vmul.f32 %v1651, 1.442695
      %v1756 = vpow.pop %v1755
      %v1757 = vmul.f32 %v1652, 1.442695
      %v1758 = vpow.pop %v1757
      %v1759 = vmul.f32 %v1653, 1.442695
      %v1760 = vpow.pop %v1759
      %v1761 = vmul.f32 %v1654, 1.442695
      %v1762 = vpow.pop %v1761
      %v1763 = vmul.f32 %v1655, 1.442695
      %v1764 = vpow.pop %v1763
      %v1765 = vmul.f32 %v1656, 1.442695
      %v1766 = vpow.pop %v1765
      %v1767 = vmul.f32 %v1657, 1.442695
      %v1768 = vpow.pop %v1767
      %v1769 = vmul.f32 %v1658, 1.442695
      %v1770 = vpow.pop %v1769
      %v1771 = vmul.f32 %v1659, 1.442695
      %v1772 = vpow.pop %v1771
      %v1773 = vmul.f32 %v1660, 1.442695
      %v1774 = vpow.pop %v1773
      %v1775 = vmul.f32 %v1661, 1.442695
      %v1776 = vpow.pop %v1775
      %v1777 = vmul.f32 %v1662, 1.442695
      %v1778 = vpow.pop %v1777
      %v1779 = vmul.f32 %v1663, 1.442695
      %v1780 = vpow.pop %v1779
      %v1781 = vmul.f32 %v1664, 1.442695
      %v1782 = vpow.pop %v1781
      %v1783 = vmul.f32 %v1665, 1.442695
      %v1784 = vpow.pop %v1783
      %v1785 = vmul.f32 %v1666, 1.442695
      %v1786 = vpow.pop %v1785
      %v1787 = vmul.f32 %v1667, 1.442695
      %v1788 = vpow.pop %v1787
      %v1789 = vmul.f32 %v1668, 1.442695
      %v1790 = vpow.pop %v1789
      %v1791 = vmul.f32 %v1669, 1.442695
      %v1792 = vpow.pop %v1791
      %v1793 = vmul.f32 %v1670, 1.442695
      %v1794 = vpow.pop %v1793
      %v1795 = vmul.f32 %v1671, 1.442695
      %v1796 = vpow.pop %v1795
      %v1797 = vmul.f32 %v1672, 1.442695
      %v1798 = vpow.pop %v1797
      %v1799 = vmul.f32 %v1673, 1.442695
      %v1800 = vpow.pop %v1799
      %v1801 = vmul.f32 %v1674, 1.442695
      %v1802 = vpow.pop %v1801
      %v1803 = vadd.f32 %v1676, 1.0
      %v1804 = vadd.f32 %v1678, 1.0
      %v1805 = vadd.f32 %v1680, 1.0
      %v1806 = vadd.f32 %v1682, 1.0
      %v1807 = vadd.f32 %v1684, 1.0
      %v1808 = vadd.f32 %v1686, 1.0
      %v1809 = vadd.f32 %v1688, 1.0
      %v1810 = vadd.f32 %v1690, 1.0
      %v1811 = vadd.f32 %v1692, 1.0
      %v1812 = vadd.f32 %v1694, 1.0
      %v1813 = vadd.f32 %v1696, 1.0
      %v1814 = vadd.f32 %v1698, 1.0
      %v1815 = vadd.f32 %v1700, 1.0
      %v1816 = vadd.f32 %v1702, 1.0
      %v1817 = vadd.f32 %v1704, 1.0
      %v1818 = vadd.f32 %v1706, 1.0
      %v1819 = vadd.f32 %v1708, 1.0
      %v1820 = vadd.f32 %v1710, 1.0
      %v1821 = vadd.f32 %v1712, 1.0
      %v1822 = vadd.f32 %v1714, 1.0
      %v1823 = vadd.f32 %v1716, 1.0
      %v1824 = vadd.f32 %v1718, 1.0
      %v1825 = vadd.f32 %v1720, 1.0
      %v1826 = vadd.f32 %v1722, 1.0
      %v1827 = vadd.f32 %v1724, 1.0
      %v1828 = vadd.f32 %v1726, 1.0
      %v1829 = vadd.f32 %v1728, 1.0
      %v1830 = vadd.f32 %v1730, 1.0
      %v1831 = vadd.f32 %v1732, 1.0
      %v1832 = vadd.f32 %v1734, 1.0
      %v1833 = vadd.f32 %v1736, 1.0
      %v1834 = vadd.f32 %v1738, 1.0
      %v1835 = vadd.f32 %v1740, 1.0
      %v1836 = vadd.f32 %v1742, 1.0
      %v1837 = vadd.f32 %v1744, 1.0
      %v1838 = vadd.f32 %v1746, 1.0
      %v1839 = vadd.f32 %v1748, 1.0
      %v1840 = vadd.f32 %v1750, 1.0
      %v1841 = vadd.f32 %v1752, 1.0
      %v1842 = vadd.f32 %v1754, 1.0
      %v1843 = vadd.f32 %v1756, 1.0
      %v1844 = vadd.f32 %v1758, 1.0
      %v1845 = vadd.f32 %v1760, 1.0
      %v1846 = vadd.f32 %v1762, 1.0
      %v1847 = vadd.f32 %v1764, 1.0
      %v1848 = vadd.f32 %v1766, 1.0
      %v1849 = vadd.f32 %v1768, 1.0
      %v1850 = vadd.f32 %v1770, 1.0
      %v1851 = vadd.f32 %v1772, 1.0
      %v1852 = vadd.f32 %v1774, 1.0
      %v1853 = vadd.f32 %v1776, 1.0
      %v1854 = vadd.f32 %v1778, 1.0
      %v1855 = vadd.f32 %v1780, 1.0
      %v1856 = vadd.f32 %v1782, 1.0
      %v1857 = vadd.f32 %v1784, 1.0
      %v1858 = vadd.f32 %v1786, 1.0
      %v1859 = vadd.f32 %v1788, 1.0
      %v1860 = vadd.f32 %v1790, 1.0
      %v1861 = vadd.f32 %v1792, 1.0
      %v1862 = vadd.f32 %v1794, 1.0
      %v1863 = vadd.f32 %v1796, 1.0
      %v1864 = vadd.f32 %v1798, 1.0
      %v1865 = vadd.f32 %v1800, 1.0
      %v1866 = vadd.f32 %v1802, 1.0
      %v1867 = vrcp.pop %v1803
      %v1868 = vmul.f32 1.0, %v1867
      %v1869 = vrcp.pop %v1804
      %v1870 = vmul.f32 1.0, %v1869
      %v1871 = vrcp.pop %v1805
      %v1872 = vmul.f32 1.0, %v1871
      %v1873 = vrcp.pop %v1806
      %v1874 = vmul.f32 1.0, %v1873
      %v1875 = vrcp.pop %v1807
      %v1876 = vmul.f32 1.0, %v1875
      %v1877 = vrcp.pop %v1808
      %v1878 = vmul.f32 1.0, %v1877
      %v1879 = vrcp.pop %v1809
      %v1880 = vmul.f32 1.0, %v1879
      %v1881 = vrcp.pop %v1810
      %v1882 = vmul.f32 1.0, %v1881
      %v1883 = vrcp.pop %v1811
      %v1884 = vmul.f32 1.0, %v1883
      %v1885 = vrcp.pop %v1812
      %v1886 = vmul.f32 1.0, %v1885
      %v1887 = vrcp.pop %v1813
      %v1888 = vmul.f32 1.0, %v1887
      %v1889 = vrcp.pop %v1814
      %v1890 = vmul.f32 1.0, %v1889
      %v1891 = vrcp.pop %v1815
      %v1892 = vmul.f32 1.0, %v1891
      %v1893 = vrcp.pop %v1816
      %v1894 = vmul.f32 1.0, %v1893
      %v1895 = vrcp.pop %v1817
      %v1896 = vmul.f32 1.0, %v1895
      %v1897 = vrcp.pop %v1818
      %v1898 = vmul.f32 1.0, %v1897
      %v1899 = vrcp.pop %v1819
      %v1900 = vmul.f32 1.0, %v1899
      %v1901 = vrcp.pop %v1820
      %v1902 = vmul.f32 1.0, %v1901
      %v1903 = vrcp.pop %v1821
      %v1904 = vmul.f32 1.0, %v1903
      %v1905 = vrcp.pop %v1822
      %v1906 = vmul.f32 1.0, %v1905
      %v1907 = vrcp.pop %v1823
      %v1908 = vmul.f32 1.0, %v1907
      %v1909 = vrcp.pop %v1824
      %v1910 = vmul.f32 1.0, %v1909
      %v1911 = vrcp.pop %v1825
      %v1912 = vmul.f32 1.0, %v1911
      %v1913 = vrcp.pop %v1826
      %v1914 = vmul.f32 1.0, %v1913
      %v1915 = vrcp.pop %v1827
      %v1916 = vmul.f32 1.0, %v1915
      %v1917 = vrcp.pop %v1828
      %v1918 = vmul.f32 1.0, %v1917
      %v1919 = vrcp.pop %v1829
      %v1920 = vmul.f32 1.0, %v1919
      %v1921 = vrcp.pop %v1830
      %v1922 = vmul.f32 1.0, %v1921
      %v1923 = vrcp.pop %v1831
      %v1924 = vmul.f32 1.0, %v1923
      %v1925 = vrcp.pop %v1832
      %v1926 = vmul.f32 1.0, %v1925
      %v1927 = vrcp.pop %v1833
      %v1928 = vmul.f32 1.0, %v1927
      %v1929 = vrcp.pop %v1834
      %v1930 = vmul.f32 1.0, %v1929
      %v1931 = vrcp.pop %v1835
      %v1932 = vmul.f32 1.0, %v1931
      %v1933 = vrcp.pop %v1836
      %v1934 = vmul.f32 1.0, %v1933
      %v1935 = vrcp.pop %v1837
      %v1936 = vmul.f32 1.0, %v1935
      %v1937 = vrcp.pop %v1838
      %v1938 = vmul.f32 1.0, %v1937
      %v1939 = vrcp.pop %v1839
      %v1940 = vmul.f32 1.0, %v1939
      %v1941 = vrcp.pop %v1840
      %v1942 = vmul.f32 1.0, %v1941
      %v1943 = vrcp.pop %v1841
      %v1944 = vmul.f32 1.0, %v1943
      %v1945 = vrcp.pop %v1842
      %v1946 = vmul.f32 1.0, %v1945
      %v1947 = vrcp.pop %v1843
      %v1948 = vmul.f32 1.0, %v1947
      %v1949 = vrcp.pop %v1844
      %v1950 = vmul.f32 1.0, %v1949
      %v1951 = vrcp.pop %v1845
      %v1952 = vmul.f32 1.0, %v1951
      %v1953 = vrcp.pop %v1846
      %v1954 = vmul.f32 1.0, %v1953
      %v1955 = vrcp.pop %v1847
      %v1956 = vmul.f32 1.0, %v1955
      %v1957 = vrcp.pop %v1848
      %v1958 = vmul.f32 1.0, %v1957
      %v1959 = vrcp.pop %v1849
      %v1960 = vmul.f32 1.0, %v1959
      %v1961 = vrcp.pop %v1850
      %v1962 = vmul.f32 1.0, %v1961
      %v1963 = vrcp.pop %v1851
      %v1964 = vmul.f32 1.0, %v1963
      %v1965 = vrcp.pop %v1852
      %v1966 = vmul.f32 1.0, %v1965
      %v1967 = vrcp.pop %v1853
      %v1968 = vmul.f32 1.0, %v1967
      %v1969 = vrcp.pop %v1854
      %v1970 = vmul.f32 1.0, %v1969
      %v1971 = vrcp.pop %v1855
      %v1972 = vmul.f32 1.0, %v1971
      %v1973 = vrcp.pop %v1856
      %v1974 = vmul.f32 1.0, %v1973
      %v1975 = vrcp.pop %v1857
      %v1976 = vmul.f32 1.0, %v1975
      %v1977 = vrcp.pop %v1858
      %v1978 = vmul.f32 1.0, %v1977
      %v1979 = vrcp.pop %v1859
      %v1980 = vmul.f32 1.0, %v1979
      %v1981 = vrcp.pop %v1860
      %v1982 = vmul.f32 1.0, %v1981
      %v1983 = vrcp.pop %v1861
      %v1984 = vmul.f32 1.0, %v1983
      %v1985 = vrcp.pop %v1862
      %v1986 = vmul.f32 1.0, %v1985
      %v1987 = vrcp.pop %v1863
      %v1988 = vmul.f32 1.0, %v1987
      %v1989 = vrcp.pop %v1864
      %v1990 = vmul.f32 1.0, %v1989
      %v1991 = vrcp.pop %v1865
      %v1992 = vmul.f32 1.0, %v1991
      %v1993 = vrcp.pop %v1866
      %v1994 = vmul.f32 1.0, %v1993
      %v1995 = vmul.f32 %v250, %v1868
      %v1996 = vmul.f32 %v251, %v1870
      %v1997 = vmul.f32 %v252, %v1872
      %v1998 = vmul.f32 %v253, %v1874
      %v1999 = vmul.f32 %v254, %v1876
      %v2000 = vmul.f32 %v255, %v1878
      %v2001 = vmul.f32 %v256, %v1880
      %v2002 = vmul.f32 %v257, %v1882
      %v2003 = vmul.f32 %v258, %v1884
      %v2004 = vmul.f32 %v259, %v1886
      %v2005 = vmul.f32 %v260, %v1888
      %v2006 = vmul.f32 %v261, %v1890
      %v2007 = vmul.f32 %v262, %v1892
      %v2008 = vmul.f32 %v263, %v1894
      %v2009 = vmul.f32 %v264, %v1896
      %v2010 = vmul.f32 %v265, %v1898
      %v2011 = vmul.f32 %v266, %v1900
      %v2012 = vmul.f32 %v267, %v1902
      %v2013 = vmul.f32 %v268, %v1904
      %v2014 = vmul.f32 %v269, %v1906
      %v2015 = vmul.f32 %v270, %v1908
      %v2016 = vmul.f32 %v271, %v1910
      %v2017 = vmul.f32 %v272, %v1912
      %v2018 = vmul.f32 %v273, %v1914
      %v2019 = vmul.f32 %v274, %v1916
      %v2020 = vmul.f32 %v275, %v1918
      %v2021 = vmul.f32 %v276, %v1920
      %v2022 = vmul.f32 %v277, %v1922
      %v2023 = vmul.f32 %v278, %v1924
      %v2024 = vmul.f32 %v279, %v1926
      %v2025 = vmul.f32 %v280, %v1928
      %v2026 = vmul.f32 %v281, %v1930
      %v2027 = vmul.f32 %v282, %v1932
      %v2028 = vmul.f32 %v283, %v1934
      %v2029 = vmul.f32 %v284, %v1936
      %v2030 = vmul.f32 %v285, %v1938
      %v2031 = vmul.f32 %v286, %v1940
      %v2032 = vmul.f32 %v287, %v1942
      %v2033 = vmul.f32 %v288, %v1944
      %v2034 = vmul.f32 %v289, %v1946
      %v2035 = vmul.f32 %v290, %v1948
      %v2036 = vmul.f32 %v291, %v1950
      %v2037 = vmul.f32 %v292, %v1952
      %v2038 = vmul.f32 %v293, %v1954
      %v2039 = vmul.f32 %v294, %v1956
      %v2040 = vmul.f32 %v295, %v1958
      %v2041 = vmul.f32 %v296, %v1960
      %v2042 = vmul.f32 %v297, %v1962
      %v2043 = vmul.f32 %v298, %v1964
      %v2044 = vmul.f32 %v299, %v1966
      %v2045 = vmul.f32 %v300, %v1968
      %v2046 = vmul.f32 %v301, %v1970
      %v2047 = vmul.f32 %v302, %v1972
      %v2048 = vmul.f32 %v303, %v1974
      %v2049 = vmul.f32 %v304, %v1976
      %v2050 = vmul.f32 %v305, %v1978
      %v2051 = vmul.f32 %v306, %v1980
      %v2052 = vmul.f32 %v307, %v1982
      %v2053 = vmul.f32 %v308, %v1984
      %v2054 = vmul.f32 %v309, %v1986
      %v2055 = vmul.f32 %v310, %v1988
      %v2056 = vmul.f32 %v311, %v1990
      %v2057 = vmul.f32 %v312, %v1992
      %v2058 = vmul.f32 %v313, %v1994
      %2059 = vst.msk [vmem:[%s248] sm:$0xff] %vm380, %v1995
      %2060 = vst.msk [vmem:[%s248 + $0x8] sm:$0xff] %vm380, %v1996
      %2061 = vst.msk [vmem:[%s248 + $0x10] sm:$0xff] %vm380, %v1997
      %2062 = vst.msk [vmem:[%s248 + $0x18] sm:$0xff] %vm380, %v1998
      %2063 = vst.msk [vmem:[%s248 + $0x20] sm:$0xff] %vm380, %v1999
      %2064 = vst.msk [vmem:[%s248 + $0x28] sm:$0xff] %vm380, %v2000
      %2065 = vst.msk [vmem:[%s248 + $0x30] sm:$0xff] %vm380, %v2001
      %2066 = vst.msk [vmem:[%s248 + $0x38] sm:$0xff] %vm380, %v2002
      %2067 = vst.msk [vmem:[%s248 + $0x40] sm:$0xff] %vm380, %v2003
      %2068 = vst.msk [vmem:[%s248 + $0x48] sm:$0xff] %vm380, %v2004
      %2069 = vst.msk [vmem:[%s248 + $0x50] sm:$0xff] %vm380, %v2005
      %2070 = vst.msk [vmem:[%s248 + $0x58] sm:$0xff] %vm380, %v2006
      %2071 = vst.msk [vmem:[%s248 + $0x60] sm:$0xff] %vm380, %v2007
      %2072 = vst.msk [vmem:[%s248 + $0x68] sm:$0xff] %vm380, %v2008
      %2073 = vst.msk [vmem:[%s248 + $0x70] sm:$0xff] %vm380, %v2009
      %2074 = vst.msk [vmem:[%s248 + $0x78] sm:$0xff] %vm380, %v2010
      %2075 = vst.msk [vmem:[%s248 + $0x80] sm:$0xff] %vm380, %v2011
      %2076 = vst.msk [vmem:[%s248 + $0x88] sm:$0xff] %vm380, %v2012
      %2077 = vst.msk [vmem:[%s248 + $0x90] sm:$0xff] %vm380, %v2013
      %2078 = vst.msk [vmem:[%s248 + $0x98] sm:$0xff] %vm380, %v2014
      %2079 = vst.msk [vmem:[%s248 + $0xa0] sm:$0xff] %vm380, %v2015
      %2080 = vst.msk [vmem:[%s248 + $0xa8] sm:$0xff] %vm380, %v2016
      %2081 = vst.msk [vmem:[%s248 + $0xb0] sm:$0xff] %vm380, %v2017
      %2082 = vst.msk [vmem:[%s248 + $0xb8] sm:$0xff] %vm380, %v2018
      %2083 = vst.msk [vmem:[%s248 + $0xc0] sm:$0xff] %vm380, %v2019
      %2084 = vst.msk [vmem:[%s248 + $0xc8] sm:$0xff] %vm380, %v2020
      %2085 = vst.msk [vmem:[%s248 + $0xd0] sm:$0xff] %vm380, %v2021
      %2086 = vst.msk [vmem:[%s248 + $0xd8] sm:$0xff] %vm380, %v2022
      %2087 = vst.msk [vmem:[%s248 + $0xe0] sm:$0xff] %vm380, %v2023
      %2088 = vst.msk [vmem:[%s248 + $0xe8] sm:$0xff] %vm380, %v2024
      %2089 = vst.msk [vmem:[%s248 + $0xf0] sm:$0xff] %vm380, %v2025
      %2090 = vst.msk [vmem:[%s248 + $0xf8] sm:$0xff] %vm380, %v2026
      %2091 = vst.msk [vmem:[%s248 + $0x100] sm:$0xff] %vm380, %v2027
      %2092 = vst.msk [vmem:[%s248 + $0x108] sm:$0xff] %vm380, %v2028
      %2093 = vst.msk [vmem:[%s248 + $0x110] sm:$0xff] %vm380, %v2029
      %2094 = vst.msk [vmem:[%s248 + $0x118] sm:$0xff] %vm380, %v2030
      %2095 = vst.msk [vmem:[%s248 + $0x120] sm:$0xff] %vm380, %v2031
      %2096 = vst.msk [vmem:[%s248 + $0x128] sm:$0xff] %vm380, %v2032
      %2097 = vst.msk [vmem:[%s248 + $0x130] sm:$0xff] %vm380, %v2033
      %2098 = vst.msk [vmem:[%s248 + $0x138] sm:$0xff] %vm380, %v2034
      %2099 = vst.msk [vmem:[%s248 + $0x140] sm:$0xff] %vm380, %v2035
      %2100 = vst.msk [vmem:[%s248 + $0x148] sm:$0xff] %vm380, %v2036
      %2101 = vst.msk [vmem:[%s248 + $0x150] sm:$0xff] %vm380, %v2037
      %2102 = vst.msk [vmem:[%s248 + $0x158] sm:$0xff] %vm380, %v2038
      %2103 = vst.msk [vmem:[%s248 + $0x160] sm:$0xff] %vm380, %v2039
      %2104 = vst.msk [vmem:[%s248 + $0x168] sm:$0xff] %vm380, %v2040
      %2105 = vst.msk [vmem:[%s248 + $0x170] sm:$0xff] %vm380, %v2041
      %2106 = vst.msk [vmem:[%s248 + $0x178] sm:$0xff] %vm380, %v2042
      %2107 = vst.msk [vmem:[%s248 + $0x180] sm:$0xff] %vm380, %v2043
      %2108 = vst.msk [vmem:[%s248 + $0x188] sm:$0xff] %vm380, %v2044
      %2109 = vst.msk [vmem:[%s248 + $0x190] sm:$0xff] %vm380, %v2045
      %2110 = vst.msk [vmem:[%s248 + $0x198] sm:$0xff] %vm380, %v2046
      %2111 = vst.msk [vmem:[%s248 + $0x1a0] sm:$0xff] %vm380, %v2047
      %2112 = vst.msk [vmem:[%s248 + $0x1a8] sm:$0xff] %vm380, %v2048
      %2113 = vst.msk [vmem:[%s248 + $0x1b0] sm:$0xff] %vm380, %v2049
      %2114 = vst.msk [vmem:[%s248 + $0x1b8] sm:$0xff] %vm380, %v2050
      %2115 = vst.msk [vmem:[%s248 + $0x1c0] sm:$0xff] %vm380, %v2051
      %2116 = vst.msk [vmem:[%s248 + $0x1c8] sm:$0xff] %vm380, %v2052
      %2117 = vst.msk [vmem:[%s248 + $0x1d0] sm:$0xff] %vm380, %v2053
      %2118 = vst.msk [vmem:[%s248 + $0x1d8] sm:$0xff] %vm380, %v2054
      %2119 = vst.msk [vmem:[%s248 + $0x1e0] sm:$0xff] %vm380, %v2055
      %2120 = vst.msk [vmem:[%s248 + $0x1e8] sm:$0xff] %vm380, %v2056
      %2121 = vst.msk [vmem:[%s248 + $0x1f0] sm:$0xff] %vm380, %v2057
      %2122 = vst.msk [vmem:[%s248 + $0x1f8] sm:$0xff] %vm380, %v2058
      %s2123 = smul.u32 64, %s16
      %p2124 = scmp.lt.s32.totalorder %s2123, 575
      %s2125 = scalar_select %p2124, %s2123, 575
      %s2126 = smul.addr %s2125, 8
      %s2127 = scalar_lea.vmem %s5, %s2126
      // Predicated region
      $region41: #{esa_forward.27} parent=39 // pred_check
        %p2128 = pneg %p149
      $region42: #{esa_forward.27} parent=39 // pred_check_branch
        %2130 = sbr.rel (%p2128) target = $region44
      $region43: #{esa_forward.27} parent=39 // pred_region
        %s2131 = smul.u32 64, %s16
      $region44: #{esa_forward.27} parent=39 // pred_fallthru
        _
    $region40: #{esa_forward.27} parent=5 // pred_fallthru
      _
    %p2132 = scmp.le.s32.totalorder 2, %s11
    // Predicated region
    $region45: #{esa_forward.27} parent=5 // pred_check
      %p2133 = pneg %p2132
    $region46: #{esa_forward.27} parent=5 // pred_check_branch
      %2135 = sbr.rel (%p2133) target = $region48
    $region47: #{esa_forward.27} parent=5 // pred_region
      %s2136 = ssub.s32 %s11, 2
      // Predicated region
      $region49: #{esa_forward.27} parent=47 // pred_check
        %p2137 = pneg %p155
      $region50: #{esa_forward.27} parent=47 // pred_check_branch
        %2139 = sbr.rel (%p2137) target = $region52
      $region51: #{esa_forward.27} parent=47 // pred_region
        %s2140 = smul.u32 64, %s17
        %p2141 = scmp.lt.s32.totalorder %s2140, 575
        %s2142 = scalar_select %p2141, %s2140, 575
        %s2143 = smul.addr %s2142, 8
        %s2144 = scalar_lea.vmem %s5, %s2143
      $region52: #{esa_forward.27} parent=47 // pred_fallthru
        _
    $region48: #{esa_forward.27} parent=5 // pred_fallthru
      _
  $region6: #{esa_forward.27} parent=0 // loop_footer
    %s15 = sadd.s32 1, %s11
  $region7: #{esa_forward.27} parent=0 // loop_footer_branch
    %10 = sbr.rel target = $region3
  $region8: #{esa_forward.27} parent=0 // loop_exit
    _

</llo_original>
